<compile_context>
chip_gen: v6e
topology: v6e:2x2x1
jax: 0.10.0
libtpu: 0.0.40
codegen_flags: <defaults>
</compile_context>

<pallas_src>
import numpy as np

import jax
import jax.numpy as jnp
from jax.experimental import pallas as pl
from jax.experimental.pallas import tpu as pltpu


def _round_up(n, m):
    return ((n + m - 1) // m) * m


# ----------------------------------------------------------------------------
# The single fused Pallas kernel
# ----------------------------------------------------------------------------
def _autoencoder_kernel(x_ref,
                        l1, m1, c1, l2, m2, c2, l3, m3, c3,
                        s4, w4, c4, w5, c5,
                        t6, q6,
                        l7, m7, c7, l8, m8, c8, l9, m9, c9,
                        enc_ref, b1_ref, b2_ref, dec_ref):
    """Everything VMEM-resident; only bf16 2-D matmuls (f32 acc) + bias + act."""

    def stage(x_bf, l_ref, m_ref, bias_ref, act):
        acc = None
        for i in range(4):                       # 4 kernel-row taps (static unroll)
            sel = l_ref[i].astype(jnp.bfloat16)  # 0/1 row-tap selection (exact)
            rows = jnp.dot(sel, x_bf, preferred_element_type=jnp.float32)
            part = jnp.dot(rows.astype(jnp.bfloat16), m_ref[i],
                           preferred_element_type=jnp.float32)
            acc = part if acc is None else acc + part
        if bias_ref is not None:
            acc = acc + bias_ref[...]
        if act == "relu":
            acc = jnp.maximum(acc, 0.0)
        elif act == "tanh":
            acc = jnp.tanh(acc)
        return acc

    x = x_ref[...]                                            # (B*32, 128) bf16
    h = stage(x, l1, m1, c1, "relu")                          # (B*16, 256)
    h = stage(h.astype(jnp.bfloat16), l2, m2, c2, "relu")     # (B*8 , 256)
    enc = stage(h.astype(jnp.bfloat16), l3, m3, c3, "relu")   # (B*4 , 256)
    enc_ref[...] = enc

    # bn1 (the NCHW flatten is folded into s4 / w4), bn2
    hb1 = stage(enc.astype(jnp.bfloat16), s4, w4, c4, "relu")     # (rpad, 512)
    b1_ref[...] = hb1
    hb2 = jnp.dot(hb1.astype(jnp.bfloat16), w5[...],
                  preferred_element_type=jnp.float32) + c5[...]
    hb2 = jnp.maximum(hb2, 0.0)                                   # (rpad, 384)
    b2_ref[...] = hb2

    # un-flatten (B,384) -> decoder layout, then 3 transposed convs
    d = stage(hb2.astype(jnp.bfloat16), t6, q6, None, "none")     # (B*4 , 128)
    d = stage(d.astype(jnp.bfloat16), l7, m7, c7, "relu")         # (B*8 , 128)
    d = stage(d.astype(jnp.bfloat16), l8, m8, c8, "relu")         # (B*16, 128)
    d = stage(d.astype(jnp.bfloat16), l9, m9, c9, "tanh")         # (B*32, 128)
    dec_ref[...] = d


# ----------------------------------------------------------------------------
# One-time weight packing (outside jit): structured matrices, padding, bf16
# ----------------------------------------------------------------------------
def _pack_conv(w_oihw, bias, H, W, B, k_pad, n_pad):
    """nn.Conv2d(k=4, s=2, p=1): out = sum_i (L_i @ X) @ M_i + bias."""
    w = np.asarray(w_oihw, np.float32)
    Cout, Cin, KH, KW = w.shape
    OH, OW = H // 2, W // 2
    L = np.zeros((KH, B * OH, B * H), np.float32)
    M = np.zeros((KH, k_pad, n_pad), np.float32)
    for i in range(KH):
        for b in range(B):
            for oh in range(OH):
                h = 2 * oh + i - 1
                if 0 <= h < H:
                    L[i, b * OH + oh, b * H + h] = 1.0
        for ow in range(OW):
            for j in range(KW):
                win = 2 * ow + j - 1
                if 0 <= win < W:
                    M[i, win * Cin:(win + 1) * Cin,
                      ow * Cout:(ow + 1) * Cout] = w[:, :, i, j].T
    brow = np.zeros((1, n_pad), np.float32)
    brow[0, :OW * Cout] = np.tile(np.asarray(bias, np.float32), OW)
    return L, M, brow


def _pack_deconv(w_iohw, bias, IH, IW, B, k_pad, n_pad):
    """nn.ConvTranspose2d(k=4, s=2, p=1): oh = 2*ih + kh - 1, ow = 2*iw + kw - 1."""
    w = np.asarray(w_iohw, np.float32)
    Cin, Cout, KH, KW = w.shape
    OH, OW = 2 * IH, 2 * IW
    L = np.zeros((KH, B * OH, B * IH), np.float32)
    M = np.zeros((KH, k_pad, n_pad), np.float32)
    for i in range(KH):
        for b in range(B):
            for ih in range(IH):
                oh = 2 * ih + i - 1
                if 0 <= oh < OH:
                    L[i, b * OH + oh, b * IH + ih] = 1.0
        for iw in range(IW):
            for j in range(KW):
                ow = 2 * iw + j - 1
                if 0 <= ow < OW:
                    M[i, iw * Cin:(iw + 1) * Cin,
                      ow * Cout:(ow + 1) * Cout] = w[:, :, i, j]
    brow = np.zeros((1, n_pad), np.float32)
    brow[0, :OW * Cout] = np.tile(np.asarray(bias, np.float32), OW)
    return L, M, brow


def _pack_bn1(w_in_out, bias, B, rpad, k_pad):
    """Linear(768,512) with torch NCHW flatten folded in: 4 (h) terms."""
    Wt = np.asarray(w_in_out, np.float32)            # (768, 512), index (c*16+h*4+w, n)
    S = np.zeros((4, rpad, 4 * B), np.float32)
    Wh = np.zeros((4, k_pad, 512), np.float32)
    for h in range(4):
        for b in range(B):
            S[h, b, b * 4 + h] = 1.0
        idx = np.array([c * 16 + h * 4 + w for w in range(4) for c in range(48)])
        Wh[h, :192, :] = Wt[idx, :]
    return S, Wh, np.asarray(bias, np.float32).reshape(1, 512)


def _pack_decin(B, rpad):
    """(B,384) -> decoder layout (rows=(b,h), cols=(w,c)), torch .view(B,24,4,4)."""
    T = np.zeros((4, 4 * B, rpad), np.float32)
    Q = np.zeros((4, 384, 128), np.float32)
    for h in range(4):
        for b in range(B):
            T[h, b * 4 + h, b] = 1.0
        for w in range(4):
            for c in range(24):
                Q[h, c * 16 + h * 4 + w, w * 24 + c] = 1.0
    return T, Q


def init_params(key):
    """Deterministic synthetic parameters, torch layouts (bn weights stored as W.T)."""
    def u(k, shape, fan_in):
        bound = 1.0 / jnp.sqrt(jnp.float32(fan_in))
        return jax.random.uniform(k, shape, jnp.float32, -bound, bound)

    ks = jax.random.split(key, 16)
    p = {}
    p["enc1_w"] = u(ks[0], (12, 3, 4, 4), 3 * 16);    p["enc1_b"] = u(ks[1], (12,), 3 * 16)
    p["enc2_w"] = u(ks[2], (24, 12, 4, 4), 12 * 16);  p["enc2_b"] = u(ks[3], (24,), 12 * 16)
    p["enc3_w"] = u(ks[4], (48, 24, 4, 4), 24 * 16);  p["enc3_b"] = u(ks[5], (48,), 24 * 16)
    p["bn1_w"] = u(ks[6], (48 * 4 * 4, 512), 768);    p["bn1_b"] = u(ks[7], (512,), 768)
    p["bn2_w"] = u(ks[8], (512, 384), 512);           p["bn2_b"] = u(ks[9], (384,), 512)
    p["dec1_w"] = u(ks[10], (24, 12, 4, 4), 24 * 16); p["dec1_b"] = u(ks[11], (12,), 24 * 16)
    p["dec2_w"] = u(ks[12], (12, 6, 4, 4), 12 * 16);  p["dec2_b"] = u(ks[13], (6,), 12 * 16)
    p["dec3_w"] = u(ks[14], (6, 3, 4, 4), 6 * 16);    p["dec3_b"] = u(ks[15], (3,), 6 * 16)
    return p


def pack_params(params, batch):
    """Pre-pack everything once for a fixed batch size (selection matrices are B-dependent)."""
    B = batch
    rpad = _round_up(max(B, 1), 8)

    l1, m1, c1 = _pack_conv(params["enc1_w"], params["enc1_b"], 32, 32, B, 128, 256)
    l2, m2, c2 = _pack_conv(params["enc2_w"], params["enc2_b"], 16, 16, B, 256, 256)
    l3, m3, c3 = _pack_conv(params["enc3_w"], params["enc3_b"], 8, 8, B, 256, 256)
    s4, w4, c4 = _pack_bn1(params["bn1_w"], params["bn1_b"], B, rpad, 256)
    w5 = np.asarray(params["bn2_w"], np.float32)
    c5 = np.asarray(params["bn2_b"], np.float32).reshape(1, 384)
    t6, q6 = _pack_decin(B, rpad)
    l7, m7, c7 = _pack_deconv(params["dec1_w"], params["dec1_b"], 4, 4, B, 128, 128)
    l8, m8, c8 = _pack_deconv(params["dec2_w"], params["dec2_b"], 8, 8, B, 128, 128)
    l9, m9, c9 = _pack_deconv(params["dec3_w"], params["dec3_b"], 16, 16, B, 128, 128)

    bf = lambda a: jnp.asarray(a, jnp.bfloat16)   # MXU operands
    f3 = lambda a: jnp.asarray(a, jnp.float32)    # selection matrices / biases

    arrays = (
        f3(l1), bf(m1), f3(c1),
        f3(l2), bf(m2), f3(c2),
        f3(l3), bf(m3), f3(c3),
        f3(s4), bf(w4), f3(c4),
        bf(w5), f3(c5),
        f3(t6), bf(q6),
        f3(l7), bf(m7), f3(c7),
        f3(l8), bf(m8), f3(c8),
        f3(l9), bf(m9), f3(c9),
    )
    return {"arrays": arrays, "batch": B, "rpad": rpad}


# ----------------------------------------------------------------------------
# Forward builder: one pallas_call + tiny NCHW <-> 2-D glue
# ----------------------------------------------------------------------------
def make_forward(packed):
    arrays = packed["arrays"]
    B = packed["batch"]
    rpad = packed["rpad"]

    out_shape = (
        jax.ShapeDtypeStruct((4 * B, 256), jnp.float32),    # encoder output (rows=(b,h))
        jax.ShapeDtypeStruct((rpad, 512), jnp.float32),     # enc_b1 (row-padded)
        jax.ShapeDtypeStruct((rpad, 384), jnp.float32),     # enc_b2 (row-padded)
        jax.ShapeDtypeStruct((32 * B, 128), jnp.float32),   # decoder output
    )

    # advisory cost estimate (flops of all matmuls, tanh count, total bytes)
    flops = 2 * rpad * 512 * 384
    for li, mi in ((0, 1), (3, 4), (6, 7), (9, 10), (14, 15), (16, 17), (19, 20), (22, 23)):
        taps, r_out, r_in = arrays[li].shape
        _, k, n = arrays[mi].shape
        flops += taps * 2 * (r_out * r_in * k + r_out * k * n)
    bytes_accessed = (32 * B * 128 * 2
                      + sum(int(np.prod(a.shape)) * a.dtype.itemsize for a in arrays)
                      + sum(int(np.prod(s.shape)) * 4 for s in out_shape))
    transcendentals = 32 * B * 128

    n_in = 1 + len(arrays)
    call = pl.pallas_call(
        _autoencoder_kernel,
        out_shape=out_shape,
        in_specs=[pl.BlockSpec(memory_space=pltpu.MemorySpace.VMEM)] * n_in,
        out_specs=tuple(pl.BlockSpec(memory_space=pltpu.MemorySpace.VMEM) for _ in out_shape),
        compiler_params=pltpu.CompilerParams(vmem_limit_bytes=32 * 1024 * 1024),
        cost_estimate=pl.CostEstimate(flops=int(flops),
                                      transcendentals=int(transcendentals),
                                      bytes_accessed=int(bytes_accessed)),
    )

    @jax.jit
    def _forward(x_nchw, arrs):
        assert x_nchw.shape == (B, 3, 32, 32)
        # NCHW -> rows=(b, image_row), cols=(image_col, channel); lane-pad; bf16.
        x2d = x_nchw.transpose(0, 2, 3, 1).reshape(32 * B, 32 * 3)
        x2d = jnp.pad(x2d, ((0, 0), (0, 32))).astype(jnp.bfloat16)      # 96 -> 128 lanes

        enc2d, encb1, encb2, dec2d = call(x2d, *arrs)

        enc = enc2d[:, :192].reshape(B, 4, 4, 48).transpose(0, 3, 1, 2)   # (B,48,4,4)
        dec = dec2d[:, :96].reshape(B, 32, 32, 3).transpose(0, 3, 1, 2)   # (B,3,32,32)
        return enc, dec, (encb1[:B], encb2[:B])

    return lambda x: _forward(x, arrays)


# ----------------------------------------------------------------------------
# Plain-JAX f32 reference (for a numerical self-check only)
# ----------------------------------------------------------------------------
def reference_forward(params, x_nchw):
    relu = jax.nn.relu

    def conv(h, w, b):
        return jax.lax.conv_general_dilated(
            h, jnp.transpose(w, (2, 3, 1, 0)), (2, 2), [(1, 1), (1, 1)],
            dimension_numbers=("NHWC", "HWIO", "NHWC")) + b

    def deconv(h, w, b):
        wf = jnp.transpose(jnp.flip(w, (2, 3)), (2, 3, 0, 1))
        return jax.lax.conv_general_dilated(
            h, wf, (1, 1), [(2, 2), (2, 2)], lhs_dilation=(2, 2),
            dimension_numbers=("NHWC", "HWIO", "NHWC")) + b

    x = x_nchw.transpose(0, 2, 3, 1)
    h1 = relu(conv(x, params["enc1_w"], params["enc1_b"]))
    h2 = relu(conv(h1, params["enc2_w"], params["enc2_b"]))
    enc_nhwc = relu(conv(h2, params["enc3_w"], params["enc3_b"]))
    enc = enc_nhwc.transpose(0, 3, 1, 2)
    B = x_nchw.shape[0]
    flat = enc.reshape(B, 48 * 4 * 4)
    eb1 = relu(flat @ params["bn1_w"] + params["bn1_b"])
    eb2 = relu(eb1 @ params["bn2_w"] + params["bn2_b"])
    d0 = eb2.reshape(B, 24, 4, 4).transpose(0, 2, 3, 1)
    d1 = relu(deconv(d0, params["dec1_w"], params["dec1_b"]))
    d2 = relu(deconv(d1, params["dec2_w"], params["dec2_b"]))
    d3 = jnp.tanh(deconv(d2, params["dec3_w"], params["dec3_b"]))
    dec = d3.transpose(0, 3, 1, 2)
    return enc, dec, (eb1, eb2)


if __name__ == "__main__":
    key = jax.random.PRNGKey(0)
    xkey, pkey = jax.random.split(key)
    # 32x32 spatial is forced by bn1 = Linear(48*4*4, 512) after 3 stride-2 convs.
    x = jax.random.normal(xkey, (2, 3, 32, 32), jnp.float32)
    params = init_params(pkey)

    packed = pack_params(params, batch=2)
    forward = make_forward(packed)

    enc, dec, (enc_b1, enc_b2) = forward(x)
    jax.block_until_ready((enc, dec, enc_b1, enc_b2))

    assert enc.shape == (2, 48, 4, 4)
    assert dec.shape == (2, 3, 32, 32)
    assert enc_b1.shape == (2, 512)
    assert enc_b2.shape == (2, 384)

    # numerical self-check vs plain-JAX f32 reference (generous bf16-MXU tolerance)
    r_enc, r_dec, (r_b1, r_b2) = jax.jit(reference_forward)(params, x)
    for got, ref in ((enc, r_enc), (dec, r_dec), (enc_b1, r_b1), (enc_b2, r_b2)):
        np.testing.assert_allclose(np.asarray(got), np.asarray(ref), rtol=5e-2, atol=5e-2)

    print("KERNEL_OK")
</pallas_src>

<mosaic_0001>
module attributes {stable_mosaic.version = 11 : i64} {
  func.func @_autoencoder_kernel(%arg0: memref<64x128xbf16, #tpu.memory_space<vmem>>, %arg1: memref<4x32x64xf32, #tpu.memory_space<vmem>>, %arg2: memref<4x128x256xbf16, #tpu.memory_space<vmem>>, %arg3: memref<1x256xf32, #tpu.memory_space<vmem>>, %arg4: memref<4x16x32xf32, #tpu.memory_space<vmem>>, %arg5: memref<4x256x256xbf16, #tpu.memory_space<vmem>>, %arg6: memref<1x256xf32, #tpu.memory_space<vmem>>, %arg7: memref<4x8x16xf32, #tpu.memory_space<vmem>>, %arg8: memref<4x256x256xbf16, #tpu.memory_space<vmem>>, %arg9: memref<1x256xf32, #tpu.memory_space<vmem>>, %arg10: memref<4x8x8xf32, #tpu.memory_space<vmem>>, %arg11: memref<4x256x512xbf16, #tpu.memory_space<vmem>>, %arg12: memref<1x512xf32, #tpu.memory_space<vmem>>, %arg13: memref<512x384xbf16, #tpu.memory_space<vmem>>, %arg14: memref<1x384xf32, #tpu.memory_space<vmem>>, %arg15: memref<4x8x8xf32, #tpu.memory_space<vmem>>, %arg16: memref<4x384x128xbf16, #tpu.memory_space<vmem>>, %arg17: memref<4x16x8xf32, #tpu.memory_space<vmem>>, %arg18: memref<4x128x128xbf16, #tpu.memory_space<vmem>>, %arg19: memref<1x128xf32, #tpu.memory_space<vmem>>, %arg20: memref<4x32x16xf32, #tpu.memory_space<vmem>>, %arg21: memref<4x128x128xbf16, #tpu.memory_space<vmem>>, %arg22: memref<1x128xf32, #tpu.memory_space<vmem>>, %arg23: memref<4x64x32xf32, #tpu.memory_space<vmem>>, %arg24: memref<4x128x128xbf16, #tpu.memory_space<vmem>>, %arg25: memref<1x128xf32, #tpu.memory_space<vmem>>, %arg26: memref<8x256xf32, #tpu.memory_space<vmem>>, %arg27: memref<8x512xf32, #tpu.memory_space<vmem>>, %arg28: memref<8x384xf32, #tpu.memory_space<vmem>>, %arg29: memref<64x128xf32, #tpu.memory_space<vmem>>) attributes {dimension_semantics = [], scalar_prefetch = 0 : i64, scratch_operands = 0 : i64, tpu.core_type = #tpu.core_type<tc>} {
    %c0 = arith.constant 0 : index
    %c0_0 = arith.constant 0 : index
    %0 = vector.load %arg0[%c0, %c0_0] : memref<64x128xbf16, #tpu.memory_space<vmem>>, vector<64x128xbf16>
    %c0_1 = arith.constant 0 : index
    %c0_2 = arith.constant 0 : index
    %c0_3 = arith.constant 0 : index
    %1 = vector.load %arg1[%c0_1, %c0_2, %c0_3] : memref<4x32x64xf32, #tpu.memory_space<vmem>>, vector<1x32x64xf32>
    %2 = vector.shape_cast %1 : vector<1x32x64xf32> to vector<32x64xf32>
    %3 = arith.truncf %2 : vector<32x64xf32> to vector<32x64xbf16>
    %cst = arith.constant dense<0.000000e+00> : vector<32x128xf32>
    %4 = tpu.matmul %3, %0, %cst {dimension_numbers = #tpu.dot_dimension_numbers<[1], [0], [0], [1], [0, 0, 1, 1], [], []>} : vector<32x64xbf16>, vector<64x128xbf16>, vector<32x128xf32> -> vector<32x128xf32>
    %5 = arith.truncf %4 : vector<32x128xf32> to vector<32x128xbf16>
    %c0_4 = arith.constant 0 : index
    %c0_5 = arith.constant 0 : index
    %c0_6 = arith.constant 0 : index
    %6 = vector.load %arg2[%c0_4, %c0_5, %c0_6] : memref<4x128x256xbf16, #tpu.memory_space<vmem>>, vector<1x128x256xbf16>
    %7 = vector.shape_cast %6 : vector<1x128x256xbf16> to vector<128x256xbf16>
    %cst_7 = arith.constant dense<0.000000e+00> : vector<32x256xf32>
    %8 = tpu.matmul %5, %7, %cst_7 {dimension_numbers = #tpu.dot_dimension_numbers<[1], [0], [0], [1], [0, 0, 1, 1], [], []>} : vector<32x128xbf16>, vector<128x256xbf16>, vector<32x256xf32> -> vector<32x256xf32>
    %c1 = arith.constant 1 : index
    %c0_8 = arith.constant 0 : index
    %c0_9 = arith.constant 0 : index
    %9 = vector.load %arg1[%c1, %c0_8, %c0_9] : memref<4x32x64xf32, #tpu.memory_space<vmem>>, vector<1x32x64xf32>
    %10 = vector.shape_cast %9 : vector<1x32x64xf32> to vector<32x64xf32>
    %11 = arith.truncf %10 : vector<32x64xf32> to vector<32x64xbf16>
    %cst_10 = arith.constant dense<0.000000e+00> : vector<32x128xf32>
    %12 = tpu.matmul %11, %0, %cst_10 {dimension_numbers = #tpu.dot_dimension_numbers<[1], [0], [0], [1], [0, 0, 1, 1], [], []>} : vector<32x64xbf16>, vector<64x128xbf16>, vector<32x128xf32> -> vector<32x128xf32>
    %13 = arith.truncf %12 : vector<32x128xf32> to vector<32x128xbf16>
    %c1_11 = arith.constant 1 : index
    %c0_12 = arith.constant 0 : index
    %c0_13 = arith.constant 0 : index
    %14 = vector.load %arg2[%c1_11, %c0_12, %c0_13] : memref<4x128x256xbf16, #tpu.memory_space<vmem>>, vector<1x128x256xbf16>
    %15 = vector.shape_cast %14 : vector<1x128x256xbf16> to vector<128x256xbf16>
    %cst_14 = arith.constant dense<0.000000e+00> : vector<32x256xf32>
    %16 = tpu.matmul %13, %15, %cst_14 {dimension_numbers = #tpu.dot_dimension_numbers<[1], [0], [0], [1], [0, 0, 1, 1], [], []>} : vector<32x128xbf16>, vector<128x256xbf16>, vector<32x256xf32> -> vector<32x256xf32>
    %17 = arith.addf %8, %16 : vector<32x256xf32>
    %c2 = arith.constant 2 : index
    %c0_15 = arith.constant 0 : index
    %c0_16 = arith.constant 0 : index
    %18 = vector.load %arg1[%c2, %c0_15, %c0_16] : memref<4x32x64xf32, #tpu.memory_space<vmem>>, vector<1x32x64xf32>
    %19 = vector.shape_cast %18 : vector<1x32x64xf32> to vector<32x64xf32>
    %20 = arith.truncf %19 : vector<32x64xf32> to vector<32x64xbf16>
    %cst_17 = arith.constant dense<0.000000e+00> : vector<32x128xf32>
    %21 = tpu.matmul %20, %0, %cst_17 {dimension_numbers = #tpu.dot_dimension_numbers<[1], [0], [0], [1], [0, 0, 1, 1], [], []>} : vector<32x64xbf16>, vector<64x128xbf16>, vector<32x128xf32> -> vector<32x128xf32>
    %22 = arith.truncf %21 : vector<32x128xf32> to vector<32x128xbf16>
    %c2_18 = arith.constant 2 : index
    %c0_19 = arith.constant 0 : index
    %c0_20 = arith.constant 0 : index
    %23 = vector.load %arg2[%c2_18, %c0_19, %c0_20] : memref<4x128x256xbf16, #tpu.memory_space<vmem>>, vector<1x128x256xbf16>
    %24 = vector.shape_cast %23 : vector<1x128x256xbf16> to vector<128x256xbf16>
    %cst_21 = arith.constant dense<0.000000e+00> : vector<32x256xf32>
    %25 = tpu.matmul %22, %24, %cst_21 {dimension_numbers = #tpu.dot_dimension_numbers<[1], [0], [0], [1], [0, 0, 1, 1], [], []>} : vector<32x128xbf16>, vector<128x256xbf16>, vector<32x256xf32> -> vector<32x256xf32>
    %26 = arith.addf %17, %25 : vector<32x256xf32>
    %c3 = arith.constant 3 : index
    %c0_22 = arith.constant 0 : index
    %c0_23 = arith.constant 0 : index
    %27 = vector.load %arg1[%c3, %c0_22, %c0_23] : memref<4x32x64xf32, #tpu.memory_space<vmem>>, vector<1x32x64xf32>
    %28 = vector.shape_cast %27 : vector<1x32x64xf32> to vector<32x64xf32>
    %29 = arith.truncf %28 : vector<32x64xf32> to vector<32x64xbf16>
    %cst_24 = arith.constant dense<0.000000e+00> : vector<32x128xf32>
    %30 = tpu.matmul %29, %0, %cst_24 {dimension_numbers = #tpu.dot_dimension_numbers<[1], [0], [0], [1], [0, 0, 1, 1], [], []>} : vector<32x64xbf16>, vector<64x128xbf16>, vector<32x128xf32> -> vector<32x128xf32>
    %31 = arith.truncf %30 : vector<32x128xf32> to vector<32x128xbf16>
    %c3_25 = arith.constant 3 : index
    %c0_26 = arith.constant 0 : index
    %c0_27 = arith.constant 0 : index
    %32 = vector.load %arg2[%c3_25, %c0_26, %c0_27] : memref<4x128x256xbf16, #tpu.memory_space<vmem>>, vector<1x128x256xbf16>
    %33 = vector.shape_cast %32 : vector<1x128x256xbf16> to vector<128x256xbf16>
    %cst_28 = arith.constant dense<0.000000e+00> : vector<32x256xf32>
    %34 = tpu.matmul %31, %33, %cst_28 {dimension_numbers = #tpu.dot_dimension_numbers<[1], [0], [0], [1], [0, 0, 1, 1], [], []>} : vector<32x128xbf16>, vector<128x256xbf16>, vector<32x256xf32> -> vector<32x256xf32>
    %35 = arith.addf %26, %34 : vector<32x256xf32>
    %c0_29 = arith.constant 0 : index
    %c0_30 = arith.constant 0 : index
    %36 = vector.load %arg3[%c0_29, %c0_30] : memref<1x256xf32, #tpu.memory_space<vmem>>, vector<1x256xf32>
    %37 = vector.broadcast %36 : vector<1x256xf32> to vector<32x256xf32>
    %38 = arith.addf %35, %37 : vector<32x256xf32>
    %cst_31 = arith.constant 0.000000e+00 : f32
    %39 = vector.broadcast %cst_31 : f32 to vector<32x256xf32>
    %40 = arith.maximumf %38, %39 : vector<32x256xf32>
    %41 = arith.truncf %40 : vector<32x256xf32> to vector<32x256xbf16>
    %c0_32 = arith.constant 0 : index
    %c0_33 = arith.constant 0 : index
    %c0_34 = arith.constant 0 : index
    %42 = vector.load %arg4[%c0_32, %c0_33, %c0_34] : memref<4x16x32xf32, #tpu.memory_space<vmem>>, vector<1x16x32xf32>
    %43 = vector.shape_cast %42 : vector<1x16x32xf32> to vector<16x32xf32>
    %44 = arith.truncf %43 : vector<16x32xf32> to vector<16x32xbf16>
    %cst_35 = arith.constant dense<0.000000e+00> : vector<16x256xf32>
    %45 = tpu.matmul %44, %41, %cst_35 {dimension_numbers = #tpu.dot_dimension_numbers<[1], [0], [0], [1], [0, 0, 1, 1], [], []>} : vector<16x32xbf16>, vector<32x256xbf16>, vector<16x256xf32> -> vector<16x256xf32>
    %46 = arith.truncf %45 : vector<16x256xf32> to vector<16x256xbf16>
    %c0_36 = arith.constant 0 : index
    %c0_37 = arith.constant 0 : index
    %c0_38 = arith.constant 0 : index
    %47 = vector.load %arg5[%c0_36, %c0_37, %c0_38] : memref<4x256x256xbf16, #tpu.memory_space<vmem>>, vector<1x256x256xbf16>
    %48 = vector.shape_cast %47 : vector<1x256x256xbf16> to vector<256x256xbf16>
    %cst_39 = arith.constant dense<0.000000e+00> : vector<16x256xf32>
    %49 = tpu.matmul %46, %48, %cst_39 {dimension_numbers = #tpu.dot_dimension_numbers<[1], [0], [0], [1], [0, 0, 1, 1], [], []>} : vector<16x256xbf16>, vector<256x256xbf16>, vector<16x256xf32> -> vector<16x256xf32>
    %c1_40 = arith.constant 1 : index
    %c0_41 = arith.constant 0 : index
    %c0_42 = arith.constant 0 : index
    %50 = vector.load %arg4[%c1_40, %c0_41, %c0_42] : memref<4x16x32xf32, #tpu.memory_space<vmem>>, vector<1x16x32xf32>
    %51 = vector.shape_cast %50 : vector<1x16x32xf32> to vector<16x32xf32>
    %52 = arith.truncf %51 : vector<16x32xf32> to vector<16x32xbf16>
    %cst_43 = arith.constant dense<0.000000e+00> : vector<16x256xf32>
    %53 = tpu.matmul %52, %41, %cst_43 {dimension_numbers = #tpu.dot_dimension_numbers<[1], [0], [0], [1], [0, 0, 1, 1], [], []>} : vector<16x32xbf16>, vector<32x256xbf16>, vector<16x256xf32> -> vector<16x256xf32>
    %54 = arith.truncf %53 : vector<16x256xf32> to vector<16x256xbf16>
    %c1_44 = arith.constant 1 : index
    %c0_45 = arith.constant 0 : index
    %c0_46 = arith.constant 0 : index
    %55 = vector.load %arg5[%c1_44, %c0_45, %c0_46] : memref<4x256x256xbf16, #tpu.memory_space<vmem>>, vector<1x256x256xbf16>
    %56 = vector.shape_cast %55 : vector<1x256x256xbf16> to vector<256x256xbf16>
    %cst_47 = arith.constant dense<0.000000e+00> : vector<16x256xf32>
    %57 = tpu.matmul %54, %56, %cst_47 {dimension_numbers = #tpu.dot_dimension_numbers<[1], [0], [0], [1], [0, 0, 1, 1], [], []>} : vector<16x256xbf16>, vector<256x256xbf16>, vector<16x256xf32> -> vector<16x256xf32>
    %58 = arith.addf %49, %57 : vector<16x256xf32>
    %c2_48 = arith.constant 2 : index
    %c0_49 = arith.constant 0 : index
    %c0_50 = arith.constant 0 : index
    %59 = vector.load %arg4[%c2_48, %c0_49, %c0_50] : memref<4x16x32xf32, #tpu.memory_space<vmem>>, vector<1x16x32xf32>
    %60 = vector.shape_cast %59 : vector<1x16x32xf32> to vector<16x32xf32>
    %61 = arith.truncf %60 : vector<16x32xf32> to vector<16x32xbf16>
    %cst_51 = arith.constant dense<0.000000e+00> : vector<16x256xf32>
    %62 = tpu.matmul %61, %41, %cst_51 {dimension_numbers = #tpu.dot_dimension_numbers<[1], [0], [0], [1], [0, 0, 1, 1], [], []>} : vector<16x32xbf16>, vector<32x256xbf16>, vector<16x256xf32> -> vector<16x256xf32>
    %63 = arith.truncf %62 : vector<16x256xf32> to vector<16x256xbf16>
    %c2_52 = arith.constant 2 : index
    %c0_53 = arith.constant 0 : index
    %c0_54 = arith.constant 0 : index
    %64 = vector.load %arg5[%c2_52, %c0_53, %c0_54] : memref<4x256x256xbf16, #tpu.memory_space<vmem>>, vector<1x256x256xbf16>
    %65 = vector.shape_cast %64 : vector<1x256x256xbf16> to vector<256x256xbf16>
    %cst_55 = arith.constant dense<0.000000e+00> : vector<16x256xf32>
    %66 = tpu.matmul %63, %65, %cst_55 {dimension_numbers = #tpu.dot_dimension_numbers<[1], [0], [0], [1], [0, 0, 1, 1], [], []>} : vector<16x256xbf16>, vector<256x256xbf16>, vector<16x256xf32> -> vector<16x256xf32>
    %67 = arith.addf %58, %66 : vector<16x256xf32>
    %c3_56 = arith.constant 3 : index
    %c0_57 = arith.constant 0 : index
    %c0_58 = arith.constant 0 : index
    %68 = vector.load %arg4[%c3_56, %c0_57, %c0_58] : memref<4x16x32xf32, #tpu.memory_space<vmem>>, vector<1x16x32xf32>
    %69 = vector.shape_cast %68 : vector<1x16x32xf32> to vector<16x32xf32>
    %70 = arith.truncf %69 : vector<16x32xf32> to vector<16x32xbf16>
    %cst_59 = arith.constant dense<0.000000e+00> : vector<16x256xf32>
    %71 = tpu.matmul %70, %41, %cst_59 {dimension_numbers = #tpu.dot_dimension_numbers<[1], [0], [0], [1], [0, 0, 1, 1], [], []>} : vector<16x32xbf16>, vector<32x256xbf16>, vector<16x256xf32> -> vector<16x256xf32>
    %72 = arith.truncf %71 : vector<16x256xf32> to vector<16x256xbf16>
    %c3_60 = arith.constant 3 : index
    %c0_61 = arith.constant 0 : index
    %c0_62 = arith.constant 0 : index
    %73 = vector.load %arg5[%c3_60, %c0_61, %c0_62] : memref<4x256x256xbf16, #tpu.memory_space<vmem>>, vector<1x256x256xbf16>
    %74 = vector.shape_cast %73 : vector<1x256x256xbf16> to vector<256x256xbf16>
    %cst_63 = arith.constant dense<0.000000e+00> : vector<16x256xf32>
    %75 = tpu.matmul %72, %74, %cst_63 {dimension_numbers = #tpu.dot_dimension_numbers<[1], [0], [0], [1], [0, 0, 1, 1], [], []>} : vector<16x256xbf16>, vector<256x256xbf16>, vector<16x256xf32> -> vector<16x256xf32>
    %76 = arith.addf %67, %75 : vector<16x256xf32>
    %c0_64 = arith.constant 0 : index
    %c0_65 = arith.constant 0 : index
    %77 = vector.load %arg6[%c0_64, %c0_65] : memref<1x256xf32, #tpu.memory_space<vmem>>, vector<1x256xf32>
    %78 = vector.broadcast %77 : vector<1x256xf32> to vector<16x256xf32>
    %79 = arith.addf %76, %78 : vector<16x256xf32>
    %cst_66 = arith.constant 0.000000e+00 : f32
    %80 = vector.broadcast %cst_66 : f32 to vector<16x256xf32>
    %81 = arith.maximumf %79, %80 : vector<16x256xf32>
    %82 = arith.truncf %81 : vector<16x256xf32> to vector<16x256xbf16>
    %c0_67 = arith.constant 0 : index
    %c0_68 = arith.constant 0 : index
    %c0_69 = arith.constant 0 : index
    %83 = vector.load %arg7[%c0_67, %c0_68, %c0_69] : memref<4x8x16xf32, #tpu.memory_space<vmem>>, vector<1x8x16xf32>
    %84 = vector.shape_cast %83 : vector<1x8x16xf32> to vector<8x16xf32>
    %85 = arith.truncf %84 : vector<8x16xf32> to vector<8x16xbf16>
    %cst_70 = arith.constant dense<0.000000e+00> : vector<8x256xf32>
    %86 = tpu.matmul %85, %82, %cst_70 {dimension_numbers = #tpu.dot_dimension_numbers<[1], [0], [0], [1], [0, 0, 1, 1], [], []>} : vector<8x16xbf16>, vector<16x256xbf16>, vector<8x256xf32> -> vector<8x256xf32>
    %87 = arith.truncf %86 : vector<8x256xf32> to vector<8x256xbf16>
    %c0_71 = arith.constant 0 : index
    %c0_72 = arith.constant 0 : index
    %c0_73 = arith.constant 0 : index
    %88 = vector.load %arg8[%c0_71, %c0_72, %c0_73] : memref<4x256x256xbf16, #tpu.memory_space<vmem>>, vector<1x256x256xbf16>
    %89 = vector.shape_cast %88 : vector<1x256x256xbf16> to vector<256x256xbf16>
    %cst_74 = arith.constant dense<0.000000e+00> : vector<8x256xf32>
    %90 = tpu.matmul %87, %89, %cst_74 {dimension_numbers = #tpu.dot_dimension_numbers<[1], [0], [0], [1], [0, 0, 1, 1], [], []>} : vector<8x256xbf16>, vector<256x256xbf16>, vector<8x256xf32> -> vector<8x256xf32>
    %c1_75 = arith.constant 1 : index
    %c0_76 = arith.constant 0 : index
    %c0_77 = arith.constant 0 : index
    %91 = vector.load %arg7[%c1_75, %c0_76, %c0_77] : memref<4x8x16xf32, #tpu.memory_space<vmem>>, vector<1x8x16xf32>
    %92 = vector.shape_cast %91 : vector<1x8x16xf32> to vector<8x16xf32>
    %93 = arith.truncf %92 : vector<8x16xf32> to vector<8x16xbf16>
    %cst_78 = arith.constant dense<0.000000e+00> : vector<8x256xf32>
    %94 = tpu.matmul %93, %82, %cst_78 {dimension_numbers = #tpu.dot_dimension_numbers<[1], [0], [0], [1], [0, 0, 1, 1], [], []>} : vector<8x16xbf16>, vector<16x256xbf16>, vector<8x256xf32> -> vector<8x256xf32>
    %95 = arith.truncf %94 : vector<8x256xf32> to vector<8x256xbf16>
    %c1_79 = arith.constant 1 : index
    %c0_80 = arith.constant 0 : index
    %c0_81 = arith.constant 0 : index
    %96 = vector.load %arg8[%c1_79, %c0_80, %c0_81] : memref<4x256x256xbf16, #tpu.memory_space<vmem>>, vector<1x256x256xbf16>
    %97 = vector.shape_cast %96 : vector<1x256x256xbf16> to vector<256x256xbf16>
    %cst_82 = arith.constant dense<0.000000e+00> : vector<8x256xf32>
    %98 = tpu.matmul %95, %97, %cst_82 {dimension_numbers = #tpu.dot_dimension_numbers<[1], [0], [0], [1], [0, 0, 1, 1], [], []>} : vector<8x256xbf16>, vector<256x256xbf16>, vector<8x256xf32> -> vector<8x256xf32>
    %99 = arith.addf %90, %98 : vector<8x256xf32>
    %c2_83 = arith.constant 2 : index
    %c0_84 = arith.constant 0 : index
    %c0_85 = arith.constant 0 : index
    %100 = vector.load %arg7[%c2_83, %c0_84, %c0_85] : memref<4x8x16xf32, #tpu.memory_space<vmem>>, vector<1x8x16xf32>
    %101 = vector.shape_cast %100 : vector<1x8x16xf32> to vector<8x16xf32>
    %102 = arith.truncf %101 : vector<8x16xf32> to vector<8x16xbf16>
    %cst_86 = arith.constant dense<0.000000e+00> : vector<8x256xf32>
    %103 = tpu.matmul %102, %82, %cst_86 {dimension_numbers = #tpu.dot_dimension_numbers<[1], [0], [0], [1], [0, 0, 1, 1], [], []>} : vector<8x16xbf16>, vector<16x256xbf16>, vector<8x256xf32> -> vector<8x256xf32>
    %104 = arith.truncf %103 : vector<8x256xf32> to vector<8x256xbf16>
    %c2_87 = arith.constant 2 : index
    %c0_88 = arith.constant 0 : index
    %c0_89 = arith.constant 0 : index
    %105 = vector.load %arg8[%c2_87, %c0_88, %c0_89] : memref<4x256x256xbf16, #tpu.memory_space<vmem>>, vector<1x256x256xbf16>
    %106 = vector.shape_cast %105 : vector<1x256x256xbf16> to vector<256x256xbf16>
    %cst_90 = arith.constant dense<0.000000e+00> : vector<8x256xf32>
    %107 = tpu.matmul %104, %106, %cst_90 {dimension_numbers = #tpu.dot_dimension_numbers<[1], [0], [0], [1], [0, 0, 1, 1], [], []>} : vector<8x256xbf16>, vector<256x256xbf16>, vector<8x256xf32> -> vector<8x256xf32>
    %108 = arith.addf %99, %107 : vector<8x256xf32>
    %c3_91 = arith.constant 3 : index
    %c0_92 = arith.constant 0 : index
    %c0_93 = arith.constant 0 : index
    %109 = vector.load %arg7[%c3_91, %c0_92, %c0_93] : memref<4x8x16xf32, #tpu.memory_space<vmem>>, vector<1x8x16xf32>
    %110 = vector.shape_cast %109 : vector<1x8x16xf32> to vector<8x16xf32>
    %111 = arith.truncf %110 : vector<8x16xf32> to vector<8x16xbf16>
    %cst_94 = arith.constant dense<0.000000e+00> : vector<8x256xf32>
    %112 = tpu.matmul %111, %82, %cst_94 {dimension_numbers = #tpu.dot_dimension_numbers<[1], [0], [0], [1], [0, 0, 1, 1], [], []>} : vector<8x16xbf16>, vector<16x256xbf16>, vector<8x256xf32> -> vector<8x256xf32>
    %113 = arith.truncf %112 : vector<8x256xf32> to vector<8x256xbf16>
    %c3_95 = arith.constant 3 : index
    %c0_96 = arith.constant 0 : index
    %c0_97 = arith.constant 0 : index
    %114 = vector.load %arg8[%c3_95, %c0_96, %c0_97] : memref<4x256x256xbf16, #tpu.memory_space<vmem>>, vector<1x256x256xbf16>
    %115 = vector.shape_cast %114 : vector<1x256x256xbf16> to vector<256x256xbf16>
    %cst_98 = arith.constant dense<0.000000e+00> : vector<8x256xf32>
    %116 = tpu.matmul %113, %115, %cst_98 {dimension_numbers = #tpu.dot_dimension_numbers<[1], [0], [0], [1], [0, 0, 1, 1], [], []>} : vector<8x256xbf16>, vector<256x256xbf16>, vector<8x256xf32> -> vector<8x256xf32>
    %117 = arith.addf %108, %116 : vector<8x256xf32>
    %c0_99 = arith.constant 0 : index
    %c0_100 = arith.constant 0 : index
    %118 = vector.load %arg9[%c0_99, %c0_100] : memref<1x256xf32, #tpu.memory_space<vmem>>, vector<1x256xf32>
    %119 = vector.broadcast %118 : vector<1x256xf32> to vector<8x256xf32>
    %120 = arith.addf %117, %119 : vector<8x256xf32>
    %cst_101 = arith.constant 0.000000e+00 : f32
    %121 = vector.broadcast %cst_101 : f32 to vector<8x256xf32>
    %122 = arith.maximumf %120, %121 : vector<8x256xf32>
    %c0_102 = arith.constant 0 : index
    %c0_103 = arith.constant 0 : index
    %123 = vector.load %arg26[%c0_102, %c0_103] : memref<8x256xf32, #tpu.memory_space<vmem>>, vector<8x256xf32>
    tpu.vector_store %arg26[%c0_102, %c0_103], %122 {strides = array<i32>} : memref<8x256xf32, #tpu.memory_space<vmem>>, vector<8x256xf32>,
    %124 = arith.truncf %122 : vector<8x256xf32> to vector<8x256xbf16>
    %c0_104 = arith.constant 0 : index
    %c0_105 = arith.constant 0 : index
    %c0_106 = arith.constant 0 : index
    %125 = vector.load %arg10[%c0_104, %c0_105, %c0_106] : memref<4x8x8xf32, #tpu.memory_space<vmem>>, vector<1x8x8xf32>
    %126 = vector.shape_cast %125 : vector<1x8x8xf32> to vector<8x8xf32>
    %127 = arith.truncf %126 : vector<8x8xf32> to vector<8x8xbf16>
    %cst_107 = arith.constant dense<0.000000e+00> : vector<8x256xf32>
    %128 = tpu.matmul %127, %124, %cst_107 {dimension_numbers = #tpu.dot_dimension_numbers<[1], [0], [0], [1], [0, 0, 1, 1], [], []>} : vector<8x8xbf16>, vector<8x256xbf16>, vector<8x256xf32> -> vector<8x256xf32>
    %129 = arith.truncf %128 : vector<8x256xf32> to vector<8x256xbf16>
    %c0_108 = arith.constant 0 : index
    %c0_109 = arith.constant 0 : index
    %c0_110 = arith.constant 0 : index
    %130 = vector.load %arg11[%c0_108, %c0_109, %c0_110] : memref<4x256x512xbf16, #tpu.memory_space<vmem>>, vector<1x256x512xbf16>
    %131 = vector.shape_cast %130 : vector<1x256x512xbf16> to vector<256x512xbf16>
    %cst_111 = arith.constant dense<0.000000e+00> : vector<8x512xf32>
    %132 = tpu.matmul %129, %131, %cst_111 {dimension_numbers = #tpu.dot_dimension_numbers<[1], [0], [0], [1], [0, 0, 1, 1], [], []>} : vector<8x256xbf16>, vector<256x512xbf16>, vector<8x512xf32> -> vector<8x512xf32>
    %c1_112 = arith.constant 1 : index
    %c0_113 = arith.constant 0 : index
    %c0_114 = arith.constant 0 : index
    %133 = vector.load %arg10[%c1_112, %c0_113, %c0_114] : memref<4x8x8xf32, #tpu.memory_space<vmem>>, vector<1x8x8xf32>
    %134 = vector.shape_cast %133 : vector<1x8x8xf32> to vector<8x8xf32>
    %135 = arith.truncf %134 : vector<8x8xf32> to vector<8x8xbf16>
    %cst_115 = arith.constant dense<0.000000e+00> : vector<8x256xf32>
    %136 = tpu.matmul %135, %124, %cst_115 {dimension_numbers = #tpu.dot_dimension_numbers<[1], [0], [0], [1], [0, 0, 1, 1], [], []>} : vector<8x8xbf16>, vector<8x256xbf16>, vector<8x256xf32> -> vector<8x256xf32>
    %137 = arith.truncf %136 : vector<8x256xf32> to vector<8x256xbf16>
    %c1_116 = arith.constant 1 : index
    %c0_117 = arith.constant 0 : index
    %c0_118 = arith.constant 0 : index
    %138 = vector.load %arg11[%c1_116, %c0_117, %c0_118] : memref<4x256x512xbf16, #tpu.memory_space<vmem>>, vector<1x256x512xbf16>
    %139 = vector.shape_cast %138 : vector<1x256x512xbf16> to vector<256x512xbf16>
    %cst_119 = arith.constant dense<0.000000e+00> : vector<8x512xf32>
    %140 = tpu.matmul %137, %139, %cst_119 {dimension_numbers = #tpu.dot_dimension_numbers<[1], [0], [0], [1], [0, 0, 1, 1], [], []>} : vector<8x256xbf16>, vector<256x512xbf16>, vector<8x512xf32> -> vector<8x512xf32>
    %141 = arith.addf %132, %140 : vector<8x512xf32>
    %c2_120 = arith.constant 2 : index
    %c0_121 = arith.constant 0 : index
    %c0_122 = arith.constant 0 : index
    %142 = vector.load %arg10[%c2_120, %c0_121, %c0_122] : memref<4x8x8xf32, #tpu.memory_space<vmem>>, vector<1x8x8xf32>
    %143 = vector.shape_cast %142 : vector<1x8x8xf32> to vector<8x8xf32>
    %144 = arith.truncf %143 : vector<8x8xf32> to vector<8x8xbf16>
    %cst_123 = arith.constant dense<0.000000e+00> : vector<8x256xf32>
    %145 = tpu.matmul %144, %124, %cst_123 {dimension_numbers = #tpu.dot_dimension_numbers<[1], [0], [0], [1], [0, 0, 1, 1], [], []>} : vector<8x8xbf16>, vector<8x256xbf16>, vector<8x256xf32> -> vector<8x256xf32>
    %146 = arith.truncf %145 : vector<8x256xf32> to vector<8x256xbf16>
    %c2_124 = arith.constant 2 : index
    %c0_125 = arith.constant 0 : index
    %c0_126 = arith.constant 0 : index
    %147 = vector.load %arg11[%c2_124, %c0_125, %c0_126] : memref<4x256x512xbf16, #tpu.memory_space<vmem>>, vector<1x256x512xbf16>
    %148 = vector.shape_cast %147 : vector<1x256x512xbf16> to vector<256x512xbf16>
    %cst_127 = arith.constant dense<0.000000e+00> : vector<8x512xf32>
    %149 = tpu.matmul %146, %148, %cst_127 {dimension_numbers = #tpu.dot_dimension_numbers<[1], [0], [0], [1], [0, 0, 1, 1], [], []>} : vector<8x256xbf16>, vector<256x512xbf16>, vector<8x512xf32> -> vector<8x512xf32>
    %150 = arith.addf %141, %149 : vector<8x512xf32>
    %c3_128 = arith.constant 3 : index
    %c0_129 = arith.constant 0 : index
    %c0_130 = arith.constant 0 : index
    %151 = vector.load %arg10[%c3_128, %c0_129, %c0_130] : memref<4x8x8xf32, #tpu.memory_space<vmem>>, vector<1x8x8xf32>
    %152 = vector.shape_cast %151 : vector<1x8x8xf32> to vector<8x8xf32>
    %153 = arith.truncf %152 : vector<8x8xf32> to vector<8x8xbf16>
    %cst_131 = arith.constant dense<0.000000e+00> : vector<8x256xf32>
    %154 = tpu.matmul %153, %124, %cst_131 {dimension_numbers = #tpu.dot_dimension_numbers<[1], [0], [0], [1], [0, 0, 1, 1], [], []>} : vector<8x8xbf16>, vector<8x256xbf16>, vector<8x256xf32> -> vector<8x256xf32>
    %155 = arith.truncf %154 : vector<8x256xf32> to vector<8x256xbf16>
    %c3_132 = arith.constant 3 : index
    %c0_133 = arith.constant 0 : index
    %c0_134 = arith.constant 0 : index
    %156 = vector.load %arg11[%c3_132, %c0_133, %c0_134] : memref<4x256x512xbf16, #tpu.memory_space<vmem>>, vector<1x256x512xbf16>
    %157 = vector.shape_cast %156 : vector<1x256x512xbf16> to vector<256x512xbf16>
    %cst_135 = arith.constant dense<0.000000e+00> : vector<8x512xf32>
    %158 = tpu.matmul %155, %157, %cst_135 {dimension_numbers = #tpu.dot_dimension_numbers<[1], [0], [0], [1], [0, 0, 1, 1], [], []>} : vector<8x256xbf16>, vector<256x512xbf16>, vector<8x512xf32> -> vector<8x512xf32>
    %159 = arith.addf %150, %158 : vector<8x512xf32>
    %c0_136 = arith.constant 0 : index
    %c0_137 = arith.constant 0 : index
    %160 = vector.load %arg12[%c0_136, %c0_137] : memref<1x512xf32, #tpu.memory_space<vmem>>, vector<1x512xf32>
    %161 = vector.broadcast %160 : vector<1x512xf32> to vector<8x512xf32>
    %162 = arith.addf %159, %161 : vector<8x512xf32>
    %cst_138 = arith.constant 0.000000e+00 : f32
    %163 = vector.broadcast %cst_138 : f32 to vector<8x512xf32>
    %164 = arith.maximumf %162, %163 : vector<8x512xf32>
    %c0_139 = arith.constant 0 : index
    %c0_140 = arith.constant 0 : index
    %165 = vector.load %arg27[%c0_139, %c0_140] : memref<8x512xf32, #tpu.memory_space<vmem>>, vector<8x512xf32>
    tpu.vector_store %arg27[%c0_139, %c0_140], %164 {strides = array<i32>} : memref<8x512xf32, #tpu.memory_space<vmem>>, vector<8x512xf32>,
    %166 = arith.truncf %164 : vector<8x512xf32> to vector<8x512xbf16>
    %c0_141 = arith.constant 0 : index
    %c0_142 = arith.constant 0 : index
    %167 = vector.load %arg13[%c0_141, %c0_142] : memref<512x384xbf16, #tpu.memory_space<vmem>>, vector<512x384xbf16>
    %cst_143 = arith.constant dense<0.000000e+00> : vector<8x384xf32>
    %168 = tpu.matmul %166, %167, %cst_143 {dimension_numbers = #tpu.dot_dimension_numbers<[1], [0], [0], [1], [0, 0, 1, 1], [], []>} : vector<8x512xbf16>, vector<512x384xbf16>, vector<8x384xf32> -> vector<8x384xf32>
    %c0_144 = arith.constant 0 : index
    %c0_145 = arith.constant 0 : index
    %169 = vector.load %arg14[%c0_144, %c0_145] : memref<1x384xf32, #tpu.memory_space<vmem>>, vector<1x384xf32>
    %170 = vector.broadcast %169 : vector<1x384xf32> to vector<8x384xf32>
    %171 = arith.addf %168, %170 : vector<8x384xf32>
    %cst_146 = arith.constant 0.000000e+00 : f32
    %172 = vector.broadcast %cst_146 : f32 to vector<8x384xf32>
    %173 = arith.maximumf %171, %172 : vector<8x384xf32>
    %c0_147 = arith.constant 0 : index
    %c0_148 = arith.constant 0 : index
    %174 = vector.load %arg28[%c0_147, %c0_148] : memref<8x384xf32, #tpu.memory_space<vmem>>, vector<8x384xf32>
    tpu.vector_store %arg28[%c0_147, %c0_148], %173 {strides = array<i32>} : memref<8x384xf32, #tpu.memory_space<vmem>>, vector<8x384xf32>,
    %175 = arith.truncf %173 : vector<8x384xf32> to vector<8x384xbf16>
    %c0_149 = arith.constant 0 : index
    %c0_150 = arith.constant 0 : index
    %c0_151 = arith.constant 0 : index
    %176 = vector.load %arg15[%c0_149, %c0_150, %c0_151] : memref<4x8x8xf32, #tpu.memory_space<vmem>>, vector<1x8x8xf32>
    %177 = vector.shape_cast %176 : vector<1x8x8xf32> to vector<8x8xf32>
    %178 = arith.truncf %177 : vector<8x8xf32> to vector<8x8xbf16>
    %cst_152 = arith.constant dense<0.000000e+00> : vector<8x384xf32>
    %179 = tpu.matmul %178, %175, %cst_152 {dimension_numbers = #tpu.dot_dimension_numbers<[1], [0], [0], [1], [0, 0, 1, 1], [], []>} : vector<8x8xbf16>, vector<8x384xbf16>, vector<8x384xf32> -> vector<8x384xf32>
    %180 = arith.truncf %179 : vector<8x384xf32> to vector<8x384xbf16>
    %c0_153 = arith.constant 0 : index
    %c0_154 = arith.constant 0 : index
    %c0_155 = arith.constant 0 : index
    %181 = vector.load %arg16[%c0_153, %c0_154, %c0_155] : memref<4x384x128xbf16, #tpu.memory_space<vmem>>, vector<1x384x128xbf16>
    %182 = vector.shape_cast %181 : vector<1x384x128xbf16> to vector<384x128xbf16>
    %cst_156 = arith.constant dense<0.000000e+00> : vector<8x128xf32>
    %183 = tpu.matmul %180, %182, %cst_156 {dimension_numbers = #tpu.dot_dimension_numbers<[1], [0], [0], [1], [0, 0, 1, 1], [], []>} : vector<8x384xbf16>, vector<384x128xbf16>, vector<8x128xf32> -> vector<8x128xf32>
    %c1_157 = arith.constant 1 : index
    %c0_158 = arith.constant 0 : index
    %c0_159 = arith.constant 0 : index
    %184 = vector.load %arg15[%c1_157, %c0_158, %c0_159] : memref<4x8x8xf32, #tpu.memory_space<vmem>>, vector<1x8x8xf32>
    %185 = vector.shape_cast %184 : vector<1x8x8xf32> to vector<8x8xf32>
    %186 = arith.truncf %185 : vector<8x8xf32> to vector<8x8xbf16>
    %cst_160 = arith.constant dense<0.000000e+00> : vector<8x384xf32>
    %187 = tpu.matmul %186, %175, %cst_160 {dimension_numbers = #tpu.dot_dimension_numbers<[1], [0], [0], [1], [0, 0, 1, 1], [], []>} : vector<8x8xbf16>, vector<8x384xbf16>, vector<8x384xf32> -> vector<8x384xf32>
    %188 = arith.truncf %187 : vector<8x384xf32> to vector<8x384xbf16>
    %c1_161 = arith.constant 1 : index
    %c0_162 = arith.constant 0 : index
    %c0_163 = arith.constant 0 : index
    %189 = vector.load %arg16[%c1_161, %c0_162, %c0_163] : memref<4x384x128xbf16, #tpu.memory_space<vmem>>, vector<1x384x128xbf16>
    %190 = vector.shape_cast %189 : vector<1x384x128xbf16> to vector<384x128xbf16>
    %cst_164 = arith.constant dense<0.000000e+00> : vector<8x128xf32>
    %191 = tpu.matmul %188, %190, %cst_164 {dimension_numbers = #tpu.dot_dimension_numbers<[1], [0], [0], [1], [0, 0, 1, 1], [], []>} : vector<8x384xbf16>, vector<384x128xbf16>, vector<8x128xf32> -> vector<8x128xf32>
    %192 = arith.addf %183, %191 : vector<8x128xf32>
    %c2_165 = arith.constant 2 : index
    %c0_166 = arith.constant 0 : index
    %c0_167 = arith.constant 0 : index
    %193 = vector.load %arg15[%c2_165, %c0_166, %c0_167] : memref<4x8x8xf32, #tpu.memory_space<vmem>>, vector<1x8x8xf32>
    %194 = vector.shape_cast %193 : vector<1x8x8xf32> to vector<8x8xf32>
    %195 = arith.truncf %194 : vector<8x8xf32> to vector<8x8xbf16>
    %cst_168 = arith.constant dense<0.000000e+00> : vector<8x384xf32>
    %196 = tpu.matmul %195, %175, %cst_168 {dimension_numbers = #tpu.dot_dimension_numbers<[1], [0], [0], [1], [0, 0, 1, 1], [], []>} : vector<8x8xbf16>, vector<8x384xbf16>, vector<8x384xf32> -> vector<8x384xf32>
    %197 = arith.truncf %196 : vector<8x384xf32> to vector<8x384xbf16>
    %c2_169 = arith.constant 2 : index
    %c0_170 = arith.constant 0 : index
    %c0_171 = arith.constant 0 : index
    %198 = vector.load %arg16[%c2_169, %c0_170, %c0_171] : memref<4x384x128xbf16, #tpu.memory_space<vmem>>, vector<1x384x128xbf16>
    %199 = vector.shape_cast %198 : vector<1x384x128xbf16> to vector<384x128xbf16>
    %cst_172 = arith.constant dense<0.000000e+00> : vector<8x128xf32>
    %200 = tpu.matmul %197, %199, %cst_172 {dimension_numbers = #tpu.dot_dimension_numbers<[1], [0], [0], [1], [0, 0, 1, 1], [], []>} : vector<8x384xbf16>, vector<384x128xbf16>, vector<8x128xf32> -> vector<8x128xf32>
    %201 = arith.addf %192, %200 : vector<8x128xf32>
    %c3_173 = arith.constant 3 : index
    %c0_174 = arith.constant 0 : index
    %c0_175 = arith.constant 0 : index
    %202 = vector.load %arg15[%c3_173, %c0_174, %c0_175] : memref<4x8x8xf32, #tpu.memory_space<vmem>>, vector<1x8x8xf32>
    %203 = vector.shape_cast %202 : vector<1x8x8xf32> to vector<8x8xf32>
    %204 = arith.truncf %203 : vector<8x8xf32> to vector<8x8xbf16>
    %cst_176 = arith.constant dense<0.000000e+00> : vector<8x384xf32>
    %205 = tpu.matmul %204, %175, %cst_176 {dimension_numbers = #tpu.dot_dimension_numbers<[1], [0], [0], [1], [0, 0, 1, 1], [], []>} : vector<8x8xbf16>, vector<8x384xbf16>, vector<8x384xf32> -> vector<8x384xf32>
    %206 = arith.truncf %205 : vector<8x384xf32> to vector<8x384xbf16>
    %c3_177 = arith.constant 3 : index
    %c0_178 = arith.constant 0 : index
    %c0_179 = arith.constant 0 : index
    %207 = vector.load %arg16[%c3_177, %c0_178, %c0_179] : memref<4x384x128xbf16, #tpu.memory_space<vmem>>, vector<1x384x128xbf16>
    %208 = vector.shape_cast %207 : vector<1x384x128xbf16> to vector<384x128xbf16>
    %cst_180 = arith.constant dense<0.000000e+00> : vector<8x128xf32>
    %209 = tpu.matmul %206, %208, %cst_180 {dimension_numbers = #tpu.dot_dimension_numbers<[1], [0], [0], [1], [0, 0, 1, 1], [], []>} : vector<8x384xbf16>, vector<384x128xbf16>, vector<8x128xf32> -> vector<8x128xf32>
    %210 = arith.addf %201, %209 : vector<8x128xf32>
    %211 = arith.truncf %210 : vector<8x128xf32> to vector<8x128xbf16>
    %c0_181 = arith.constant 0 : index
    %c0_182 = arith.constant 0 : index
    %c0_183 = arith.constant 0 : index
    %212 = vector.load %arg17[%c0_181, %c0_182, %c0_183] : memref<4x16x8xf32, #tpu.memory_space<vmem>>, vector<1x16x8xf32>
    %213 = vector.shape_cast %212 : vector<1x16x8xf32> to vector<16x8xf32>
    %214 = arith.truncf %213 : vector<16x8xf32> to vector<16x8xbf16>
    %cst_184 = arith.constant dense<0.000000e+00> : vector<16x128xf32>
    %215 = tpu.matmul %214, %211, %cst_184 {dimension_numbers = #tpu.dot_dimension_numbers<[1], [0], [0], [1], [0, 0, 1, 1], [], []>} : vector<16x8xbf16>, vector<8x128xbf16>, vector<16x128xf32> -> vector<16x128xf32>
    %216 = arith.truncf %215 : vector<16x128xf32> to vector<16x128xbf16>
    %c0_185 = arith.constant 0 : index
    %c0_186 = arith.constant 0 : index
    %c0_187 = arith.constant 0 : index
    %217 = vector.load %arg18[%c0_185, %c0_186, %c0_187] : memref<4x128x128xbf16, #tpu.memory_space<vmem>>, vector<1x128x128xbf16>
    %218 = vector.shape_cast %217 : vector<1x128x128xbf16> to vector<128x128xbf16>
    %cst_188 = arith.constant dense<0.000000e+00> : vector<16x128xf32>
    %219 = tpu.matmul %216, %218, %cst_188 {dimension_numbers = #tpu.dot_dimension_numbers<[1], [0], [0], [1], [0, 0, 1, 1], [], []>} : vector<16x128xbf16>, vector<128x128xbf16>, vector<16x128xf32> -> vector<16x128xf32>
    %c1_189 = arith.constant 1 : index
    %c0_190 = arith.constant 0 : index
    %c0_191 = arith.constant 0 : index
    %220 = vector.load %arg17[%c1_189, %c0_190, %c0_191] : memref<4x16x8xf32, #tpu.memory_space<vmem>>, vector<1x16x8xf32>
    %221 = vector.shape_cast %220 : vector<1x16x8xf32> to vector<16x8xf32>
    %222 = arith.truncf %221 : vector<16x8xf32> to vector<16x8xbf16>
    %cst_192 = arith.constant dense<0.000000e+00> : vector<16x128xf32>
    %223 = tpu.matmul %222, %211, %cst_192 {dimension_numbers = #tpu.dot_dimension_numbers<[1], [0], [0], [1], [0, 0, 1, 1], [], []>} : vector<16x8xbf16>, vector<8x128xbf16>, vector<16x128xf32> -> vector<16x128xf32>
    %224 = arith.truncf %223 : vector<16x128xf32> to vector<16x128xbf16>
    %c1_193 = arith.constant 1 : index
    %c0_194 = arith.constant 0 : index
    %c0_195 = arith.constant 0 : index
    %225 = vector.load %arg18[%c1_193, %c0_194, %c0_195] : memref<4x128x128xbf16, #tpu.memory_space<vmem>>, vector<1x128x128xbf16>
    %226 = vector.shape_cast %225 : vector<1x128x128xbf16> to vector<128x128xbf16>
    %cst_196 = arith.constant dense<0.000000e+00> : vector<16x128xf32>
    %227 = tpu.matmul %224, %226, %cst_196 {dimension_numbers = #tpu.dot_dimension_numbers<[1], [0], [0], [1], [0, 0, 1, 1], [], []>} : vector<16x128xbf16>, vector<128x128xbf16>, vector<16x128xf32> -> vector<16x128xf32>
    %228 = arith.addf %219, %227 : vector<16x128xf32>
    %c2_197 = arith.constant 2 : index
    %c0_198 = arith.constant 0 : index
    %c0_199 = arith.constant 0 : index
    %229 = vector.load %arg17[%c2_197, %c0_198, %c0_199] : memref<4x16x8xf32, #tpu.memory_space<vmem>>, vector<1x16x8xf32>
    %230 = vector.shape_cast %229 : vector<1x16x8xf32> to vector<16x8xf32>
    %231 = arith.truncf %230 : vector<16x8xf32> to vector<16x8xbf16>
    %cst_200 = arith.constant dense<0.000000e+00> : vector<16x128xf32>
    %232 = tpu.matmul %231, %211, %cst_200 {dimension_numbers = #tpu.dot_dimension_numbers<[1], [0], [0], [1], [0, 0, 1, 1], [], []>} : vector<16x8xbf16>, vector<8x128xbf16>, vector<16x128xf32> -> vector<16x128xf32>
    %233 = arith.truncf %232 : vector<16x128xf32> to vector<16x128xbf16>
    %c2_201 = arith.constant 2 : index
    %c0_202 = arith.constant 0 : index
    %c0_203 = arith.constant 0 : index
    %234 = vector.load %arg18[%c2_201, %c0_202, %c0_203] : memref<4x128x128xbf16, #tpu.memory_space<vmem>>, vector<1x128x128xbf16>
    %235 = vector.shape_cast %234 : vector<1x128x128xbf16> to vector<128x128xbf16>
    %cst_204 = arith.constant dense<0.000000e+00> : vector<16x128xf32>
    %236 = tpu.matmul %233, %235, %cst_204 {dimension_numbers = #tpu.dot_dimension_numbers<[1], [0], [0], [1], [0, 0, 1, 1], [], []>} : vector<16x128xbf16>, vector<128x128xbf16>, vector<16x128xf32> -> vector<16x128xf32>
    %237 = arith.addf %228, %236 : vector<16x128xf32>
    %c3_205 = arith.constant 3 : index
    %c0_206 = arith.constant 0 : index
    %c0_207 = arith.constant 0 : index
    %238 = vector.load %arg17[%c3_205, %c0_206, %c0_207] : memref<4x16x8xf32, #tpu.memory_space<vmem>>, vector<1x16x8xf32>
    %239 = vector.shape_cast %238 : vector<1x16x8xf32> to vector<16x8xf32>
    %240 = arith.truncf %239 : vector<16x8xf32> to vector<16x8xbf16>
    %cst_208 = arith.constant dense<0.000000e+00> : vector<16x128xf32>
    %241 = tpu.matmul %240, %211, %cst_208 {dimension_numbers = #tpu.dot_dimension_numbers<[1], [0], [0], [1], [0, 0, 1, 1], [], []>} : vector<16x8xbf16>, vector<8x128xbf16>, vector<16x128xf32> -> vector<16x128xf32>
    %242 = arith.truncf %241 : vector<16x128xf32> to vector<16x128xbf16>
    %c3_209 = arith.constant 3 : index
    %c0_210 = arith.constant 0 : index
    %c0_211 = arith.constant 0 : index
    %243 = vector.load %arg18[%c3_209, %c0_210, %c0_211] : memref<4x128x128xbf16, #tpu.memory_space<vmem>>, vector<1x128x128xbf16>
    %244 = vector.shape_cast %243 : vector<1x128x128xbf16> to vector<128x128xbf16>
    %cst_212 = arith.constant dense<0.000000e+00> : vector<16x128xf32>
    %245 = tpu.matmul %242, %244, %cst_212 {dimension_numbers = #tpu.dot_dimension_numbers<[1], [0], [0], [1], [0, 0, 1, 1], [], []>} : vector<16x128xbf16>, vector<128x128xbf16>, vector<16x128xf32> -> vector<16x128xf32>
    %246 = arith.addf %237, %245 : vector<16x128xf32>
    %c0_213 = arith.constant 0 : index
    %c0_214 = arith.constant 0 : index
    %247 = vector.load %arg19[%c0_213, %c0_214] : memref<1x128xf32, #tpu.memory_space<vmem>>, vector<1x128xf32>
    %248 = vector.broadcast %247 : vector<1x128xf32> to vector<16x128xf32>
    %249 = arith.addf %246, %248 : vector<16x128xf32>
    %cst_215 = arith.constant 0.000000e+00 : f32
    %250 = vector.broadcast %cst_215 : f32 to vector<16x128xf32>
    %251 = arith.maximumf %249, %250 : vector<16x128xf32>
    %252 = arith.truncf %251 : vector<16x128xf32> to vector<16x128xbf16>
    %c0_216 = arith.constant 0 : index
    %c0_217 = arith.constant 0 : index
    %c0_218 = arith.constant 0 : index
    %253 = vector.load %arg20[%c0_216, %c0_217, %c0_218] : memref<4x32x16xf32, #tpu.memory_space<vmem>>, vector<1x32x16xf32>
    %254 = vector.shape_cast %253 : vector<1x32x16xf32> to vector<32x16xf32>
    %255 = arith.truncf %254 : vector<32x16xf32> to vector<32x16xbf16>
    %cst_219 = arith.constant dense<0.000000e+00> : vector<32x128xf32>
    %256 = tpu.matmul %255, %252, %cst_219 {dimension_numbers = #tpu.dot_dimension_numbers<[1], [0], [0], [1], [0, 0, 1, 1], [], []>} : vector<32x16xbf16>, vector<16x128xbf16>, vector<32x128xf32> -> vector<32x128xf32>
    %257 = arith.truncf %256 : vector<32x128xf32> to vector<32x128xbf16>
    %c0_220 = arith.constant 0 : index
    %c0_221 = arith.constant 0 : index
    %c0_222 = arith.constant 0 : index
    %258 = vector.load %arg21[%c0_220, %c0_221, %c0_222] : memref<4x128x128xbf16, #tpu.memory_space<vmem>>, vector<1x128x128xbf16>
    %259 = vector.shape_cast %258 : vector<1x128x128xbf16> to vector<128x128xbf16>
    %cst_223 = arith.constant dense<0.000000e+00> : vector<32x128xf32>
    %260 = tpu.matmul %257, %259, %cst_223 {dimension_numbers = #tpu.dot_dimension_numbers<[1], [0], [0], [1], [0, 0, 1, 1], [], []>} : vector<32x128xbf16>, vector<128x128xbf16>, vector<32x128xf32> -> vector<32x128xf32>
    %c1_224 = arith.constant 1 : index
    %c0_225 = arith.constant 0 : index
    %c0_226 = arith.constant 0 : index
    %261 = vector.load %arg20[%c1_224, %c0_225, %c0_226] : memref<4x32x16xf32, #tpu.memory_space<vmem>>, vector<1x32x16xf32>
    %262 = vector.shape_cast %261 : vector<1x32x16xf32> to vector<32x16xf32>
    %263 = arith.truncf %262 : vector<32x16xf32> to vector<32x16xbf16>
    %cst_227 = arith.constant dense<0.000000e+00> : vector<32x128xf32>
    %264 = tpu.matmul %263, %252, %cst_227 {dimension_numbers = #tpu.dot_dimension_numbers<[1], [0], [0], [1], [0, 0, 1, 1], [], []>} : vector<32x16xbf16>, vector<16x128xbf16>, vector<32x128xf32> -> vector<32x128xf32>
    %265 = arith.truncf %264 : vector<32x128xf32> to vector<32x128xbf16>
    %c1_228 = arith.constant 1 : index
    %c0_229 = arith.constant 0 : index
    %c0_230 = arith.constant 0 : index
    %266 = vector.load %arg21[%c1_228, %c0_229, %c0_230] : memref<4x128x128xbf16, #tpu.memory_space<vmem>>, vector<1x128x128xbf16>
    %267 = vector.shape_cast %266 : vector<1x128x128xbf16> to vector<128x128xbf16>
    %cst_231 = arith.constant dense<0.000000e+00> : vector<32x128xf32>
    %268 = tpu.matmul %265, %267, %cst_231 {dimension_numbers = #tpu.dot_dimension_numbers<[1], [0], [0], [1], [0, 0, 1, 1], [], []>} : vector<32x128xbf16>, vector<128x128xbf16>, vector<32x128xf32> -> vector<32x128xf32>
    %269 = arith.addf %260, %268 : vector<32x128xf32>
    %c2_232 = arith.constant 2 : index
    %c0_233 = arith.constant 0 : index
    %c0_234 = arith.constant 0 : index
    %270 = vector.load %arg20[%c2_232, %c0_233, %c0_234] : memref<4x32x16xf32, #tpu.memory_space<vmem>>, vector<1x32x16xf32>
    %271 = vector.shape_cast %270 : vector<1x32x16xf32> to vector<32x16xf32>
    %272 = arith.truncf %271 : vector<32x16xf32> to vector<32x16xbf16>
    %cst_235 = arith.constant dense<0.000000e+00> : vector<32x128xf32>
    %273 = tpu.matmul %272, %252, %cst_235 {dimension_numbers = #tpu.dot_dimension_numbers<[1], [0], [0], [1], [0, 0, 1, 1], [], []>} : vector<32x16xbf16>, vector<16x128xbf16>, vector<32x128xf32> -> vector<32x128xf32>
    %274 = arith.truncf %273 : vector<32x128xf32> to vector<32x128xbf16>
    %c2_236 = arith.constant 2 : index
    %c0_237 = arith.constant 0 : index
    %c0_238 = arith.constant 0 : index
    %275 = vector.load %arg21[%c2_236, %c0_237, %c0_238] : memref<4x128x128xbf16, #tpu.memory_space<vmem>>, vector<1x128x128xbf16>
    %276 = vector.shape_cast %275 : vector<1x128x128xbf16> to vector<128x128xbf16>
    %cst_239 = arith.constant dense<0.000000e+00> : vector<32x128xf32>
    %277 = tpu.matmul %274, %276, %cst_239 {dimension_numbers = #tpu.dot_dimension_numbers<[1], [0], [0], [1], [0, 0, 1, 1], [], []>} : vector<32x128xbf16>, vector<128x128xbf16>, vector<32x128xf32> -> vector<32x128xf32>
    %278 = arith.addf %269, %277 : vector<32x128xf32>
    %c3_240 = arith.constant 3 : index
    %c0_241 = arith.constant 0 : index
    %c0_242 = arith.constant 0 : index
    %279 = vector.load %arg20[%c3_240, %c0_241, %c0_242] : memref<4x32x16xf32, #tpu.memory_space<vmem>>, vector<1x32x16xf32>
    %280 = vector.shape_cast %279 : vector<1x32x16xf32> to vector<32x16xf32>
    %281 = arith.truncf %280 : vector<32x16xf32> to vector<32x16xbf16>
    %cst_243 = arith.constant dense<0.000000e+00> : vector<32x128xf32>
    %282 = tpu.matmul %281, %252, %cst_243 {dimension_numbers = #tpu.dot_dimension_numbers<[1], [0], [0], [1], [0, 0, 1, 1], [], []>} : vector<32x16xbf16>, vector<16x128xbf16>, vector<32x128xf32> -> vector<32x128xf32>
    %283 = arith.truncf %282 : vector<32x128xf32> to vector<32x128xbf16>
    %c3_244 = arith.constant 3 : index
    %c0_245 = arith.constant 0 : index
    %c0_246 = arith.constant 0 : index
    %284 = vector.load %arg21[%c3_244, %c0_245, %c0_246] : memref<4x128x128xbf16, #tpu.memory_space<vmem>>, vector<1x128x128xbf16>
    %285 = vector.shape_cast %284 : vector<1x128x128xbf16> to vector<128x128xbf16>
    %cst_247 = arith.constant dense<0.000000e+00> : vector<32x128xf32>
    %286 = tpu.matmul %283, %285, %cst_247 {dimension_numbers = #tpu.dot_dimension_numbers<[1], [0], [0], [1], [0, 0, 1, 1], [], []>} : vector<32x128xbf16>, vector<128x128xbf16>, vector<32x128xf32> -> vector<32x128xf32>
    %287 = arith.addf %278, %286 : vector<32x128xf32>
    %c0_248 = arith.constant 0 : index
    %c0_249 = arith.constant 0 : index
    %288 = vector.load %arg22[%c0_248, %c0_249] : memref<1x128xf32, #tpu.memory_space<vmem>>, vector<1x128xf32>
    %289 = vector.broadcast %288 : vector<1x128xf32> to vector<32x128xf32>
    %290 = arith.addf %287, %289 : vector<32x128xf32>
    %cst_250 = arith.constant 0.000000e+00 : f32
    %291 = vector.broadcast %cst_250 : f32 to vector<32x128xf32>
    %292 = arith.maximumf %290, %291 : vector<32x128xf32>
    %293 = arith.truncf %292 : vector<32x128xf32> to vector<32x128xbf16>
    %c0_251 = arith.constant 0 : index
    %c0_252 = arith.constant 0 : index
    %c0_253 = arith.constant 0 : index
    %294 = vector.load %arg23[%c0_251, %c0_252, %c0_253] : memref<4x64x32xf32, #tpu.memory_space<vmem>>, vector<1x64x32xf32>
    %295 = vector.shape_cast %294 : vector<1x64x32xf32> to vector<64x32xf32>
    %296 = arith.truncf %295 : vector<64x32xf32> to vector<64x32xbf16>
    %cst_254 = arith.constant dense<0.000000e+00> : vector<64x128xf32>
    %297 = tpu.matmul %296, %293, %cst_254 {dimension_numbers = #tpu.dot_dimension_numbers<[1], [0], [0], [1], [0, 0, 1, 1], [], []>} : vector<64x32xbf16>, vector<32x128xbf16>, vector<64x128xf32> -> vector<64x128xf32>
    %298 = arith.truncf %297 : vector<64x128xf32> to vector<64x128xbf16>
    %c0_255 = arith.constant 0 : index
    %c0_256 = arith.constant 0 : index
    %c0_257 = arith.constant 0 : index
    %299 = vector.load %arg24[%c0_255, %c0_256, %c0_257] : memref<4x128x128xbf16, #tpu.memory_space<vmem>>, vector<1x128x128xbf16>
    %300 = vector.shape_cast %299 : vector<1x128x128xbf16> to vector<128x128xbf16>
    %cst_258 = arith.constant dense<0.000000e+00> : vector<64x128xf32>
    %301 = tpu.matmul %298, %300, %cst_258 {dimension_numbers = #tpu.dot_dimension_numbers<[1], [0], [0], [1], [0, 0, 1, 1], [], []>} : vector<64x128xbf16>, vector<128x128xbf16>, vector<64x128xf32> -> vector<64x128xf32>
    %c1_259 = arith.constant 1 : index
    %c0_260 = arith.constant 0 : index
    %c0_261 = arith.constant 0 : index
    %302 = vector.load %arg23[%c1_259, %c0_260, %c0_261] : memref<4x64x32xf32, #tpu.memory_space<vmem>>, vector<1x64x32xf32>
    %303 = vector.shape_cast %302 : vector<1x64x32xf32> to vector<64x32xf32>
    %304 = arith.truncf %303 : vector<64x32xf32> to vector<64x32xbf16>
    %cst_262 = arith.constant dense<0.000000e+00> : vector<64x128xf32>
    %305 = tpu.matmul %304, %293, %cst_262 {dimension_numbers = #tpu.dot_dimension_numbers<[1], [0], [0], [1], [0, 0, 1, 1], [], []>} : vector<64x32xbf16>, vector<32x128xbf16>, vector<64x128xf32> -> vector<64x128xf32>
    %306 = arith.truncf %305 : vector<64x128xf32> to vector<64x128xbf16>
    %c1_263 = arith.constant 1 : index
    %c0_264 = arith.constant 0 : index
    %c0_265 = arith.constant 0 : index
    %307 = vector.load %arg24[%c1_263, %c0_264, %c0_265] : memref<4x128x128xbf16, #tpu.memory_space<vmem>>, vector<1x128x128xbf16>
    %308 = vector.shape_cast %307 : vector<1x128x128xbf16> to vector<128x128xbf16>
    %cst_266 = arith.constant dense<0.000000e+00> : vector<64x128xf32>
    %309 = tpu.matmul %306, %308, %cst_266 {dimension_numbers = #tpu.dot_dimension_numbers<[1], [0], [0], [1], [0, 0, 1, 1], [], []>} : vector<64x128xbf16>, vector<128x128xbf16>, vector<64x128xf32> -> vector<64x128xf32>
    %310 = arith.addf %301, %309 : vector<64x128xf32>
    %c2_267 = arith.constant 2 : index
    %c0_268 = arith.constant 0 : index
    %c0_269 = arith.constant 0 : index
    %311 = vector.load %arg23[%c2_267, %c0_268, %c0_269] : memref<4x64x32xf32, #tpu.memory_space<vmem>>, vector<1x64x32xf32>
    %312 = vector.shape_cast %311 : vector<1x64x32xf32> to vector<64x32xf32>
    %313 = arith.truncf %312 : vector<64x32xf32> to vector<64x32xbf16>
    %cst_270 = arith.constant dense<0.000000e+00> : vector<64x128xf32>
    %314 = tpu.matmul %313, %293, %cst_270 {dimension_numbers = #tpu.dot_dimension_numbers<[1], [0], [0], [1], [0, 0, 1, 1], [], []>} : vector<64x32xbf16>, vector<32x128xbf16>, vector<64x128xf32> -> vector<64x128xf32>
    %315 = arith.truncf %314 : vector<64x128xf32> to vector<64x128xbf16>
    %c2_271 = arith.constant 2 : index
    %c0_272 = arith.constant 0 : index
    %c0_273 = arith.constant 0 : index
    %316 = vector.load %arg24[%c2_271, %c0_272, %c0_273] : memref<4x128x128xbf16, #tpu.memory_space<vmem>>, vector<1x128x128xbf16>
    %317 = vector.shape_cast %316 : vector<1x128x128xbf16> to vector<128x128xbf16>
    %cst_274 = arith.constant dense<0.000000e+00> : vector<64x128xf32>
    %318 = tpu.matmul %315, %317, %cst_274 {dimension_numbers = #tpu.dot_dimension_numbers<[1], [0], [0], [1], [0, 0, 1, 1], [], []>} : vector<64x128xbf16>, vector<128x128xbf16>, vector<64x128xf32> -> vector<64x128xf32>
    %319 = arith.addf %310, %318 : vector<64x128xf32>
    %c3_275 = arith.constant 3 : index
    %c0_276 = arith.constant 0 : index
    %c0_277 = arith.constant 0 : index
    %320 = vector.load %arg23[%c3_275, %c0_276, %c0_277] : memref<4x64x32xf32, #tpu.memory_space<vmem>>, vector<1x64x32xf32>
    %321 = vector.shape_cast %320 : vector<1x64x32xf32> to vector<64x32xf32>
    %322 = arith.truncf %321 : vector<64x32xf32> to vector<64x32xbf16>
    %cst_278 = arith.constant dense<0.000000e+00> : vector<64x128xf32>
    %323 = tpu.matmul %322, %293, %cst_278 {dimension_numbers = #tpu.dot_dimension_numbers<[1], [0], [0], [1], [0, 0, 1, 1], [], []>} : vector<64x32xbf16>, vector<32x128xbf16>, vector<64x128xf32> -> vector<64x128xf32>
    %324 = arith.truncf %323 : vector<64x128xf32> to vector<64x128xbf16>
    %c3_279 = arith.constant 3 : index
    %c0_280 = arith.constant 0 : index
    %c0_281 = arith.constant 0 : index
    %325 = vector.load %arg24[%c3_279, %c0_280, %c0_281] : memref<4x128x128xbf16, #tpu.memory_space<vmem>>, vector<1x128x128xbf16>
    %326 = vector.shape_cast %325 : vector<1x128x128xbf16> to vector<128x128xbf16>
    %cst_282 = arith.constant dense<0.000000e+00> : vector<64x128xf32>
    %327 = tpu.matmul %324, %326, %cst_282 {dimension_numbers = #tpu.dot_dimension_numbers<[1], [0], [0], [1], [0, 0, 1, 1], [], []>} : vector<64x128xbf16>, vector<128x128xbf16>, vector<64x128xf32> -> vector<64x128xf32>
    %328 = arith.addf %319, %327 : vector<64x128xf32>
    %c0_283 = arith.constant 0 : index
    %c0_284 = arith.constant 0 : index
    %329 = vector.load %arg25[%c0_283, %c0_284] : memref<1x128xf32, #tpu.memory_space<vmem>>, vector<1x128xf32>
    %330 = vector.broadcast %329 : vector<1x128xf32> to vector<64x128xf32>
    %331 = arith.addf %328, %330 : vector<64x128xf32>
    %332 = math.tanh %331 : vector<64x128xf32>
    %c0_285 = arith.constant 0 : index
    %c0_286 = arith.constant 0 : index
    %333 = vector.load %arg29[%c0_285, %c0_286] : memref<64x128xf32, #tpu.memory_space<vmem>>, vector<64x128xf32>
    tpu.vector_store %arg29[%c0_285, %c0_286], %332 {strides = array<i32>} : memref<64x128xf32, #tpu.memory_space<vmem>>, vector<64x128xf32>,
    return
  }
}

</mosaic_0001>

<llo_original>
// kernel: _forward.1
$region0: #{_forward.1}
  #allocation0 [shape = 'u32[]', space=smem, size = 0x4, offset = 0x4, fixed_abs, tag = 'smem constant byte address 0x4 - core index']
  #allocation1 [shape = 'u32[144,128]{1,0:T(1,128)}', space=vmem, size = 0x12000, scoped, tag = 'internal scratch']
  %s0 = inlined_call_operand.smem [shape: u32[30], index: -1, kind: input, shape index: {}]
  %s1 = sld [smem:[%s0]]
  %s2 = scalar_lea.smem %s0, 1
  %s3 = sld [smem:[%s2]]
  %s4 = scalar_lea.smem %s0, 2
  %s5 = sld [smem:[%s4]]
  %s6 = scalar_lea.smem %s0, 3
  %s7 = sld [smem:[%s6]]
  %s8 = scalar_lea.smem %s0, 4
  %s9 = sld [smem:[%s8]]
  %s10 = scalar_lea.smem %s0, 5
  %s11 = sld [smem:[%s10]]
  %s12 = scalar_lea.smem %s0, 6
  %s13 = sld [smem:[%s12]]
  %s14 = scalar_lea.smem %s0, 7
  %s15 = sld [smem:[%s14]]
  %s16 = scalar_lea.smem %s0, 8
  %s17 = sld [smem:[%s16]]
  %s18 = scalar_lea.smem %s0, 9
  %s19 = sld [smem:[%s18]]
  %s20 = scalar_lea.smem %s0, 10
  %s21 = sld [smem:[%s20]]
  %s22 = scalar_lea.smem %s0, 11
  %s23 = sld [smem:[%s22]]
  %s24 = scalar_lea.smem %s0, 12
  %s25 = sld [smem:[%s24]]
  %s26 = scalar_lea.smem %s0, 13
  %s27 = sld [smem:[%s26]]
  %s28 = scalar_lea.smem %s0, 14
  %s29 = sld [smem:[%s28]]
  %s30 = scalar_lea.smem %s0, 15
  %s31 = sld [smem:[%s30]]
  %s32 = scalar_lea.smem %s0, 16
  %s33 = sld [smem:[%s32]]
  %s34 = scalar_lea.smem %s0, 17
  %s35 = sld [smem:[%s34]]
  %s36 = scalar_lea.smem %s0, 18
  %s37 = sld [smem:[%s36]]
  %s38 = scalar_lea.smem %s0, 19
  %s39 = sld [smem:[%s38]]
  %s40 = scalar_lea.smem %s0, 20
  %s41 = sld [smem:[%s40]]
  %s42 = scalar_lea.smem %s0, 21
  %s43 = sld [smem:[%s42]]
  %s44 = scalar_lea.smem %s0, 22
  %s45 = sld [smem:[%s44]]
  %s46 = scalar_lea.smem %s0, 23
  %s47 = sld [smem:[%s46]]
  %s48 = scalar_lea.smem %s0, 24
  %s49 = sld [smem:[%s48]]
  %s50 = scalar_lea.smem %s0, 25
  %s51 = sld [smem:[%s50]]
  %s52 = scalar_lea.smem %s0, 26
  %s53 = sld [smem:[%s52]]
  %s54 = scalar_lea.smem %s0, 27
  %s55 = sld [smem:[%s54]]
  %s56 = scalar_lea.smem %s0, 28
  %s57 = sld [smem:[%s56]]
  %s58 = scalar_lea.smem %s0, 29
  %s59 = sld [smem:[%s58]]
  %60 = xla_tuple %s53, %s55, %s57, %s59
  %s61 = sld [smem:[#allocation0]]
  $region210: #{_forward.1} parent=0
    _
  %s63 = ssub.s32 1, %s61
  %s64 = scalar_select 0, %s63, %s61
  $region1: #{_forward.1} parent=0
    #allocation2 [shape = 'u8[65536]{0}', space=vmem, size = 0x10000, scoped, tag = 'input window, operand 1, single buffered']
    #allocation3 [shape = 's32[1]{0}', space=sflag, size = 0x4, scoped, tag = 'scoped memory for _forward.1']
    #allocation4 [shape = 'u8[262144]{0}', space=vmem, size = 0x40000, scoped, tag = 'input window, operand 2, single buffered']
    #allocation5 [shape = 's32[1]{0}', space=sflag, size = 0x4, scoped, tag = 'scoped memory for _forward.1']
    #allocation6 [shape = 'u8[1024]{0}', space=vmem, size = 0x400, scoped, tag = 'input window, operand 3, single buffered']
    #allocation7 [shape = 'u8[32768]{0}', space=vmem, size = 0x8000, scoped, tag = 'input window, operand 4, single buffered']
    #allocation8 [shape = 's32[1]{0}', space=sflag, size = 0x4, scoped, tag = 'scoped memory for _forward.1']
    #allocation9 [shape = 'u8[1024]{0}', space=vmem, size = 0x400, scoped, tag = 'input window, operand 6, single buffered']
    #allocation10 [shape = 'u8[16384]{0}', space=vmem, size = 0x4000, scoped, tag = 'input window, operand 7, single buffered']
    #allocation11 [shape = 's32[1]{0}', space=sflag, size = 0x4, scoped, tag = 'scoped memory for _forward.1']
    #allocation12 [shape = 'u8[524288]{0}', space=vmem, size = 0x80000, scoped, tag = 'input window, operand 8, single buffered']
    #allocation13 [shape = 'u8[1024]{0}', space=vmem, size = 0x400, scoped, tag = 'input window, operand 9, single buffered']
    #allocation14 [shape = 's32[1]{0}', space=sflag, size = 0x4, scoped, tag = 'scoped memory for _forward.1']
    #allocation15 [shape = 'u8[16384]{0}', space=vmem, size = 0x4000, scoped, tag = 'input window, operand 10, single buffered']
    #allocation16 [shape = 'u8[1048576]{0}', space=vmem, size = 0x100000, scoped, tag = 'input window, operand 11, single buffered']
    #allocation17 [shape = 's32[1]{0}', space=sflag, size = 0x4, scoped, tag = 'scoped memory for _forward.1']
    #allocation18 [shape = 'u8[393216]{0}', space=vmem, size = 0x60000, scoped, tag = 'input window, operand 13, single buffered']
    #allocation19 [shape = 'u8[1536]{0}', space=vmem, size = 0x800, scoped, tag = 'input window, operand 14, single buffered']
    #allocation20 [shape = 's32[1]{0}', space=sflag, size = 0x4, scoped, tag = 'scoped memory for _forward.1']
    #allocation21 [shape = 'u8[16384]{0}', space=vmem, size = 0x4000, scoped, tag = 'input window, operand 15, single buffered']
    #allocation22 [shape = 'u8[393216]{0}', space=vmem, size = 0x60000, scoped, tag = 'input window, operand 16, single buffered']
    #allocation23 [shape = 's32[1]{0}', space=sflag, size = 0x4, scoped, tag = 'scoped memory for _forward.1']
    #allocation24 [shape = 'u8[131072]{0}', space=vmem, size = 0x20000, scoped, tag = 'input window, operand 21, single buffered']
    #allocation25 [shape = 'u8[512]{0}', space=vmem, size = 0x400, scoped, tag = 'input window, operand 22, single buffered']
    #allocation26 [shape = 's32[1]{0}', space=sflag, size = 0x4, scoped, tag = 'scoped memory for _forward.1']
    #allocation27 [shape = 'u8[131072]{0}', space=vmem, size = 0x20000, scoped, tag = 'input window, operand 24, single buffered']
    #allocation28 [shape = 'u8[512]{0}', space=vmem, size = 0x400, scoped, tag = 'input window, operand 25, single buffered']
    #allocation29 [shape = 's32[1]{0}', space=sflag, size = 0x4, scoped, tag = 'scoped memory for _forward.1']
    %65 = vsyncpa [#allocation3], 0
    %66 = vsyncpa [#allocation5], 0
    %67 = vsyncpa [#allocation8], 0
    %68 = vsyncpa [#allocation11], 0
    %69 = vsyncpa [#allocation14], 0
    %70 = vsyncpa [#allocation17], 0
    %71 = vsyncpa [#allocation20], 0
    %72 = vsyncpa [#allocation23], 0
    %73 = vsyncpa [#allocation26], 0
    %74 = vsyncpa [#allocation29], 0
    // Predicated region
    $region2: #{_forward.1} parent=1 // pred_check
      _
    $region3: #{_forward.1} parent=1 // pred_check_branch
      %76 = sbr.rel (0) target = $region5
    $region4: #{_forward.1} parent=1 // pred_region
      _
    $region5: #{_forward.1} parent=1 // pred_fallthru
      _
    // Predicated region
    $region6: #{_forward.1} parent=1 // pred_check
      _
    $region7: #{_forward.1} parent=1 // pred_check_branch
      %78 = sbr.rel (0) target = $region9
    $region8: #{_forward.1} parent=1 // pred_region
      %s80 = ssub.s32 2048, 2048
      %81 = vsyncadd [#allocation3], %s80
      %s82 = sshll.u32 [#allocation2], 4
      %s83 = int_to_ptr.vmem [resolvable:$true] %s82
      %88 = dma.hbm_to_vmem [thread:$0]  %s3, 2048, %s83, [#allocation3], 128, 128, 8
    $region9: #{_forward.1} parent=1 // pred_fallthru
      _
    // Predicated region
    $region10: #{_forward.1} parent=1 // pred_check
      _
    $region11: #{_forward.1} parent=1 // pred_check_branch
      %90 = sbr.rel (0) target = $region13
    $region12: #{_forward.1} parent=1 // pred_region
      %s92 = ssub.s32 8192, 8192
      %93 = vsyncadd [#allocation5], %s92
      %s94 = sshll.u32 [#allocation4], 4
      %s95 = int_to_ptr.vmem [resolvable:$true] %s94
      %100 = dma.hbm_to_vmem [thread:$0]  %s5, 8192, %s95, [#allocation5], 128, 128, 8
    $region13: #{_forward.1} parent=1 // pred_fallthru
      _
    // Predicated region
    $region14: #{_forward.1} parent=1 // pred_check
      _
    $region15: #{_forward.1} parent=1 // pred_check_branch
      %102 = sbr.rel (0) target = $region17
    $region16: #{_forward.1} parent=1 // pred_region
      %s104 = ssub.s32 32, 32
      %105 = vsyncadd [#allocation5], %s104
      %s107 = sshll.u32 [#allocation6], 4
      %s108 = int_to_ptr.vmem [resolvable:$true] %s107
      %110 = dma.hbm_to_vmem [thread:$0]  %s7, 32, %s108, [#allocation5]
    $region17: #{_forward.1} parent=1 // pred_fallthru
      _
    // Predicated region
    $region18: #{_forward.1} parent=1 // pred_check
      _
    $region19: #{_forward.1} parent=1 // pred_check_branch
      %112 = sbr.rel (0) target = $region21
    $region20: #{_forward.1} parent=1 // pred_region
      %s114 = ssub.s32 1024, 1024
      %115 = vsyncadd [#allocation8], %s114
      %s116 = sshll.u32 [#allocation7], 4
      %s117 = int_to_ptr.vmem [resolvable:$true] %s116
      %122 = dma.hbm_to_vmem [thread:$0]  %s9, 1024, %s117, [#allocation8], 128, 128, 8
    $region21: #{_forward.1} parent=1 // pred_fallthru
      _
    // Predicated region
    $region22: #{_forward.1} parent=1 // pred_check
      _
    $region23: #{_forward.1} parent=1 // pred_check_branch
      %124 = sbr.rel (0) target = $region25
    $region24: #{_forward.1} parent=1 // pred_region
      _
    $region25: #{_forward.1} parent=1 // pred_fallthru
      _
    // Predicated region
    $region26: #{_forward.1} parent=1 // pred_check
      _
    $region27: #{_forward.1} parent=1 // pred_check_branch
      %126 = sbr.rel (0) target = $region29
    $region28: #{_forward.1} parent=1 // pred_region
      %s128 = ssub.s32 32, 32
      %129 = vsyncadd [#allocation8], %s128
      %s131 = sshll.u32 [#allocation9], 4
      %s132 = int_to_ptr.vmem [resolvable:$true] %s131
      %134 = dma.hbm_to_vmem [thread:$0]  %s13, 32, %s132, [#allocation8]
    $region29: #{_forward.1} parent=1 // pred_fallthru
      _
    // Predicated region
    $region30: #{_forward.1} parent=1 // pred_check
      _
    $region31: #{_forward.1} parent=1 // pred_check_branch
      %136 = sbr.rel (0) target = $region33
    $region32: #{_forward.1} parent=1 // pred_region
      %s138 = ssub.s32 512, 512
      %139 = vsyncadd [#allocation11], %s138
      %s140 = sshll.u32 [#allocation10], 4
      %s141 = int_to_ptr.vmem [resolvable:$true] %s140
      %146 = dma.hbm_to_vmem [thread:$0]  %s15, 512, %s141, [#allocation11], 128, 128, 8
    $region33: #{_forward.1} parent=1 // pred_fallthru
      _
    // Predicated region
    $region34: #{_forward.1} parent=1 // pred_check
      _
    $region35: #{_forward.1} parent=1 // pred_check_branch
      %148 = sbr.rel (0) target = $region37
    $region36: #{_forward.1} parent=1 // pred_region
      %s150 = ssub.s32 16384, 16384
      %151 = vsyncadd [#allocation11], %s150
      %s152 = sshll.u32 [#allocation12], 4
      %s153 = int_to_ptr.vmem [resolvable:$true] %s152
      %158 = dma.hbm_to_vmem [thread:$0]  %s17, 16384, %s153, [#allocation11], 128, 128, 8
    $region37: #{_forward.1} parent=1 // pred_fallthru
      _
    // Predicated region
    $region38: #{_forward.1} parent=1 // pred_check
      _
    $region39: #{_forward.1} parent=1 // pred_check_branch
      %160 = sbr.rel (0) target = $region41
    $region40: #{_forward.1} parent=1 // pred_region
      %s162 = ssub.s32 32, 32
      %163 = vsyncadd [#allocation14], %s162
      %s165 = sshll.u32 [#allocation13], 4
      %s166 = int_to_ptr.vmem [resolvable:$true] %s165
      %168 = dma.hbm_to_vmem [thread:$0]  %s19, 32, %s166, [#allocation14]
    $region41: #{_forward.1} parent=1 // pred_fallthru
      _
    // Predicated region
    $region42: #{_forward.1} parent=1 // pred_check
      _
    $region43: #{_forward.1} parent=1 // pred_check_branch
      %170 = sbr.rel (0) target = $region45
    $region44: #{_forward.1} parent=1 // pred_region
      %s172 = ssub.s32 512, 512
      %173 = vsyncadd [#allocation14], %s172
      %s174 = sshll.u32 [#allocation15], 4
      %s175 = int_to_ptr.vmem [resolvable:$true] %s174
      %180 = dma.hbm_to_vmem [thread:$0]  %s21, 512, %s175, [#allocation14], 128, 128, 8
    $region45: #{_forward.1} parent=1 // pred_fallthru
      _
    // Predicated region
    $region46: #{_forward.1} parent=1 // pred_check
      _
    $region47: #{_forward.1} parent=1 // pred_check_branch
      %182 = sbr.rel (0) target = $region49
    $region48: #{_forward.1} parent=1 // pred_region
      %s184 = ssub.s32 32768, 32768
      %185 = vsyncadd [#allocation17], %s184
      %s186 = sshll.u32 [#allocation16], 4
      %s187 = int_to_ptr.vmem [resolvable:$true] %s186
      %192 = dma.hbm_to_vmem [thread:$0]  %s23, 32768, %s187, [#allocation17], 256, 256, 16
    $region49: #{_forward.1} parent=1 // pred_fallthru
      _
    // Predicated region
    $region50: #{_forward.1} parent=1 // pred_check
      _
    $region51: #{_forward.1} parent=1 // pred_check_branch
      %194 = sbr.rel (0) target = $region53
    $region52: #{_forward.1} parent=1 // pred_region
      _
    $region53: #{_forward.1} parent=1 // pred_fallthru
      _
    // Predicated region
    $region54: #{_forward.1} parent=1 // pred_check
      _
    $region55: #{_forward.1} parent=1 // pred_check_branch
      %196 = sbr.rel (0) target = $region57
    $region56: #{_forward.1} parent=1 // pred_region
      %s198 = ssub.s32 12288, 12288
      %199 = vsyncadd [#allocation17], %s198
      %s200 = sshll.u32 [#allocation18], 4
      %s201 = int_to_ptr.vmem [resolvable:$true] %s200
      %206 = dma.hbm_to_vmem [thread:$0]  %s27, 12288, %s201, [#allocation17], 192, 192, 12
    $region57: #{_forward.1} parent=1 // pred_fallthru
      _
    // Predicated region
    $region58: #{_forward.1} parent=1 // pred_check
      _
    $region59: #{_forward.1} parent=1 // pred_check_branch
      %208 = sbr.rel (0) target = $region61
    $region60: #{_forward.1} parent=1 // pred_region
      %s210 = ssub.s32 48, 48
      %211 = vsyncadd [#allocation20], %s210
      %s213 = sshll.u32 [#allocation19], 4
      %s214 = int_to_ptr.vmem [resolvable:$true] %s213
      %216 = dma.hbm_to_vmem [thread:$0]  %s29, 48, %s214, [#allocation20]
    $region61: #{_forward.1} parent=1 // pred_fallthru
      _
    // Predicated region
    $region62: #{_forward.1} parent=1 // pred_check
      _
    $region63: #{_forward.1} parent=1 // pred_check_branch
      %218 = sbr.rel (0) target = $region65
    $region64: #{_forward.1} parent=1 // pred_region
      %s220 = ssub.s32 512, 512
      %221 = vsyncadd [#allocation20], %s220
      %s222 = sshll.u32 [#allocation21], 4
      %s223 = int_to_ptr.vmem [resolvable:$true] %s222
      %228 = dma.hbm_to_vmem [thread:$0]  %s31, 512, %s223, [#allocation20], 128, 128, 8
    $region65: #{_forward.1} parent=1 // pred_fallthru
      _
    // Predicated region
    $region66: #{_forward.1} parent=1 // pred_check
      _
    $region67: #{_forward.1} parent=1 // pred_check_branch
      %230 = sbr.rel (0) target = $region69
    $region68: #{_forward.1} parent=1 // pred_region
      %s232 = ssub.s32 12288, 12288
      %233 = vsyncadd [#allocation23], %s232
      %s234 = sshll.u32 [#allocation22], 4
      %s235 = int_to_ptr.vmem [resolvable:$true] %s234
      %240 = dma.hbm_to_vmem [thread:$0]  %s33, 12288, %s235, [#allocation23], 64, 64, 4
    $region69: #{_forward.1} parent=1 // pred_fallthru
      _
    // Predicated region
    $region70: #{_forward.1} parent=1 // pred_check
      _
    $region71: #{_forward.1} parent=1 // pred_check_branch
      %242 = sbr.rel (0) target = $region73
    $region72: #{_forward.1} parent=1 // pred_region
      _
    $region73: #{_forward.1} parent=1 // pred_fallthru
      _
    // Predicated region
    $region74: #{_forward.1} parent=1 // pred_check
      _
    $region75: #{_forward.1} parent=1 // pred_check_branch
      %244 = sbr.rel (0) target = $region77
    $region76: #{_forward.1} parent=1 // pred_region
      _
    $region77: #{_forward.1} parent=1 // pred_fallthru
      _
    // Predicated region
    $region78: #{_forward.1} parent=1 // pred_check
      _
    $region79: #{_forward.1} parent=1 // pred_check_branch
      %246 = sbr.rel (0) target = $region81
    $region80: #{_forward.1} parent=1 // pred_region
      _
    $region81: #{_forward.1} parent=1 // pred_fallthru
      _
    // Predicated region
    $region82: #{_forward.1} parent=1 // pred_check
      _
    $region83: #{_forward.1} parent=1 // pred_check_branch
      %248 = sbr.rel (0) target = $region85
    $region84: #{_forward.1} parent=1 // pred_region
      _
    $region85: #{_forward.1} parent=1 // pred_fallthru
      _
    // Predicated region
    $region86: #{_forward.1} parent=1 // pred_check
      _
    $region87: #{_forward.1} parent=1 // pred_check_branch
      %250 = sbr.rel (0) target = $region89
    $region88: #{_forward.1} parent=1 // pred_region
      %s252 = ssub.s32 4096, 4096
      %253 = vsyncadd [#allocation23], %s252
      %s254 = sshll.u32 [#allocation24], 4
      %s255 = int_to_ptr.vmem [resolvable:$true] %s254
      %260 = dma.hbm_to_vmem [thread:$0]  %s43, 4096, %s255, [#allocation23], 64, 64, 4
    $region89: #{_forward.1} parent=1 // pred_fallthru
      _
    // Predicated region
    $region90: #{_forward.1} parent=1 // pred_check
      _
    $region91: #{_forward.1} parent=1 // pred_check_branch
      %262 = sbr.rel (0) target = $region93
    $region92: #{_forward.1} parent=1 // pred_region
      %s264 = ssub.s32 16, 16
      %265 = vsyncadd [#allocation26], %s264
      %s267 = sshll.u32 [#allocation25], 4
      %s268 = int_to_ptr.vmem [resolvable:$true] %s267
      %270 = dma.hbm_to_vmem [thread:$0]  %s45, 16, %s268, [#allocation26]
    $region93: #{_forward.1} parent=1 // pred_fallthru
      _
    // Predicated region
    $region94: #{_forward.1} parent=1 // pred_check
      _
    $region95: #{_forward.1} parent=1 // pred_check_branch
      %272 = sbr.rel (0) target = $region97
    $region96: #{_forward.1} parent=1 // pred_region
      _
    $region97: #{_forward.1} parent=1 // pred_fallthru
      _
    // Predicated region
    $region98: #{_forward.1} parent=1 // pred_check
      _
    $region99: #{_forward.1} parent=1 // pred_check_branch
      %274 = sbr.rel (0) target = $region101
    $region100: #{_forward.1} parent=1 // pred_region
      %s276 = ssub.s32 4096, 4096
      %277 = vsyncadd [#allocation26], %s276
      %s278 = sshll.u32 [#allocation27], 4
      %s279 = int_to_ptr.vmem [resolvable:$true] %s278
      %284 = dma.hbm_to_vmem [thread:$0]  %s49, 4096, %s279, [#allocation26], 64, 64, 4
    $region101: #{_forward.1} parent=1 // pred_fallthru
      _
    // Predicated region
    $region102: #{_forward.1} parent=1 // pred_check
      _
    $region103: #{_forward.1} parent=1 // pred_check_branch
      %286 = sbr.rel (0) target = $region105
    $region104: #{_forward.1} parent=1 // pred_region
      %s288 = ssub.s32 16, 16
      %289 = vsyncadd [#allocation29], %s288
      %s291 = sshll.u32 [#allocation28], 4
      %s292 = int_to_ptr.vmem [resolvable:$true] %s291
      %294 = dma.hbm_to_vmem [thread:$0]  %s51, 16, %s292, [#allocation29]
    $region105: #{_forward.1} parent=1 // pred_fallthru
      _
    // Predicated region
    $region106: #{_forward.1} parent=1 // pred_check
      _
    $region107: #{_forward.1} parent=1 // pred_check_branch
      %296 = sbr.rel (0) target = $region109
    $region108: #{_forward.1} parent=1 // pred_region
      %297 = dma.done [#allocation3], 2048
    $region109: #{_forward.1} parent=1 // pred_fallthru
      _
    // Predicated region
    $region110: #{_forward.1} parent=1 // pred_check
      _
    $region111: #{_forward.1} parent=1 // pred_check_branch
      %299 = sbr.rel (0) target = $region113
    $region112: #{_forward.1} parent=1 // pred_region
      %300 = dma.done [#allocation5], 8192
    $region113: #{_forward.1} parent=1 // pred_fallthru
      _
    // Predicated region
    $region114: #{_forward.1} parent=1 // pred_check
      _
    $region115: #{_forward.1} parent=1 // pred_check_branch
      %302 = sbr.rel (0) target = $region117
    $region116: #{_forward.1} parent=1 // pred_region
      %303 = dma.done [#allocation5], 32
    $region117: #{_forward.1} parent=1 // pred_fallthru
      _
    // Predicated region
    $region118: #{_forward.1} parent=1 // pred_check
      _
    $region119: #{_forward.1} parent=1 // pred_check_branch
      %305 = sbr.rel (0) target = $region121
    $region120: #{_forward.1} parent=1 // pred_region
      %306 = dma.done [#allocation8], 1024
    $region121: #{_forward.1} parent=1 // pred_fallthru
      _
    // Predicated region
    $region122: #{_forward.1} parent=1 // pred_check
      _
    $region123: #{_forward.1} parent=1 // pred_check_branch
      %308 = sbr.rel (0) target = $region125
    $region124: #{_forward.1} parent=1 // pred_region
      %309 = dma.done [#allocation8], 32
    $region125: #{_forward.1} parent=1 // pred_fallthru
      _
    // Predicated region
    $region126: #{_forward.1} parent=1 // pred_check
      _
    $region127: #{_forward.1} parent=1 // pred_check_branch
      %311 = sbr.rel (0) target = $region129
    $region128: #{_forward.1} parent=1 // pred_region
      %312 = dma.done [#allocation11], 512
    $region129: #{_forward.1} parent=1 // pred_fallthru
      _
    // Predicated region
    $region130: #{_forward.1} parent=1 // pred_check
      _
    $region131: #{_forward.1} parent=1 // pred_check_branch
      %314 = sbr.rel (0) target = $region133
    $region132: #{_forward.1} parent=1 // pred_region
      %315 = dma.done [#allocation11], 16384
    $region133: #{_forward.1} parent=1 // pred_fallthru
      _
    // Predicated region
    $region134: #{_forward.1} parent=1 // pred_check
      _
    $region135: #{_forward.1} parent=1 // pred_check_branch
      %317 = sbr.rel (0) target = $region137
    $region136: #{_forward.1} parent=1 // pred_region
      %318 = dma.done [#allocation14], 32
    $region137: #{_forward.1} parent=1 // pred_fallthru
      _
    // Predicated region
    $region138: #{_forward.1} parent=1 // pred_check
      _
    $region139: #{_forward.1} parent=1 // pred_check_branch
      %320 = sbr.rel (0) target = $region141
    $region140: #{_forward.1} parent=1 // pred_region
      %321 = dma.done [#allocation14], 512
    $region141: #{_forward.1} parent=1 // pred_fallthru
      _
    // Predicated region
    $region142: #{_forward.1} parent=1 // pred_check
      _
    $region143: #{_forward.1} parent=1 // pred_check_branch
      %323 = sbr.rel (0) target = $region145
    $region144: #{_forward.1} parent=1 // pred_region
      %324 = dma.done [#allocation17], 32768
    $region145: #{_forward.1} parent=1 // pred_fallthru
      _
    // Predicated region
    $region146: #{_forward.1} parent=1 // pred_check
      _
    $region147: #{_forward.1} parent=1 // pred_check_branch
      %326 = sbr.rel (0) target = $region149
    $region148: #{_forward.1} parent=1 // pred_region
      %327 = dma.done [#allocation17], 12288
    $region149: #{_forward.1} parent=1 // pred_fallthru
      _
    // Predicated region
    $region150: #{_forward.1} parent=1 // pred_check
      _
    $region151: #{_forward.1} parent=1 // pred_check_branch
      %329 = sbr.rel (0) target = $region153
    $region152: #{_forward.1} parent=1 // pred_region
      %330 = dma.done [#allocation20], 48
    $region153: #{_forward.1} parent=1 // pred_fallthru
      _
    // Predicated region
    $region154: #{_forward.1} parent=1 // pred_check
      _
    $region155: #{_forward.1} parent=1 // pred_check_branch
      %332 = sbr.rel (0) target = $region157
    $region156: #{_forward.1} parent=1 // pred_region
      %333 = dma.done [#allocation20], 512
    $region157: #{_forward.1} parent=1 // pred_fallthru
      _
    // Predicated region
    $region158: #{_forward.1} parent=1 // pred_check
      _
    $region159: #{_forward.1} parent=1 // pred_check_branch
      %335 = sbr.rel (0) target = $region161
    $region160: #{_forward.1} parent=1 // pred_region
      %336 = dma.done [#allocation23], 12288
    $region161: #{_forward.1} parent=1 // pred_fallthru
      _
    // Predicated region
    $region162: #{_forward.1} parent=1 // pred_check
      _
    $region163: #{_forward.1} parent=1 // pred_check_branch
      %338 = sbr.rel (0) target = $region165
    $region164: #{_forward.1} parent=1 // pred_region
      %339 = dma.done [#allocation23], 4096
    $region165: #{_forward.1} parent=1 // pred_fallthru
      _
    // Predicated region
    $region166: #{_forward.1} parent=1 // pred_check
      _
    $region167: #{_forward.1} parent=1 // pred_check_branch
      %341 = sbr.rel (0) target = $region169
    $region168: #{_forward.1} parent=1 // pred_region
      %342 = dma.done [#allocation26], 16
    $region169: #{_forward.1} parent=1 // pred_fallthru
      _
    // Predicated region
    $region170: #{_forward.1} parent=1 // pred_check
      _
    $region171: #{_forward.1} parent=1 // pred_check_branch
      %344 = sbr.rel (0) target = $region173
    $region172: #{_forward.1} parent=1 // pred_region
      %345 = dma.done [#allocation26], 4096
    $region173: #{_forward.1} parent=1 // pred_fallthru
      _
    // Predicated region
    $region174: #{_forward.1} parent=1 // pred_check
      _
    $region175: #{_forward.1} parent=1 // pred_check_branch
      %347 = sbr.rel (0) target = $region177
    $region176: #{_forward.1} parent=1 // pred_region
      %348 = dma.done [#allocation29], 16
    $region177: #{_forward.1} parent=1 // pred_fallthru
      _
    %v350 = vld [vmem:[%s1] sm:$0xf]
    %v351 = vld [vmem:[%s1 + $0x4] sm:$0xf]
    %v352 = vld [vmem:[%s1 + $0x8] sm:$0xf]
    %v353 = vld [vmem:[%s1 + $0xc] sm:$0xf]
    %v354 = vld [vmem:[%s1 + $0x10] sm:$0xf]
    %v355 = vld [vmem:[%s1 + $0x14] sm:$0xf]
    %v356 = vld [vmem:[%s1 + $0x18] sm:$0xf]
    %v357 = vld [vmem:[%s1 + $0x1c] sm:$0xf]
    %v358 = vld [vmem:[#allocation2] sm:$0xff]
    %v359 = vld [vmem:[#allocation2 + $0x8] sm:$0xff]
    %v360 = vld [vmem:[#allocation2 + $0x10] sm:$0xff]
    %v361 = vld [vmem:[#allocation2 + $0x18] sm:$0xff]
    %v362 = vpack.c.bf16 %v359, %v358
    %v363 = vpack.c.bf16 %v361, %v360
    %v372 = vunpack.c.l.b16 %v350
    %v373 = vunpack.c.l.b16 %v351
    %v374 = vunpack.c.l.b16 %v352
    %v375 = vunpack.c.l.b16 %v353
    %v376 = vunpack.c.l.b16 %v354
    %v377 = vunpack.c.l.b16 %v355
    %v378 = vunpack.c.l.b16 %v356
    %v379 = vunpack.c.l.b16 %v357
    %v380 = vpack.c.b16 %v373, %v372
    %v381 = vpack.c.b16 %v375, %v374
    %v382 = vpack.c.b16 %v377, %v376
    %v383 = vpack.c.b16 %v379, %v378
    %vm388 = vcmask 523264
    %v390 = vsel %vm388, %v362, 0
    %v393 = vsel %vm388, %v363, 0
    %395 = vmatprep.subr.bf16.mxu0 0
    %396 = vmatpush1.bf16.msra.mxu0 0
    %397 = vmatprep.subr.bf16.mxu0 0
    %398 = vmatpush1.bf16.msra.mxu0 0
    %399 = vmatprep.subr.bf16.mxu0 0
    %400 = vmatpush1.bf16.msra.mxu0 0
    %401 = vmatprep.subr.bf16.mxu0 0
    %402 = vmatpush1.bf16.msra.mxu0 0
    %403 = vmatprep.subr.bf16.mxu0 0
    %404 = vmatpush1.bf16.msra.mxu0 %v383
    %405 = vmatprep.subr.bf16.mxu0 0
    %406 = vmatpush1.bf16.msra.mxu0 %v382
    %407 = vmatprep.subr.bf16.mxu0 0
    %408 = vmatpush1.bf16.msra.mxu0 %v381
    %409 = vmatprep.subr.bf16.mxu0 0
    %410 = vmatpush1.bf16.msra.mxu0 %v380
    %411 = vmatprep.subr.bf16.mxu0 0
    %412 = vmatpush2.bf16.msra.mxu0 0
    %413 = vmatprep.subr.bf16.mxu0 0
    %414 = vmatpush2.bf16.msra.mxu0 0
    %415 = vmatprep.subr.bf16.mxu0 0
    %416 = vmatpush2.bf16.msra.mxu0 0
    %417 = vmatprep.subr.bf16.mxu0 0
    %418 = vmatpush2.bf16.msra.mxu0 0
    %419 = vmatprep.subr.bf16.mxu0 0
    %420 = vmatpush2.bf16.msra.mxu0 0
    %421 = vmatprep.subr.bf16.mxu0 0
    %422 = vmatpush2.bf16.msra.mxu0 0
    %423 = vmatprep.subr.bf16.mxu0 0
    %424 = vmatpush2.bf16.msra.mxu0 0
    %425 = vmatprep.subr.bf16.mxu0 0
    %426 = vmatpush2.bf16.msra.mxu0 0
    %427 = vmatprep.mubr.bf16.mxu0 0
    %428 = vmatmul.mubr.bf16.gmra.mxu0 %v390
    %v429 = vpop.f32.mrf.mxu0
    %v430 = vadd.f32 0.0, %v429
    %v431 = vpop.f32.mrf.mxu0
    %v432 = vpop.f32.mrf.mxu0
    %v433 = vadd.f32 0.0, %v432
    %v434 = vpop.f32.mrf.mxu0
    %435 = vmatprep.mubr.bf16.mxu0 0
    %436 = vmatmul.mubr.bf16.gmra.mxu0 %v393
    %v437 = vpop.f32.mrf.mxu0
    %v438 = vadd.f32 0.0, %v437
    %v439 = vpop.f32.mrf.mxu0
    %v440 = vpop.f32.mrf.mxu0
    %v441 = vadd.f32 0.0, %v440
    %v442 = vpop.f32.mrf.mxu0
    %443 = vdwg.mxu0
    %v444 = vpack.c.bf16 %v433, %v430
    %v445 = vpack.c.bf16 %v441, %v438
    %v446 = vld [vmem:[#allocation4] sm:$0xff]
    %v447 = vld [vmem:[#allocation4 + $0x8] sm:$0xff]
    %v448 = vld [vmem:[#allocation4 + $0x10] sm:$0xff]
    %v449 = vld [vmem:[#allocation4 + $0x18] sm:$0xff]
    %v450 = vld [vmem:[#allocation4 + $0x20] sm:$0xff]
    %v451 = vld [vmem:[#allocation4 + $0x28] sm:$0xff]
    %v452 = vld [vmem:[#allocation4 + $0x30] sm:$0xff]
    %v453 = vld [vmem:[#allocation4 + $0x38] sm:$0xff]
    %v454 = vld [vmem:[#allocation4 + $0x40] sm:$0xff]
    %v455 = vld [vmem:[#allocation4 + $0x48] sm:$0xff]
    %v456 = vld [vmem:[#allocation4 + $0x50] sm:$0xff]
    %v457 = vld [vmem:[#allocation4 + $0x58] sm:$0xff]
    %v458 = vld [vmem:[#allocation4 + $0x60] sm:$0xff]
    %v459 = vld [vmem:[#allocation4 + $0x68] sm:$0xff]
    %v460 = vld [vmem:[#allocation4 + $0x70] sm:$0xff]
    %v461 = vld [vmem:[#allocation4 + $0x78] sm:$0xff]
    %s462 = scalar_lea.vmem [#allocation2], 32
    %v463 = vld [vmem:[%s462] sm:$0xff]
    %v464 = vld [vmem:[%s462 + $0x8] sm:$0xff]
    %v465 = vld [vmem:[%s462 + $0x10] sm:$0xff]
    %v466 = vld [vmem:[%s462 + $0x18] sm:$0xff]
    %v467 = vpack.c.bf16 %v464, %v463
    %v468 = vpack.c.bf16 %v466, %v465
    %v470 = vsel %vm388, %v467, 0
    %v473 = vsel %vm388, %v468, 0
    %475 = vmatprep.subr.bf16.mxu0 0
    %476 = vmatpush1.bf16.msra.mxu0 0
    %477 = vmatprep.subr.bf16.mxu0 0
    %478 = vmatpush1.bf16.msra.mxu0 0
    %479 = vmatprep.subr.bf16.mxu0 0
    %480 = vmatpush1.bf16.msra.mxu0 0
    %481 = vmatprep.subr.bf16.mxu0 0
    %482 = vmatpush1.bf16.msra.mxu0 0
    %483 = vmatprep.subr.bf16.mxu0 0
    %484 = vmatpush1.bf16.msra.mxu0 %v383
    %485 = vmatprep.subr.bf16.mxu0 0
    %486 = vmatpush1.bf16.msra.mxu0 %v382
    %487 = vmatprep.subr.bf16.mxu0 0
    %488 = vmatpush1.bf16.msra.mxu0 %v381
    %489 = vmatprep.subr.bf16.mxu0 0
    %490 = vmatpush1.bf16.msra.mxu0 %v380
    %491 = vmatprep.subr.bf16.mxu0 0
    %492 = vmatpush2.bf16.msra.mxu0 0
    %493 = vmatprep.subr.bf16.mxu0 0
    %494 = vmatpush2.bf16.msra.mxu0 0
    %495 = vmatprep.subr.bf16.mxu0 0
    %496 = vmatpush2.bf16.msra.mxu0 0
    %497 = vmatprep.subr.bf16.mxu0 0
    %498 = vmatpush2.bf16.msra.mxu0 0
    %499 = vmatprep.subr.bf16.mxu0 0
    %500 = vmatpush2.bf16.msra.mxu0 0
    %501 = vmatprep.subr.bf16.mxu0 0
    %502 = vmatpush2.bf16.msra.mxu0 0
    %503 = vmatprep.subr.bf16.mxu0 0
    %504 = vmatpush2.bf16.msra.mxu0 0
    %505 = vmatprep.subr.bf16.mxu0 0
    %506 = vmatpush2.bf16.msra.mxu0 0
    %507 = vmatprep.mubr.bf16.mxu0 0
    %508 = vmatmul.mubr.bf16.gmra.mxu0 %v470
    %v509 = vpop.f32.mrf.mxu0
    %v510 = vadd.f32 0.0, %v509
    %v511 = vpop.f32.mrf.mxu0
    %v512 = vpop.f32.mrf.mxu0
    %v513 = vadd.f32 0.0, %v512
    %v514 = vpop.f32.mrf.mxu0
    %515 = vmatprep.mubr.bf16.mxu0 0
    %516 = vmatmul.mubr.bf16.gmra.mxu0 %v473
    %v517 = vpop.f32.mrf.mxu0
    %v518 = vadd.f32 0.0, %v517
    %v519 = vpop.f32.mrf.mxu0
    %v520 = vpop.f32.mrf.mxu0
    %v521 = vadd.f32 0.0, %v520
    %v522 = vpop.f32.mrf.mxu0
    %523 = vdwg.mxu0
    %v524 = vpack.c.bf16 %v513, %v510
    %v525 = vpack.c.bf16 %v521, %v518
    %s526 = scalar_lea.vmem [#allocation4], 128
    %v527 = vld [vmem:[%s526] sm:$0xff]
    %v528 = vld [vmem:[%s526 + $0x8] sm:$0xff]
    %v529 = vld [vmem:[%s526 + $0x10] sm:$0xff]
    %v530 = vld [vmem:[%s526 + $0x18] sm:$0xff]
    %v531 = vld [vmem:[%s526 + $0x20] sm:$0xff]
    %v532 = vld [vmem:[%s526 + $0x28] sm:$0xff]
    %v533 = vld [vmem:[%s526 + $0x30] sm:$0xff]
    %v534 = vld [vmem:[%s526 + $0x38] sm:$0xff]
    %v535 = vld [vmem:[%s526 + $0x40] sm:$0xff]
    %v536 = vld [vmem:[%s526 + $0x48] sm:$0xff]
    %v537 = vld [vmem:[%s526 + $0x50] sm:$0xff]
    %v538 = vld [vmem:[%s526 + $0x58] sm:$0xff]
    %v539 = vld [vmem:[%s526 + $0x60] sm:$0xff]
    %v540 = vld [vmem:[%s526 + $0x68] sm:$0xff]
    %v541 = vld [vmem:[%s526 + $0x70] sm:$0xff]
    %v542 = vld [vmem:[%s526 + $0x78] sm:$0xff]
    %v559 = vunpack.c.l.b16 %v527
    %v560 = vunpack.c.h.b16 %v527
    %v561 = vunpack.c.l.b16 %v528
    %v562 = vunpack.c.h.b16 %v528
    %v563 = vunpack.c.l.b16 %v529
    %v564 = vunpack.c.h.b16 %v529
    %v565 = vunpack.c.l.b16 %v530
    %v566 = vunpack.c.h.b16 %v530
    %v567 = vunpack.c.l.b16 %v531
    %v568 = vunpack.c.h.b16 %v531
    %v569 = vunpack.c.l.b16 %v532
    %v570 = vunpack.c.h.b16 %v532
    %v571 = vunpack.c.l.b16 %v533
    %v572 = vunpack.c.h.b16 %v533
    %v573 = vunpack.c.l.b16 %v534
    %v574 = vunpack.c.h.b16 %v534
    %v575 = vunpack.c.l.b16 %v535
    %v576 = vunpack.c.h.b16 %v535
    %v577 = vunpack.c.l.b16 %v536
    %v578 = vunpack.c.h.b16 %v536
    %v579 = vunpack.c.l.b16 %v537
    %v580 = vunpack.c.h.b16 %v537
    %v581 = vunpack.c.l.b16 %v538
    %v582 = vunpack.c.h.b16 %v538
    %v583 = vunpack.c.l.b16 %v539
    %v584 = vunpack.c.h.b16 %v539
    %v585 = vunpack.c.l.b16 %v540
    %v586 = vunpack.c.h.b16 %v540
    %v587 = vunpack.c.l.b16 %v541
    %v588 = vunpack.c.h.b16 %v541
    %v589 = vunpack.c.l.b16 %v542
    %v590 = vunpack.c.h.b16 %v542
    %v591 = vpack.c.b16 %v561, %v559
    %v592 = vpack.c.b16 %v562, %v560
    %v593 = vpack.c.b16 %v565, %v563
    %v594 = vpack.c.b16 %v566, %v564
    %v595 = vpack.c.b16 %v569, %v567
    %v596 = vpack.c.b16 %v570, %v568
    %v597 = vpack.c.b16 %v573, %v571
    %v598 = vpack.c.b16 %v574, %v572
    %v599 = vpack.c.b16 %v577, %v575
    %v600 = vpack.c.b16 %v578, %v576
    %v601 = vpack.c.b16 %v581, %v579
    %v602 = vpack.c.b16 %v582, %v580
    %v603 = vpack.c.b16 %v585, %v583
    %v604 = vpack.c.b16 %v586, %v584
    %v605 = vpack.c.b16 %v589, %v587
    %v606 = vpack.c.b16 %v590, %v588
    %623 = vmatprep.subr.bf16.mxu0 %v606
    %624 = vmatpush1.bf16.msra.mxu0 %v605
    %625 = vmatprep.subr.bf16.mxu0 %v604
    %626 = vmatpush1.bf16.msra.mxu0 %v603
    %627 = vmatprep.subr.bf16.mxu0 %v602
    %628 = vmatpush1.bf16.msra.mxu0 %v601
    %629 = vmatprep.subr.bf16.mxu0 %v600
    %630 = vmatpush1.bf16.msra.mxu0 %v599
    %631 = vmatprep.subr.bf16.mxu0 %v598
    %632 = vmatpush1.bf16.msra.mxu0 %v597
    %633 = vmatprep.subr.bf16.mxu0 %v596
    %634 = vmatpush1.bf16.msra.mxu0 %v595
    %635 = vmatprep.subr.bf16.mxu0 %v594
    %636 = vmatpush1.bf16.msra.mxu0 %v593
    %637 = vmatprep.subr.bf16.mxu0 %v592
    %638 = vmatpush1.bf16.msra.mxu0 %v591
    %639 = vmatprep.subr.bf16.mxu0 0
    %640 = vmatpush2.bf16.msra.mxu0 0
    %641 = vmatprep.subr.bf16.mxu0 0
    %642 = vmatpush2.bf16.msra.mxu0 0
    %643 = vmatprep.subr.bf16.mxu0 0
    %644 = vmatpush2.bf16.msra.mxu0 0
    %645 = vmatprep.subr.bf16.mxu0 0
    %646 = vmatpush2.bf16.msra.mxu0 0
    %647 = vmatprep.subr.bf16.mxu0 0
    %648 = vmatpush2.bf16.msra.mxu0 0
    %649 = vmatprep.subr.bf16.mxu0 0
    %650 = vmatpush2.bf16.msra.mxu0 0
    %651 = vmatprep.subr.bf16.mxu0 0
    %652 = vmatpush2.bf16.msra.mxu0 0
    %653 = vmatprep.subr.bf16.mxu0 0
    %654 = vmatpush2.bf16.msra.mxu0 0
    %655 = vmatprep.mubr.bf16.mxu0 0
    %656 = vmatmul.mubr.bf16.gmra.mxu0 %v524
    %v657 = vpop.f32.mrf.mxu0
    %v658 = vadd.f32 0.0, %v657
    %v659 = vpop.f32.mrf.mxu0
    %v660 = vadd.f32 0.0, %v659
    %v661 = vpop.f32.mrf.mxu0
    %v662 = vadd.f32 0.0, %v661
    %v663 = vpop.f32.mrf.mxu0
    %v664 = vadd.f32 0.0, %v663
    %665 = vmatprep.mubr.bf16.mxu0 0
    %666 = vmatmul.mubr.bf16.gmra.mxu0 %v525
    %v667 = vpop.f32.mrf.mxu0
    %v668 = vadd.f32 0.0, %v667
    %v669 = vpop.f32.mrf.mxu0
    %v670 = vadd.f32 0.0, %v669
    %v671 = vpop.f32.mrf.mxu0
    %v672 = vadd.f32 0.0, %v671
    %v673 = vpop.f32.mrf.mxu0
    %v674 = vadd.f32 0.0, %v673
    %675 = vdwg.mxu0
    %v692 = vunpack.c.l.b16 %v446
    %v693 = vunpack.c.h.b16 %v446
    %v694 = vunpack.c.l.b16 %v447
    %v695 = vunpack.c.h.b16 %v447
    %v696 = vunpack.c.l.b16 %v448
    %v697 = vunpack.c.h.b16 %v448
    %v698 = vunpack.c.l.b16 %v449
    %v699 = vunpack.c.h.b16 %v449
    %v700 = vunpack.c.l.b16 %v450
    %v701 = vunpack.c.h.b16 %v450
    %v702 = vunpack.c.l.b16 %v451
    %v703 = vunpack.c.h.b16 %v451
    %v704 = vunpack.c.l.b16 %v452
    %v705 = vunpack.c.h.b16 %v452
    %v706 = vunpack.c.l.b16 %v453
    %v707 = vunpack.c.h.b16 %v453
    %v708 = vunpack.c.l.b16 %v454
    %v709 = vunpack.c.h.b16 %v454
    %v710 = vunpack.c.l.b16 %v455
    %v711 = vunpack.c.h.b16 %v455
    %v712 = vunpack.c.l.b16 %v456
    %v713 = vunpack.c.h.b16 %v456
    %v714 = vunpack.c.l.b16 %v457
    %v715 = vunpack.c.h.b16 %v457
    %v716 = vunpack.c.l.b16 %v458
    %v717 = vunpack.c.h.b16 %v458
    %v718 = vunpack.c.l.b16 %v459
    %v719 = vunpack.c.h.b16 %v459
    %v720 = vunpack.c.l.b16 %v460
    %v721 = vunpack.c.h.b16 %v460
    %v722 = vunpack.c.l.b16 %v461
    %v723 = vunpack.c.h.b16 %v461
    %v724 = vpack.c.b16 %v694, %v692
    %v725 = vpack.c.b16 %v695, %v693
    %v726 = vpack.c.b16 %v698, %v696
    %v727 = vpack.c.b16 %v699, %v697
    %v728 = vpack.c.b16 %v702, %v700
    %v729 = vpack.c.b16 %v703, %v701
    %v730 = vpack.c.b16 %v706, %v704
    %v731 = vpack.c.b16 %v707, %v705
    %v732 = vpack.c.b16 %v710, %v708
    %v733 = vpack.c.b16 %v711, %v709
    %v734 = vpack.c.b16 %v714, %v712
    %v735 = vpack.c.b16 %v715, %v713
    %v736 = vpack.c.b16 %v718, %v716
    %v737 = vpack.c.b16 %v719, %v717
    %v738 = vpack.c.b16 %v722, %v720
    %v739 = vpack.c.b16 %v723, %v721
    %756 = vmatprep.subr.bf16.mxu0 %v739
    %757 = vmatpush1.bf16.msra.mxu0 %v738
    %758 = vmatprep.subr.bf16.mxu0 %v737
    %759 = vmatpush1.bf16.msra.mxu0 %v736
    %760 = vmatprep.subr.bf16.mxu0 %v735
    %761 = vmatpush1.bf16.msra.mxu0 %v734
    %762 = vmatprep.subr.bf16.mxu0 %v733
    %763 = vmatpush1.bf16.msra.mxu0 %v732
    %764 = vmatprep.subr.bf16.mxu0 %v731
    %765 = vmatpush1.bf16.msra.mxu0 %v730
    %766 = vmatprep.subr.bf16.mxu0 %v729
    %767 = vmatpush1.bf16.msra.mxu0 %v728
    %768 = vmatprep.subr.bf16.mxu0 %v727
    %769 = vmatpush1.bf16.msra.mxu0 %v726
    %770 = vmatprep.subr.bf16.mxu0 %v725
    %771 = vmatpush1.bf16.msra.mxu0 %v724
    %772 = vmatprep.subr.bf16.mxu0 0
    %773 = vmatpush2.bf16.msra.mxu0 0
    %774 = vmatprep.subr.bf16.mxu0 0
    %775 = vmatpush2.bf16.msra.mxu0 0
    %776 = vmatprep.subr.bf16.mxu0 0
    %777 = vmatpush2.bf16.msra.mxu0 0
    %778 = vmatprep.subr.bf16.mxu0 0
    %779 = vmatpush2.bf16.msra.mxu0 0
    %780 = vmatprep.subr.bf16.mxu0 0
    %781 = vmatpush2.bf16.msra.mxu0 0
    %782 = vmatprep.subr.bf16.mxu0 0
    %783 = vmatpush2.bf16.msra.mxu0 0
    %784 = vmatprep.subr.bf16.mxu0 0
    %785 = vmatpush2.bf16.msra.mxu0 0
    %786 = vmatprep.subr.bf16.mxu0 0
    %787 = vmatpush2.bf16.msra.mxu0 0
    %788 = vmatprep.mubr.bf16.mxu0 0
    %789 = vmatmul.mubr.bf16.gmra.mxu0 %v444
    %v790 = vpop.f32.mrf.mxu0
    %v791 = vadd.f32 %v658, %v790
    %v792 = vpop.f32.mrf.mxu0
    %v793 = vadd.f32 %v660, %v792
    %v794 = vpop.f32.mrf.mxu0
    %v795 = vadd.f32 %v662, %v794
    %v796 = vpop.f32.mrf.mxu0
    %v797 = vadd.f32 %v664, %v796
    %798 = vmatprep.mubr.bf16.mxu0 0
    %799 = vmatmul.mubr.bf16.gmra.mxu0 %v445
    %v800 = vpop.f32.mrf.mxu0
    %v801 = vadd.f32 %v668, %v800
    %v802 = vpop.f32.mrf.mxu0
    %v803 = vadd.f32 %v670, %v802
    %v804 = vpop.f32.mrf.mxu0
    %v805 = vadd.f32 %v672, %v804
    %v806 = vpop.f32.mrf.mxu0
    %v807 = vadd.f32 %v674, %v806
    %808 = vdwg.mxu0
    %s809 = scalar_lea.vmem [#allocation2], 64
    %v810 = vld [vmem:[%s809] sm:$0xff]
    %v811 = vld [vmem:[%s809 + $0x8] sm:$0xff]
    %v812 = vld [vmem:[%s809 + $0x10] sm:$0xff]
    %v813 = vld [vmem:[%s809 + $0x18] sm:$0xff]
    %v814 = vpack.c.bf16 %v811, %v810
    %v815 = vpack.c.bf16 %v813, %v812
    %v817 = vsel %vm388, %v814, 0
    %v820 = vsel %vm388, %v815, 0
    %822 = vmatprep.subr.bf16.mxu0 0
    %823 = vmatpush1.bf16.msra.mxu0 0
    %824 = vmatprep.subr.bf16.mxu0 0
    %825 = vmatpush1.bf16.msra.mxu0 0
    %826 = vmatprep.subr.bf16.mxu0 0
    %827 = vmatpush1.bf16.msra.mxu0 0
    %828 = vmatprep.subr.bf16.mxu0 0
    %829 = vmatpush1.bf16.msra.mxu0 0
    %830 = vmatprep.subr.bf16.mxu0 0
    %831 = vmatpush1.bf16.msra.mxu0 %v383
    %832 = vmatprep.subr.bf16.mxu0 0
    %833 = vmatpush1.bf16.msra.mxu0 %v382
    %834 = vmatprep.subr.bf16.mxu0 0
    %835 = vmatpush1.bf16.msra.mxu0 %v381
    %836 = vmatprep.subr.bf16.mxu0 0
    %837 = vmatpush1.bf16.msra.mxu0 %v380
    %838 = vmatprep.subr.bf16.mxu0 0
    %839 = vmatpush2.bf16.msra.mxu0 0
    %840 = vmatprep.subr.bf16.mxu0 0
    %841 = vmatpush2.bf16.msra.mxu0 0
    %842 = vmatprep.subr.bf16.mxu0 0
    %843 = vmatpush2.bf16.msra.mxu0 0
    %844 = vmatprep.subr.bf16.mxu0 0
    %845 = vmatpush2.bf16.msra.mxu0 0
    %846 = vmatprep.subr.bf16.mxu0 0
    %847 = vmatpush2.bf16.msra.mxu0 0
    %848 = vmatprep.subr.bf16.mxu0 0
    %849 = vmatpush2.bf16.msra.mxu0 0
    %850 = vmatprep.subr.bf16.mxu0 0
    %851 = vmatpush2.bf16.msra.mxu0 0
    %852 = vmatprep.subr.bf16.mxu0 0
    %853 = vmatpush2.bf16.msra.mxu0 0
    %854 = vmatprep.mubr.bf16.mxu0 0
    %855 = vmatmul.mubr.bf16.gmra.mxu0 %v817
    %v856 = vpop.f32.mrf.mxu0
    %v857 = vadd.f32 0.0, %v856
    %v858 = vpop.f32.mrf.mxu0
    %v859 = vpop.f32.mrf.mxu0
    %v860 = vadd.f32 0.0, %v859
    %v861 = vpop.f32.mrf.mxu0
    %862 = vmatprep.mubr.bf16.mxu0 0
    %863 = vmatmul.mubr.bf16.gmra.mxu0 %v820
    %v864 = vpop.f32.mrf.mxu0
    %v865 = vadd.f32 0.0, %v864
    %v866 = vpop.f32.mrf.mxu0
    %v867 = vpop.f32.mrf.mxu0
    %v868 = vadd.f32 0.0, %v867
    %v869 = vpop.f32.mrf.mxu0
    %870 = vdwg.mxu0
    %v871 = vpack.c.bf16 %v860, %v857
    %v872 = vpack.c.bf16 %v868, %v865
    %s873 = scalar_lea.vmem [#allocation4], 256
    %v874 = vld [vmem:[%s873] sm:$0xff]
    %v875 = vld [vmem:[%s873 + $0x8] sm:$0xff]
    %v876 = vld [vmem:[%s873 + $0x10] sm:$0xff]
    %v877 = vld [vmem:[%s873 + $0x18] sm:$0xff]
    %v878 = vld [vmem:[%s873 + $0x20] sm:$0xff]
    %v879 = vld [vmem:[%s873 + $0x28] sm:$0xff]
    %v880 = vld [vmem:[%s873 + $0x30] sm:$0xff]
    %v881 = vld [vmem:[%s873 + $0x38] sm:$0xff]
    %v882 = vld [vmem:[%s873 + $0x40] sm:$0xff]
    %v883 = vld [vmem:[%s873 + $0x48] sm:$0xff]
    %v884 = vld [vmem:[%s873 + $0x50] sm:$0xff]
    %v885 = vld [vmem:[%s873 + $0x58] sm:$0xff]
    %v886 = vld [vmem:[%s873 + $0x60] sm:$0xff]
    %v887 = vld [vmem:[%s873 + $0x68] sm:$0xff]
    %v888 = vld [vmem:[%s873 + $0x70] sm:$0xff]
    %v889 = vld [vmem:[%s873 + $0x78] sm:$0xff]
    %v906 = vunpack.c.l.b16 %v874
    %v907 = vunpack.c.h.b16 %v874
    %v908 = vunpack.c.l.b16 %v875
    %v909 = vunpack.c.h.b16 %v875
    %v910 = vunpack.c.l.b16 %v876
    %v911 = vunpack.c.h.b16 %v876
    %v912 = vunpack.c.l.b16 %v877
    %v913 = vunpack.c.h.b16 %v877
    %v914 = vunpack.c.l.b16 %v878
    %v915 = vunpack.c.h.b16 %v878
    %v916 = vunpack.c.l.b16 %v879
    %v917 = vunpack.c.h.b16 %v879
    %v918 = vunpack.c.l.b16 %v880
    %v919 = vunpack.c.h.b16 %v880
    %v920 = vunpack.c.l.b16 %v881
    %v921 = vunpack.c.h.b16 %v881
    %v922 = vunpack.c.l.b16 %v882
    %v923 = vunpack.c.h.b16 %v882
    %v924 = vunpack.c.l.b16 %v883
    %v925 = vunpack.c.h.b16 %v883
    %v926 = vunpack.c.l.b16 %v884
    %v927 = vunpack.c.h.b16 %v884
    %v928 = vunpack.c.l.b16 %v885
    %v929 = vunpack.c.h.b16 %v885
    %v930 = vunpack.c.l.b16 %v886
    %v931 = vunpack.c.h.b16 %v886
    %v932 = vunpack.c.l.b16 %v887
    %v933 = vunpack.c.h.b16 %v887
    %v934 = vunpack.c.l.b16 %v888
    %v935 = vunpack.c.h.b16 %v888
    %v936 = vunpack.c.l.b16 %v889
    %v937 = vunpack.c.h.b16 %v889
    %v938 = vpack.c.b16 %v908, %v906
    %v939 = vpack.c.b16 %v909, %v907
    %v940 = vpack.c.b16 %v912, %v910
    %v941 = vpack.c.b16 %v913, %v911
    %v942 = vpack.c.b16 %v916, %v914
    %v943 = vpack.c.b16 %v917, %v915
    %v944 = vpack.c.b16 %v920, %v918
    %v945 = vpack.c.b16 %v921, %v919
    %v946 = vpack.c.b16 %v924, %v922
    %v947 = vpack.c.b16 %v925, %v923
    %v948 = vpack.c.b16 %v928, %v926
    %v949 = vpack.c.b16 %v929, %v927
    %v950 = vpack.c.b16 %v932, %v930
    %v951 = vpack.c.b16 %v933, %v931
    %v952 = vpack.c.b16 %v936, %v934
    %v953 = vpack.c.b16 %v937, %v935
    %970 = vmatprep.subr.bf16.mxu0 %v953
    %971 = vmatpush1.bf16.msra.mxu0 %v952
    %972 = vmatprep.subr.bf16.mxu0 %v951
    %973 = vmatpush1.bf16.msra.mxu0 %v950
    %974 = vmatprep.subr.bf16.mxu0 %v949
    %975 = vmatpush1.bf16.msra.mxu0 %v948
    %976 = vmatprep.subr.bf16.mxu0 %v947
    %977 = vmatpush1.bf16.msra.mxu0 %v946
    %978 = vmatprep.subr.bf16.mxu0 %v945
    %979 = vmatpush1.bf16.msra.mxu0 %v944
    %980 = vmatprep.subr.bf16.mxu0 %v943
    %981 = vmatpush1.bf16.msra.mxu0 %v942
    %982 = vmatprep.subr.bf16.mxu0 %v941
    %983 = vmatpush1.bf16.msra.mxu0 %v940
    %984 = vmatprep.subr.bf16.mxu0 %v939
    %985 = vmatpush1.bf16.msra.mxu0 %v938
    %986 = vmatprep.subr.bf16.mxu0 0
    %987 = vmatpush2.bf16.msra.mxu0 0
    %988 = vmatprep.subr.bf16.mxu0 0
    %989 = vmatpush2.bf16.msra.mxu0 0
    %990 = vmatprep.subr.bf16.mxu0 0
    %991 = vmatpush2.bf16.msra.mxu0 0
    %992 = vmatprep.subr.bf16.mxu0 0
    %993 = vmatpush2.bf16.msra.mxu0 0
    %994 = vmatprep.subr.bf16.mxu0 0
    %995 = vmatpush2.bf16.msra.mxu0 0
    %996 = vmatprep.subr.bf16.mxu0 0
    %997 = vmatpush2.bf16.msra.mxu0 0
    %998 = vmatprep.subr.bf16.mxu0 0
    %999 = vmatpush2.bf16.msra.mxu0 0
    %1000 = vmatprep.subr.bf16.mxu0 0
    %1001 = vmatpush2.bf16.msra.mxu0 0
    %1002 = vmatprep.mubr.bf16.mxu0 0
    %1003 = vmatmul.mubr.bf16.gmra.mxu0 %v871
    %v1004 = vpop.f32.mrf.mxu0
    %v1005 = vadd.f32 0.0, %v1004
    %v1006 = vpop.f32.mrf.mxu0
    %v1007 = vadd.f32 0.0, %v1006
    %v1008 = vpop.f32.mrf.mxu0
    %v1009 = vadd.f32 0.0, %v1008
    %v1010 = vpop.f32.mrf.mxu0
    %v1011 = vadd.f32 0.0, %v1010
    %1012 = vmatprep.mubr.bf16.mxu0 0
    %1013 = vmatmul.mubr.bf16.gmra.mxu0 %v872
    %v1014 = vpop.f32.mrf.mxu0
    %v1015 = vadd.f32 0.0, %v1014
    %v1016 = vpop.f32.mrf.mxu0
    %v1017 = vadd.f32 0.0, %v1016
    %v1018 = vpop.f32.mrf.mxu0
    %v1019 = vadd.f32 0.0, %v1018
    %v1020 = vpop.f32.mrf.mxu0
    %v1021 = vadd.f32 0.0, %v1020
    %1022 = vdwg.mxu0
    %v1023 = vadd.f32 %v791, %v1005
    %v1024 = vadd.f32 %v793, %v1007
    %v1025 = vadd.f32 %v795, %v1009
    %v1026 = vadd.f32 %v797, %v1011
    %v1027 = vadd.f32 %v801, %v1015
    %v1028 = vadd.f32 %v803, %v1017
    %v1029 = vadd.f32 %v805, %v1019
    %v1030 = vadd.f32 %v807, %v1021
    %s1031 = scalar_lea.vmem [#allocation2], 96
    %v1032 = vld [vmem:[%s1031] sm:$0xff]
    %v1033 = vld [vmem:[%s1031 + $0x8] sm:$0xff]
    %v1034 = vld [vmem:[%s1031 + $0x10] sm:$0xff]
    %v1035 = vld [vmem:[%s1031 + $0x18] sm:$0xff]
    %v1036 = vpack.c.bf16 %v1033, %v1032
    %v1037 = vpack.c.bf16 %v1035, %v1034
    %v1039 = vsel %vm388, %v1036, 0
    %v1042 = vsel %vm388, %v1037, 0
    %1044 = vmatprep.subr.bf16.mxu0 0
    %1045 = vmatpush1.bf16.msra.mxu0 0
    %1046 = vmatprep.subr.bf16.mxu0 0
    %1047 = vmatpush1.bf16.msra.mxu0 0
    %1048 = vmatprep.subr.bf16.mxu0 0
    %1049 = vmatpush1.bf16.msra.mxu0 0
    %1050 = vmatprep.subr.bf16.mxu0 0
    %1051 = vmatpush1.bf16.msra.mxu0 0
    %1052 = vmatprep.subr.bf16.mxu0 0
    %1053 = vmatpush1.bf16.msra.mxu0 %v383
    %1054 = vmatprep.subr.bf16.mxu0 0
    %1055 = vmatpush1.bf16.msra.mxu0 %v382
    %1056 = vmatprep.subr.bf16.mxu0 0
    %1057 = vmatpush1.bf16.msra.mxu0 %v381
    %1058 = vmatprep.subr.bf16.mxu0 0
    %1059 = vmatpush1.bf16.msra.mxu0 %v380
    %1060 = vmatprep.subr.bf16.mxu0 0
    %1061 = vmatpush2.bf16.msra.mxu0 0
    %1062 = vmatprep.subr.bf16.mxu0 0
    %1063 = vmatpush2.bf16.msra.mxu0 0
    %1064 = vmatprep.subr.bf16.mxu0 0
    %1065 = vmatpush2.bf16.msra.mxu0 0
    %1066 = vmatprep.subr.bf16.mxu0 0
    %1067 = vmatpush2.bf16.msra.mxu0 0
    %1068 = vmatprep.subr.bf16.mxu0 0
    %1069 = vmatpush2.bf16.msra.mxu0 0
    %1070 = vmatprep.subr.bf16.mxu0 0
    %1071 = vmatpush2.bf16.msra.mxu0 0
    %1072 = vmatprep.subr.bf16.mxu0 0
    %1073 = vmatpush2.bf16.msra.mxu0 0
    %1074 = vmatprep.subr.bf16.mxu0 0
    %1075 = vmatpush2.bf16.msra.mxu0 0
    %1076 = vmatprep.mubr.bf16.mxu0 0
    %1077 = vmatmul.mubr.bf16.gmra.mxu0 %v1039
    %v1078 = vpop.f32.mrf.mxu0
    %v1079 = vadd.f32 0.0, %v1078
    %v1080 = vpop.f32.mrf.mxu0
    %v1081 = vpop.f32.mrf.mxu0
    %v1082 = vadd.f32 0.0, %v1081
    %v1083 = vpop.f32.mrf.mxu0
    %1084 = vmatprep.mubr.bf16.mxu0 0
    %1085 = vmatmul.mubr.bf16.gmra.mxu0 %v1042
    %v1086 = vpop.f32.mrf.mxu0
    %v1087 = vadd.f32 0.0, %v1086
    %v1088 = vpop.f32.mrf.mxu0
    %v1089 = vpop.f32.mrf.mxu0
    %v1090 = vadd.f32 0.0, %v1089
    %v1091 = vpop.f32.mrf.mxu0
    %1092 = vdwg.mxu0
    %v1093 = vpack.c.bf16 %v1082, %v1079
    %v1094 = vpack.c.bf16 %v1090, %v1087
    %s1095 = scalar_lea.vmem [#allocation4], 384
    %v1096 = vld [vmem:[%s1095] sm:$0xff]
    %v1097 = vld [vmem:[%s1095 + $0x8] sm:$0xff]
    %v1098 = vld [vmem:[%s1095 + $0x10] sm:$0xff]
    %v1099 = vld [vmem:[%s1095 + $0x18] sm:$0xff]
    %v1100 = vld [vmem:[%s1095 + $0x20] sm:$0xff]
    %v1101 = vld [vmem:[%s1095 + $0x28] sm:$0xff]
    %v1102 = vld [vmem:[%s1095 + $0x30] sm:$0xff]
    %v1103 = vld [vmem:[%s1095 + $0x38] sm:$0xff]
    %v1104 = vld [vmem:[%s1095 + $0x40] sm:$0xff]
    %v1105 = vld [vmem:[%s1095 + $0x48] sm:$0xff]
    %v1106 = vld [vmem:[%s1095 + $0x50] sm:$0xff]
    %v1107 = vld [vmem:[%s1095 + $0x58] sm:$0xff]
    %v1108 = vld [vmem:[%s1095 + $0x60] sm:$0xff]
    %v1109 = vld [vmem:[%s1095 + $0x68] sm:$0xff]
    %v1110 = vld [vmem:[%s1095 + $0x70] sm:$0xff]
    %v1111 = vld [vmem:[%s1095 + $0x78] sm:$0xff]
    %v1128 = vunpack.c.l.b16 %v1096
    %v1129 = vunpack.c.h.b16 %v1096
    %v1130 = vunpack.c.l.b16 %v1097
    %v1131 = vunpack.c.h.b16 %v1097
    %v1132 = vunpack.c.l.b16 %v1098
    %v1133 = vunpack.c.h.b16 %v1098
    %v1134 = vunpack.c.l.b16 %v1099
    %v1135 = vunpack.c.h.b16 %v1099
    %v1136 = vunpack.c.l.b16 %v1100
    %v1137 = vunpack.c.h.b16 %v1100
    %v1138 = vunpack.c.l.b16 %v1101
    %v1139 = vunpack.c.h.b16 %v1101
    %v1140 = vunpack.c.l.b16 %v1102
    %v1141 = vunpack.c.h.b16 %v1102
    %v1142 = vunpack.c.l.b16 %v1103
    %v1143 = vunpack.c.h.b16 %v1103
    %v1144 = vunpack.c.l.b16 %v1104
    %v1145 = vunpack.c.h.b16 %v1104
    %v1146 = vunpack.c.l.b16 %v1105
    %v1147 = vunpack.c.h.b16 %v1105
    %v1148 = vunpack.c.l.b16 %v1106
    %v1149 = vunpack.c.h.b16 %v1106
    %v1150 = vunpack.c.l.b16 %v1107
    %v1151 = vunpack.c.h.b16 %v1107
    %v1152 = vunpack.c.l.b16 %v1108
    %v1153 = vunpack.c.h.b16 %v1108
    %v1154 = vunpack.c.l.b16 %v1109
    %v1155 = vunpack.c.h.b16 %v1109
    %v1156 = vunpack.c.l.b16 %v1110
    %v1157 = vunpack.c.h.b16 %v1110
    %v1158 = vunpack.c.l.b16 %v1111
    %v1159 = vunpack.c.h.b16 %v1111
    %v1160 = vpack.c.b16 %v1130, %v1128
    %v1161 = vpack.c.b16 %v1131, %v1129
    %v1162 = vpack.c.b16 %v1134, %v1132
    %v1163 = vpack.c.b16 %v1135, %v1133
    %v1164 = vpack.c.b16 %v1138, %v1136
    %v1165 = vpack.c.b16 %v1139, %v1137
    %v1166 = vpack.c.b16 %v1142, %v1140
    %v1167 = vpack.c.b16 %v1143, %v1141
    %v1168 = vpack.c.b16 %v1146, %v1144
    %v1169 = vpack.c.b16 %v1147, %v1145
    %v1170 = vpack.c.b16 %v1150, %v1148
    %v1171 = vpack.c.b16 %v1151, %v1149
    %v1172 = vpack.c.b16 %v1154, %v1152
    %v1173 = vpack.c.b16 %v1155, %v1153
    %v1174 = vpack.c.b16 %v1158, %v1156
    %v1175 = vpack.c.b16 %v1159, %v1157
    %1192 = vmatprep.subr.bf16.mxu0 %v1175
    %1193 = vmatpush1.bf16.msra.mxu0 %v1174
    %1194 = vmatprep.subr.bf16.mxu0 %v1173
    %1195 = vmatpush1.bf16.msra.mxu0 %v1172
    %1196 = vmatprep.subr.bf16.mxu0 %v1171
    %1197 = vmatpush1.bf16.msra.mxu0 %v1170
    %1198 = vmatprep.subr.bf16.mxu0 %v1169
    %1199 = vmatpush1.bf16.msra.mxu0 %v1168
    %1200 = vmatprep.subr.bf16.mxu0 %v1167
    %1201 = vmatpush1.bf16.msra.mxu0 %v1166
    %1202 = vmatprep.subr.bf16.mxu0 %v1165
    %1203 = vmatpush1.bf16.msra.mxu0 %v1164
    %1204 = vmatprep.subr.bf16.mxu0 %v1163
    %1205 = vmatpush1.bf16.msra.mxu0 %v1162
    %1206 = vmatprep.subr.bf16.mxu0 %v1161
    %1207 = vmatpush1.bf16.msra.mxu0 %v1160
    %1208 = vmatprep.subr.bf16.mxu0 0
    %1209 = vmatpush2.bf16.msra.mxu0 0
    %1210 = vmatprep.subr.bf16.mxu0 0
    %1211 = vmatpush2.bf16.msra.mxu0 0
    %1212 = vmatprep.subr.bf16.mxu0 0
    %1213 = vmatpush2.bf16.msra.mxu0 0
    %1214 = vmatprep.subr.bf16.mxu0 0
    %1215 = vmatpush2.bf16.msra.mxu0 0
    %1216 = vmatprep.subr.bf16.mxu0 0
    %1217 = vmatpush2.bf16.msra.mxu0 0
    %1218 = vmatprep.subr.bf16.mxu0 0
    %1219 = vmatpush2.bf16.msra.mxu0 0
    %1220 = vmatprep.subr.bf16.mxu0 0
    %1221 = vmatpush2.bf16.msra.mxu0 0
    %1222 = vmatprep.subr.bf16.mxu0 0
    %1223 = vmatpush2.bf16.msra.mxu0 0
    %1224 = vmatprep.mubr.bf16.mxu0 0
    %1225 = vmatmul.mubr.bf16.gmra.mxu0 %v1093
    %v1226 = vpop.f32.mrf.mxu0
    %v1227 = vadd.f32 0.0, %v1226
    %v1228 = vpop.f32.mrf.mxu0
    %v1229 = vadd.f32 0.0, %v1228
    %v1230 = vpop.f32.mrf.mxu0
    %v1231 = vadd.f32 0.0, %v1230
    %v1232 = vpop.f32.mrf.mxu0
    %v1233 = vadd.f32 0.0, %v1232
    %1234 = vmatprep.mubr.bf16.mxu0 0
    %1235 = vmatmul.mubr.bf16.gmra.mxu0 %v1094
    %v1236 = vpop.f32.mrf.mxu0
    %v1237 = vadd.f32 0.0, %v1236
    %v1238 = vpop.f32.mrf.mxu0
    %v1239 = vadd.f32 0.0, %v1238
    %v1240 = vpop.f32.mrf.mxu0
    %v1241 = vadd.f32 0.0, %v1240
    %v1242 = vpop.f32.mrf.mxu0
    %v1243 = vadd.f32 0.0, %v1242
    %1244 = vdwg.mxu0
    %v1245 = vadd.f32 %v1023, %v1227
    %v1246 = vadd.f32 %v1024, %v1229
    %v1247 = vadd.f32 %v1025, %v1231
    %v1248 = vadd.f32 %v1026, %v1233
    %v1249 = vadd.f32 %v1027, %v1237
    %v1250 = vadd.f32 %v1028, %v1239
    %v1251 = vadd.f32 %v1029, %v1241
    %v1252 = vadd.f32 %v1030, %v1243
    %v1253 = vld [vmem:[#allocation6] sm:$0x3]
    %v1255 = vlaneseq
    %v1256 = vshrl.u32 %v1255, 7
    %v1257 = vsub.s32 0, %v1256
    %v1258 = vrot.slane %v1253, %v1257
    %v1259 = vlaneseq
    %v1260 = vshrl.u32 %v1259, 7
    %v1261 = vsub.s32 1, %v1260
    %v1262 = vrot.slane %v1253, %v1261
    %v1265 = vadd.f32 %v1245, %v1258
    %v1266 = vadd.f32 %v1246, %v1262
    %v1267 = vadd.f32 %v1247, %v1258
    %v1268 = vadd.f32 %v1248, %v1262
    %v1269 = vadd.f32 %v1249, %v1258
    %v1270 = vadd.f32 %v1250, %v1262
    %v1271 = vadd.f32 %v1251, %v1258
    %v1272 = vadd.f32 %v1252, %v1262
    %v1273 = vmax.f32 %v1265, 0.0
    %v1274 = vmax.f32 %v1266, 0.0
    %v1275 = vmax.f32 %v1267, 0.0
    %v1276 = vmax.f32 %v1268, 0.0
    %v1277 = vmax.f32 %v1269, 0.0
    %v1278 = vmax.f32 %v1270, 0.0
    %v1279 = vmax.f32 %v1271, 0.0
    %v1280 = vmax.f32 %v1272, 0.0
    %v1281 = vpack.c.bf16 %v1275, %v1273
    %v1282 = vpack.c.bf16 %v1276, %v1274
    %v1283 = vpack.c.bf16 %v1279, %v1277
    %v1284 = vpack.c.bf16 %v1280, %v1278
    %v1285 = vld [vmem:[#allocation7] sm:$0xff]
    %v1286 = vld [vmem:[#allocation7 + $0x8] sm:$0xff]
    %v1287 = vpack.c.bf16 %v1286, %v1285
    %vm1288 = vcmask 261120
    %v1290 = vsel %vm1288, %v1287, 0
    %1292 = vmatprep.subr.bf16.mxu0 0
    %1293 = vmatpush1.bf16.msra.mxu0 0
    %1294 = vmatprep.subr.bf16.mxu0 0
    %1295 = vmatpush1.bf16.msra.mxu0 0
    %1296 = vmatprep.subr.bf16.mxu0 0
    %1297 = vmatpush1.bf16.msra.mxu0 0
    %1298 = vmatprep.subr.bf16.mxu0 0
    %1299 = vmatpush1.bf16.msra.mxu0 0
    %1300 = vmatprep.subr.bf16.mxu0 0
    %1301 = vmatpush1.bf16.msra.mxu0 0
    %1302 = vmatprep.subr.bf16.mxu0 0
    %1303 = vmatpush1.bf16.msra.mxu0 0
    %1304 = vmatprep.subr.bf16.mxu0 %v1284
    %1305 = vmatpush1.bf16.msra.mxu0 %v1283
    %1306 = vmatprep.subr.bf16.mxu0 %v1282
    %1307 = vmatpush1.bf16.msra.mxu0 %v1281
    %1308 = vmatprep.subr.bf16.mxu0 0
    %1309 = vmatpush2.bf16.msra.mxu0 0
    %1310 = vmatprep.subr.bf16.mxu0 0
    %1311 = vmatpush2.bf16.msra.mxu0 0
    %1312 = vmatprep.subr.bf16.mxu0 0
    %1313 = vmatpush2.bf16.msra.mxu0 0
    %1314 = vmatprep.subr.bf16.mxu0 0
    %1315 = vmatpush2.bf16.msra.mxu0 0
    %1316 = vmatprep.subr.bf16.mxu0 0
    %1317 = vmatpush2.bf16.msra.mxu0 0
    %1318 = vmatprep.subr.bf16.mxu0 0
    %1319 = vmatpush2.bf16.msra.mxu0 0
    %1320 = vmatprep.subr.bf16.mxu0 0
    %1321 = vmatpush2.bf16.msra.mxu0 0
    %1322 = vmatprep.subr.bf16.mxu0 0
    %1323 = vmatpush2.bf16.msra.mxu0 0
    %1324 = vmatprep.mubr.bf16.mxu0 0
    %1325 = vmatmul.mubr.bf16.gmra.mxu0 %v1290
    %v1326 = vpop.f32.mrf.mxu0
    %v1327 = vadd.f32 0.0, %v1326
    %v1328 = vpop.f32.mrf.mxu0
    %v1329 = vadd.f32 0.0, %v1328
    %v1330 = vpop.f32.mrf.mxu0
    %v1331 = vadd.f32 0.0, %v1330
    %v1332 = vpop.f32.mrf.mxu0
    %v1333 = vadd.f32 0.0, %v1332
    %1334 = vdwg.mxu0
    %v1335 = vpack.c.bf16 %v1331, %v1327
    %v1336 = vpack.c.bf16 %v1333, %v1329
    %v1337 = vld [vmem:[%s11] sm:$0xff]
    %v1338 = vld [vmem:[%s11 + $0x8] sm:$0xff]
    %v1339 = vld [vmem:[%s11 + $0x10] sm:$0xff]
    %v1340 = vld [vmem:[%s11 + $0x18] sm:$0xff]
    %v1341 = vld [vmem:[%s11 + $0x20] sm:$0xff]
    %v1342 = vld [vmem:[%s11 + $0x28] sm:$0xff]
    %v1343 = vld [vmem:[%s11 + $0x30] sm:$0xff]
    %v1344 = vld [vmem:[%s11 + $0x38] sm:$0xff]
    %v1345 = vld [vmem:[%s11 + $0x40] sm:$0xff]
    %v1346 = vld [vmem:[%s11 + $0x48] sm:$0xff]
    %v1347 = vld [vmem:[%s11 + $0x50] sm:$0xff]
    %v1348 = vld [vmem:[%s11 + $0x58] sm:$0xff]
    %v1349 = vld [vmem:[%s11 + $0x60] sm:$0xff]
    %v1350 = vld [vmem:[%s11 + $0x68] sm:$0xff]
    %v1351 = vld [vmem:[%s11 + $0x70] sm:$0xff]
    %v1352 = vld [vmem:[%s11 + $0x78] sm:$0xff]
    %v1353 = vld [vmem:[%s11 + $0x80] sm:$0xff]
    %v1354 = vld [vmem:[%s11 + $0x88] sm:$0xff]
    %v1355 = vld [vmem:[%s11 + $0x90] sm:$0xff]
    %v1356 = vld [vmem:[%s11 + $0x98] sm:$0xff]
    %v1357 = vld [vmem:[%s11 + $0xa0] sm:$0xff]
    %v1358 = vld [vmem:[%s11 + $0xa8] sm:$0xff]
    %v1359 = vld [vmem:[%s11 + $0xb0] sm:$0xff]
    %v1360 = vld [vmem:[%s11 + $0xb8] sm:$0xff]
    %v1361 = vld [vmem:[%s11 + $0xc0] sm:$0xff]
    %v1362 = vld [vmem:[%s11 + $0xc8] sm:$0xff]
    %v1363 = vld [vmem:[%s11 + $0xd0] sm:$0xff]
    %v1364 = vld [vmem:[%s11 + $0xd8] sm:$0xff]
    %v1365 = vld [vmem:[%s11 + $0xe0] sm:$0xff]
    %v1366 = vld [vmem:[%s11 + $0xe8] sm:$0xff]
    %v1367 = vld [vmem:[%s11 + $0xf0] sm:$0xff]
    %v1368 = vld [vmem:[%s11 + $0xf8] sm:$0xff]
    %s1369 = scalar_lea.vmem [#allocation7], 16
    %v1370 = vld [vmem:[%s1369] sm:$0xff]
    %v1371 = vld [vmem:[%s1369 + $0x8] sm:$0xff]
    %v1372 = vpack.c.bf16 %v1371, %v1370
    %v1374 = vsel %vm1288, %v1372, 0
    %1376 = vmatprep.subr.bf16.mxu0 0
    %1377 = vmatpush1.bf16.msra.mxu0 0
    %1378 = vmatprep.subr.bf16.mxu0 0
    %1379 = vmatpush1.bf16.msra.mxu0 0
    %1380 = vmatprep.subr.bf16.mxu0 0
    %1381 = vmatpush1.bf16.msra.mxu0 0
    %1382 = vmatprep.subr.bf16.mxu0 0
    %1383 = vmatpush1.bf16.msra.mxu0 0
    %1384 = vmatprep.subr.bf16.mxu0 0
    %1385 = vmatpush1.bf16.msra.mxu0 0
    %1386 = vmatprep.subr.bf16.mxu0 0
    %1387 = vmatpush1.bf16.msra.mxu0 0
    %1388 = vmatprep.subr.bf16.mxu0 %v1284
    %1389 = vmatpush1.bf16.msra.mxu0 %v1283
    %1390 = vmatprep.subr.bf16.mxu0 %v1282
    %1391 = vmatpush1.bf16.msra.mxu0 %v1281
    %1392 = vmatprep.subr.bf16.mxu0 0
    %1393 = vmatpush2.bf16.msra.mxu0 0
    %1394 = vmatprep.subr.bf16.mxu0 0
    %1395 = vmatpush2.bf16.msra.mxu0 0
    %1396 = vmatprep.subr.bf16.mxu0 0
    %1397 = vmatpush2.bf16.msra.mxu0 0
    %1398 = vmatprep.subr.bf16.mxu0 0
    %1399 = vmatpush2.bf16.msra.mxu0 0
    %1400 = vmatprep.subr.bf16.mxu0 0
    %1401 = vmatpush2.bf16.msra.mxu0 0
    %1402 = vmatprep.subr.bf16.mxu0 0
    %1403 = vmatpush2.bf16.msra.mxu0 0
    %1404 = vmatprep.subr.bf16.mxu0 0
    %1405 = vmatpush2.bf16.msra.mxu0 0
    %1406 = vmatprep.subr.bf16.mxu0 0
    %1407 = vmatpush2.bf16.msra.mxu0 0
    %1408 = vmatprep.mubr.bf16.mxu0 0
    %1409 = vmatmul.mubr.bf16.gmra.mxu0 %v1374
    %v1410 = vpop.f32.mrf.mxu0
    %v1411 = vadd.f32 0.0, %v1410
    %v1412 = vpop.f32.mrf.mxu0
    %v1413 = vadd.f32 0.0, %v1412
    %v1414 = vpop.f32.mrf.mxu0
    %v1415 = vadd.f32 0.0, %v1414
    %v1416 = vpop.f32.mrf.mxu0
    %v1417 = vadd.f32 0.0, %v1416
    %1418 = vdwg.mxu0
    %v1419 = vpack.c.bf16 %v1415, %v1411
    %v1420 = vpack.c.bf16 %v1417, %v1413
    %s1421 = scalar_lea.vmem %s11, 256
    %v1422 = vld [vmem:[%s1421] sm:$0xff]
    %v1423 = vld [vmem:[%s1421 + $0x8] sm:$0xff]
    %v1424 = vld [vmem:[%s1421 + $0x10] sm:$0xff]
    %v1425 = vld [vmem:[%s1421 + $0x18] sm:$0xff]
    %v1426 = vld [vmem:[%s1421 + $0x20] sm:$0xff]
    %v1427 = vld [vmem:[%s1421 + $0x28] sm:$0xff]
    %v1428 = vld [vmem:[%s1421 + $0x30] sm:$0xff]
    %v1429 = vld [vmem:[%s1421 + $0x38] sm:$0xff]
    %v1430 = vld [vmem:[%s1421 + $0x40] sm:$0xff]
    %v1431 = vld [vmem:[%s1421 + $0x48] sm:$0xff]
    %v1432 = vld [vmem:[%s1421 + $0x50] sm:$0xff]
    %v1433 = vld [vmem:[%s1421 + $0x58] sm:$0xff]
    %v1434 = vld [vmem:[%s1421 + $0x60] sm:$0xff]
    %v1435 = vld [vmem:[%s1421 + $0x68] sm:$0xff]
    %v1436 = vld [vmem:[%s1421 + $0x70] sm:$0xff]
    %v1437 = vld [vmem:[%s1421 + $0x78] sm:$0xff]
    %v1438 = vld [vmem:[%s1421 + $0x80] sm:$0xff]
    %v1439 = vld [vmem:[%s1421 + $0x88] sm:$0xff]
    %v1440 = vld [vmem:[%s1421 + $0x90] sm:$0xff]
    %v1441 = vld [vmem:[%s1421 + $0x98] sm:$0xff]
    %v1442 = vld [vmem:[%s1421 + $0xa0] sm:$0xff]
    %v1443 = vld [vmem:[%s1421 + $0xa8] sm:$0xff]
    %v1444 = vld [vmem:[%s1421 + $0xb0] sm:$0xff]
    %v1445 = vld [vmem:[%s1421 + $0xb8] sm:$0xff]
    %v1446 = vld [vmem:[%s1421 + $0xc0] sm:$0xff]
    %v1447 = vld [vmem:[%s1421 + $0xc8] sm:$0xff]
    %v1448 = vld [vmem:[%s1421 + $0xd0] sm:$0xff]
    %v1449 = vld [vmem:[%s1421 + $0xd8] sm:$0xff]
    %v1450 = vld [vmem:[%s1421 + $0xe0] sm:$0xff]
    %v1451 = vld [vmem:[%s1421 + $0xe8] sm:$0xff]
    %v1452 = vld [vmem:[%s1421 + $0xf0] sm:$0xff]
    %v1453 = vld [vmem:[%s1421 + $0xf8] sm:$0xff]
    %v1486 = vunpack.c.l.b16 %v1422
    %v1487 = vunpack.c.h.b16 %v1422
    %v1488 = vunpack.c.l.b16 %v1423
    %v1489 = vunpack.c.h.b16 %v1423
    %v1490 = vunpack.c.l.b16 %v1424
    %v1491 = vunpack.c.h.b16 %v1424
    %v1492 = vunpack.c.l.b16 %v1425
    %v1493 = vunpack.c.h.b16 %v1425
    %v1494 = vunpack.c.l.b16 %v1426
    %v1495 = vunpack.c.h.b16 %v1426
    %v1496 = vunpack.c.l.b16 %v1427
    %v1497 = vunpack.c.h.b16 %v1427
    %v1498 = vunpack.c.l.b16 %v1428
    %v1499 = vunpack.c.h.b16 %v1428
    %v1500 = vunpack.c.l.b16 %v1429
    %v1501 = vunpack.c.h.b16 %v1429
    %v1502 = vunpack.c.l.b16 %v1430
    %v1503 = vunpack.c.h.b16 %v1430
    %v1504 = vunpack.c.l.b16 %v1431
    %v1505 = vunpack.c.h.b16 %v1431
    %v1506 = vunpack.c.l.b16 %v1432
    %v1507 = vunpack.c.h.b16 %v1432
    %v1508 = vunpack.c.l.b16 %v1433
    %v1509 = vunpack.c.h.b16 %v1433
    %v1510 = vunpack.c.l.b16 %v1434
    %v1511 = vunpack.c.h.b16 %v1434
    %v1512 = vunpack.c.l.b16 %v1435
    %v1513 = vunpack.c.h.b16 %v1435
    %v1514 = vunpack.c.l.b16 %v1436
    %v1515 = vunpack.c.h.b16 %v1436
    %v1516 = vunpack.c.l.b16 %v1437
    %v1517 = vunpack.c.h.b16 %v1437
    %v1518 = vunpack.c.l.b16 %v1438
    %v1519 = vunpack.c.h.b16 %v1438
    %v1520 = vunpack.c.l.b16 %v1439
    %v1521 = vunpack.c.h.b16 %v1439
    %v1522 = vunpack.c.l.b16 %v1440
    %v1523 = vunpack.c.h.b16 %v1440
    %v1524 = vunpack.c.l.b16 %v1441
    %v1525 = vunpack.c.h.b16 %v1441
    %v1526 = vunpack.c.l.b16 %v1442
    %v1527 = vunpack.c.h.b16 %v1442
    %v1528 = vunpack.c.l.b16 %v1443
    %v1529 = vunpack.c.h.b16 %v1443
    %v1530 = vunpack.c.l.b16 %v1444
    %v1531 = vunpack.c.h.b16 %v1444
    %v1532 = vunpack.c.l.b16 %v1445
    %v1533 = vunpack.c.h.b16 %v1445
    %v1534 = vunpack.c.l.b16 %v1446
    %v1535 = vunpack.c.h.b16 %v1446
    %v1536 = vunpack.c.l.b16 %v1447
    %v1537 = vunpack.c.h.b16 %v1447
    %v1538 = vunpack.c.l.b16 %v1448
    %v1539 = vunpack.c.h.b16 %v1448
    %v1540 = vunpack.c.l.b16 %v1449
    %v1541 = vunpack.c.h.b16 %v1449
    %v1542 = vunpack.c.l.b16 %v1450
    %v1543 = vunpack.c.h.b16 %v1450
    %v1544 = vunpack.c.l.b16 %v1451
    %v1545 = vunpack.c.h.b16 %v1451
    %v1546 = vunpack.c.l.b16 %v1452
    %v1547 = vunpack.c.h.b16 %v1452
    %v1548 = vunpack.c.l.b16 %v1453
    %v1549 = vunpack.c.h.b16 %v1453
    %v1550 = vpack.c.b16 %v1488, %v1486
    %v1551 = vpack.c.b16 %v1489, %v1487
    %v1552 = vpack.c.b16 %v1492, %v1490
    %v1553 = vpack.c.b16 %v1493, %v1491
    %v1554 = vpack.c.b16 %v1496, %v1494
    %v1555 = vpack.c.b16 %v1497, %v1495
    %v1556 = vpack.c.b16 %v1500, %v1498
    %v1557 = vpack.c.b16 %v1501, %v1499
    %v1558 = vpack.c.b16 %v1504, %v1502
    %v1559 = vpack.c.b16 %v1505, %v1503
    %v1560 = vpack.c.b16 %v1508, %v1506
    %v1561 = vpack.c.b16 %v1509, %v1507
    %v1562 = vpack.c.b16 %v1512, %v1510
    %v1563 = vpack.c.b16 %v1513, %v1511
    %v1564 = vpack.c.b16 %v1516, %v1514
    %v1565 = vpack.c.b16 %v1517, %v1515
    %v1566 = vpack.c.b16 %v1520, %v1518
    %v1567 = vpack.c.b16 %v1521, %v1519
    %v1568 = vpack.c.b16 %v1524, %v1522
    %v1569 = vpack.c.b16 %v1525, %v1523
    %v1570 = vpack.c.b16 %v1528, %v1526
    %v1571 = vpack.c.b16 %v1529, %v1527
    %v1572 = vpack.c.b16 %v1532, %v1530
    %v1573 = vpack.c.b16 %v1533, %v1531
    %v1574 = vpack.c.b16 %v1536, %v1534
    %v1575 = vpack.c.b16 %v1537, %v1535
    %v1576 = vpack.c.b16 %v1540, %v1538
    %v1577 = vpack.c.b16 %v1541, %v1539
    %v1578 = vpack.c.b16 %v1544, %v1542
    %v1579 = vpack.c.b16 %v1545, %v1543
    %v1580 = vpack.c.b16 %v1548, %v1546
    %v1581 = vpack.c.b16 %v1549, %v1547
    %1614 = vmatprep.subr.bf16.mxu0 %v1565
    %1615 = vmatpush1.bf16.msra.mxu0 %v1564
    %1616 = vmatprep.subr.bf16.mxu0 %v1563
    %1617 = vmatpush1.bf16.msra.mxu0 %v1562
    %1618 = vmatprep.subr.bf16.mxu0 %v1561
    %1619 = vmatpush1.bf16.msra.mxu0 %v1560
    %1620 = vmatprep.subr.bf16.mxu0 %v1559
    %1621 = vmatpush1.bf16.msra.mxu0 %v1558
    %1622 = vmatprep.subr.bf16.mxu0 %v1557
    %1623 = vmatpush1.bf16.msra.mxu0 %v1556
    %1624 = vmatprep.subr.bf16.mxu0 %v1555
    %1625 = vmatpush1.bf16.msra.mxu0 %v1554
    %1626 = vmatprep.subr.bf16.mxu0 %v1553
    %1627 = vmatpush1.bf16.msra.mxu0 %v1552
    %1628 = vmatprep.subr.bf16.mxu0 %v1551
    %1629 = vmatpush1.bf16.msra.mxu0 %v1550
    %1630 = vmatprep.subr.bf16.mxu0 %v1581
    %1631 = vmatpush2.bf16.msra.mxu0 %v1580
    %1632 = vmatprep.subr.bf16.mxu0 %v1579
    %1633 = vmatpush2.bf16.msra.mxu0 %v1578
    %1634 = vmatprep.subr.bf16.mxu0 %v1577
    %1635 = vmatpush2.bf16.msra.mxu0 %v1576
    %1636 = vmatprep.subr.bf16.mxu0 %v1575
    %1637 = vmatpush2.bf16.msra.mxu0 %v1574
    %1638 = vmatprep.subr.bf16.mxu0 %v1573
    %1639 = vmatpush2.bf16.msra.mxu0 %v1572
    %1640 = vmatprep.subr.bf16.mxu0 %v1571
    %1641 = vmatpush2.bf16.msra.mxu0 %v1570
    %1642 = vmatprep.subr.bf16.mxu0 %v1569
    %1643 = vmatpush2.bf16.msra.mxu0 %v1568
    %1644 = vmatprep.subr.bf16.mxu0 %v1567
    %1645 = vmatpush2.bf16.msra.mxu0 %v1566
    %1646 = vmatprep.mubr.bf16.mxu0 %v1420
    %1647 = vmatmul.mubr.bf16.gmra.mxu0 %v1419
    %v1648 = vpop.f32.mrf.mxu0
    %v1649 = vadd.f32 0.0, %v1648
    %v1650 = vpop.f32.mrf.mxu0
    %v1651 = vadd.f32 0.0, %v1650
    %v1652 = vpop.f32.mrf.mxu0
    %v1653 = vadd.f32 0.0, %v1652
    %v1654 = vpop.f32.mrf.mxu0
    %v1655 = vadd.f32 0.0, %v1654
    %1656 = vdwg.mxu0
    %v1689 = vunpack.c.l.b16 %v1337
    %v1690 = vunpack.c.h.b16 %v1337
    %v1691 = vunpack.c.l.b16 %v1338
    %v1692 = vunpack.c.h.b16 %v1338
    %v1693 = vunpack.c.l.b16 %v1339
    %v1694 = vunpack.c.h.b16 %v1339
    %v1695 = vunpack.c.l.b16 %v1340
    %v1696 = vunpack.c.h.b16 %v1340
    %v1697 = vunpack.c.l.b16 %v1341
    %v1698 = vunpack.c.h.b16 %v1341
    %v1699 = vunpack.c.l.b16 %v1342
    %v1700 = vunpack.c.h.b16 %v1342
    %v1701 = vunpack.c.l.b16 %v1343
    %v1702 = vunpack.c.h.b16 %v1343
    %v1703 = vunpack.c.l.b16 %v1344
    %v1704 = vunpack.c.h.b16 %v1344
    %v1705 = vunpack.c.l.b16 %v1345
    %v1706 = vunpack.c.h.b16 %v1345
    %v1707 = vunpack.c.l.b16 %v1346
    %v1708 = vunpack.c.h.b16 %v1346
    %v1709 = vunpack.c.l.b16 %v1347
    %v1710 = vunpack.c.h.b16 %v1347
    %v1711 = vunpack.c.l.b16 %v1348
    %v1712 = vunpack.c.h.b16 %v1348
    %v1713 = vunpack.c.l.b16 %v1349
    %v1714 = vunpack.c.h.b16 %v1349
    %v1715 = vunpack.c.l.b16 %v1350
    %v1716 = vunpack.c.h.b16 %v1350
    %v1717 = vunpack.c.l.b16 %v1351
    %v1718 = vunpack.c.h.b16 %v1351
    %v1719 = vunpack.c.l.b16 %v1352
    %v1720 = vunpack.c.h.b16 %v1352
    %v1721 = vunpack.c.l.b16 %v1353
    %v1722 = vunpack.c.h.b16 %v1353
    %v1723 = vunpack.c.l.b16 %v1354
    %v1724 = vunpack.c.h.b16 %v1354
    %v1725 = vunpack.c.l.b16 %v1355
    %v1726 = vunpack.c.h.b16 %v1355
    %v1727 = vunpack.c.l.b16 %v1356
    %v1728 = vunpack.c.h.b16 %v1356
    %v1729 = vunpack.c.l.b16 %v1357
    %v1730 = vunpack.c.h.b16 %v1357
    %v1731 = vunpack.c.l.b16 %v1358
    %v1732 = vunpack.c.h.b16 %v1358
    %v1733 = vunpack.c.l.b16 %v1359
    %v1734 = vunpack.c.h.b16 %v1359
    %v1735 = vunpack.c.l.b16 %v1360
    %v1736 = vunpack.c.h.b16 %v1360
    %v1737 = vunpack.c.l.b16 %v1361
    %v1738 = vunpack.c.h.b16 %v1361
    %v1739 = vunpack.c.l.b16 %v1362
    %v1740 = vunpack.c.h.b16 %v1362
    %v1741 = vunpack.c.l.b16 %v1363
    %v1742 = vunpack.c.h.b16 %v1363
    %v1743 = vunpack.c.l.b16 %v1364
    %v1744 = vunpack.c.h.b16 %v1364
    %v1745 = vunpack.c.l.b16 %v1365
    %v1746 = vunpack.c.h.b16 %v1365
    %v1747 = vunpack.c.l.b16 %v1366
    %v1748 = vunpack.c.h.b16 %v1366
    %v1749 = vunpack.c.l.b16 %v1367
    %v1750 = vunpack.c.h.b16 %v1367
    %v1751 = vunpack.c.l.b16 %v1368
    %v1752 = vunpack.c.h.b16 %v1368
    %v1753 = vpack.c.b16 %v1691, %v1689
    %v1754 = vpack.c.b16 %v1692, %v1690
    %v1755 = vpack.c.b16 %v1695, %v1693
    %v1756 = vpack.c.b16 %v1696, %v1694
    %v1757 = vpack.c.b16 %v1699, %v1697
    %v1758 = vpack.c.b16 %v1700, %v1698
    %v1759 = vpack.c.b16 %v1703, %v1701
    %v1760 = vpack.c.b16 %v1704, %v1702
    %v1761 = vpack.c.b16 %v1707, %v1705
    %v1762 = vpack.c.b16 %v1708, %v1706
    %v1763 = vpack.c.b16 %v1711, %v1709
    %v1764 = vpack.c.b16 %v1712, %v1710
    %v1765 = vpack.c.b16 %v1715, %v1713
    %v1766 = vpack.c.b16 %v1716, %v1714
    %v1767 = vpack.c.b16 %v1719, %v1717
    %v1768 = vpack.c.b16 %v1720, %v1718
    %v1769 = vpack.c.b16 %v1723, %v1721
    %v1770 = vpack.c.b16 %v1724, %v1722
    %v1771 = vpack.c.b16 %v1727, %v1725
    %v1772 = vpack.c.b16 %v1728, %v1726
    %v1773 = vpack.c.b16 %v1731, %v1729
    %v1774 = vpack.c.b16 %v1732, %v1730
    %v1775 = vpack.c.b16 %v1735, %v1733
    %v1776 = vpack.c.b16 %v1736, %v1734
    %v1777 = vpack.c.b16 %v1739, %v1737
    %v1778 = vpack.c.b16 %v1740, %v1738
    %v1779 = vpack.c.b16 %v1743, %v1741
    %v1780 = vpack.c.b16 %v1744, %v1742
    %v1781 = vpack.c.b16 %v1747, %v1745
    %v1782 = vpack.c.b16 %v1748, %v1746
    %v1783 = vpack.c.b16 %v1751, %v1749
    %v1784 = vpack.c.b16 %v1752, %v1750
    %1817 = vmatprep.subr.bf16.mxu0 %v1768
    %1818 = vmatpush1.bf16.msra.mxu0 %v1767
    %1819 = vmatprep.subr.bf16.mxu0 %v1766
    %1820 = vmatpush1.bf16.msra.mxu0 %v1765
    %1821 = vmatprep.subr.bf16.mxu0 %v1764
    %1822 = vmatpush1.bf16.msra.mxu0 %v1763
    %1823 = vmatprep.subr.bf16.mxu0 %v1762
    %1824 = vmatpush1.bf16.msra.mxu0 %v1761
    %1825 = vmatprep.subr.bf16.mxu0 %v1760
    %1826 = vmatpush1.bf16.msra.mxu0 %v1759
    %1827 = vmatprep.subr.bf16.mxu0 %v1758
    %1828 = vmatpush1.bf16.msra.mxu0 %v1757
    %1829 = vmatprep.subr.bf16.mxu0 %v1756
    %1830 = vmatpush1.bf16.msra.mxu0 %v1755
    %1831 = vmatprep.subr.bf16.mxu0 %v1754
    %1832 = vmatpush1.bf16.msra.mxu0 %v1753
    %1833 = vmatprep.subr.bf16.mxu0 %v1784
    %1834 = vmatpush2.bf16.msra.mxu0 %v1783
    %1835 = vmatprep.subr.bf16.mxu0 %v1782
    %1836 = vmatpush2.bf16.msra.mxu0 %v1781
    %1837 = vmatprep.subr.bf16.mxu0 %v1780
    %1838 = vmatpush2.bf16.msra.mxu0 %v1779
    %1839 = vmatprep.subr.bf16.mxu0 %v1778
    %1840 = vmatpush2.bf16.msra.mxu0 %v1777
    %1841 = vmatprep.subr.bf16.mxu0 %v1776
    %1842 = vmatpush2.bf16.msra.mxu0 %v1775
    %1843 = vmatprep.subr.bf16.mxu0 %v1774
    %1844 = vmatpush2.bf16.msra.mxu0 %v1773
    %1845 = vmatprep.subr.bf16.mxu0 %v1772
    %1846 = vmatpush2.bf16.msra.mxu0 %v1771
    %1847 = vmatprep.subr.bf16.mxu0 %v1770
    %1848 = vmatpush2.bf16.msra.mxu0 %v1769
    %1849 = vmatprep.mubr.bf16.mxu0 %v1336
    %1850 = vmatmul.mubr.bf16.gmra.mxu0 %v1335
    %v1851 = vpop.f32.mrf.mxu0
    %v1852 = vadd.f32 %v1649, %v1851
    %v1853 = vpop.f32.mrf.mxu0
    %v1854 = vadd.f32 %v1651, %v1853
    %v1855 = vpop.f32.mrf.mxu0
    %v1856 = vadd.f32 %v1653, %v1855
    %v1857 = vpop.f32.mrf.mxu0
    %v1858 = vadd.f32 %v1655, %v1857
    %1859 = vdwg.mxu0
    %s1860 = scalar_lea.vmem [#allocation7], 32
    %v1861 = vld [vmem:[%s1860] sm:$0xff]
    %v1862 = vld [vmem:[%s1860 + $0x8] sm:$0xff]
    %v1863 = vpack.c.bf16 %v1862, %v1861
    %v1865 = vsel %vm1288, %v1863, 0
    %1867 = vmatprep.subr.bf16.mxu0 0
    %1868 = vmatpush1.bf16.msra.mxu0 0
    %1869 = vmatprep.subr.bf16.mxu0 0
    %1870 = vmatpush1.bf16.msra.mxu0 0
    %1871 = vmatprep.subr.bf16.mxu0 0
    %1872 = vmatpush1.bf16.msra.mxu0 0
    %1873 = vmatprep.subr.bf16.mxu0 0
    %1874 = vmatpush1.bf16.msra.mxu0 0
    %1875 = vmatprep.subr.bf16.mxu0 0
    %1876 = vmatpush1.bf16.msra.mxu0 0
    %1877 = vmatprep.subr.bf16.mxu0 0
    %1878 = vmatpush1.bf16.msra.mxu0 0
    %1879 = vmatprep.subr.bf16.mxu0 %v1284
    %1880 = vmatpush1.bf16.msra.mxu0 %v1283
    %1881 = vmatprep.subr.bf16.mxu0 %v1282
    %1882 = vmatpush1.bf16.msra.mxu0 %v1281
    %1883 = vmatprep.subr.bf16.mxu0 0
    %1884 = vmatpush2.bf16.msra.mxu0 0
    %1885 = vmatprep.subr.bf16.mxu0 0
    %1886 = vmatpush2.bf16.msra.mxu0 0
    %1887 = vmatprep.subr.bf16.mxu0 0
    %1888 = vmatpush2.bf16.msra.mxu0 0
    %1889 = vmatprep.subr.bf16.mxu0 0
    %1890 = vmatpush2.bf16.msra.mxu0 0
    %1891 = vmatprep.subr.bf16.mxu0 0
    %1892 = vmatpush2.bf16.msra.mxu0 0
    %1893 = vmatprep.subr.bf16.mxu0 0
    %1894 = vmatpush2.bf16.msra.mxu0 0
    %1895 = vmatprep.subr.bf16.mxu0 0
    %1896 = vmatpush2.bf16.msra.mxu0 0
    %1897 = vmatprep.subr.bf16.mxu0 0
    %1898 = vmatpush2.bf16.msra.mxu0 0
    %1899 = vmatprep.mubr.bf16.mxu0 0
    %1900 = vmatmul.mubr.bf16.gmra.mxu0 %v1865
    %v1901 = vpop.f32.mrf.mxu0
    %v1902 = vadd.f32 0.0, %v1901
    %v1903 = vpop.f32.mrf.mxu0
    %v1904 = vadd.f32 0.0, %v1903
    %v1905 = vpop.f32.mrf.mxu0
    %v1906 = vadd.f32 0.0, %v1905
    %v1907 = vpop.f32.mrf.mxu0
    %v1908 = vadd.f32 0.0, %v1907
    %1909 = vdwg.mxu0
    %v1910 = vpack.c.bf16 %v1906, %v1902
    %v1911 = vpack.c.bf16 %v1908, %v1904
    %s1912 = scalar_lea.vmem %s11, 512
    %v1913 = vld [vmem:[%s1912] sm:$0xff]
    %v1914 = vld [vmem:[%s1912 + $0x8] sm:$0xff]
    %v1915 = vld [vmem:[%s1912 + $0x10] sm:$0xff]
    %v1916 = vld [vmem:[%s1912 + $0x18] sm:$0xff]
    %v1917 = vld [vmem:[%s1912 + $0x20] sm:$0xff]
    %v1918 = vld [vmem:[%s1912 + $0x28] sm:$0xff]
    %v1919 = vld [vmem:[%s1912 + $0x30] sm:$0xff]
    %v1920 = vld [vmem:[%s1912 + $0x38] sm:$0xff]
    %v1921 = vld [vmem:[%s1912 + $0x40] sm:$0xff]
    %v1922 = vld [vmem:[%s1912 + $0x48] sm:$0xff]
    %v1923 = vld [vmem:[%s1912 + $0x50] sm:$0xff]
    %v1924 = vld [vmem:[%s1912 + $0x58] sm:$0xff]
    %v1925 = vld [vmem:[%s1912 + $0x60] sm:$0xff]
    %v1926 = vld [vmem:[%s1912 + $0x68] sm:$0xff]
    %v1927 = vld [vmem:[%s1912 + $0x70] sm:$0xff]
    %v1928 = vld [vmem:[%s1912 + $0x78] sm:$0xff]
    %v1929 = vld [vmem:[%s1912 + $0x80] sm:$0xff]
    %v1930 = vld [vmem:[%s1912 + $0x88] sm:$0xff]
    %v1931 = vld [vmem:[%s1912 + $0x90] sm:$0xff]
    %v1932 = vld [vmem:[%s1912 + $0x98] sm:$0xff]
    %v1933 = vld [vmem:[%s1912 + $0xa0] sm:$0xff]
    %v1934 = vld [vmem:[%s1912 + $0xa8] sm:$0xff]
    %v1935 = vld [vmem:[%s1912 + $0xb0] sm:$0xff]
    %v1936 = vld [vmem:[%s1912 + $0xb8] sm:$0xff]
    %v1937 = vld [vmem:[%s1912 + $0xc0] sm:$0xff]
    %v1938 = vld [vmem:[%s1912 + $0xc8] sm:$0xff]
    %v1939 = vld [vmem:[%s1912 + $0xd0] sm:$0xff]
    %v1940 = vld [vmem:[%s1912 + $0xd8] sm:$0xff]
    %v1941 = vld [vmem:[%s1912 + $0xe0] sm:$0xff]
    %v1942 = vld [vmem:[%s1912 + $0xe8] sm:$0xff]
    %v1943 = vld [vmem:[%s1912 + $0xf0] sm:$0xff]
    %v1944 = vld [vmem:[%s1912 + $0xf8] sm:$0xff]
    %v1977 = vunpack.c.l.b16 %v1913
    %v1978 = vunpack.c.h.b16 %v1913
    %v1979 = vunpack.c.l.b16 %v1914
    %v1980 = vunpack.c.h.b16 %v1914
    %v1981 = vunpack.c.l.b16 %v1915
    %v1982 = vunpack.c.h.b16 %v1915
    %v1983 = vunpack.c.l.b16 %v1916
    %v1984 = vunpack.c.h.b16 %v1916
    %v1985 = vunpack.c.l.b16 %v1917
    %v1986 = vunpack.c.h.b16 %v1917
    %v1987 = vunpack.c.l.b16 %v1918
    %v1988 = vunpack.c.h.b16 %v1918
    %v1989 = vunpack.c.l.b16 %v1919
    %v1990 = vunpack.c.h.b16 %v1919
    %v1991 = vunpack.c.l.b16 %v1920
    %v1992 = vunpack.c.h.b16 %v1920
    %v1993 = vunpack.c.l.b16 %v1921
    %v1994 = vunpack.c.h.b16 %v1921
    %v1995 = vunpack.c.l.b16 %v1922
    %v1996 = vunpack.c.h.b16 %v1922
    %v1997 = vunpack.c.l.b16 %v1923
    %v1998 = vunpack.c.h.b16 %v1923
    %v1999 = vunpack.c.l.b16 %v1924
    %v2000 = vunpack.c.h.b16 %v1924
    %v2001 = vunpack.c.l.b16 %v1925
    %v2002 = vunpack.c.h.b16 %v1925
    %v2003 = vunpack.c.l.b16 %v1926
    %v2004 = vunpack.c.h.b16 %v1926
    %v2005 = vunpack.c.l.b16 %v1927
    %v2006 = vunpack.c.h.b16 %v1927
    %v2007 = vunpack.c.l.b16 %v1928
    %v2008 = vunpack.c.h.b16 %v1928
    %v2009 = vunpack.c.l.b16 %v1929
    %v2010 = vunpack.c.h.b16 %v1929
    %v2011 = vunpack.c.l.b16 %v1930
    %v2012 = vunpack.c.h.b16 %v1930
    %v2013 = vunpack.c.l.b16 %v1931
    %v2014 = vunpack.c.h.b16 %v1931
    %v2015 = vunpack.c.l.b16 %v1932
    %v2016 = vunpack.c.h.b16 %v1932
    %v2017 = vunpack.c.l.b16 %v1933
    %v2018 = vunpack.c.h.b16 %v1933
    %v2019 = vunpack.c.l.b16 %v1934
    %v2020 = vunpack.c.h.b16 %v1934
    %v2021 = vunpack.c.l.b16 %v1935
    %v2022 = vunpack.c.h.b16 %v1935
    %v2023 = vunpack.c.l.b16 %v1936
    %v2024 = vunpack.c.h.b16 %v1936
    %v2025 = vunpack.c.l.b16 %v1937
    %v2026 = vunpack.c.h.b16 %v1937
    %v2027 = vunpack.c.l.b16 %v1938
    %v2028 = vunpack.c.h.b16 %v1938
    %v2029 = vunpack.c.l.b16 %v1939
    %v2030 = vunpack.c.h.b16 %v1939
    %v2031 = vunpack.c.l.b16 %v1940
    %v2032 = vunpack.c.h.b16 %v1940
    %v2033 = vunpack.c.l.b16 %v1941
    %v2034 = vunpack.c.h.b16 %v1941
    %v2035 = vunpack.c.l.b16 %v1942
    %v2036 = vunpack.c.h.b16 %v1942
    %v2037 = vunpack.c.l.b16 %v1943
    %v2038 = vunpack.c.h.b16 %v1943
    %v2039 = vunpack.c.l.b16 %v1944
    %v2040 = vunpack.c.h.b16 %v1944
    %v2041 = vpack.c.b16 %v1979, %v1977
    %v2042 = vpack.c.b16 %v1980, %v1978
    %v2043 = vpack.c.b16 %v1983, %v1981
    %v2044 = vpack.c.b16 %v1984, %v1982
    %v2045 = vpack.c.b16 %v1987, %v1985
    %v2046 = vpack.c.b16 %v1988, %v1986
    %v2047 = vpack.c.b16 %v1991, %v1989
    %v2048 = vpack.c.b16 %v1992, %v1990
    %v2049 = vpack.c.b16 %v1995, %v1993
    %v2050 = vpack.c.b16 %v1996, %v1994
    %v2051 = vpack.c.b16 %v1999, %v1997
    %v2052 = vpack.c.b16 %v2000, %v1998
    %v2053 = vpack.c.b16 %v2003, %v2001
    %v2054 = vpack.c.b16 %v2004, %v2002
    %v2055 = vpack.c.b16 %v2007, %v2005
    %v2056 = vpack.c.b16 %v2008, %v2006
    %v2057 = vpack.c.b16 %v2011, %v2009
    %v2058 = vpack.c.b16 %v2012, %v2010
    %v2059 = vpack.c.b16 %v2015, %v2013
    %v2060 = vpack.c.b16 %v2016, %v2014
    %v2061 = vpack.c.b16 %v2019, %v2017
    %v2062 = vpack.c.b16 %v2020, %v2018
    %v2063 = vpack.c.b16 %v2023, %v2021
    %v2064 = vpack.c.b16 %v2024, %v2022
    %v2065 = vpack.c.b16 %v2027, %v2025
    %v2066 = vpack.c.b16 %v2028, %v2026
    %v2067 = vpack.c.b16 %v2031, %v2029
    %v2068 = vpack.c.b16 %v2032, %v2030
    %v2069 = vpack.c.b16 %v2035, %v2033
    %v2070 = vpack.c.b16 %v2036, %v2034
    %v2071 = vpack.c.b16 %v2039, %v2037
    %v2072 = vpack.c.b16 %v2040, %v2038
    %2105 = vmatprep.subr.bf16.mxu0 %v2056
    %2106 = vmatpush1.bf16.msra.mxu0 %v2055
    %2107 = vmatprep.subr.bf16.mxu0 %v2054
    %2108 = vmatpush1.bf16.msra.mxu0 %v2053
    %2109 = vmatprep.subr.bf16.mxu0 %v2052
    %2110 = vmatpush1.bf16.msra.mxu0 %v2051
    %2111 = vmatprep.subr.bf16.mxu0 %v2050
    %2112 = vmatpush1.bf16.msra.mxu0 %v2049
    %2113 = vmatprep.subr.bf16.mxu0 %v2048
    %2114 = vmatpush1.bf16.msra.mxu0 %v2047
    %2115 = vmatprep.subr.bf16.mxu0 %v2046
    %2116 = vmatpush1.bf16.msra.mxu0 %v2045
    %2117 = vmatprep.subr.bf16.mxu0 %v2044
    %2118 = vmatpush1.bf16.msra.mxu0 %v2043
    %2119 = vmatprep.subr.bf16.mxu0 %v2042
    %2120 = vmatpush1.bf16.msra.mxu0 %v2041
    %2121 = vmatprep.subr.bf16.mxu0 %v2072
    %2122 = vmatpush2.bf16.msra.mxu0 %v2071
    %2123 = vmatprep.subr.bf16.mxu0 %v2070
    %2124 = vmatpush2.bf16.msra.mxu0 %v2069
    %2125 = vmatprep.subr.bf16.mxu0 %v2068
    %2126 = vmatpush2.bf16.msra.mxu0 %v2067
    %2127 = vmatprep.subr.bf16.mxu0 %v2066
    %2128 = vmatpush2.bf16.msra.mxu0 %v2065
    %2129 = vmatprep.subr.bf16.mxu0 %v2064
    %2130 = vmatpush2.bf16.msra.mxu0 %v2063
    %2131 = vmatprep.subr.bf16.mxu0 %v2062
    %2132 = vmatpush2.bf16.msra.mxu0 %v2061
    %2133 = vmatprep.subr.bf16.mxu0 %v2060
    %2134 = vmatpush2.bf16.msra.mxu0 %v2059
    %2135 = vmatprep.subr.bf16.mxu0 %v2058
    %2136 = vmatpush2.bf16.msra.mxu0 %v2057
    %2137 = vmatprep.mubr.bf16.mxu0 %v1911
    %2138 = vmatmul.mubr.bf16.gmra.mxu0 %v1910
    %v2139 = vpop.f32.mrf.mxu0
    %v2140 = vadd.f32 0.0, %v2139
    %v2141 = vpop.f32.mrf.mxu0
    %v2142 = vadd.f32 0.0, %v2141
    %v2143 = vpop.f32.mrf.mxu0
    %v2144 = vadd.f32 0.0, %v2143
    %v2145 = vpop.f32.mrf.mxu0
    %v2146 = vadd.f32 0.0, %v2145
    %2147 = vdwg.mxu0
    %v2148 = vadd.f32 %v1852, %v2140
    %v2149 = vadd.f32 %v1854, %v2142
    %v2150 = vadd.f32 %v1856, %v2144
    %v2151 = vadd.f32 %v1858, %v2146
    %s2152 = scalar_lea.vmem [#allocation7], 48
    %v2153 = vld [vmem:[%s2152] sm:$0xff]
    %v2154 = vld [vmem:[%s2152 + $0x8] sm:$0xff]
    %v2155 = vpack.c.bf16 %v2154, %v2153
    %v2157 = vsel %vm1288, %v2155, 0
    %2159 = vmatprep.subr.bf16.mxu0 0
    %2160 = vmatpush1.bf16.msra.mxu0 0
    %2161 = vmatprep.subr.bf16.mxu0 0
    %2162 = vmatpush1.bf16.msra.mxu0 0
    %2163 = vmatprep.subr.bf16.mxu0 0
    %2164 = vmatpush1.bf16.msra.mxu0 0
    %2165 = vmatprep.subr.bf16.mxu0 0
    %2166 = vmatpush1.bf16.msra.mxu0 0
    %2167 = vmatprep.subr.bf16.mxu0 0
    %2168 = vmatpush1.bf16.msra.mxu0 0
    %2169 = vmatprep.subr.bf16.mxu0 0
    %2170 = vmatpush1.bf16.msra.mxu0 0
    %2171 = vmatprep.subr.bf16.mxu0 %v1284
    %2172 = vmatpush1.bf16.msra.mxu0 %v1283
    %2173 = vmatprep.subr.bf16.mxu0 %v1282
    %2174 = vmatpush1.bf16.msra.mxu0 %v1281
    %2175 = vmatprep.subr.bf16.mxu0 0
    %2176 = vmatpush2.bf16.msra.mxu0 0
    %2177 = vmatprep.subr.bf16.mxu0 0
    %2178 = vmatpush2.bf16.msra.mxu0 0
    %2179 = vmatprep.subr.bf16.mxu0 0
    %2180 = vmatpush2.bf16.msra.mxu0 0
    %2181 = vmatprep.subr.bf16.mxu0 0
    %2182 = vmatpush2.bf16.msra.mxu0 0
    %2183 = vmatprep.subr.bf16.mxu0 0
    %2184 = vmatpush2.bf16.msra.mxu0 0
    %2185 = vmatprep.subr.bf16.mxu0 0
    %2186 = vmatpush2.bf16.msra.mxu0 0
    %2187 = vmatprep.subr.bf16.mxu0 0
    %2188 = vmatpush2.bf16.msra.mxu0 0
    %2189 = vmatprep.subr.bf16.mxu0 0
    %2190 = vmatpush2.bf16.msra.mxu0 0
    %2191 = vmatprep.mubr.bf16.mxu0 0
    %2192 = vmatmul.mubr.bf16.gmra.mxu0 %v2157
    %v2193 = vpop.f32.mrf.mxu0
    %v2194 = vadd.f32 0.0, %v2193
    %v2195 = vpop.f32.mrf.mxu0
    %v2196 = vadd.f32 0.0, %v2195
    %v2197 = vpop.f32.mrf.mxu0
    %v2198 = vadd.f32 0.0, %v2197
    %v2199 = vpop.f32.mrf.mxu0
    %v2200 = vadd.f32 0.0, %v2199
    %2201 = vdwg.mxu0
    %v2202 = vpack.c.bf16 %v2198, %v2194
    %v2203 = vpack.c.bf16 %v2200, %v2196
    %s2204 = scalar_lea.vmem %s11, 768
    %v2205 = vld [vmem:[%s2204] sm:$0xff]
    %v2206 = vld [vmem:[%s2204 + $0x8] sm:$0xff]
    %v2207 = vld [vmem:[%s2204 + $0x10] sm:$0xff]
    %v2208 = vld [vmem:[%s2204 + $0x18] sm:$0xff]
    %v2209 = vld [vmem:[%s2204 + $0x20] sm:$0xff]
    %v2210 = vld [vmem:[%s2204 + $0x28] sm:$0xff]
    %v2211 = vld [vmem:[%s2204 + $0x30] sm:$0xff]
    %v2212 = vld [vmem:[%s2204 + $0x38] sm:$0xff]
    %v2213 = vld [vmem:[%s2204 + $0x40] sm:$0xff]
    %v2214 = vld [vmem:[%s2204 + $0x48] sm:$0xff]
    %v2215 = vld [vmem:[%s2204 + $0x50] sm:$0xff]
    %v2216 = vld [vmem:[%s2204 + $0x58] sm:$0xff]
    %v2217 = vld [vmem:[%s2204 + $0x60] sm:$0xff]
    %v2218 = vld [vmem:[%s2204 + $0x68] sm:$0xff]
    %v2219 = vld [vmem:[%s2204 + $0x70] sm:$0xff]
    %v2220 = vld [vmem:[%s2204 + $0x78] sm:$0xff]
    %v2221 = vld [vmem:[%s2204 + $0x80] sm:$0xff]
    %v2222 = vld [vmem:[%s2204 + $0x88] sm:$0xff]
    %v2223 = vld [vmem:[%s2204 + $0x90] sm:$0xff]
    %v2224 = vld [vmem:[%s2204 + $0x98] sm:$0xff]
    %v2225 = vld [vmem:[%s2204 + $0xa0] sm:$0xff]
    %v2226 = vld [vmem:[%s2204 + $0xa8] sm:$0xff]
    %v2227 = vld [vmem:[%s2204 + $0xb0] sm:$0xff]
    %v2228 = vld [vmem:[%s2204 + $0xb8] sm:$0xff]
    %v2229 = vld [vmem:[%s2204 + $0xc0] sm:$0xff]
    %v2230 = vld [vmem:[%s2204 + $0xc8] sm:$0xff]
    %v2231 = vld [vmem:[%s2204 + $0xd0] sm:$0xff]
    %v2232 = vld [vmem:[%s2204 + $0xd8] sm:$0xff]
    %v2233 = vld [vmem:[%s2204 + $0xe0] sm:$0xff]
    %v2234 = vld [vmem:[%s2204 + $0xe8] sm:$0xff]
    %v2235 = vld [vmem:[%s2204 + $0xf0] sm:$0xff]
    %v2236 = vld [vmem:[%s2204 + $0xf8] sm:$0xff]
    %v2269 = vunpack.c.l.b16 %v2205
    %v2270 = vunpack.c.h.b16 %v2205
    %v2271 = vunpack.c.l.b16 %v2206
    %v2272 = vunpack.c.h.b16 %v2206
    %v2273 = vunpack.c.l.b16 %v2207
    %v2274 = vunpack.c.h.b16 %v2207
    %v2275 = vunpack.c.l.b16 %v2208
    %v2276 = vunpack.c.h.b16 %v2208
    %v2277 = vunpack.c.l.b16 %v2209
    %v2278 = vunpack.c.h.b16 %v2209
    %v2279 = vunpack.c.l.b16 %v2210
    %v2280 = vunpack.c.h.b16 %v2210
    %v2281 = vunpack.c.l.b16 %v2211
    %v2282 = vunpack.c.h.b16 %v2211
    %v2283 = vunpack.c.l.b16 %v2212
    %v2284 = vunpack.c.h.b16 %v2212
    %v2285 = vunpack.c.l.b16 %v2213
    %v2286 = vunpack.c.h.b16 %v2213
    %v2287 = vunpack.c.l.b16 %v2214
    %v2288 = vunpack.c.h.b16 %v2214
    %v2289 = vunpack.c.l.b16 %v2215
    %v2290 = vunpack.c.h.b16 %v2215
    %v2291 = vunpack.c.l.b16 %v2216
    %v2292 = vunpack.c.h.b16 %v2216
    %v2293 = vunpack.c.l.b16 %v2217
    %v2294 = vunpack.c.h.b16 %v2217
    %v2295 = vunpack.c.l.b16 %v2218
    %v2296 = vunpack.c.h.b16 %v2218
    %v2297 = vunpack.c.l.b16 %v2219
    %v2298 = vunpack.c.h.b16 %v2219
    %v2299 = vunpack.c.l.b16 %v2220
    %v2300 = vunpack.c.h.b16 %v2220
    %v2301 = vunpack.c.l.b16 %v2221
    %v2302 = vunpack.c.h.b16 %v2221
    %v2303 = vunpack.c.l.b16 %v2222
    %v2304 = vunpack.c.h.b16 %v2222
    %v2305 = vunpack.c.l.b16 %v2223
    %v2306 = vunpack.c.h.b16 %v2223
    %v2307 = vunpack.c.l.b16 %v2224
    %v2308 = vunpack.c.h.b16 %v2224
    %v2309 = vunpack.c.l.b16 %v2225
    %v2310 = vunpack.c.h.b16 %v2225
    %v2311 = vunpack.c.l.b16 %v2226
    %v2312 = vunpack.c.h.b16 %v2226
    %v2313 = vunpack.c.l.b16 %v2227
    %v2314 = vunpack.c.h.b16 %v2227
    %v2315 = vunpack.c.l.b16 %v2228
    %v2316 = vunpack.c.h.b16 %v2228
    %v2317 = vunpack.c.l.b16 %v2229
    %v2318 = vunpack.c.h.b16 %v2229
    %v2319 = vunpack.c.l.b16 %v2230
    %v2320 = vunpack.c.h.b16 %v2230
    %v2321 = vunpack.c.l.b16 %v2231
    %v2322 = vunpack.c.h.b16 %v2231
    %v2323 = vunpack.c.l.b16 %v2232
    %v2324 = vunpack.c.h.b16 %v2232
    %v2325 = vunpack.c.l.b16 %v2233
    %v2326 = vunpack.c.h.b16 %v2233
    %v2327 = vunpack.c.l.b16 %v2234
    %v2328 = vunpack.c.h.b16 %v2234
    %v2329 = vunpack.c.l.b16 %v2235
    %v2330 = vunpack.c.h.b16 %v2235
    %v2331 = vunpack.c.l.b16 %v2236
    %v2332 = vunpack.c.h.b16 %v2236
    %v2333 = vpack.c.b16 %v2271, %v2269
    %v2334 = vpack.c.b16 %v2272, %v2270
    %v2335 = vpack.c.b16 %v2275, %v2273
    %v2336 = vpack.c.b16 %v2276, %v2274
    %v2337 = vpack.c.b16 %v2279, %v2277
    %v2338 = vpack.c.b16 %v2280, %v2278
    %v2339 = vpack.c.b16 %v2283, %v2281
    %v2340 = vpack.c.b16 %v2284, %v2282
    %v2341 = vpack.c.b16 %v2287, %v2285
    %v2342 = vpack.c.b16 %v2288, %v2286
    %v2343 = vpack.c.b16 %v2291, %v2289
    %v2344 = vpack.c.b16 %v2292, %v2290
    %v2345 = vpack.c.b16 %v2295, %v2293
    %v2346 = vpack.c.b16 %v2296, %v2294
    %v2347 = vpack.c.b16 %v2299, %v2297
    %v2348 = vpack.c.b16 %v2300, %v2298
    %v2349 = vpack.c.b16 %v2303, %v2301
    %v2350 = vpack.c.b16 %v2304, %v2302
    %v2351 = vpack.c.b16 %v2307, %v2305
    %v2352 = vpack.c.b16 %v2308, %v2306
    %v2353 = vpack.c.b16 %v2311, %v2309
    %v2354 = vpack.c.b16 %v2312, %v2310
    %v2355 = vpack.c.b16 %v2315, %v2313
    %v2356 = vpack.c.b16 %v2316, %v2314
    %v2357 = vpack.c.b16 %v2319, %v2317
    %v2358 = vpack.c.b16 %v2320, %v2318
    %v2359 = vpack.c.b16 %v2323, %v2321
    %v2360 = vpack.c.b16 %v2324, %v2322
    %v2361 = vpack.c.b16 %v2327, %v2325
    %v2362 = vpack.c.b16 %v2328, %v2326
    %v2363 = vpack.c.b16 %v2331, %v2329
    %v2364 = vpack.c.b16 %v2332, %v2330
    %2397 = vmatprep.subr.bf16.mxu0 %v2348
    %2398 = vmatpush1.bf16.msra.mxu0 %v2347
    %2399 = vmatprep.subr.bf16.mxu0 %v2346
    %2400 = vmatpush1.bf16.msra.mxu0 %v2345
    %2401 = vmatprep.subr.bf16.mxu0 %v2344
    %2402 = vmatpush1.bf16.msra.mxu0 %v2343
    %2403 = vmatprep.subr.bf16.mxu0 %v2342
    %2404 = vmatpush1.bf16.msra.mxu0 %v2341
    %2405 = vmatprep.subr.bf16.mxu0 %v2340
    %2406 = vmatpush1.bf16.msra.mxu0 %v2339
    %2407 = vmatprep.subr.bf16.mxu0 %v2338
    %2408 = vmatpush1.bf16.msra.mxu0 %v2337
    %2409 = vmatprep.subr.bf16.mxu0 %v2336
    %2410 = vmatpush1.bf16.msra.mxu0 %v2335
    %2411 = vmatprep.subr.bf16.mxu0 %v2334
    %2412 = vmatpush1.bf16.msra.mxu0 %v2333
    %2413 = vmatprep.subr.bf16.mxu0 %v2364
    %2414 = vmatpush2.bf16.msra.mxu0 %v2363
    %2415 = vmatprep.subr.bf16.mxu0 %v2362
    %2416 = vmatpush2.bf16.msra.mxu0 %v2361
    %2417 = vmatprep.subr.bf16.mxu0 %v2360
    %2418 = vmatpush2.bf16.msra.mxu0 %v2359
    %2419 = vmatprep.subr.bf16.mxu0 %v2358
    %2420 = vmatpush2.bf16.msra.mxu0 %v2357
    %2421 = vmatprep.subr.bf16.mxu0 %v2356
    %2422 = vmatpush2.bf16.msra.mxu0 %v2355
    %2423 = vmatprep.subr.bf16.mxu0 %v2354
    %2424 = vmatpush2.bf16.msra.mxu0 %v2353
    %2425 = vmatprep.subr.bf16.mxu0 %v2352
    %2426 = vmatpush2.bf16.msra.mxu0 %v2351
    %2427 = vmatprep.subr.bf16.mxu0 %v2350
    %2428 = vmatpush2.bf16.msra.mxu0 %v2349
    %2429 = vmatprep.mubr.bf16.mxu0 %v2203
    %2430 = vmatmul.mubr.bf16.gmra.mxu0 %v2202
    %v2431 = vpop.f32.mrf.mxu0
    %v2432 = vadd.f32 0.0, %v2431
    %v2433 = vpop.f32.mrf.mxu0
    %v2434 = vadd.f32 0.0, %v2433
    %v2435 = vpop.f32.mrf.mxu0
    %v2436 = vadd.f32 0.0, %v2435
    %v2437 = vpop.f32.mrf.mxu0
    %v2438 = vadd.f32 0.0, %v2437
    %2439 = vdwg.mxu0
    %v2440 = vadd.f32 %v2148, %v2432
    %v2441 = vadd.f32 %v2149, %v2434
    %v2442 = vadd.f32 %v2150, %v2436
    %v2443 = vadd.f32 %v2151, %v2438
    %v2444 = vld [vmem:[#allocation9] sm:$0x3]
    %v2446 = vlaneseq
    %v2447 = vshrl.u32 %v2446, 7
    %v2448 = vsub.s32 0, %v2447
    %v2449 = vrot.slane %v2444, %v2448
    %v2450 = vlaneseq
    %v2451 = vshrl.u32 %v2450, 7
    %v2452 = vsub.s32 1, %v2451
    %v2453 = vrot.slane %v2444, %v2452
    %v2456 = vadd.f32 %v2440, %v2449
    %v2457 = vadd.f32 %v2441, %v2453
    %v2458 = vadd.f32 %v2442, %v2449
    %v2459 = vadd.f32 %v2443, %v2453
    %v2460 = vmax.f32 %v2456, 0.0
    %v2461 = vmax.f32 %v2457, 0.0
    %v2462 = vmax.f32 %v2458, 0.0
    %v2463 = vmax.f32 %v2459, 0.0
    %v2464 = vpack.c.bf16 %v2462, %v2460
    %v2465 = vpack.c.bf16 %v2463, %v2461
    %v2466 = vld [vmem:[#allocation10] sm:$0xff]
    %v2467 = vpack.c.bf16 %v2466, %v2466
    %vm2468 = vcmask 130048
    %v2470 = vsel %vm2468, %v2467, 0
    %2472 = vmatprep.subr.bf16.mxu0 0
    %2473 = vmatpush1.bf16.msra.mxu0 0
    %2474 = vmatprep.subr.bf16.mxu0 0
    %2475 = vmatpush1.bf16.msra.mxu0 0
    %2476 = vmatprep.subr.bf16.mxu0 0
    %2477 = vmatpush1.bf16.msra.mxu0 0
    %2478 = vmatprep.subr.bf16.mxu0 0
    %2479 = vmatpush1.bf16.msra.mxu0 0
    %2480 = vmatprep.subr.bf16.mxu0 0
    %2481 = vmatpush1.bf16.msra.mxu0 0
    %2482 = vmatprep.subr.bf16.mxu0 0
    %2483 = vmatpush1.bf16.msra.mxu0 0
    %2484 = vmatprep.subr.bf16.mxu0 0
    %2485 = vmatpush1.bf16.msra.mxu0 0
    %2486 = vmatprep.subr.bf16.mxu0 %v2465
    %2487 = vmatpush1.bf16.msra.mxu0 %v2464
    %2488 = vmatprep.subr.bf16.mxu0 0
    %2489 = vmatpush2.bf16.msra.mxu0 0
    %2490 = vmatprep.subr.bf16.mxu0 0
    %2491 = vmatpush2.bf16.msra.mxu0 0
    %2492 = vmatprep.subr.bf16.mxu0 0
    %2493 = vmatpush2.bf16.msra.mxu0 0
    %2494 = vmatprep.subr.bf16.mxu0 0
    %2495 = vmatpush2.bf16.msra.mxu0 0
    %2496 = vmatprep.subr.bf16.mxu0 0
    %2497 = vmatpush2.bf16.msra.mxu0 0
    %2498 = vmatprep.subr.bf16.mxu0 0
    %2499 = vmatpush2.bf16.msra.mxu0 0
    %2500 = vmatprep.subr.bf16.mxu0 0
    %2501 = vmatpush2.bf16.msra.mxu0 0
    %2502 = vmatprep.subr.bf16.mxu0 0
    %2503 = vmatpush2.bf16.msra.mxu0 0
    %2504 = vmatprep.mubr.bf16.mxu0 0
    %2505 = vmatmul.mubr.bf16.gmra.mxu0 %v2470
    %v2506 = vpop.f32.mrf.mxu0
    %v2507 = vadd.f32 0.0, %v2506
    %v2508 = vpop.f32.mrf.mxu0
    %v2509 = vadd.f32 0.0, %v2508
    %v2510 = vpop.f32.mrf.mxu0
    %v2511 = vpop.f32.mrf.mxu0
    %2512 = vdwg.mxu0
    %v2513 = vpack.c.bf16 %v2507, %v2507
    %v2514 = vpack.c.bf16 %v2509, %v2509
    %v2515 = vld [vmem:[#allocation12] sm:$0xff]
    %v2516 = vld [vmem:[#allocation12 + $0x8] sm:$0xff]
    %v2517 = vld [vmem:[#allocation12 + $0x10] sm:$0xff]
    %v2518 = vld [vmem:[#allocation12 + $0x18] sm:$0xff]
    %v2519 = vld [vmem:[#allocation12 + $0x20] sm:$0xff]
    %v2520 = vld [vmem:[#allocation12 + $0x28] sm:$0xff]
    %v2521 = vld [vmem:[#allocation12 + $0x30] sm:$0xff]
    %v2522 = vld [vmem:[#allocation12 + $0x38] sm:$0xff]
    %v2523 = vld [vmem:[#allocation12 + $0x40] sm:$0xff]
    %v2524 = vld [vmem:[#allocation12 + $0x48] sm:$0xff]
    %v2525 = vld [vmem:[#allocation12 + $0x50] sm:$0xff]
    %v2526 = vld [vmem:[#allocation12 + $0x58] sm:$0xff]
    %v2527 = vld [vmem:[#allocation12 + $0x60] sm:$0xff]
    %v2528 = vld [vmem:[#allocation12 + $0x68] sm:$0xff]
    %v2529 = vld [vmem:[#allocation12 + $0x70] sm:$0xff]
    %v2530 = vld [vmem:[#allocation12 + $0x78] sm:$0xff]
    %v2531 = vld [vmem:[#allocation12 + $0x80] sm:$0xff]
    %v2532 = vld [vmem:[#allocation12 + $0x88] sm:$0xff]
    %v2533 = vld [vmem:[#allocation12 + $0x90] sm:$0xff]
    %v2534 = vld [vmem:[#allocation12 + $0x98] sm:$0xff]
    %v2535 = vld [vmem:[#allocation12 + $0xa0] sm:$0xff]
    %v2536 = vld [vmem:[#allocation12 + $0xa8] sm:$0xff]
    %v2537 = vld [vmem:[#allocation12 + $0xb0] sm:$0xff]
    %v2538 = vld [vmem:[#allocation12 + $0xb8] sm:$0xff]
    %v2539 = vld [vmem:[#allocation12 + $0xc0] sm:$0xff]
    %v2540 = vld [vmem:[#allocation12 + $0xc8] sm:$0xff]
    %v2541 = vld [vmem:[#allocation12 + $0xd0] sm:$0xff]
    %v2542 = vld [vmem:[#allocation12 + $0xd8] sm:$0xff]
    %v2543 = vld [vmem:[#allocation12 + $0xe0] sm:$0xff]
    %v2544 = vld [vmem:[#allocation12 + $0xe8] sm:$0xff]
    %v2545 = vld [vmem:[#allocation12 + $0xf0] sm:$0xff]
    %v2546 = vld [vmem:[#allocation12 + $0xf8] sm:$0xff]
    %s2547 = scalar_lea.vmem [#allocation10], 8
    %v2548 = vld [vmem:[%s2547] sm:$0xff]
    %v2549 = vpack.c.bf16 %v2548, %v2548
    %v2551 = vsel %vm2468, %v2549, 0
    %2553 = vmatprep.subr.bf16.mxu0 0
    %2554 = vmatpush1.bf16.msra.mxu0 0
    %2555 = vmatprep.subr.bf16.mxu0 0
    %2556 = vmatpush1.bf16.msra.mxu0 0
    %2557 = vmatprep.subr.bf16.mxu0 0
    %2558 = vmatpush1.bf16.msra.mxu0 0
    %2559 = vmatprep.subr.bf16.mxu0 0
    %2560 = vmatpush1.bf16.msra.mxu0 0
    %2561 = vmatprep.subr.bf16.mxu0 0
    %2562 = vmatpush1.bf16.msra.mxu0 0
    %2563 = vmatprep.subr.bf16.mxu0 0
    %2564 = vmatpush1.bf16.msra.mxu0 0
    %2565 = vmatprep.subr.bf16.mxu0 0
    %2566 = vmatpush1.bf16.msra.mxu0 0
    %2567 = vmatprep.subr.bf16.mxu0 %v2465
    %2568 = vmatpush1.bf16.msra.mxu0 %v2464
    %2569 = vmatprep.subr.bf16.mxu0 0
    %2570 = vmatpush2.bf16.msra.mxu0 0
    %2571 = vmatprep.subr.bf16.mxu0 0
    %2572 = vmatpush2.bf16.msra.mxu0 0
    %2573 = vmatprep.subr.bf16.mxu0 0
    %2574 = vmatpush2.bf16.msra.mxu0 0
    %2575 = vmatprep.subr.bf16.mxu0 0
    %2576 = vmatpush2.bf16.msra.mxu0 0
    %2577 = vmatprep.subr.bf16.mxu0 0
    %2578 = vmatpush2.bf16.msra.mxu0 0
    %2579 = vmatprep.subr.bf16.mxu0 0
    %2580 = vmatpush2.bf16.msra.mxu0 0
    %2581 = vmatprep.subr.bf16.mxu0 0
    %2582 = vmatpush2.bf16.msra.mxu0 0
    %2583 = vmatprep.subr.bf16.mxu0 0
    %2584 = vmatpush2.bf16.msra.mxu0 0
    %2585 = vmatprep.mubr.bf16.mxu0 0
    %2586 = vmatmul.mubr.bf16.gmra.mxu0 %v2551
    %v2587 = vpop.f32.mrf.mxu0
    %v2588 = vadd.f32 0.0, %v2587
    %v2589 = vpop.f32.mrf.mxu0
    %v2590 = vadd.f32 0.0, %v2589
    %v2591 = vpop.f32.mrf.mxu0
    %v2592 = vpop.f32.mrf.mxu0
    %2593 = vdwg.mxu0
    %v2594 = vpack.c.bf16 %v2588, %v2588
    %v2595 = vpack.c.bf16 %v2590, %v2590
    %s2596 = scalar_lea.vmem [#allocation12], 256
    %v2597 = vld [vmem:[%s2596] sm:$0xff]
    %v2598 = vld [vmem:[%s2596 + $0x8] sm:$0xff]
    %v2599 = vld [vmem:[%s2596 + $0x10] sm:$0xff]
    %v2600 = vld [vmem:[%s2596 + $0x18] sm:$0xff]
    %v2601 = vld [vmem:[%s2596 + $0x20] sm:$0xff]
    %v2602 = vld [vmem:[%s2596 + $0x28] sm:$0xff]
    %v2603 = vld [vmem:[%s2596 + $0x30] sm:$0xff]
    %v2604 = vld [vmem:[%s2596 + $0x38] sm:$0xff]
    %v2605 = vld [vmem:[%s2596 + $0x40] sm:$0xff]
    %v2606 = vld [vmem:[%s2596 + $0x48] sm:$0xff]
    %v2607 = vld [vmem:[%s2596 + $0x50] sm:$0xff]
    %v2608 = vld [vmem:[%s2596 + $0x58] sm:$0xff]
    %v2609 = vld [vmem:[%s2596 + $0x60] sm:$0xff]
    %v2610 = vld [vmem:[%s2596 + $0x68] sm:$0xff]
    %v2611 = vld [vmem:[%s2596 + $0x70] sm:$0xff]
    %v2612 = vld [vmem:[%s2596 + $0x78] sm:$0xff]
    %v2613 = vld [vmem:[%s2596 + $0x80] sm:$0xff]
    %v2614 = vld [vmem:[%s2596 + $0x88] sm:$0xff]
    %v2615 = vld [vmem:[%s2596 + $0x90] sm:$0xff]
    %v2616 = vld [vmem:[%s2596 + $0x98] sm:$0xff]
    %v2617 = vld [vmem:[%s2596 + $0xa0] sm:$0xff]
    %v2618 = vld [vmem:[%s2596 + $0xa8] sm:$0xff]
    %v2619 = vld [vmem:[%s2596 + $0xb0] sm:$0xff]
    %v2620 = vld [vmem:[%s2596 + $0xb8] sm:$0xff]
    %v2621 = vld [vmem:[%s2596 + $0xc0] sm:$0xff]
    %v2622 = vld [vmem:[%s2596 + $0xc8] sm:$0xff]
    %v2623 = vld [vmem:[%s2596 + $0xd0] sm:$0xff]
    %v2624 = vld [vmem:[%s2596 + $0xd8] sm:$0xff]
    %v2625 = vld [vmem:[%s2596 + $0xe0] sm:$0xff]
    %v2626 = vld [vmem:[%s2596 + $0xe8] sm:$0xff]
    %v2627 = vld [vmem:[%s2596 + $0xf0] sm:$0xff]
    %v2628 = vld [vmem:[%s2596 + $0xf8] sm:$0xff]
    %v2661 = vunpack.c.l.b16 %v2597
    %v2662 = vunpack.c.h.b16 %v2597
    %v2663 = vunpack.c.l.b16 %v2598
    %v2664 = vunpack.c.h.b16 %v2598
    %v2665 = vunpack.c.l.b16 %v2599
    %v2666 = vunpack.c.h.b16 %v2599
    %v2667 = vunpack.c.l.b16 %v2600
    %v2668 = vunpack.c.h.b16 %v2600
    %v2669 = vunpack.c.l.b16 %v2601
    %v2670 = vunpack.c.h.b16 %v2601
    %v2671 = vunpack.c.l.b16 %v2602
    %v2672 = vunpack.c.h.b16 %v2602
    %v2673 = vunpack.c.l.b16 %v2603
    %v2674 = vunpack.c.h.b16 %v2603
    %v2675 = vunpack.c.l.b16 %v2604
    %v2676 = vunpack.c.h.b16 %v2604
    %v2677 = vunpack.c.l.b16 %v2605
    %v2678 = vunpack.c.h.b16 %v2605
    %v2679 = vunpack.c.l.b16 %v2606
    %v2680 = vunpack.c.h.b16 %v2606
    %v2681 = vunpack.c.l.b16 %v2607
    %v2682 = vunpack.c.h.b16 %v2607
    %v2683 = vunpack.c.l.b16 %v2608
    %v2684 = vunpack.c.h.b16 %v2608
    %v2685 = vunpack.c.l.b16 %v2609
    %v2686 = vunpack.c.h.b16 %v2609
    %v2687 = vunpack.c.l.b16 %v2610
    %v2688 = vunpack.c.h.b16 %v2610
    %v2689 = vunpack.c.l.b16 %v2611
    %v2690 = vunpack.c.h.b16 %v2611
    %v2691 = vunpack.c.l.b16 %v2612
    %v2692 = vunpack.c.h.b16 %v2612
    %v2693 = vunpack.c.l.b16 %v2613
    %v2694 = vunpack.c.h.b16 %v2613
    %v2695 = vunpack.c.l.b16 %v2614
    %v2696 = vunpack.c.h.b16 %v2614
    %v2697 = vunpack.c.l.b16 %v2615
    %v2698 = vunpack.c.h.b16 %v2615
    %v2699 = vunpack.c.l.b16 %v2616
    %v2700 = vunpack.c.h.b16 %v2616
    %v2701 = vunpack.c.l.b16 %v2617
    %v2702 = vunpack.c.h.b16 %v2617
    %v2703 = vunpack.c.l.b16 %v2618
    %v2704 = vunpack.c.h.b16 %v2618
    %v2705 = vunpack.c.l.b16 %v2619
    %v2706 = vunpack.c.h.b16 %v2619
    %v2707 = vunpack.c.l.b16 %v2620
    %v2708 = vunpack.c.h.b16 %v2620
    %v2709 = vunpack.c.l.b16 %v2621
    %v2710 = vunpack.c.h.b16 %v2621
    %v2711 = vunpack.c.l.b16 %v2622
    %v2712 = vunpack.c.h.b16 %v2622
    %v2713 = vunpack.c.l.b16 %v2623
    %v2714 = vunpack.c.h.b16 %v2623
    %v2715 = vunpack.c.l.b16 %v2624
    %v2716 = vunpack.c.h.b16 %v2624
    %v2717 = vunpack.c.l.b16 %v2625
    %v2718 = vunpack.c.h.b16 %v2625
    %v2719 = vunpack.c.l.b16 %v2626
    %v2720 = vunpack.c.h.b16 %v2626
    %v2721 = vunpack.c.l.b16 %v2627
    %v2722 = vunpack.c.h.b16 %v2627
    %v2723 = vunpack.c.l.b16 %v2628
    %v2724 = vunpack.c.h.b16 %v2628
    %v2725 = vpack.c.b16 %v2663, %v2661
    %v2726 = vpack.c.b16 %v2664, %v2662
    %v2727 = vpack.c.b16 %v2667, %v2665
    %v2728 = vpack.c.b16 %v2668, %v2666
    %v2729 = vpack.c.b16 %v2671, %v2669
    %v2730 = vpack.c.b16 %v2672, %v2670
    %v2731 = vpack.c.b16 %v2675, %v2673
    %v2732 = vpack.c.b16 %v2676, %v2674
    %v2733 = vpack.c.b16 %v2679, %v2677
    %v2734 = vpack.c.b16 %v2680, %v2678
    %v2735 = vpack.c.b16 %v2683, %v2681
    %v2736 = vpack.c.b16 %v2684, %v2682
    %v2737 = vpack.c.b16 %v2687, %v2685
    %v2738 = vpack.c.b16 %v2688, %v2686
    %v2739 = vpack.c.b16 %v2691, %v2689
    %v2740 = vpack.c.b16 %v2692, %v2690
    %v2741 = vpack.c.b16 %v2695, %v2693
    %v2742 = vpack.c.b16 %v2696, %v2694
    %v2743 = vpack.c.b16 %v2699, %v2697
    %v2744 = vpack.c.b16 %v2700, %v2698
    %v2745 = vpack.c.b16 %v2703, %v2701
    %v2746 = vpack.c.b16 %v2704, %v2702
    %v2747 = vpack.c.b16 %v2707, %v2705
    %v2748 = vpack.c.b16 %v2708, %v2706
    %v2749 = vpack.c.b16 %v2711, %v2709
    %v2750 = vpack.c.b16 %v2712, %v2710
    %v2751 = vpack.c.b16 %v2715, %v2713
    %v2752 = vpack.c.b16 %v2716, %v2714
    %v2753 = vpack.c.b16 %v2719, %v2717
    %v2754 = vpack.c.b16 %v2720, %v2718
    %v2755 = vpack.c.b16 %v2723, %v2721
    %v2756 = vpack.c.b16 %v2724, %v2722
    %2789 = vmatprep.subr.bf16.mxu0 %v2740
    %2790 = vmatpush1.bf16.msra.mxu0 %v2739
    %2791 = vmatprep.subr.bf16.mxu0 %v2738
    %2792 = vmatpush1.bf16.msra.mxu0 %v2737
    %2793 = vmatprep.subr.bf16.mxu0 %v2736
    %2794 = vmatpush1.bf16.msra.mxu0 %v2735
    %2795 = vmatprep.subr.bf16.mxu0 %v2734
    %2796 = vmatpush1.bf16.msra.mxu0 %v2733
    %2797 = vmatprep.subr.bf16.mxu0 %v2732
    %2798 = vmatpush1.bf16.msra.mxu0 %v2731
    %2799 = vmatprep.subr.bf16.mxu0 %v2730
    %2800 = vmatpush1.bf16.msra.mxu0 %v2729
    %2801 = vmatprep.subr.bf16.mxu0 %v2728
    %2802 = vmatpush1.bf16.msra.mxu0 %v2727
    %2803 = vmatprep.subr.bf16.mxu0 %v2726
    %2804 = vmatpush1.bf16.msra.mxu0 %v2725
    %2805 = vmatprep.subr.bf16.mxu0 %v2756
    %2806 = vmatpush2.bf16.msra.mxu0 %v2755
    %2807 = vmatprep.subr.bf16.mxu0 %v2754
    %2808 = vmatpush2.bf16.msra.mxu0 %v2753
    %2809 = vmatprep.subr.bf16.mxu0 %v2752
    %2810 = vmatpush2.bf16.msra.mxu0 %v2751
    %2811 = vmatprep.subr.bf16.mxu0 %v2750
    %2812 = vmatpush2.bf16.msra.mxu0 %v2749
    %2813 = vmatprep.subr.bf16.mxu0 %v2748
    %2814 = vmatpush2.bf16.msra.mxu0 %v2747
    %2815 = vmatprep.subr.bf16.mxu0 %v2746
    %2816 = vmatpush2.bf16.msra.mxu0 %v2745
    %2817 = vmatprep.subr.bf16.mxu0 %v2744
    %2818 = vmatpush2.bf16.msra.mxu0 %v2743
    %2819 = vmatprep.subr.bf16.mxu0 %v2742
    %2820 = vmatpush2.bf16.msra.mxu0 %v2741
    %2821 = vmatprep.mubr.bf16.mxu0 %v2595
    %2822 = vmatmul.mubr.bf16.gmra.mxu0 %v2594
    %v2823 = vpop.f32.mrf.mxu0
    %v2824 = vadd.f32 0.0, %v2823
    %v2825 = vpop.f32.mrf.mxu0
    %v2826 = vadd.f32 0.0, %v2825
    %v2827 = vpop.f32.mrf.mxu0
    %v2828 = vpop.f32.mrf.mxu0
    %2829 = vdwg.mxu0
    %v2862 = vunpack.c.l.b16 %v2515
    %v2863 = vunpack.c.h.b16 %v2515
    %v2864 = vunpack.c.l.b16 %v2516
    %v2865 = vunpack.c.h.b16 %v2516
    %v2866 = vunpack.c.l.b16 %v2517
    %v2867 = vunpack.c.h.b16 %v2517
    %v2868 = vunpack.c.l.b16 %v2518
    %v2869 = vunpack.c.h.b16 %v2518
    %v2870 = vunpack.c.l.b16 %v2519
    %v2871 = vunpack.c.h.b16 %v2519
    %v2872 = vunpack.c.l.b16 %v2520
    %v2873 = vunpack.c.h.b16 %v2520
    %v2874 = vunpack.c.l.b16 %v2521
    %v2875 = vunpack.c.h.b16 %v2521
    %v2876 = vunpack.c.l.b16 %v2522
    %v2877 = vunpack.c.h.b16 %v2522
    %v2878 = vunpack.c.l.b16 %v2523
    %v2879 = vunpack.c.h.b16 %v2523
    %v2880 = vunpack.c.l.b16 %v2524
    %v2881 = vunpack.c.h.b16 %v2524
    %v2882 = vunpack.c.l.b16 %v2525
    %v2883 = vunpack.c.h.b16 %v2525
    %v2884 = vunpack.c.l.b16 %v2526
    %v2885 = vunpack.c.h.b16 %v2526
    %v2886 = vunpack.c.l.b16 %v2527
    %v2887 = vunpack.c.h.b16 %v2527
    %v2888 = vunpack.c.l.b16 %v2528
    %v2889 = vunpack.c.h.b16 %v2528
    %v2890 = vunpack.c.l.b16 %v2529
    %v2891 = vunpack.c.h.b16 %v2529
    %v2892 = vunpack.c.l.b16 %v2530
    %v2893 = vunpack.c.h.b16 %v2530
    %v2894 = vunpack.c.l.b16 %v2531
    %v2895 = vunpack.c.h.b16 %v2531
    %v2896 = vunpack.c.l.b16 %v2532
    %v2897 = vunpack.c.h.b16 %v2532
    %v2898 = vunpack.c.l.b16 %v2533
    %v2899 = vunpack.c.h.b16 %v2533
    %v2900 = vunpack.c.l.b16 %v2534
    %v2901 = vunpack.c.h.b16 %v2534
    %v2902 = vunpack.c.l.b16 %v2535
    %v2903 = vunpack.c.h.b16 %v2535
    %v2904 = vunpack.c.l.b16 %v2536
    %v2905 = vunpack.c.h.b16 %v2536
    %v2906 = vunpack.c.l.b16 %v2537
    %v2907 = vunpack.c.h.b16 %v2537
    %v2908 = vunpack.c.l.b16 %v2538
    %v2909 = vunpack.c.h.b16 %v2538
    %v2910 = vunpack.c.l.b16 %v2539
    %v2911 = vunpack.c.h.b16 %v2539
    %v2912 = vunpack.c.l.b16 %v2540
    %v2913 = vunpack.c.h.b16 %v2540
    %v2914 = vunpack.c.l.b16 %v2541
    %v2915 = vunpack.c.h.b16 %v2541
    %v2916 = vunpack.c.l.b16 %v2542
    %v2917 = vunpack.c.h.b16 %v2542
    %v2918 = vunpack.c.l.b16 %v2543
    %v2919 = vunpack.c.h.b16 %v2543
    %v2920 = vunpack.c.l.b16 %v2544
    %v2921 = vunpack.c.h.b16 %v2544
    %v2922 = vunpack.c.l.b16 %v2545
    %v2923 = vunpack.c.h.b16 %v2545
    %v2924 = vunpack.c.l.b16 %v2546
    %v2925 = vunpack.c.h.b16 %v2546
    %v2926 = vpack.c.b16 %v2864, %v2862
    %v2927 = vpack.c.b16 %v2865, %v2863
    %v2928 = vpack.c.b16 %v2868, %v2866
    %v2929 = vpack.c.b16 %v2869, %v2867
    %v2930 = vpack.c.b16 %v2872, %v2870
    %v2931 = vpack.c.b16 %v2873, %v2871
    %v2932 = vpack.c.b16 %v2876, %v2874
    %v2933 = vpack.c.b16 %v2877, %v2875
    %v2934 = vpack.c.b16 %v2880, %v2878
    %v2935 = vpack.c.b16 %v2881, %v2879
    %v2936 = vpack.c.b16 %v2884, %v2882
    %v2937 = vpack.c.b16 %v2885, %v2883
    %v2938 = vpack.c.b16 %v2888, %v2886
    %v2939 = vpack.c.b16 %v2889, %v2887
    %v2940 = vpack.c.b16 %v2892, %v2890
    %v2941 = vpack.c.b16 %v2893, %v2891
    %v2942 = vpack.c.b16 %v2896, %v2894
    %v2943 = vpack.c.b16 %v2897, %v2895
    %v2944 = vpack.c.b16 %v2900, %v2898
    %v2945 = vpack.c.b16 %v2901, %v2899
    %v2946 = vpack.c.b16 %v2904, %v2902
    %v2947 = vpack.c.b16 %v2905, %v2903
    %v2948 = vpack.c.b16 %v2908, %v2906
    %v2949 = vpack.c.b16 %v2909, %v2907
    %v2950 = vpack.c.b16 %v2912, %v2910
    %v2951 = vpack.c.b16 %v2913, %v2911
    %v2952 = vpack.c.b16 %v2916, %v2914
    %v2953 = vpack.c.b16 %v2917, %v2915
    %v2954 = vpack.c.b16 %v2920, %v2918
    %v2955 = vpack.c.b16 %v2921, %v2919
    %v2956 = vpack.c.b16 %v2924, %v2922
    %v2957 = vpack.c.b16 %v2925, %v2923
    %2990 = vmatprep.subr.bf16.mxu0 %v2941
    %2991 = vmatpush1.bf16.msra.mxu0 %v2940
    %2992 = vmatprep.subr.bf16.mxu0 %v2939
    %2993 = vmatpush1.bf16.msra.mxu0 %v2938
    %2994 = vmatprep.subr.bf16.mxu0 %v2937
    %2995 = vmatpush1.bf16.msra.mxu0 %v2936
    %2996 = vmatprep.subr.bf16.mxu0 %v2935
    %2997 = vmatpush1.bf16.msra.mxu0 %v2934
    %2998 = vmatprep.subr.bf16.mxu0 %v2933
    %2999 = vmatpush1.bf16.msra.mxu0 %v2932
    %3000 = vmatprep.subr.bf16.mxu0 %v2931
    %3001 = vmatpush1.bf16.msra.mxu0 %v2930
    %3002 = vmatprep.subr.bf16.mxu0 %v2929
    %3003 = vmatpush1.bf16.msra.mxu0 %v2928
    %3004 = vmatprep.subr.bf16.mxu0 %v2927
    %3005 = vmatpush1.bf16.msra.mxu0 %v2926
    %3006 = vmatprep.subr.bf16.mxu0 %v2957
    %3007 = vmatpush2.bf16.msra.mxu0 %v2956
    %3008 = vmatprep.subr.bf16.mxu0 %v2955
    %3009 = vmatpush2.bf16.msra.mxu0 %v2954
    %3010 = vmatprep.subr.bf16.mxu0 %v2953
    %3011 = vmatpush2.bf16.msra.mxu0 %v2952
    %3012 = vmatprep.subr.bf16.mxu0 %v2951
    %3013 = vmatpush2.bf16.msra.mxu0 %v2950
    %3014 = vmatprep.subr.bf16.mxu0 %v2949
    %3015 = vmatpush2.bf16.msra.mxu0 %v2948
    %3016 = vmatprep.subr.bf16.mxu0 %v2947
    %3017 = vmatpush2.bf16.msra.mxu0 %v2946
    %3018 = vmatprep.subr.bf16.mxu0 %v2945
    %3019 = vmatpush2.bf16.msra.mxu0 %v2944
    %3020 = vmatprep.subr.bf16.mxu0 %v2943
    %3021 = vmatpush2.bf16.msra.mxu0 %v2942
    %3022 = vmatprep.mubr.bf16.mxu0 %v2514
    %3023 = vmatmul.mubr.bf16.gmra.mxu0 %v2513
    %v3024 = vpop.f32.mrf.mxu0
    %v3025 = vadd.f32 %v2824, %v3024
    %v3026 = vpop.f32.mrf.mxu0
    %v3027 = vadd.f32 %v2826, %v3026
    %v3028 = vpop.f32.mrf.mxu0
    %v3029 = vpop.f32.mrf.mxu0
    %3030 = vdwg.mxu0
    %s3031 = scalar_lea.vmem [#allocation10], 16
    %v3032 = vld [vmem:[%s3031] sm:$0xff]
    %v3033 = vpack.c.bf16 %v3032, %v3032
    %v3035 = vsel %vm2468, %v3033, 0
    %3037 = vmatprep.subr.bf16.mxu0 0
    %3038 = vmatpush1.bf16.msra.mxu0 0
    %3039 = vmatprep.subr.bf16.mxu0 0
    %3040 = vmatpush1.bf16.msra.mxu0 0
    %3041 = vmatprep.subr.bf16.mxu0 0
    %3042 = vmatpush1.bf16.msra.mxu0 0
    %3043 = vmatprep.subr.bf16.mxu0 0
    %3044 = vmatpush1.bf16.msra.mxu0 0
    %3045 = vmatprep.subr.bf16.mxu0 0
    %3046 = vmatpush1.bf16.msra.mxu0 0
    %3047 = vmatprep.subr.bf16.mxu0 0
    %3048 = vmatpush1.bf16.msra.mxu0 0
    %3049 = vmatprep.subr.bf16.mxu0 0
    %3050 = vmatpush1.bf16.msra.mxu0 0
    %3051 = vmatprep.subr.bf16.mxu0 %v2465
    %3052 = vmatpush1.bf16.msra.mxu0 %v2464
    %3053 = vmatprep.subr.bf16.mxu0 0
    %3054 = vmatpush2.bf16.msra.mxu0 0
    %3055 = vmatprep.subr.bf16.mxu0 0
    %3056 = vmatpush2.bf16.msra.mxu0 0
    %3057 = vmatprep.subr.bf16.mxu0 0
    %3058 = vmatpush2.bf16.msra.mxu0 0
    %3059 = vmatprep.subr.bf16.mxu0 0
    %3060 = vmatpush2.bf16.msra.mxu0 0
    %3061 = vmatprep.subr.bf16.mxu0 0
    %3062 = vmatpush2.bf16.msra.mxu0 0
    %3063 = vmatprep.subr.bf16.mxu0 0
    %3064 = vmatpush2.bf16.msra.mxu0 0
    %3065 = vmatprep.subr.bf16.mxu0 0
    %3066 = vmatpush2.bf16.msra.mxu0 0
    %3067 = vmatprep.subr.bf16.mxu0 0
    %3068 = vmatpush2.bf16.msra.mxu0 0
    %3069 = vmatprep.mubr.bf16.mxu0 0
    %3070 = vmatmul.mubr.bf16.gmra.mxu0 %v3035
    %v3071 = vpop.f32.mrf.mxu0
    %v3072 = vadd.f32 0.0, %v3071
    %v3073 = vpop.f32.mrf.mxu0
    %v3074 = vadd.f32 0.0, %v3073
    %v3075 = vpop.f32.mrf.mxu0
    %v3076 = vpop.f32.mrf.mxu0
    %3077 = vdwg.mxu0
    %v3078 = vpack.c.bf16 %v3072, %v3072
    %v3079 = vpack.c.bf16 %v3074, %v3074
    %s3080 = scalar_lea.vmem [#allocation12], 512
    %v3081 = vld [vmem:[%s3080] sm:$0xff]
    %v3082 = vld [vmem:[%s3080 + $0x8] sm:$0xff]
    %v3083 = vld [vmem:[%s3080 + $0x10] sm:$0xff]
    %v3084 = vld [vmem:[%s3080 + $0x18] sm:$0xff]
    %v3085 = vld [vmem:[%s3080 + $0x20] sm:$0xff]
    %v3086 = vld [vmem:[%s3080 + $0x28] sm:$0xff]
    %v3087 = vld [vmem:[%s3080 + $0x30] sm:$0xff]
    %v3088 = vld [vmem:[%s3080 + $0x38] sm:$0xff]
    %v3089 = vld [vmem:[%s3080 + $0x40] sm:$0xff]
    %v3090 = vld [vmem:[%s3080 + $0x48] sm:$0xff]
    %v3091 = vld [vmem:[%s3080 + $0x50] sm:$0xff]
    %v3092 = vld [vmem:[%s3080 + $0x58] sm:$0xff]
    %v3093 = vld [vmem:[%s3080 + $0x60] sm:$0xff]
    %v3094 = vld [vmem:[%s3080 + $0x68] sm:$0xff]
    %v3095 = vld [vmem:[%s3080 + $0x70] sm:$0xff]
    %v3096 = vld [vmem:[%s3080 + $0x78] sm:$0xff]
    %v3097 = vld [vmem:[%s3080 + $0x80] sm:$0xff]
    %v3098 = vld [vmem:[%s3080 + $0x88] sm:$0xff]
    %v3099 = vld [vmem:[%s3080 + $0x90] sm:$0xff]
    %v3100 = vld [vmem:[%s3080 + $0x98] sm:$0xff]
    %v3101 = vld [vmem:[%s3080 + $0xa0] sm:$0xff]
    %v3102 = vld [vmem:[%s3080 + $0xa8] sm:$0xff]
    %v3103 = vld [vmem:[%s3080 + $0xb0] sm:$0xff]
    %v3104 = vld [vmem:[%s3080 + $0xb8] sm:$0xff]
    %v3105 = vld [vmem:[%s3080 + $0xc0] sm:$0xff]
    %v3106 = vld [vmem:[%s3080 + $0xc8] sm:$0xff]
    %v3107 = vld [vmem:[%s3080 + $0xd0] sm:$0xff]
    %v3108 = vld [vmem:[%s3080 + $0xd8] sm:$0xff]
    %v3109 = vld [vmem:[%s3080 + $0xe0] sm:$0xff]
    %v3110 = vld [vmem:[%s3080 + $0xe8] sm:$0xff]
    %v3111 = vld [vmem:[%s3080 + $0xf0] sm:$0xff]
    %v3112 = vld [vmem:[%s3080 + $0xf8] sm:$0xff]
    %v3145 = vunpack.c.l.b16 %v3081
    %v3146 = vunpack.c.h.b16 %v3081
    %v3147 = vunpack.c.l.b16 %v3082
    %v3148 = vunpack.c.h.b16 %v3082
    %v3149 = vunpack.c.l.b16 %v3083
    %v3150 = vunpack.c.h.b16 %v3083
    %v3151 = vunpack.c.l.b16 %v3084
    %v3152 = vunpack.c.h.b16 %v3084
    %v3153 = vunpack.c.l.b16 %v3085
    %v3154 = vunpack.c.h.b16 %v3085
    %v3155 = vunpack.c.l.b16 %v3086
    %v3156 = vunpack.c.h.b16 %v3086
    %v3157 = vunpack.c.l.b16 %v3087
    %v3158 = vunpack.c.h.b16 %v3087
    %v3159 = vunpack.c.l.b16 %v3088
    %v3160 = vunpack.c.h.b16 %v3088
    %v3161 = vunpack.c.l.b16 %v3089
    %v3162 = vunpack.c.h.b16 %v3089
    %v3163 = vunpack.c.l.b16 %v3090
    %v3164 = vunpack.c.h.b16 %v3090
    %v3165 = vunpack.c.l.b16 %v3091
    %v3166 = vunpack.c.h.b16 %v3091
    %v3167 = vunpack.c.l.b16 %v3092
    %v3168 = vunpack.c.h.b16 %v3092
    %v3169 = vunpack.c.l.b16 %v3093
    %v3170 = vunpack.c.h.b16 %v3093
    %v3171 = vunpack.c.l.b16 %v3094
    %v3172 = vunpack.c.h.b16 %v3094
    %v3173 = vunpack.c.l.b16 %v3095
    %v3174 = vunpack.c.h.b16 %v3095
    %v3175 = vunpack.c.l.b16 %v3096
    %v3176 = vunpack.c.h.b16 %v3096
    %v3177 = vunpack.c.l.b16 %v3097
    %v3178 = vunpack.c.h.b16 %v3097
    %v3179 = vunpack.c.l.b16 %v3098
    %v3180 = vunpack.c.h.b16 %v3098
    %v3181 = vunpack.c.l.b16 %v3099
    %v3182 = vunpack.c.h.b16 %v3099
    %v3183 = vunpack.c.l.b16 %v3100
    %v3184 = vunpack.c.h.b16 %v3100
    %v3185 = vunpack.c.l.b16 %v3101
    %v3186 = vunpack.c.h.b16 %v3101
    %v3187 = vunpack.c.l.b16 %v3102
    %v3188 = vunpack.c.h.b16 %v3102
    %v3189 = vunpack.c.l.b16 %v3103
    %v3190 = vunpack.c.h.b16 %v3103
    %v3191 = vunpack.c.l.b16 %v3104
    %v3192 = vunpack.c.h.b16 %v3104
    %v3193 = vunpack.c.l.b16 %v3105
    %v3194 = vunpack.c.h.b16 %v3105
    %v3195 = vunpack.c.l.b16 %v3106
    %v3196 = vunpack.c.h.b16 %v3106
    %v3197 = vunpack.c.l.b16 %v3107
    %v3198 = vunpack.c.h.b16 %v3107
    %v3199 = vunpack.c.l.b16 %v3108
    %v3200 = vunpack.c.h.b16 %v3108
    %v3201 = vunpack.c.l.b16 %v3109
    %v3202 = vunpack.c.h.b16 %v3109
    %v3203 = vunpack.c.l.b16 %v3110
    %v3204 = vunpack.c.h.b16 %v3110
    %v3205 = vunpack.c.l.b16 %v3111
    %v3206 = vunpack.c.h.b16 %v3111
    %v3207 = vunpack.c.l.b16 %v3112
    %v3208 = vunpack.c.h.b16 %v3112
    %v3209 = vpack.c.b16 %v3147, %v3145
    %v3210 = vpack.c.b16 %v3148, %v3146
    %v3211 = vpack.c.b16 %v3151, %v3149
    %v3212 = vpack.c.b16 %v3152, %v3150
    %v3213 = vpack.c.b16 %v3155, %v3153
    %v3214 = vpack.c.b16 %v3156, %v3154
    %v3215 = vpack.c.b16 %v3159, %v3157
    %v3216 = vpack.c.b16 %v3160, %v3158
    %v3217 = vpack.c.b16 %v3163, %v3161
    %v3218 = vpack.c.b16 %v3164, %v3162
    %v3219 = vpack.c.b16 %v3167, %v3165
    %v3220 = vpack.c.b16 %v3168, %v3166
    %v3221 = vpack.c.b16 %v3171, %v3169
    %v3222 = vpack.c.b16 %v3172, %v3170
    %v3223 = vpack.c.b16 %v3175, %v3173
    %v3224 = vpack.c.b16 %v3176, %v3174
    %v3225 = vpack.c.b16 %v3179, %v3177
    %v3226 = vpack.c.b16 %v3180, %v3178
    %v3227 = vpack.c.b16 %v3183, %v3181
    %v3228 = vpack.c.b16 %v3184, %v3182
    %v3229 = vpack.c.b16 %v3187, %v3185
    %v3230 = vpack.c.b16 %v3188, %v3186
    %v3231 = vpack.c.b16 %v3191, %v3189
    %v3232 = vpack.c.b16 %v3192, %v3190
    %v3233 = vpack.c.b16 %v3195, %v3193
    %v3234 = vpack.c.b16 %v3196, %v3194
    %v3235 = vpack.c.b16 %v3199, %v3197
    %v3236 = vpack.c.b16 %v3200, %v3198
    %v3237 = vpack.c.b16 %v3203, %v3201
    %v3238 = vpack.c.b16 %v3204, %v3202
    %v3239 = vpack.c.b16 %v3207, %v3205
    %v3240 = vpack.c.b16 %v3208, %v3206
    %3273 = vmatprep.subr.bf16.mxu0 %v3224
    %3274 = vmatpush1.bf16.msra.mxu0 %v3223
    %3275 = vmatprep.subr.bf16.mxu0 %v3222
    %3276 = vmatpush1.bf16.msra.mxu0 %v3221
    %3277 = vmatprep.subr.bf16.mxu0 %v3220
    %3278 = vmatpush1.bf16.msra.mxu0 %v3219
    %3279 = vmatprep.subr.bf16.mxu0 %v3218
    %3280 = vmatpush1.bf16.msra.mxu0 %v3217
    %3281 = vmatprep.subr.bf16.mxu0 %v3216
    %3282 = vmatpush1.bf16.msra.mxu0 %v3215
    %3283 = vmatprep.subr.bf16.mxu0 %v3214
    %3284 = vmatpush1.bf16.msra.mxu0 %v3213
    %3285 = vmatprep.subr.bf16.mxu0 %v3212
    %3286 = vmatpush1.bf16.msra.mxu0 %v3211
    %3287 = vmatprep.subr.bf16.mxu0 %v3210
    %3288 = vmatpush1.bf16.msra.mxu0 %v3209
    %3289 = vmatprep.subr.bf16.mxu0 %v3240
    %3290 = vmatpush2.bf16.msra.mxu0 %v3239
    %3291 = vmatprep.subr.bf16.mxu0 %v3238
    %3292 = vmatpush2.bf16.msra.mxu0 %v3237
    %3293 = vmatprep.subr.bf16.mxu0 %v3236
    %3294 = vmatpush2.bf16.msra.mxu0 %v3235
    %3295 = vmatprep.subr.bf16.mxu0 %v3234
    %3296 = vmatpush2.bf16.msra.mxu0 %v3233
    %3297 = vmatprep.subr.bf16.mxu0 %v3232
    %3298 = vmatpush2.bf16.msra.mxu0 %v3231
    %3299 = vmatprep.subr.bf16.mxu0 %v3230
    %3300 = vmatpush2.bf16.msra.mxu0 %v3229
    %3301 = vmatprep.subr.bf16.mxu0 %v3228
    %3302 = vmatpush2.bf16.msra.mxu0 %v3227
    %3303 = vmatprep.subr.bf16.mxu0 %v3226
    %3304 = vmatpush2.bf16.msra.mxu0 %v3225
    %3305 = vmatprep.mubr.bf16.mxu0 %v3079
    %3306 = vmatmul.mubr.bf16.gmra.mxu0 %v3078
    %v3307 = vpop.f32.mrf.mxu0
    %v3308 = vadd.f32 0.0, %v3307
    %v3309 = vpop.f32.mrf.mxu0
    %v3310 = vadd.f32 0.0, %v3309
    %v3311 = vpop.f32.mrf.mxu0
    %v3312 = vpop.f32.mrf.mxu0
    %3313 = vdwg.mxu0
    %v3314 = vadd.f32 %v3025, %v3308
    %v3315 = vadd.f32 %v3027, %v3310
    %s3316 = scalar_lea.vmem [#allocation10], 24
    %v3317 = vld [vmem:[%s3316] sm:$0xff]
    %v3318 = vpack.c.bf16 %v3317, %v3317
    %v3320 = vsel %vm2468, %v3318, 0
    %3322 = vmatprep.subr.bf16.mxu0 0
    %3323 = vmatpush1.bf16.msra.mxu0 0
    %3324 = vmatprep.subr.bf16.mxu0 0
    %3325 = vmatpush1.bf16.msra.mxu0 0
    %3326 = vmatprep.subr.bf16.mxu0 0
    %3327 = vmatpush1.bf16.msra.mxu0 0
    %3328 = vmatprep.subr.bf16.mxu0 0
    %3329 = vmatpush1.bf16.msra.mxu0 0
    %3330 = vmatprep.subr.bf16.mxu0 0
    %3331 = vmatpush1.bf16.msra.mxu0 0
    %3332 = vmatprep.subr.bf16.mxu0 0
    %3333 = vmatpush1.bf16.msra.mxu0 0
    %3334 = vmatprep.subr.bf16.mxu0 0
    %3335 = vmatpush1.bf16.msra.mxu0 0
    %3336 = vmatprep.subr.bf16.mxu0 %v2465
    %3337 = vmatpush1.bf16.msra.mxu0 %v2464
    %3338 = vmatprep.subr.bf16.mxu0 0
    %3339 = vmatpush2.bf16.msra.mxu0 0
    %3340 = vmatprep.subr.bf16.mxu0 0
    %3341 = vmatpush2.bf16.msra.mxu0 0
    %3342 = vmatprep.subr.bf16.mxu0 0
    %3343 = vmatpush2.bf16.msra.mxu0 0
    %3344 = vmatprep.subr.bf16.mxu0 0
    %3345 = vmatpush2.bf16.msra.mxu0 0
    %3346 = vmatprep.subr.bf16.mxu0 0
    %3347 = vmatpush2.bf16.msra.mxu0 0
    %3348 = vmatprep.subr.bf16.mxu0 0
    %3349 = vmatpush2.bf16.msra.mxu0 0
    %3350 = vmatprep.subr.bf16.mxu0 0
    %3351 = vmatpush2.bf16.msra.mxu0 0
    %3352 = vmatprep.subr.bf16.mxu0 0
    %3353 = vmatpush2.bf16.msra.mxu0 0
    %3354 = vmatprep.mubr.bf16.mxu0 0
    %3355 = vmatmul.mubr.bf16.gmra.mxu0 %v3320
    %v3356 = vpop.f32.mrf.mxu0
    %v3357 = vadd.f32 0.0, %v3356
    %v3358 = vpop.f32.mrf.mxu0
    %v3359 = vadd.f32 0.0, %v3358
    %v3360 = vpop.f32.mrf.mxu0
    %v3361 = vpop.f32.mrf.mxu0
    %3362 = vdwg.mxu0
    %v3363 = vpack.c.bf16 %v3357, %v3357
    %v3364 = vpack.c.bf16 %v3359, %v3359
    %s3365 = scalar_lea.vmem [#allocation12], 768
    %v3366 = vld [vmem:[%s3365] sm:$0xff]
    %v3367 = vld [vmem:[%s3365 + $0x8] sm:$0xff]
    %v3368 = vld [vmem:[%s3365 + $0x10] sm:$0xff]
    %v3369 = vld [vmem:[%s3365 + $0x18] sm:$0xff]
    %v3370 = vld [vmem:[%s3365 + $0x20] sm:$0xff]
    %v3371 = vld [vmem:[%s3365 + $0x28] sm:$0xff]
    %v3372 = vld [vmem:[%s3365 + $0x30] sm:$0xff]
    %v3373 = vld [vmem:[%s3365 + $0x38] sm:$0xff]
    %v3374 = vld [vmem:[%s3365 + $0x40] sm:$0xff]
    %v3375 = vld [vmem:[%s3365 + $0x48] sm:$0xff]
    %v3376 = vld [vmem:[%s3365 + $0x50] sm:$0xff]
    %v3377 = vld [vmem:[%s3365 + $0x58] sm:$0xff]
    %v3378 = vld [vmem:[%s3365 + $0x60] sm:$0xff]
    %v3379 = vld [vmem:[%s3365 + $0x68] sm:$0xff]
    %v3380 = vld [vmem:[%s3365 + $0x70] sm:$0xff]
    %v3381 = vld [vmem:[%s3365 + $0x78] sm:$0xff]
    %v3382 = vld [vmem:[%s3365 + $0x80] sm:$0xff]
    %v3383 = vld [vmem:[%s3365 + $0x88] sm:$0xff]
    %v3384 = vld [vmem:[%s3365 + $0x90] sm:$0xff]
    %v3385 = vld [vmem:[%s3365 + $0x98] sm:$0xff]
    %v3386 = vld [vmem:[%s3365 + $0xa0] sm:$0xff]
    %v3387 = vld [vmem:[%s3365 + $0xa8] sm:$0xff]
    %v3388 = vld [vmem:[%s3365 + $0xb0] sm:$0xff]
    %v3389 = vld [vmem:[%s3365 + $0xb8] sm:$0xff]
    %v3390 = vld [vmem:[%s3365 + $0xc0] sm:$0xff]
    %v3391 = vld [vmem:[%s3365 + $0xc8] sm:$0xff]
    %v3392 = vld [vmem:[%s3365 + $0xd0] sm:$0xff]
    %v3393 = vld [vmem:[%s3365 + $0xd8] sm:$0xff]
    %v3394 = vld [vmem:[%s3365 + $0xe0] sm:$0xff]
    %v3395 = vld [vmem:[%s3365 + $0xe8] sm:$0xff]
    %v3396 = vld [vmem:[%s3365 + $0xf0] sm:$0xff]
    %v3397 = vld [vmem:[%s3365 + $0xf8] sm:$0xff]
    %v3430 = vunpack.c.l.b16 %v3366
    %v3431 = vunpack.c.h.b16 %v3366
    %v3432 = vunpack.c.l.b16 %v3367
    %v3433 = vunpack.c.h.b16 %v3367
    %v3434 = vunpack.c.l.b16 %v3368
    %v3435 = vunpack.c.h.b16 %v3368
    %v3436 = vunpack.c.l.b16 %v3369
    %v3437 = vunpack.c.h.b16 %v3369
    %v3438 = vunpack.c.l.b16 %v3370
    %v3439 = vunpack.c.h.b16 %v3370
    %v3440 = vunpack.c.l.b16 %v3371
    %v3441 = vunpack.c.h.b16 %v3371
    %v3442 = vunpack.c.l.b16 %v3372
    %v3443 = vunpack.c.h.b16 %v3372
    %v3444 = vunpack.c.l.b16 %v3373
    %v3445 = vunpack.c.h.b16 %v3373
    %v3446 = vunpack.c.l.b16 %v3374
    %v3447 = vunpack.c.h.b16 %v3374
    %v3448 = vunpack.c.l.b16 %v3375
    %v3449 = vunpack.c.h.b16 %v3375
    %v3450 = vunpack.c.l.b16 %v3376
    %v3451 = vunpack.c.h.b16 %v3376
    %v3452 = vunpack.c.l.b16 %v3377
    %v3453 = vunpack.c.h.b16 %v3377
    %v3454 = vunpack.c.l.b16 %v3378
    %v3455 = vunpack.c.h.b16 %v3378
    %v3456 = vunpack.c.l.b16 %v3379
    %v3457 = vunpack.c.h.b16 %v3379
    %v3458 = vunpack.c.l.b16 %v3380
    %v3459 = vunpack.c.h.b16 %v3380
    %v3460 = vunpack.c.l.b16 %v3381
    %v3461 = vunpack.c.h.b16 %v3381
    %v3462 = vunpack.c.l.b16 %v3382
    %v3463 = vunpack.c.h.b16 %v3382
    %v3464 = vunpack.c.l.b16 %v3383
    %v3465 = vunpack.c.h.b16 %v3383
    %v3466 = vunpack.c.l.b16 %v3384
    %v3467 = vunpack.c.h.b16 %v3384
    %v3468 = vunpack.c.l.b16 %v3385
    %v3469 = vunpack.c.h.b16 %v3385
    %v3470 = vunpack.c.l.b16 %v3386
    %v3471 = vunpack.c.h.b16 %v3386
    %v3472 = vunpack.c.l.b16 %v3387
    %v3473 = vunpack.c.h.b16 %v3387
    %v3474 = vunpack.c.l.b16 %v3388
    %v3475 = vunpack.c.h.b16 %v3388
    %v3476 = vunpack.c.l.b16 %v3389
    %v3477 = vunpack.c.h.b16 %v3389
    %v3478 = vunpack.c.l.b16 %v3390
    %v3479 = vunpack.c.h.b16 %v3390
    %v3480 = vunpack.c.l.b16 %v3391
    %v3481 = vunpack.c.h.b16 %v3391
    %v3482 = vunpack.c.l.b16 %v3392
    %v3483 = vunpack.c.h.b16 %v3392
    %v3484 = vunpack.c.l.b16 %v3393
    %v3485 = vunpack.c.h.b16 %v3393
    %v3486 = vunpack.c.l.b16 %v3394
    %v3487 = vunpack.c.h.b16 %v3394
    %v3488 = vunpack.c.l.b16 %v3395
    %v3489 = vunpack.c.h.b16 %v3395
    %v3490 = vunpack.c.l.b16 %v3396
    %v3491 = vunpack.c.h.b16 %v3396
    %v3492 = vunpack.c.l.b16 %v3397
    %v3493 = vunpack.c.h.b16 %v3397
    %v3494 = vpack.c.b16 %v3432, %v3430
    %v3495 = vpack.c.b16 %v3433, %v3431
    %v3496 = vpack.c.b16 %v3436, %v3434
    %v3497 = vpack.c.b16 %v3437, %v3435
    %v3498 = vpack.c.b16 %v3440, %v3438
    %v3499 = vpack.c.b16 %v3441, %v3439
    %v3500 = vpack.c.b16 %v3444, %v3442
    %v3501 = vpack.c.b16 %v3445, %v3443
    %v3502 = vpack.c.b16 %v3448, %v3446
    %v3503 = vpack.c.b16 %v3449, %v3447
    %v3504 = vpack.c.b16 %v3452, %v3450
    %v3505 = vpack.c.b16 %v3453, %v3451
    %v3506 = vpack.c.b16 %v3456, %v3454
    %v3507 = vpack.c.b16 %v3457, %v3455
    %v3508 = vpack.c.b16 %v3460, %v3458
    %v3509 = vpack.c.b16 %v3461, %v3459
    %v3510 = vpack.c.b16 %v3464, %v3462
    %v3511 = vpack.c.b16 %v3465, %v3463
    %v3512 = vpack.c.b16 %v3468, %v3466
    %v3513 = vpack.c.b16 %v3469, %v3467
    %v3514 = vpack.c.b16 %v3472, %v3470
    %v3515 = vpack.c.b16 %v3473, %v3471
    %v3516 = vpack.c.b16 %v3476, %v3474
    %v3517 = vpack.c.b16 %v3477, %v3475
    %v3518 = vpack.c.b16 %v3480, %v3478
    %v3519 = vpack.c.b16 %v3481, %v3479
    %v3520 = vpack.c.b16 %v3484, %v3482
    %v3521 = vpack.c.b16 %v3485, %v3483
    %v3522 = vpack.c.b16 %v3488, %v3486
    %v3523 = vpack.c.b16 %v3489, %v3487
    %v3524 = vpack.c.b16 %v3492, %v3490
    %v3525 = vpack.c.b16 %v3493, %v3491
    %3558 = vmatprep.subr.bf16.mxu0 %v3509
    %3559 = vmatpush1.bf16.msra.mxu0 %v3508
    %3560 = vmatprep.subr.bf16.mxu0 %v3507
    %3561 = vmatpush1.bf16.msra.mxu0 %v3506
    %3562 = vmatprep.subr.bf16.mxu0 %v3505
    %3563 = vmatpush1.bf16.msra.mxu0 %v3504
    %3564 = vmatprep.subr.bf16.mxu0 %v3503
    %3565 = vmatpush1.bf16.msra.mxu0 %v3502
    %3566 = vmatprep.subr.bf16.mxu0 %v3501
    %3567 = vmatpush1.bf16.msra.mxu0 %v3500
    %3568 = vmatprep.subr.bf16.mxu0 %v3499
    %3569 = vmatpush1.bf16.msra.mxu0 %v3498
    %3570 = vmatprep.subr.bf16.mxu0 %v3497
    %3571 = vmatpush1.bf16.msra.mxu0 %v3496
    %3572 = vmatprep.subr.bf16.mxu0 %v3495
    %3573 = vmatpush1.bf16.msra.mxu0 %v3494
    %3574 = vmatprep.subr.bf16.mxu0 %v3525
    %3575 = vmatpush2.bf16.msra.mxu0 %v3524
    %3576 = vmatprep.subr.bf16.mxu0 %v3523
    %3577 = vmatpush2.bf16.msra.mxu0 %v3522
    %3578 = vmatprep.subr.bf16.mxu0 %v3521
    %3579 = vmatpush2.bf16.msra.mxu0 %v3520
    %3580 = vmatprep.subr.bf16.mxu0 %v3519
    %3581 = vmatpush2.bf16.msra.mxu0 %v3518
    %3582 = vmatprep.subr.bf16.mxu0 %v3517
    %3583 = vmatpush2.bf16.msra.mxu0 %v3516
    %3584 = vmatprep.subr.bf16.mxu0 %v3515
    %3585 = vmatpush2.bf16.msra.mxu0 %v3514
    %3586 = vmatprep.subr.bf16.mxu0 %v3513
    %3587 = vmatpush2.bf16.msra.mxu0 %v3512
    %3588 = vmatprep.subr.bf16.mxu0 %v3511
    %3589 = vmatpush2.bf16.msra.mxu0 %v3510
    %3590 = vmatprep.mubr.bf16.mxu0 %v3364
    %3591 = vmatmul.mubr.bf16.gmra.mxu0 %v3363
    %v3592 = vpop.f32.mrf.mxu0
    %v3593 = vadd.f32 0.0, %v3592
    %v3594 = vpop.f32.mrf.mxu0
    %v3595 = vadd.f32 0.0, %v3594
    %v3596 = vpop.f32.mrf.mxu0
    %v3597 = vpop.f32.mrf.mxu0
    %3598 = vdwg.mxu0
    %v3599 = vadd.f32 %v3314, %v3593
    %v3600 = vadd.f32 %v3315, %v3595
    %v3601 = vld [vmem:[#allocation13] sm:$0x3]
    %v3603 = vlaneseq
    %v3604 = vshrl.u32 %v3603, 7
    %v3605 = vsub.s32 0, %v3604
    %v3606 = vrot.slane %v3601, %v3605
    %v3607 = vlaneseq
    %v3608 = vshrl.u32 %v3607, 7
    %v3609 = vsub.s32 1, %v3608
    %v3610 = vrot.slane %v3601, %v3609
    %v3613 = vadd.f32 %v3599, %v3606
    %v3614 = vadd.f32 %v3600, %v3610
    %v3615 = vmax.f32 %v3613, 0.0
    %v3616 = vmax.f32 %v3614, 0.0
    %3617 = vst [vmem:[%s53] sm:$0xff] %v3615
    %3618 = vst [vmem:[%s53 + $0x8] sm:$0xff] %v3616
    %v3619 = vpack.c.bf16 %v3615, %v3615
    %v3620 = vpack.c.bf16 %v3616, %v3616
    %v3621 = vld [vmem:[#allocation15] sm:$0xff]
    %v3622 = vpack.c.bf16 %v3621, %v3621
    %vm3623 = vcmask 64512
    %v3625 = vsel %vm3623, %v3622, 0
    %vm3627 = vcmask 1043456
    %v3629 = vsel %vm3627, %v3619, 0
    %v3632 = vsel %vm3627, %v3620, 0
    %3634 = vmatprep.subr.bf16.mxu0 0
    %3635 = vmatpush1.bf16.msra.mxu0 0
    %3636 = vmatprep.subr.bf16.mxu0 0
    %3637 = vmatpush1.bf16.msra.mxu0 0
    %3638 = vmatprep.subr.bf16.mxu0 0
    %3639 = vmatpush1.bf16.msra.mxu0 0
    %3640 = vmatprep.subr.bf16.mxu0 0
    %3641 = vmatpush1.bf16.msra.mxu0 0
    %3642 = vmatprep.subr.bf16.mxu0 0
    %3643 = vmatpush1.bf16.msra.mxu0 0
    %3644 = vmatprep.subr.bf16.mxu0 0
    %3645 = vmatpush1.bf16.msra.mxu0 0
    %3646 = vmatprep.subr.bf16.mxu0 0
    %3647 = vmatpush1.bf16.msra.mxu0 0
    %3648 = vmatprep.subr.bf16.mxu0 %v3632
    %3649 = vmatpush1.bf16.msra.mxu0 %v3629
    %3650 = vmatprep.subr.bf16.mxu0 0
    %3651 = vmatpush2.bf16.msra.mxu0 0
    %3652 = vmatprep.subr.bf16.mxu0 0
    %3653 = vmatpush2.bf16.msra.mxu0 0
    %3654 = vmatprep.subr.bf16.mxu0 0
    %3655 = vmatpush2.bf16.msra.mxu0 0
    %3656 = vmatprep.subr.bf16.mxu0 0
    %3657 = vmatpush2.bf16.msra.mxu0 0
    %3658 = vmatprep.subr.bf16.mxu0 0
    %3659 = vmatpush2.bf16.msra.mxu0 0
    %3660 = vmatprep.subr.bf16.mxu0 0
    %3661 = vmatpush2.bf16.msra.mxu0 0
    %3662 = vmatprep.subr.bf16.mxu0 0
    %3663 = vmatpush2.bf16.msra.mxu0 0
    %3664 = vmatprep.subr.bf16.mxu0 0
    %3665 = vmatpush2.bf16.msra.mxu0 0
    %3666 = vmatprep.mubr.bf16.mxu0 0
    %3667 = vmatmul.mubr.bf16.gmra.mxu0 %v3625
    %v3668 = vpop.f32.mrf.mxu0
    %v3669 = vadd.f32 0.0, %v3668
    %v3670 = vpop.f32.mrf.mxu0
    %v3671 = vadd.f32 0.0, %v3670
    %v3672 = vpop.f32.mrf.mxu0
    %v3673 = vpop.f32.mrf.mxu0
    %3674 = vdwg.mxu0
    %v3675 = vpack.c.bf16 %v3669, %v3669
    %v3676 = vpack.c.bf16 %v3671, %v3671
    %v3677 = vld [vmem:[#allocation16] sm:$0xff]
    %v3678 = vld [vmem:[#allocation16 + $0x8] sm:$0xff]
    %v3679 = vld [vmem:[#allocation16 + $0x10] sm:$0xff]
    %v3680 = vld [vmem:[#allocation16 + $0x18] sm:$0xff]
    %v3681 = vld [vmem:[#allocation16 + $0x20] sm:$0xff]
    %v3682 = vld [vmem:[#allocation16 + $0x28] sm:$0xff]
    %v3683 = vld [vmem:[#allocation16 + $0x30] sm:$0xff]
    %v3684 = vld [vmem:[#allocation16 + $0x38] sm:$0xff]
    %v3685 = vld [vmem:[#allocation16 + $0x40] sm:$0xff]
    %v3686 = vld [vmem:[#allocation16 + $0x48] sm:$0xff]
    %v3687 = vld [vmem:[#allocation16 + $0x50] sm:$0xff]
    %v3688 = vld [vmem:[#allocation16 + $0x58] sm:$0xff]
    %v3689 = vld [vmem:[#allocation16 + $0x60] sm:$0xff]
    %v3690 = vld [vmem:[#allocation16 + $0x68] sm:$0xff]
    %v3691 = vld [vmem:[#allocation16 + $0x70] sm:$0xff]
    %v3692 = vld [vmem:[#allocation16 + $0x78] sm:$0xff]
    %v3693 = vld [vmem:[#allocation16 + $0x80] sm:$0xff]
    %v3694 = vld [vmem:[#allocation16 + $0x88] sm:$0xff]
    %v3695 = vld [vmem:[#allocation16 + $0x90] sm:$0xff]
    %v3696 = vld [vmem:[#allocation16 + $0x98] sm:$0xff]
    %v3697 = vld [vmem:[#allocation16 + $0xa0] sm:$0xff]
    %v3698 = vld [vmem:[#allocation16 + $0xa8] sm:$0xff]
    %v3699 = vld [vmem:[#allocation16 + $0xb0] sm:$0xff]
    %v3700 = vld [vmem:[#allocation16 + $0xb8] sm:$0xff]
    %v3701 = vld [vmem:[#allocation16 + $0xc0] sm:$0xff]
    %v3702 = vld [vmem:[#allocation16 + $0xc8] sm:$0xff]
    %v3703 = vld [vmem:[#allocation16 + $0xd0] sm:$0xff]
    %v3704 = vld [vmem:[#allocation16 + $0xd8] sm:$0xff]
    %v3705 = vld [vmem:[#allocation16 + $0xe0] sm:$0xff]
    %v3706 = vld [vmem:[#allocation16 + $0xe8] sm:$0xff]
    %v3707 = vld [vmem:[#allocation16 + $0xf0] sm:$0xff]
    %v3708 = vld [vmem:[#allocation16 + $0xf8] sm:$0xff]
    %v3709 = vld [vmem:[#allocation16 + $0x100] sm:$0xff]
    %v3710 = vld [vmem:[#allocation16 + $0x108] sm:$0xff]
    %v3711 = vld [vmem:[#allocation16 + $0x110] sm:$0xff]
    %v3712 = vld [vmem:[#allocation16 + $0x118] sm:$0xff]
    %v3713 = vld [vmem:[#allocation16 + $0x120] sm:$0xff]
    %v3714 = vld [vmem:[#allocation16 + $0x128] sm:$0xff]
    %v3715 = vld [vmem:[#allocation16 + $0x130] sm:$0xff]
    %v3716 = vld [vmem:[#allocation16 + $0x138] sm:$0xff]
    %v3717 = vld [vmem:[#allocation16 + $0x140] sm:$0xff]
    %v3718 = vld [vmem:[#allocation16 + $0x148] sm:$0xff]
    %v3719 = vld [vmem:[#allocation16 + $0x150] sm:$0xff]
    %v3720 = vld [vmem:[#allocation16 + $0x158] sm:$0xff]
    %v3721 = vld [vmem:[#allocation16 + $0x160] sm:$0xff]
    %v3722 = vld [vmem:[#allocation16 + $0x168] sm:$0xff]
    %v3723 = vld [vmem:[#allocation16 + $0x170] sm:$0xff]
    %v3724 = vld [vmem:[#allocation16 + $0x178] sm:$0xff]
    %v3725 = vld [vmem:[#allocation16 + $0x180] sm:$0xff]
    %v3726 = vld [vmem:[#allocation16 + $0x188] sm:$0xff]
    %v3727 = vld [vmem:[#allocation16 + $0x190] sm:$0xff]
    %v3728 = vld [vmem:[#allocation16 + $0x198] sm:$0xff]
    %v3729 = vld [vmem:[#allocation16 + $0x1a0] sm:$0xff]
    %v3730 = vld [vmem:[#allocation16 + $0x1a8] sm:$0xff]
    %v3731 = vld [vmem:[#allocation16 + $0x1b0] sm:$0xff]
    %v3732 = vld [vmem:[#allocation16 + $0x1b8] sm:$0xff]
    %v3733 = vld [vmem:[#allocation16 + $0x1c0] sm:$0xff]
    %v3734 = vld [vmem:[#allocation16 + $0x1c8] sm:$0xff]
    %v3735 = vld [vmem:[#allocation16 + $0x1d0] sm:$0xff]
    %v3736 = vld [vmem:[#allocation16 + $0x1d8] sm:$0xff]
    %v3737 = vld [vmem:[#allocation16 + $0x1e0] sm:$0xff]
    %v3738 = vld [vmem:[#allocation16 + $0x1e8] sm:$0xff]
    %v3739 = vld [vmem:[#allocation16 + $0x1f0] sm:$0xff]
    %v3740 = vld [vmem:[#allocation16 + $0x1f8] sm:$0xff]
    %s3741 = scalar_lea.vmem [#allocation15], 8
    %v3742 = vld [vmem:[%s3741] sm:$0xff]
    %v3743 = vpack.c.bf16 %v3742, %v3742
    %v3745 = vsel %vm3623, %v3743, 0
    %3747 = vmatprep.subr.bf16.mxu0 0
    %3748 = vmatpush1.bf16.msra.mxu0 0
    %3749 = vmatprep.subr.bf16.mxu0 0
    %3750 = vmatpush1.bf16.msra.mxu0 0
    %3751 = vmatprep.subr.bf16.mxu0 0
    %3752 = vmatpush1.bf16.msra.mxu0 0
    %3753 = vmatprep.subr.bf16.mxu0 0
    %3754 = vmatpush1.bf16.msra.mxu0 0
    %3755 = vmatprep.subr.bf16.mxu0 0
    %3756 = vmatpush1.bf16.msra.mxu0 0
    %3757 = vmatprep.subr.bf16.mxu0 0
    %3758 = vmatpush1.bf16.msra.mxu0 0
    %3759 = vmatprep.subr.bf16.mxu0 0
    %3760 = vmatpush1.bf16.msra.mxu0 0
    %3761 = vmatprep.subr.bf16.mxu0 %v3632
    %3762 = vmatpush1.bf16.msra.mxu0 %v3629
    %3763 = vmatprep.subr.bf16.mxu0 0
    %3764 = vmatpush2.bf16.msra.mxu0 0
    %3765 = vmatprep.subr.bf16.mxu0 0
    %3766 = vmatpush2.bf16.msra.mxu0 0
    %3767 = vmatprep.subr.bf16.mxu0 0
    %3768 = vmatpush2.bf16.msra.mxu0 0
    %3769 = vmatprep.subr.bf16.mxu0 0
    %3770 = vmatpush2.bf16.msra.mxu0 0
    %3771 = vmatprep.subr.bf16.mxu0 0
    %3772 = vmatpush2.bf16.msra.mxu0 0
    %3773 = vmatprep.subr.bf16.mxu0 0
    %3774 = vmatpush2.bf16.msra.mxu0 0
    %3775 = vmatprep.subr.bf16.mxu0 0
    %3776 = vmatpush2.bf16.msra.mxu0 0
    %3777 = vmatprep.subr.bf16.mxu0 0
    %3778 = vmatpush2.bf16.msra.mxu0 0
    %3779 = vmatprep.mubr.bf16.mxu0 0
    %3780 = vmatmul.mubr.bf16.gmra.mxu0 %v3745
    %v3781 = vpop.f32.mrf.mxu0
    %v3782 = vadd.f32 0.0, %v3781
    %v3783 = vpop.f32.mrf.mxu0
    %v3784 = vadd.f32 0.0, %v3783
    %v3785 = vpop.f32.mrf.mxu0
    %v3786 = vpop.f32.mrf.mxu0
    %3787 = vdwg.mxu0
    %v3788 = vpack.c.bf16 %v3782, %v3782
    %v3789 = vpack.c.bf16 %v3784, %v3784
    %s3790 = scalar_lea.vmem [#allocation16], 512
    %v3791 = vld [vmem:[%s3790] sm:$0xff]
    %v3792 = vld [vmem:[%s3790 + $0x8] sm:$0xff]
    %v3793 = vld [vmem:[%s3790 + $0x10] sm:$0xff]
    %v3794 = vld [vmem:[%s3790 + $0x18] sm:$0xff]
    %v3795 = vld [vmem:[%s3790 + $0x20] sm:$0xff]
    %v3796 = vld [vmem:[%s3790 + $0x28] sm:$0xff]
    %v3797 = vld [vmem:[%s3790 + $0x30] sm:$0xff]
    %v3798 = vld [vmem:[%s3790 + $0x38] sm:$0xff]
    %v3799 = vld [vmem:[%s3790 + $0x40] sm:$0xff]
    %v3800 = vld [vmem:[%s3790 + $0x48] sm:$0xff]
    %v3801 = vld [vmem:[%s3790 + $0x50] sm:$0xff]
    %v3802 = vld [vmem:[%s3790 + $0x58] sm:$0xff]
    %v3803 = vld [vmem:[%s3790 + $0x60] sm:$0xff]
    %v3804 = vld [vmem:[%s3790 + $0x68] sm:$0xff]
    %v3805 = vld [vmem:[%s3790 + $0x70] sm:$0xff]
    %v3806 = vld [vmem:[%s3790 + $0x78] sm:$0xff]
    %v3807 = vld [vmem:[%s3790 + $0x80] sm:$0xff]
    %v3808 = vld [vmem:[%s3790 + $0x88] sm:$0xff]
    %v3809 = vld [vmem:[%s3790 + $0x90] sm:$0xff]
    %v3810 = vld [vmem:[%s3790 + $0x98] sm:$0xff]
    %v3811 = vld [vmem:[%s3790 + $0xa0] sm:$0xff]
    %v3812 = vld [vmem:[%s3790 + $0xa8] sm:$0xff]
    %v3813 = vld [vmem:[%s3790 + $0xb0] sm:$0xff]
    %v3814 = vld [vmem:[%s3790 + $0xb8] sm:$0xff]
    %v3815 = vld [vmem:[%s3790 + $0xc0] sm:$0xff]
    %v3816 = vld [vmem:[%s3790 + $0xc8] sm:$0xff]
    %v3817 = vld [vmem:[%s3790 + $0xd0] sm:$0xff]
    %v3818 = vld [vmem:[%s3790 + $0xd8] sm:$0xff]
    %v3819 = vld [vmem:[%s3790 + $0xe0] sm:$0xff]
    %v3820 = vld [vmem:[%s3790 + $0xe8] sm:$0xff]
    %v3821 = vld [vmem:[%s3790 + $0xf0] sm:$0xff]
    %v3822 = vld [vmem:[%s3790 + $0xf8] sm:$0xff]
    %v3823 = vld [vmem:[%s3790 + $0x100] sm:$0xff]
    %v3824 = vld [vmem:[%s3790 + $0x108] sm:$0xff]
    %v3825 = vld [vmem:[%s3790 + $0x110] sm:$0xff]
    %v3826 = vld [vmem:[%s3790 + $0x118] sm:$0xff]
    %v3827 = vld [vmem:[%s3790 + $0x120] sm:$0xff]
    %v3828 = vld [vmem:[%s3790 + $0x128] sm:$0xff]
    %v3829 = vld [vmem:[%s3790 + $0x130] sm:$0xff]
    %v3830 = vld [vmem:[%s3790 + $0x138] sm:$0xff]
    %v3831 = vld [vmem:[%s3790 + $0x140] sm:$0xff]
    %v3832 = vld [vmem:[%s3790 + $0x148] sm:$0xff]
    %v3833 = vld [vmem:[%s3790 + $0x150] sm:$0xff]
    %v3834 = vld [vmem:[%s3790 + $0x158] sm:$0xff]
    %v3835 = vld [vmem:[%s3790 + $0x160] sm:$0xff]
    %v3836 = vld [vmem:[%s3790 + $0x168] sm:$0xff]
    %v3837 = vld [vmem:[%s3790 + $0x170] sm:$0xff]
    %v3838 = vld [vmem:[%s3790 + $0x178] sm:$0xff]
    %v3839 = vld [vmem:[%s3790 + $0x180] sm:$0xff]
    %v3840 = vld [vmem:[%s3790 + $0x188] sm:$0xff]
    %v3841 = vld [vmem:[%s3790 + $0x190] sm:$0xff]
    %v3842 = vld [vmem:[%s3790 + $0x198] sm:$0xff]
    %v3843 = vld [vmem:[%s3790 + $0x1a0] sm:$0xff]
    %v3844 = vld [vmem:[%s3790 + $0x1a8] sm:$0xff]
    %v3845 = vld [vmem:[%s3790 + $0x1b0] sm:$0xff]
    %v3846 = vld [vmem:[%s3790 + $0x1b8] sm:$0xff]
    %v3847 = vld [vmem:[%s3790 + $0x1c0] sm:$0xff]
    %v3848 = vld [vmem:[%s3790 + $0x1c8] sm:$0xff]
    %v3849 = vld [vmem:[%s3790 + $0x1d0] sm:$0xff]
    %v3850 = vld [vmem:[%s3790 + $0x1d8] sm:$0xff]
    %v3851 = vld [vmem:[%s3790 + $0x1e0] sm:$0xff]
    %v3852 = vld [vmem:[%s3790 + $0x1e8] sm:$0xff]
    %v3853 = vld [vmem:[%s3790 + $0x1f0] sm:$0xff]
    %v3854 = vld [vmem:[%s3790 + $0x1f8] sm:$0xff]
    %v3919 = vunpack.c.l.b16 %v3791
    %v3920 = vunpack.c.h.b16 %v3791
    %v3921 = vunpack.c.l.b16 %v3792
    %v3922 = vunpack.c.h.b16 %v3792
    %v3923 = vunpack.c.l.b16 %v3793
    %v3924 = vunpack.c.h.b16 %v3793
    %v3925 = vunpack.c.l.b16 %v3794
    %v3926 = vunpack.c.h.b16 %v3794
    %v3927 = vunpack.c.l.b16 %v3795
    %v3928 = vunpack.c.h.b16 %v3795
    %v3929 = vunpack.c.l.b16 %v3796
    %v3930 = vunpack.c.h.b16 %v3796
    %v3931 = vunpack.c.l.b16 %v3797
    %v3932 = vunpack.c.h.b16 %v3797
    %v3933 = vunpack.c.l.b16 %v3798
    %v3934 = vunpack.c.h.b16 %v3798
    %v3935 = vunpack.c.l.b16 %v3799
    %v3936 = vunpack.c.h.b16 %v3799
    %v3937 = vunpack.c.l.b16 %v3800
    %v3938 = vunpack.c.h.b16 %v3800
    %v3939 = vunpack.c.l.b16 %v3801
    %v3940 = vunpack.c.h.b16 %v3801
    %v3941 = vunpack.c.l.b16 %v3802
    %v3942 = vunpack.c.h.b16 %v3802
    %v3943 = vunpack.c.l.b16 %v3803
    %v3944 = vunpack.c.h.b16 %v3803
    %v3945 = vunpack.c.l.b16 %v3804
    %v3946 = vunpack.c.h.b16 %v3804
    %v3947 = vunpack.c.l.b16 %v3805
    %v3948 = vunpack.c.h.b16 %v3805
    %v3949 = vunpack.c.l.b16 %v3806
    %v3950 = vunpack.c.h.b16 %v3806
    %v3951 = vunpack.c.l.b16 %v3807
    %v3952 = vunpack.c.h.b16 %v3807
    %v3953 = vunpack.c.l.b16 %v3808
    %v3954 = vunpack.c.h.b16 %v3808
    %v3955 = vunpack.c.l.b16 %v3809
    %v3956 = vunpack.c.h.b16 %v3809
    %v3957 = vunpack.c.l.b16 %v3810
    %v3958 = vunpack.c.h.b16 %v3810
    %v3959 = vunpack.c.l.b16 %v3811
    %v3960 = vunpack.c.h.b16 %v3811
    %v3961 = vunpack.c.l.b16 %v3812
    %v3962 = vunpack.c.h.b16 %v3812
    %v3963 = vunpack.c.l.b16 %v3813
    %v3964 = vunpack.c.h.b16 %v3813
    %v3965 = vunpack.c.l.b16 %v3814
    %v3966 = vunpack.c.h.b16 %v3814
    %v3967 = vunpack.c.l.b16 %v3815
    %v3968 = vunpack.c.h.b16 %v3815
    %v3969 = vunpack.c.l.b16 %v3816
    %v3970 = vunpack.c.h.b16 %v3816
    %v3971 = vunpack.c.l.b16 %v3817
    %v3972 = vunpack.c.h.b16 %v3817
    %v3973 = vunpack.c.l.b16 %v3818
    %v3974 = vunpack.c.h.b16 %v3818
    %v3975 = vunpack.c.l.b16 %v3819
    %v3976 = vunpack.c.h.b16 %v3819
    %v3977 = vunpack.c.l.b16 %v3820
    %v3978 = vunpack.c.h.b16 %v3820
    %v3979 = vunpack.c.l.b16 %v3821
    %v3980 = vunpack.c.h.b16 %v3821
    %v3981 = vunpack.c.l.b16 %v3822
    %v3982 = vunpack.c.h.b16 %v3822
    %v3983 = vunpack.c.l.b16 %v3823
    %v3984 = vunpack.c.h.b16 %v3823
    %v3985 = vunpack.c.l.b16 %v3824
    %v3986 = vunpack.c.h.b16 %v3824
    %v3987 = vunpack.c.l.b16 %v3825
    %v3988 = vunpack.c.h.b16 %v3825
    %v3989 = vunpack.c.l.b16 %v3826
    %v3990 = vunpack.c.h.b16 %v3826
    %v3991 = vunpack.c.l.b16 %v3827
    %v3992 = vunpack.c.h.b16 %v3827
    %v3993 = vunpack.c.l.b16 %v3828
    %v3994 = vunpack.c.h.b16 %v3828
    %v3995 = vunpack.c.l.b16 %v3829
    %v3996 = vunpack.c.h.b16 %v3829
    %v3997 = vunpack.c.l.b16 %v3830
    %v3998 = vunpack.c.h.b16 %v3830
    %v3999 = vunpack.c.l.b16 %v3831
    %v4000 = vunpack.c.h.b16 %v3831
    %v4001 = vunpack.c.l.b16 %v3832
    %v4002 = vunpack.c.h.b16 %v3832
    %v4003 = vunpack.c.l.b16 %v3833
    %v4004 = vunpack.c.h.b16 %v3833
    %v4005 = vunpack.c.l.b16 %v3834
    %v4006 = vunpack.c.h.b16 %v3834
    %v4007 = vunpack.c.l.b16 %v3835
    %v4008 = vunpack.c.h.b16 %v3835
    %v4009 = vunpack.c.l.b16 %v3836
    %v4010 = vunpack.c.h.b16 %v3836
    %v4011 = vunpack.c.l.b16 %v3837
    %v4012 = vunpack.c.h.b16 %v3837
    %v4013 = vunpack.c.l.b16 %v3838
    %v4014 = vunpack.c.h.b16 %v3838
    %v4015 = vunpack.c.l.b16 %v3839
    %v4016 = vunpack.c.h.b16 %v3839
    %v4017 = vunpack.c.l.b16 %v3840
    %v4018 = vunpack.c.h.b16 %v3840
    %v4019 = vunpack.c.l.b16 %v3841
    %v4020 = vunpack.c.h.b16 %v3841
    %v4021 = vunpack.c.l.b16 %v3842
    %v4022 = vunpack.c.h.b16 %v3842
    %v4023 = vunpack.c.l.b16 %v3843
    %v4024 = vunpack.c.h.b16 %v3843
    %v4025 = vunpack.c.l.b16 %v3844
    %v4026 = vunpack.c.h.b16 %v3844
    %v4027 = vunpack.c.l.b16 %v3845
    %v4028 = vunpack.c.h.b16 %v3845
    %v4029 = vunpack.c.l.b16 %v3846
    %v4030 = vunpack.c.h.b16 %v3846
    %v4031 = vunpack.c.l.b16 %v3847
    %v4032 = vunpack.c.h.b16 %v3847
    %v4033 = vunpack.c.l.b16 %v3848
    %v4034 = vunpack.c.h.b16 %v3848
    %v4035 = vunpack.c.l.b16 %v3849
    %v4036 = vunpack.c.h.b16 %v3849
    %v4037 = vunpack.c.l.b16 %v3850
    %v4038 = vunpack.c.h.b16 %v3850
    %v4039 = vunpack.c.l.b16 %v3851
    %v4040 = vunpack.c.h.b16 %v3851
    %v4041 = vunpack.c.l.b16 %v3852
    %v4042 = vunpack.c.h.b16 %v3852
    %v4043 = vunpack.c.l.b16 %v3853
    %v4044 = vunpack.c.h.b16 %v3853
    %v4045 = vunpack.c.l.b16 %v3854
    %v4046 = vunpack.c.h.b16 %v3854
    %v4047 = vpack.c.b16 %v3923, %v3919
    %v4048 = vpack.c.b16 %v3924, %v3920
    %v4049 = vpack.c.b16 %v3925, %v3921
    %v4050 = vpack.c.b16 %v3926, %v3922
    %v4051 = vpack.c.b16 %v3931, %v3927
    %v4052 = vpack.c.b16 %v3932, %v3928
    %v4053 = vpack.c.b16 %v3933, %v3929
    %v4054 = vpack.c.b16 %v3934, %v3930
    %v4055 = vpack.c.b16 %v3939, %v3935
    %v4056 = vpack.c.b16 %v3940, %v3936
    %v4057 = vpack.c.b16 %v3941, %v3937
    %v4058 = vpack.c.b16 %v3942, %v3938
    %v4059 = vpack.c.b16 %v3947, %v3943
    %v4060 = vpack.c.b16 %v3948, %v3944
    %v4061 = vpack.c.b16 %v3949, %v3945
    %v4062 = vpack.c.b16 %v3950, %v3946
    %v4063 = vpack.c.b16 %v3955, %v3951
    %v4064 = vpack.c.b16 %v3956, %v3952
    %v4065 = vpack.c.b16 %v3957, %v3953
    %v4066 = vpack.c.b16 %v3958, %v3954
    %v4067 = vpack.c.b16 %v3963, %v3959
    %v4068 = vpack.c.b16 %v3964, %v3960
    %v4069 = vpack.c.b16 %v3965, %v3961
    %v4070 = vpack.c.b16 %v3966, %v3962
    %v4071 = vpack.c.b16 %v3971, %v3967
    %v4072 = vpack.c.b16 %v3972, %v3968
    %v4073 = vpack.c.b16 %v3973, %v3969
    %v4074 = vpack.c.b16 %v3974, %v3970
    %v4075 = vpack.c.b16 %v3979, %v3975
    %v4076 = vpack.c.b16 %v3980, %v3976
    %v4077 = vpack.c.b16 %v3981, %v3977
    %v4078 = vpack.c.b16 %v3982, %v3978
    %v4079 = vpack.c.b16 %v3987, %v3983
    %v4080 = vpack.c.b16 %v3988, %v3984
    %v4081 = vpack.c.b16 %v3989, %v3985
    %v4082 = vpack.c.b16 %v3990, %v3986
    %v4083 = vpack.c.b16 %v3995, %v3991
    %v4084 = vpack.c.b16 %v3996, %v3992
    %v4085 = vpack.c.b16 %v3997, %v3993
    %v4086 = vpack.c.b16 %v3998, %v3994
    %v4087 = vpack.c.b16 %v4003, %v3999
    %v4088 = vpack.c.b16 %v4004, %v4000
    %v4089 = vpack.c.b16 %v4005, %v4001
    %v4090 = vpack.c.b16 %v4006, %v4002
    %v4091 = vpack.c.b16 %v4011, %v4007
    %v4092 = vpack.c.b16 %v4012, %v4008
    %v4093 = vpack.c.b16 %v4013, %v4009
    %v4094 = vpack.c.b16 %v4014, %v4010
    %v4095 = vpack.c.b16 %v4019, %v4015
    %v4096 = vpack.c.b16 %v4020, %v4016
    %v4097 = vpack.c.b16 %v4021, %v4017
    %v4098 = vpack.c.b16 %v4022, %v4018
    %v4099 = vpack.c.b16 %v4027, %v4023
    %v4100 = vpack.c.b16 %v4028, %v4024
    %v4101 = vpack.c.b16 %v4029, %v4025
    %v4102 = vpack.c.b16 %v4030, %v4026
    %v4103 = vpack.c.b16 %v4035, %v4031
    %v4104 = vpack.c.b16 %v4036, %v4032
    %v4105 = vpack.c.b16 %v4037, %v4033
    %v4106 = vpack.c.b16 %v4038, %v4034
    %v4107 = vpack.c.b16 %v4043, %v4039
    %v4108 = vpack.c.b16 %v4044, %v4040
    %v4109 = vpack.c.b16 %v4045, %v4041
    %v4110 = vpack.c.b16 %v4046, %v4042
    %4175 = vmatprep.subr.bf16.mxu0 %v4076
    %4176 = vmatpush1.bf16.msra.mxu0 %v4075
    %4177 = vmatprep.subr.bf16.mxu0 %v4072
    %4178 = vmatpush1.bf16.msra.mxu0 %v4071
    %4179 = vmatprep.subr.bf16.mxu0 %v4068
    %4180 = vmatpush1.bf16.msra.mxu0 %v4067
    %4181 = vmatprep.subr.bf16.mxu0 %v4064
    %4182 = vmatpush1.bf16.msra.mxu0 %v4063
    %4183 = vmatprep.subr.bf16.mxu0 %v4060
    %4184 = vmatpush1.bf16.msra.mxu0 %v4059
    %4185 = vmatprep.subr.bf16.mxu0 %v4056
    %4186 = vmatpush1.bf16.msra.mxu0 %v4055
    %4187 = vmatprep.subr.bf16.mxu0 %v4052
    %4188 = vmatpush1.bf16.msra.mxu0 %v4051
    %4189 = vmatprep.subr.bf16.mxu0 %v4048
    %4190 = vmatpush1.bf16.msra.mxu0 %v4047
    %4191 = vmatprep.subr.bf16.mxu0 %v4108
    %4192 = vmatpush2.bf16.msra.mxu0 %v4107
    %4193 = vmatprep.subr.bf16.mxu0 %v4104
    %4194 = vmatpush2.bf16.msra.mxu0 %v4103
    %4195 = vmatprep.subr.bf16.mxu0 %v4100
    %4196 = vmatpush2.bf16.msra.mxu0 %v4099
    %4197 = vmatprep.subr.bf16.mxu0 %v4096
    %4198 = vmatpush2.bf16.msra.mxu0 %v4095
    %4199 = vmatprep.subr.bf16.mxu0 %v4092
    %4200 = vmatpush2.bf16.msra.mxu0 %v4091
    %4201 = vmatprep.subr.bf16.mxu0 %v4088
    %4202 = vmatpush2.bf16.msra.mxu0 %v4087
    %4203 = vmatprep.subr.bf16.mxu0 %v4084
    %4204 = vmatpush2.bf16.msra.mxu0 %v4083
    %4205 = vmatprep.subr.bf16.mxu0 %v4080
    %4206 = vmatpush2.bf16.msra.mxu0 %v4079
    %4207 = vmatprep.mubr.bf16.mxu0 %v3789
    %4208 = vmatmul.mubr.bf16.gmra.mxu0 %v3788
    %v4209 = vpop.f32.mrf.mxu0
    %v4210 = vadd.f32 0.0, %v4209
    %v4211 = vpop.f32.mrf.mxu0
    %v4212 = vadd.f32 0.0, %v4211
    %v4213 = vpop.f32.mrf.mxu0
    %v4214 = vpop.f32.mrf.mxu0
    %4215 = vdwg.mxu0
    %4216 = vmatprep.subr.bf16.mxu0 %v4078
    %4217 = vmatpush1.bf16.msra.mxu0 %v4077
    %4218 = vmatprep.subr.bf16.mxu0 %v4074
    %4219 = vmatpush1.bf16.msra.mxu0 %v4073
    %4220 = vmatprep.subr.bf16.mxu0 %v4070
    %4221 = vmatpush1.bf16.msra.mxu0 %v4069
    %4222 = vmatprep.subr.bf16.mxu0 %v4066
    %4223 = vmatpush1.bf16.msra.mxu0 %v4065
    %4224 = vmatprep.subr.bf16.mxu0 %v4062
    %4225 = vmatpush1.bf16.msra.mxu0 %v4061
    %4226 = vmatprep.subr.bf16.mxu0 %v4058
    %4227 = vmatpush1.bf16.msra.mxu0 %v4057
    %4228 = vmatprep.subr.bf16.mxu0 %v4054
    %4229 = vmatpush1.bf16.msra.mxu0 %v4053
    %4230 = vmatprep.subr.bf16.mxu0 %v4050
    %4231 = vmatpush1.bf16.msra.mxu0 %v4049
    %4232 = vmatprep.subr.bf16.mxu0 %v4110
    %4233 = vmatpush2.bf16.msra.mxu0 %v4109
    %4234 = vmatprep.subr.bf16.mxu0 %v4106
    %4235 = vmatpush2.bf16.msra.mxu0 %v4105
    %4236 = vmatprep.subr.bf16.mxu0 %v4102
    %4237 = vmatpush2.bf16.msra.mxu0 %v4101
    %4238 = vmatprep.subr.bf16.mxu0 %v4098
    %4239 = vmatpush2.bf16.msra.mxu0 %v4097
    %4240 = vmatprep.subr.bf16.mxu0 %v4094
    %4241 = vmatpush2.bf16.msra.mxu0 %v4093
    %4242 = vmatprep.subr.bf16.mxu0 %v4090
    %4243 = vmatpush2.bf16.msra.mxu0 %v4089
    %4244 = vmatprep.subr.bf16.mxu0 %v4086
    %4245 = vmatpush2.bf16.msra.mxu0 %v4085
    %4246 = vmatprep.subr.bf16.mxu0 %v4082
    %4247 = vmatpush2.bf16.msra.mxu0 %v4081
    %4248 = vmatprep.mubr.bf16.mxu0 %v3789
    %4249 = vmatmul.mubr.bf16.gmra.mxu0 %v3788
    %v4250 = vpop.f32.mrf.mxu0
    %v4251 = vadd.f32 0.0, %v4250
    %v4252 = vpop.f32.mrf.mxu0
    %v4253 = vadd.f32 0.0, %v4252
    %v4254 = vpop.f32.mrf.mxu0
    %v4255 = vpop.f32.mrf.mxu0
    %4256 = vdwg.mxu0
    %v4321 = vunpack.c.l.b16 %v3677
    %v4322 = vunpack.c.h.b16 %v3677
    %v4323 = vunpack.c.l.b16 %v3678
    %v4324 = vunpack.c.h.b16 %v3678
    %v4325 = vunpack.c.l.b16 %v3679
    %v4326 = vunpack.c.h.b16 %v3679
    %v4327 = vunpack.c.l.b16 %v3680
    %v4328 = vunpack.c.h.b16 %v3680
    %v4329 = vunpack.c.l.b16 %v3681
    %v4330 = vunpack.c.h.b16 %v3681
    %v4331 = vunpack.c.l.b16 %v3682
    %v4332 = vunpack.c.h.b16 %v3682
    %v4333 = vunpack.c.l.b16 %v3683
    %v4334 = vunpack.c.h.b16 %v3683
    %v4335 = vunpack.c.l.b16 %v3684
    %v4336 = vunpack.c.h.b16 %v3684
    %v4337 = vunpack.c.l.b16 %v3685
    %v4338 = vunpack.c.h.b16 %v3685
    %v4339 = vunpack.c.l.b16 %v3686
    %v4340 = vunpack.c.h.b16 %v3686
    %v4341 = vunpack.c.l.b16 %v3687
    %v4342 = vunpack.c.h.b16 %v3687
    %v4343 = vunpack.c.l.b16 %v3688
    %v4344 = vunpack.c.h.b16 %v3688
    %v4345 = vunpack.c.l.b16 %v3689
    %v4346 = vunpack.c.h.b16 %v3689
    %v4347 = vunpack.c.l.b16 %v3690
    %v4348 = vunpack.c.h.b16 %v3690
    %v4349 = vunpack.c.l.b16 %v3691
    %v4350 = vunpack.c.h.b16 %v3691
    %v4351 = vunpack.c.l.b16 %v3692
    %v4352 = vunpack.c.h.b16 %v3692
    %v4353 = vunpack.c.l.b16 %v3693
    %v4354 = vunpack.c.h.b16 %v3693
    %v4355 = vunpack.c.l.b16 %v3694
    %v4356 = vunpack.c.h.b16 %v3694
    %v4357 = vunpack.c.l.b16 %v3695
    %v4358 = vunpack.c.h.b16 %v3695
    %v4359 = vunpack.c.l.b16 %v3696
    %v4360 = vunpack.c.h.b16 %v3696
    %v4361 = vunpack.c.l.b16 %v3697
    %v4362 = vunpack.c.h.b16 %v3697
    %v4363 = vunpack.c.l.b16 %v3698
    %v4364 = vunpack.c.h.b16 %v3698
    %v4365 = vunpack.c.l.b16 %v3699
    %v4366 = vunpack.c.h.b16 %v3699
    %v4367 = vunpack.c.l.b16 %v3700
    %v4368 = vunpack.c.h.b16 %v3700
    %v4369 = vunpack.c.l.b16 %v3701
    %v4370 = vunpack.c.h.b16 %v3701
    %v4371 = vunpack.c.l.b16 %v3702
    %v4372 = vunpack.c.h.b16 %v3702
    %v4373 = vunpack.c.l.b16 %v3703
    %v4374 = vunpack.c.h.b16 %v3703
    %v4375 = vunpack.c.l.b16 %v3704
    %v4376 = vunpack.c.h.b16 %v3704
    %v4377 = vunpack.c.l.b16 %v3705
    %v4378 = vunpack.c.h.b16 %v3705
    %v4379 = vunpack.c.l.b16 %v3706
    %v4380 = vunpack.c.h.b16 %v3706
    %v4381 = vunpack.c.l.b16 %v3707
    %v4382 = vunpack.c.h.b16 %v3707
    %v4383 = vunpack.c.l.b16 %v3708
    %v4384 = vunpack.c.h.b16 %v3708
    %v4385 = vunpack.c.l.b16 %v3709
    %v4386 = vunpack.c.h.b16 %v3709
    %v4387 = vunpack.c.l.b16 %v3710
    %v4388 = vunpack.c.h.b16 %v3710
    %v4389 = vunpack.c.l.b16 %v3711
    %v4390 = vunpack.c.h.b16 %v3711
    %v4391 = vunpack.c.l.b16 %v3712
    %v4392 = vunpack.c.h.b16 %v3712
    %v4393 = vunpack.c.l.b16 %v3713
    %v4394 = vunpack.c.h.b16 %v3713
    %v4395 = vunpack.c.l.b16 %v3714
    %v4396 = vunpack.c.h.b16 %v3714
    %v4397 = vunpack.c.l.b16 %v3715
    %v4398 = vunpack.c.h.b16 %v3715
    %v4399 = vunpack.c.l.b16 %v3716
    %v4400 = vunpack.c.h.b16 %v3716
    %v4401 = vunpack.c.l.b16 %v3717
    %v4402 = vunpack.c.h.b16 %v3717
    %v4403 = vunpack.c.l.b16 %v3718
    %v4404 = vunpack.c.h.b16 %v3718
    %v4405 = vunpack.c.l.b16 %v3719
    %v4406 = vunpack.c.h.b16 %v3719
    %v4407 = vunpack.c.l.b16 %v3720
    %v4408 = vunpack.c.h.b16 %v3720
    %v4409 = vunpack.c.l.b16 %v3721
    %v4410 = vunpack.c.h.b16 %v3721
    %v4411 = vunpack.c.l.b16 %v3722
    %v4412 = vunpack.c.h.b16 %v3722
    %v4413 = vunpack.c.l.b16 %v3723
    %v4414 = vunpack.c.h.b16 %v3723
    %v4415 = vunpack.c.l.b16 %v3724
    %v4416 = vunpack.c.h.b16 %v3724
    %v4417 = vunpack.c.l.b16 %v3725
    %v4418 = vunpack.c.h.b16 %v3725
    %v4419 = vunpack.c.l.b16 %v3726
    %v4420 = vunpack.c.h.b16 %v3726
    %v4421 = vunpack.c.l.b16 %v3727
    %v4422 = vunpack.c.h.b16 %v3727
    %v4423 = vunpack.c.l.b16 %v3728
    %v4424 = vunpack.c.h.b16 %v3728
    %v4425 = vunpack.c.l.b16 %v3729
    %v4426 = vunpack.c.h.b16 %v3729
    %v4427 = vunpack.c.l.b16 %v3730
    %v4428 = vunpack.c.h.b16 %v3730
    %v4429 = vunpack.c.l.b16 %v3731
    %v4430 = vunpack.c.h.b16 %v3731
    %v4431 = vunpack.c.l.b16 %v3732
    %v4432 = vunpack.c.h.b16 %v3732
    %v4433 = vunpack.c.l.b16 %v3733
    %v4434 = vunpack.c.h.b16 %v3733
    %v4435 = vunpack.c.l.b16 %v3734
    %v4436 = vunpack.c.h.b16 %v3734
    %v4437 = vunpack.c.l.b16 %v3735
    %v4438 = vunpack.c.h.b16 %v3735
    %v4439 = vunpack.c.l.b16 %v3736
    %v4440 = vunpack.c.h.b16 %v3736
    %v4441 = vunpack.c.l.b16 %v3737
    %v4442 = vunpack.c.h.b16 %v3737
    %v4443 = vunpack.c.l.b16 %v3738
    %v4444 = vunpack.c.h.b16 %v3738
    %v4445 = vunpack.c.l.b16 %v3739
    %v4446 = vunpack.c.h.b16 %v3739
    %v4447 = vunpack.c.l.b16 %v3740
    %v4448 = vunpack.c.h.b16 %v3740
    %v4449 = vpack.c.b16 %v4325, %v4321
    %v4450 = vpack.c.b16 %v4326, %v4322
    %v4451 = vpack.c.b16 %v4327, %v4323
    %v4452 = vpack.c.b16 %v4328, %v4324
    %v4453 = vpack.c.b16 %v4333, %v4329
    %v4454 = vpack.c.b16 %v4334, %v4330
    %v4455 = vpack.c.b16 %v4335, %v4331
    %v4456 = vpack.c.b16 %v4336, %v4332
    %v4457 = vpack.c.b16 %v4341, %v4337
    %v4458 = vpack.c.b16 %v4342, %v4338
    %v4459 = vpack.c.b16 %v4343, %v4339
    %v4460 = vpack.c.b16 %v4344, %v4340
    %v4461 = vpack.c.b16 %v4349, %v4345
    %v4462 = vpack.c.b16 %v4350, %v4346
    %v4463 = vpack.c.b16 %v4351, %v4347
    %v4464 = vpack.c.b16 %v4352, %v4348
    %v4465 = vpack.c.b16 %v4357, %v4353
    %v4466 = vpack.c.b16 %v4358, %v4354
    %v4467 = vpack.c.b16 %v4359, %v4355
    %v4468 = vpack.c.b16 %v4360, %v4356
    %v4469 = vpack.c.b16 %v4365, %v4361
    %v4470 = vpack.c.b16 %v4366, %v4362
    %v4471 = vpack.c.b16 %v4367, %v4363
    %v4472 = vpack.c.b16 %v4368, %v4364
    %v4473 = vpack.c.b16 %v4373, %v4369
    %v4474 = vpack.c.b16 %v4374, %v4370
    %v4475 = vpack.c.b16 %v4375, %v4371
    %v4476 = vpack.c.b16 %v4376, %v4372
    %v4477 = vpack.c.b16 %v4381, %v4377
    %v4478 = vpack.c.b16 %v4382, %v4378
    %v4479 = vpack.c.b16 %v4383, %v4379
    %v4480 = vpack.c.b16 %v4384, %v4380
    %v4481 = vpack.c.b16 %v4389, %v4385
    %v4482 = vpack.c.b16 %v4390, %v4386
    %v4483 = vpack.c.b16 %v4391, %v4387
    %v4484 = vpack.c.b16 %v4392, %v4388
    %v4485 = vpack.c.b16 %v4397, %v4393
    %v4486 = vpack.c.b16 %v4398, %v4394
    %v4487 = vpack.c.b16 %v4399, %v4395
    %v4488 = vpack.c.b16 %v4400, %v4396
    %v4489 = vpack.c.b16 %v4405, %v4401
    %v4490 = vpack.c.b16 %v4406, %v4402
    %v4491 = vpack.c.b16 %v4407, %v4403
    %v4492 = vpack.c.b16 %v4408, %v4404
    %v4493 = vpack.c.b16 %v4413, %v4409
    %v4494 = vpack.c.b16 %v4414, %v4410
    %v4495 = vpack.c.b16 %v4415, %v4411
    %v4496 = vpack.c.b16 %v4416, %v4412
    %v4497 = vpack.c.b16 %v4421, %v4417
    %v4498 = vpack.c.b16 %v4422, %v4418
    %v4499 = vpack.c.b16 %v4423, %v4419
    %v4500 = vpack.c.b16 %v4424, %v4420
    %v4501 = vpack.c.b16 %v4429, %v4425
    %v4502 = vpack.c.b16 %v4430, %v4426
    %v4503 = vpack.c.b16 %v4431, %v4427
    %v4504 = vpack.c.b16 %v4432, %v4428
    %v4505 = vpack.c.b16 %v4437, %v4433
    %v4506 = vpack.c.b16 %v4438, %v4434
    %v4507 = vpack.c.b16 %v4439, %v4435
    %v4508 = vpack.c.b16 %v4440, %v4436
    %v4509 = vpack.c.b16 %v4445, %v4441
    %v4510 = vpack.c.b16 %v4446, %v4442
    %v4511 = vpack.c.b16 %v4447, %v4443
    %v4512 = vpack.c.b16 %v4448, %v4444
    %4577 = vmatprep.subr.bf16.mxu0 %v4478
    %4578 = vmatpush1.bf16.msra.mxu0 %v4477
    %4579 = vmatprep.subr.bf16.mxu0 %v4474
    %4580 = vmatpush1.bf16.msra.mxu0 %v4473
    %4581 = vmatprep.subr.bf16.mxu0 %v4470
    %4582 = vmatpush1.bf16.msra.mxu0 %v4469
    %4583 = vmatprep.subr.bf16.mxu0 %v4466
    %4584 = vmatpush1.bf16.msra.mxu0 %v4465
    %4585 = vmatprep.subr.bf16.mxu0 %v4462
    %4586 = vmatpush1.bf16.msra.mxu0 %v4461
    %4587 = vmatprep.subr.bf16.mxu0 %v4458
    %4588 = vmatpush1.bf16.msra.mxu0 %v4457
    %4589 = vmatprep.subr.bf16.mxu0 %v4454
    %4590 = vmatpush1.bf16.msra.mxu0 %v4453
    %4591 = vmatprep.subr.bf16.mxu0 %v4450
    %4592 = vmatpush1.bf16.msra.mxu0 %v4449
    %4593 = vmatprep.subr.bf16.mxu0 %v4510
    %4594 = vmatpush2.bf16.msra.mxu0 %v4509
    %4595 = vmatprep.subr.bf16.mxu0 %v4506
    %4596 = vmatpush2.bf16.msra.mxu0 %v4505
    %4597 = vmatprep.subr.bf16.mxu0 %v4502
    %4598 = vmatpush2.bf16.msra.mxu0 %v4501
    %4599 = vmatprep.subr.bf16.mxu0 %v4498
    %4600 = vmatpush2.bf16.msra.mxu0 %v4497
    %4601 = vmatprep.subr.bf16.mxu0 %v4494
    %4602 = vmatpush2.bf16.msra.mxu0 %v4493
    %4603 = vmatprep.subr.bf16.mxu0 %v4490
    %4604 = vmatpush2.bf16.msra.mxu0 %v4489
    %4605 = vmatprep.subr.bf16.mxu0 %v4486
    %4606 = vmatpush2.bf16.msra.mxu0 %v4485
    %4607 = vmatprep.subr.bf16.mxu0 %v4482
    %4608 = vmatpush2.bf16.msra.mxu0 %v4481
    %4609 = vmatprep.mubr.bf16.mxu0 %v3676
    %4610 = vmatmul.mubr.bf16.gmra.mxu0 %v3675
    %v4611 = vpop.f32.mrf.mxu0
    %v4612 = vadd.f32 %v4210, %v4611
    %v4613 = vpop.f32.mrf.mxu0
    %v4614 = vadd.f32 %v4212, %v4613
    %v4615 = vpop.f32.mrf.mxu0
    %v4616 = vpop.f32.mrf.mxu0
    %4617 = vdwg.mxu0
    %4618 = vmatprep.subr.bf16.mxu0 %v4480
    %4619 = vmatpush1.bf16.msra.mxu0 %v4479
    %4620 = vmatprep.subr.bf16.mxu0 %v4476
    %4621 = vmatpush1.bf16.msra.mxu0 %v4475
    %4622 = vmatprep.subr.bf16.mxu0 %v4472
    %4623 = vmatpush1.bf16.msra.mxu0 %v4471
    %4624 = vmatprep.subr.bf16.mxu0 %v4468
    %4625 = vmatpush1.bf16.msra.mxu0 %v4467
    %4626 = vmatprep.subr.bf16.mxu0 %v4464
    %4627 = vmatpush1.bf16.msra.mxu0 %v4463
    %4628 = vmatprep.subr.bf16.mxu0 %v4460
    %4629 = vmatpush1.bf16.msra.mxu0 %v4459
    %4630 = vmatprep.subr.bf16.mxu0 %v4456
    %4631 = vmatpush1.bf16.msra.mxu0 %v4455
    %4632 = vmatprep.subr.bf16.mxu0 %v4452
    %4633 = vmatpush1.bf16.msra.mxu0 %v4451
    %4634 = vmatprep.subr.bf16.mxu0 %v4512
    %4635 = vmatpush2.bf16.msra.mxu0 %v4511
    %4636 = vmatprep.subr.bf16.mxu0 %v4508
    %4637 = vmatpush2.bf16.msra.mxu0 %v4507
    %4638 = vmatprep.subr.bf16.mxu0 %v4504
    %4639 = vmatpush2.bf16.msra.mxu0 %v4503
    %4640 = vmatprep.subr.bf16.mxu0 %v4500
    %4641 = vmatpush2.bf16.msra.mxu0 %v4499
    %4642 = vmatprep.subr.bf16.mxu0 %v4496
    %4643 = vmatpush2.bf16.msra.mxu0 %v4495
    %4644 = vmatprep.subr.bf16.mxu0 %v4492
    %4645 = vmatpush2.bf16.msra.mxu0 %v4491
    %4646 = vmatprep.subr.bf16.mxu0 %v4488
    %4647 = vmatpush2.bf16.msra.mxu0 %v4487
    %4648 = vmatprep.subr.bf16.mxu0 %v4484
    %4649 = vmatpush2.bf16.msra.mxu0 %v4483
    %4650 = vmatprep.mubr.bf16.mxu0 %v3676
    %4651 = vmatmul.mubr.bf16.gmra.mxu0 %v3675
    %v4652 = vpop.f32.mrf.mxu0
    %v4653 = vadd.f32 %v4251, %v4652
    %v4654 = vpop.f32.mrf.mxu0
    %v4655 = vadd.f32 %v4253, %v4654
    %v4656 = vpop.f32.mrf.mxu0
    %v4657 = vpop.f32.mrf.mxu0
    %4658 = vdwg.mxu0
    %s4659 = scalar_lea.vmem [#allocation15], 16
    %v4660 = vld [vmem:[%s4659] sm:$0xff]
    %v4661 = vpack.c.bf16 %v4660, %v4660
    %v4663 = vsel %vm3623, %v4661, 0
    %4665 = vmatprep.subr.bf16.mxu0 0
    %4666 = vmatpush1.bf16.msra.mxu0 0
    %4667 = vmatprep.subr.bf16.mxu0 0
    %4668 = vmatpush1.bf16.msra.mxu0 0
    %4669 = vmatprep.subr.bf16.mxu0 0
    %4670 = vmatpush1.bf16.msra.mxu0 0
    %4671 = vmatprep.subr.bf16.mxu0 0
    %4672 = vmatpush1.bf16.msra.mxu0 0
    %4673 = vmatprep.subr.bf16.mxu0 0
    %4674 = vmatpush1.bf16.msra.mxu0 0
    %4675 = vmatprep.subr.bf16.mxu0 0
    %4676 = vmatpush1.bf16.msra.mxu0 0
    %4677 = vmatprep.subr.bf16.mxu0 0
    %4678 = vmatpush1.bf16.msra.mxu0 0
    %4679 = vmatprep.subr.bf16.mxu0 %v3632
    %4680 = vmatpush1.bf16.msra.mxu0 %v3629
    %4681 = vmatprep.subr.bf16.mxu0 0
    %4682 = vmatpush2.bf16.msra.mxu0 0
    %4683 = vmatprep.subr.bf16.mxu0 0
    %4684 = vmatpush2.bf16.msra.mxu0 0
    %4685 = vmatprep.subr.bf16.mxu0 0
    %4686 = vmatpush2.bf16.msra.mxu0 0
    %4687 = vmatprep.subr.bf16.mxu0 0
    %4688 = vmatpush2.bf16.msra.mxu0 0
    %4689 = vmatprep.subr.bf16.mxu0 0
    %4690 = vmatpush2.bf16.msra.mxu0 0
    %4691 = vmatprep.subr.bf16.mxu0 0
    %4692 = vmatpush2.bf16.msra.mxu0 0
    %4693 = vmatprep.subr.bf16.mxu0 0
    %4694 = vmatpush2.bf16.msra.mxu0 0
    %4695 = vmatprep.subr.bf16.mxu0 0
    %4696 = vmatpush2.bf16.msra.mxu0 0
    %4697 = vmatprep.mubr.bf16.mxu0 0
    %4698 = vmatmul.mubr.bf16.gmra.mxu0 %v4663
    %v4699 = vpop.f32.mrf.mxu0
    %v4700 = vadd.f32 0.0, %v4699
    %v4701 = vpop.f32.mrf.mxu0
    %v4702 = vadd.f32 0.0, %v4701
    %v4703 = vpop.f32.mrf.mxu0
    %v4704 = vpop.f32.mrf.mxu0
    %4705 = vdwg.mxu0
    %v4706 = vpack.c.bf16 %v4700, %v4700
    %v4707 = vpack.c.bf16 %v4702, %v4702
    %s4708 = scalar_lea.vmem [#allocation16], 1024
    %v4709 = vld [vmem:[%s4708] sm:$0xff]
    %v4710 = vld [vmem:[%s4708 + $0x8] sm:$0xff]
    %v4711 = vld [vmem:[%s4708 + $0x10] sm:$0xff]
    %v4712 = vld [vmem:[%s4708 + $0x18] sm:$0xff]
    %v4713 = vld [vmem:[%s4708 + $0x20] sm:$0xff]
    %v4714 = vld [vmem:[%s4708 + $0x28] sm:$0xff]
    %v4715 = vld [vmem:[%s4708 + $0x30] sm:$0xff]
    %v4716 = vld [vmem:[%s4708 + $0x38] sm:$0xff]
    %v4717 = vld [vmem:[%s4708 + $0x40] sm:$0xff]
    %v4718 = vld [vmem:[%s4708 + $0x48] sm:$0xff]
    %v4719 = vld [vmem:[%s4708 + $0x50] sm:$0xff]
    %v4720 = vld [vmem:[%s4708 + $0x58] sm:$0xff]
    %v4721 = vld [vmem:[%s4708 + $0x60] sm:$0xff]
    %v4722 = vld [vmem:[%s4708 + $0x68] sm:$0xff]
    %v4723 = vld [vmem:[%s4708 + $0x70] sm:$0xff]
    %v4724 = vld [vmem:[%s4708 + $0x78] sm:$0xff]
    %v4725 = vld [vmem:[%s4708 + $0x80] sm:$0xff]
    %v4726 = vld [vmem:[%s4708 + $0x88] sm:$0xff]
    %v4727 = vld [vmem:[%s4708 + $0x90] sm:$0xff]
    %v4728 = vld [vmem:[%s4708 + $0x98] sm:$0xff]
    %v4729 = vld [vmem:[%s4708 + $0xa0] sm:$0xff]
    %v4730 = vld [vmem:[%s4708 + $0xa8] sm:$0xff]
    %v4731 = vld [vmem:[%s4708 + $0xb0] sm:$0xff]
    %v4732 = vld [vmem:[%s4708 + $0xb8] sm:$0xff]
    %v4733 = vld [vmem:[%s4708 + $0xc0] sm:$0xff]
    %v4734 = vld [vmem:[%s4708 + $0xc8] sm:$0xff]
    %v4735 = vld [vmem:[%s4708 + $0xd0] sm:$0xff]
    %v4736 = vld [vmem:[%s4708 + $0xd8] sm:$0xff]
    %v4737 = vld [vmem:[%s4708 + $0xe0] sm:$0xff]
    %v4738 = vld [vmem:[%s4708 + $0xe8] sm:$0xff]
    %v4739 = vld [vmem:[%s4708 + $0xf0] sm:$0xff]
    %v4740 = vld [vmem:[%s4708 + $0xf8] sm:$0xff]
    %v4741 = vld [vmem:[%s4708 + $0x100] sm:$0xff]
    %v4742 = vld [vmem:[%s4708 + $0x108] sm:$0xff]
    %v4743 = vld [vmem:[%s4708 + $0x110] sm:$0xff]
    %v4744 = vld [vmem:[%s4708 + $0x118] sm:$0xff]
    %v4745 = vld [vmem:[%s4708 + $0x120] sm:$0xff]
    %v4746 = vld [vmem:[%s4708 + $0x128] sm:$0xff]
    %v4747 = vld [vmem:[%s4708 + $0x130] sm:$0xff]
    %v4748 = vld [vmem:[%s4708 + $0x138] sm:$0xff]
    %v4749 = vld [vmem:[%s4708 + $0x140] sm:$0xff]
    %v4750 = vld [vmem:[%s4708 + $0x148] sm:$0xff]
    %v4751 = vld [vmem:[%s4708 + $0x150] sm:$0xff]
    %v4752 = vld [vmem:[%s4708 + $0x158] sm:$0xff]
    %v4753 = vld [vmem:[%s4708 + $0x160] sm:$0xff]
    %v4754 = vld [vmem:[%s4708 + $0x168] sm:$0xff]
    %v4755 = vld [vmem:[%s4708 + $0x170] sm:$0xff]
    %v4756 = vld [vmem:[%s4708 + $0x178] sm:$0xff]
    %v4757 = vld [vmem:[%s4708 + $0x180] sm:$0xff]
    %v4758 = vld [vmem:[%s4708 + $0x188] sm:$0xff]
    %v4759 = vld [vmem:[%s4708 + $0x190] sm:$0xff]
    %v4760 = vld [vmem:[%s4708 + $0x198] sm:$0xff]
    %v4761 = vld [vmem:[%s4708 + $0x1a0] sm:$0xff]
    %v4762 = vld [vmem:[%s4708 + $0x1a8] sm:$0xff]
    %v4763 = vld [vmem:[%s4708 + $0x1b0] sm:$0xff]
    %v4764 = vld [vmem:[%s4708 + $0x1b8] sm:$0xff]
    %v4765 = vld [vmem:[%s4708 + $0x1c0] sm:$0xff]
    %v4766 = vld [vmem:[%s4708 + $0x1c8] sm:$0xff]
    %v4767 = vld [vmem:[%s4708 + $0x1d0] sm:$0xff]
    %v4768 = vld [vmem:[%s4708 + $0x1d8] sm:$0xff]
    %v4769 = vld [vmem:[%s4708 + $0x1e0] sm:$0xff]
    %v4770 = vld [vmem:[%s4708 + $0x1e8] sm:$0xff]
    %v4771 = vld [vmem:[%s4708 + $0x1f0] sm:$0xff]
    %v4772 = vld [vmem:[%s4708 + $0x1f8] sm:$0xff]
    %v4837 = vunpack.c.l.b16 %v4709
    %v4838 = vunpack.c.h.b16 %v4709
    %v4839 = vunpack.c.l.b16 %v4710
    %v4840 = vunpack.c.h.b16 %v4710
    %v4841 = vunpack.c.l.b16 %v4711
    %v4842 = vunpack.c.h.b16 %v4711
    %v4843 = vunpack.c.l.b16 %v4712
    %v4844 = vunpack.c.h.b16 %v4712
    %v4845 = vunpack.c.l.b16 %v4713
    %v4846 = vunpack.c.h.b16 %v4713
    %v4847 = vunpack.c.l.b16 %v4714
    %v4848 = vunpack.c.h.b16 %v4714
    %v4849 = vunpack.c.l.b16 %v4715
    %v4850 = vunpack.c.h.b16 %v4715
    %v4851 = vunpack.c.l.b16 %v4716
    %v4852 = vunpack.c.h.b16 %v4716
    %v4853 = vunpack.c.l.b16 %v4717
    %v4854 = vunpack.c.h.b16 %v4717
    %v4855 = vunpack.c.l.b16 %v4718
    %v4856 = vunpack.c.h.b16 %v4718
    %v4857 = vunpack.c.l.b16 %v4719
    %v4858 = vunpack.c.h.b16 %v4719
    %v4859 = vunpack.c.l.b16 %v4720
    %v4860 = vunpack.c.h.b16 %v4720
    %v4861 = vunpack.c.l.b16 %v4721
    %v4862 = vunpack.c.h.b16 %v4721
    %v4863 = vunpack.c.l.b16 %v4722
    %v4864 = vunpack.c.h.b16 %v4722
    %v4865 = vunpack.c.l.b16 %v4723
    %v4866 = vunpack.c.h.b16 %v4723
    %v4867 = vunpack.c.l.b16 %v4724
    %v4868 = vunpack.c.h.b16 %v4724
    %v4869 = vunpack.c.l.b16 %v4725
    %v4870 = vunpack.c.h.b16 %v4725
    %v4871 = vunpack.c.l.b16 %v4726
    %v4872 = vunpack.c.h.b16 %v4726
    %v4873 = vunpack.c.l.b16 %v4727
    %v4874 = vunpack.c.h.b16 %v4727
    %v4875 = vunpack.c.l.b16 %v4728
    %v4876 = vunpack.c.h.b16 %v4728
    %v4877 = vunpack.c.l.b16 %v4729
    %v4878 = vunpack.c.h.b16 %v4729
    %v4879 = vunpack.c.l.b16 %v4730
    %v4880 = vunpack.c.h.b16 %v4730
    %v4881 = vunpack.c.l.b16 %v4731
    %v4882 = vunpack.c.h.b16 %v4731
    %v4883 = vunpack.c.l.b16 %v4732
    %v4884 = vunpack.c.h.b16 %v4732
    %v4885 = vunpack.c.l.b16 %v4733
    %v4886 = vunpack.c.h.b16 %v4733
    %v4887 = vunpack.c.l.b16 %v4734
    %v4888 = vunpack.c.h.b16 %v4734
    %v4889 = vunpack.c.l.b16 %v4735
    %v4890 = vunpack.c.h.b16 %v4735
    %v4891 = vunpack.c.l.b16 %v4736
    %v4892 = vunpack.c.h.b16 %v4736
    %v4893 = vunpack.c.l.b16 %v4737
    %v4894 = vunpack.c.h.b16 %v4737
    %v4895 = vunpack.c.l.b16 %v4738
    %v4896 = vunpack.c.h.b16 %v4738
    %v4897 = vunpack.c.l.b16 %v4739
    %v4898 = vunpack.c.h.b16 %v4739
    %v4899 = vunpack.c.l.b16 %v4740
    %v4900 = vunpack.c.h.b16 %v4740
    %v4901 = vunpack.c.l.b16 %v4741
    %v4902 = vunpack.c.h.b16 %v4741
    %v4903 = vunpack.c.l.b16 %v4742
    %v4904 = vunpack.c.h.b16 %v4742
    %v4905 = vunpack.c.l.b16 %v4743
    %v4906 = vunpack.c.h.b16 %v4743
    %v4907 = vunpack.c.l.b16 %v4744
    %v4908 = vunpack.c.h.b16 %v4744
    %v4909 = vunpack.c.l.b16 %v4745
    %v4910 = vunpack.c.h.b16 %v4745
    %v4911 = vunpack.c.l.b16 %v4746
    %v4912 = vunpack.c.h.b16 %v4746
    %v4913 = vunpack.c.l.b16 %v4747
    %v4914 = vunpack.c.h.b16 %v4747
    %v4915 = vunpack.c.l.b16 %v4748
    %v4916 = vunpack.c.h.b16 %v4748
    %v4917 = vunpack.c.l.b16 %v4749
    %v4918 = vunpack.c.h.b16 %v4749
    %v4919 = vunpack.c.l.b16 %v4750
    %v4920 = vunpack.c.h.b16 %v4750
    %v4921 = vunpack.c.l.b16 %v4751
    %v4922 = vunpack.c.h.b16 %v4751
    %v4923 = vunpack.c.l.b16 %v4752
    %v4924 = vunpack.c.h.b16 %v4752
    %v4925 = vunpack.c.l.b16 %v4753
    %v4926 = vunpack.c.h.b16 %v4753
    %v4927 = vunpack.c.l.b16 %v4754
    %v4928 = vunpack.c.h.b16 %v4754
    %v4929 = vunpack.c.l.b16 %v4755
    %v4930 = vunpack.c.h.b16 %v4755
    %v4931 = vunpack.c.l.b16 %v4756
    %v4932 = vunpack.c.h.b16 %v4756
    %v4933 = vunpack.c.l.b16 %v4757
    %v4934 = vunpack.c.h.b16 %v4757
    %v4935 = vunpack.c.l.b16 %v4758
    %v4936 = vunpack.c.h.b16 %v4758
    %v4937 = vunpack.c.l.b16 %v4759
    %v4938 = vunpack.c.h.b16 %v4759
    %v4939 = vunpack.c.l.b16 %v4760
    %v4940 = vunpack.c.h.b16 %v4760
    %v4941 = vunpack.c.l.b16 %v4761
    %v4942 = vunpack.c.h.b16 %v4761
    %v4943 = vunpack.c.l.b16 %v4762
    %v4944 = vunpack.c.h.b16 %v4762
    %v4945 = vunpack.c.l.b16 %v4763
    %v4946 = vunpack.c.h.b16 %v4763
    %v4947 = vunpack.c.l.b16 %v4764
    %v4948 = vunpack.c.h.b16 %v4764
    %v4949 = vunpack.c.l.b16 %v4765
    %v4950 = vunpack.c.h.b16 %v4765
    %v4951 = vunpack.c.l.b16 %v4766
    %v4952 = vunpack.c.h.b16 %v4766
    %v4953 = vunpack.c.l.b16 %v4767
    %v4954 = vunpack.c.h.b16 %v4767
    %v4955 = vunpack.c.l.b16 %v4768
    %v4956 = vunpack.c.h.b16 %v4768
    %v4957 = vunpack.c.l.b16 %v4769
    %v4958 = vunpack.c.h.b16 %v4769
    %v4959 = vunpack.c.l.b16 %v4770
    %v4960 = vunpack.c.h.b16 %v4770
    %v4961 = vunpack.c.l.b16 %v4771
    %v4962 = vunpack.c.h.b16 %v4771
    %v4963 = vunpack.c.l.b16 %v4772
    %v4964 = vunpack.c.h.b16 %v4772
    %v4965 = vpack.c.b16 %v4841, %v4837
    %v4966 = vpack.c.b16 %v4842, %v4838
    %v4967 = vpack.c.b16 %v4843, %v4839
    %v4968 = vpack.c.b16 %v4844, %v4840
    %v4969 = vpack.c.b16 %v4849, %v4845
    %v4970 = vpack.c.b16 %v4850, %v4846
    %v4971 = vpack.c.b16 %v4851, %v4847
    %v4972 = vpack.c.b16 %v4852, %v4848
    %v4973 = vpack.c.b16 %v4857, %v4853
    %v4974 = vpack.c.b16 %v4858, %v4854
    %v4975 = vpack.c.b16 %v4859, %v4855
    %v4976 = vpack.c.b16 %v4860, %v4856
    %v4977 = vpack.c.b16 %v4865, %v4861
    %v4978 = vpack.c.b16 %v4866, %v4862
    %v4979 = vpack.c.b16 %v4867, %v4863
    %v4980 = vpack.c.b16 %v4868, %v4864
    %v4981 = vpack.c.b16 %v4873, %v4869
    %v4982 = vpack.c.b16 %v4874, %v4870
    %v4983 = vpack.c.b16 %v4875, %v4871
    %v4984 = vpack.c.b16 %v4876, %v4872
    %v4985 = vpack.c.b16 %v4881, %v4877
    %v4986 = vpack.c.b16 %v4882, %v4878
    %v4987 = vpack.c.b16 %v4883, %v4879
    %v4988 = vpack.c.b16 %v4884, %v4880
    %v4989 = vpack.c.b16 %v4889, %v4885
    %v4990 = vpack.c.b16 %v4890, %v4886
    %v4991 = vpack.c.b16 %v4891, %v4887
    %v4992 = vpack.c.b16 %v4892, %v4888
    %v4993 = vpack.c.b16 %v4897, %v4893
    %v4994 = vpack.c.b16 %v4898, %v4894
    %v4995 = vpack.c.b16 %v4899, %v4895
    %v4996 = vpack.c.b16 %v4900, %v4896
    %v4997 = vpack.c.b16 %v4905, %v4901
    %v4998 = vpack.c.b16 %v4906, %v4902
    %v4999 = vpack.c.b16 %v4907, %v4903
    %v5000 = vpack.c.b16 %v4908, %v4904
    %v5001 = vpack.c.b16 %v4913, %v4909
    %v5002 = vpack.c.b16 %v4914, %v4910
    %v5003 = vpack.c.b16 %v4915, %v4911
    %v5004 = vpack.c.b16 %v4916, %v4912
    %v5005 = vpack.c.b16 %v4921, %v4917
    %v5006 = vpack.c.b16 %v4922, %v4918
    %v5007 = vpack.c.b16 %v4923, %v4919
    %v5008 = vpack.c.b16 %v4924, %v4920
    %v5009 = vpack.c.b16 %v4929, %v4925
    %v5010 = vpack.c.b16 %v4930, %v4926
    %v5011 = vpack.c.b16 %v4931, %v4927
    %v5012 = vpack.c.b16 %v4932, %v4928
    %v5013 = vpack.c.b16 %v4937, %v4933
    %v5014 = vpack.c.b16 %v4938, %v4934
    %v5015 = vpack.c.b16 %v4939, %v4935
    %v5016 = vpack.c.b16 %v4940, %v4936
    %v5017 = vpack.c.b16 %v4945, %v4941
    %v5018 = vpack.c.b16 %v4946, %v4942
    %v5019 = vpack.c.b16 %v4947, %v4943
    %v5020 = vpack.c.b16 %v4948, %v4944
    %v5021 = vpack.c.b16 %v4953, %v4949
    %v5022 = vpack.c.b16 %v4954, %v4950
    %v5023 = vpack.c.b16 %v4955, %v4951
    %v5024 = vpack.c.b16 %v4956, %v4952
    %v5025 = vpack.c.b16 %v4961, %v4957
    %v5026 = vpack.c.b16 %v4962, %v4958
    %v5027 = vpack.c.b16 %v4963, %v4959
    %v5028 = vpack.c.b16 %v4964, %v4960
    %5093 = vmatprep.subr.bf16.mxu0 %v4994
    %5094 = vmatpush1.bf16.msra.mxu0 %v4993
    %5095 = vmatprep.subr.bf16.mxu0 %v4990
    %5096 = vmatpush1.bf16.msra.mxu0 %v4989
    %5097 = vmatprep.subr.bf16.mxu0 %v4986
    %5098 = vmatpush1.bf16.msra.mxu0 %v4985
    %5099 = vmatprep.subr.bf16.mxu0 %v4982
    %5100 = vmatpush1.bf16.msra.mxu0 %v4981
    %5101 = vmatprep.subr.bf16.mxu0 %v4978
    %5102 = vmatpush1.bf16.msra.mxu0 %v4977
    %5103 = vmatprep.subr.bf16.mxu0 %v4974
    %5104 = vmatpush1.bf16.msra.mxu0 %v4973
    %5105 = vmatprep.subr.bf16.mxu0 %v4970
    %5106 = vmatpush1.bf16.msra.mxu0 %v4969
    %5107 = vmatprep.subr.bf16.mxu0 %v4966
    %5108 = vmatpush1.bf16.msra.mxu0 %v4965
    %5109 = vmatprep.subr.bf16.mxu0 %v5026
    %5110 = vmatpush2.bf16.msra.mxu0 %v5025
    %5111 = vmatprep.subr.bf16.mxu0 %v5022
    %5112 = vmatpush2.bf16.msra.mxu0 %v5021
    %5113 = vmatprep.subr.bf16.mxu0 %v5018
    %5114 = vmatpush2.bf16.msra.mxu0 %v5017
    %5115 = vmatprep.subr.bf16.mxu0 %v5014
    %5116 = vmatpush2.bf16.msra.mxu0 %v5013
    %5117 = vmatprep.subr.bf16.mxu0 %v5010
    %5118 = vmatpush2.bf16.msra.mxu0 %v5009
    %5119 = vmatprep.subr.bf16.mxu0 %v5006
    %5120 = vmatpush2.bf16.msra.mxu0 %v5005
    %5121 = vmatprep.subr.bf16.mxu0 %v5002
    %5122 = vmatpush2.bf16.msra.mxu0 %v5001
    %5123 = vmatprep.subr.bf16.mxu0 %v4998
    %5124 = vmatpush2.bf16.msra.mxu0 %v4997
    %5125 = vmatprep.mubr.bf16.mxu0 %v4707
    %5126 = vmatmul.mubr.bf16.gmra.mxu0 %v4706
    %v5127 = vpop.f32.mrf.mxu0
    %v5128 = vadd.f32 0.0, %v5127
    %v5129 = vpop.f32.mrf.mxu0
    %v5130 = vadd.f32 0.0, %v5129
    %v5131 = vpop.f32.mrf.mxu0
    %v5132 = vpop.f32.mrf.mxu0
    %5133 = vdwg.mxu0
    %5134 = vmatprep.subr.bf16.mxu0 %v4996
    %5135 = vmatpush1.bf16.msra.mxu0 %v4995
    %5136 = vmatprep.subr.bf16.mxu0 %v4992
    %5137 = vmatpush1.bf16.msra.mxu0 %v4991
    %5138 = vmatprep.subr.bf16.mxu0 %v4988
    %5139 = vmatpush1.bf16.msra.mxu0 %v4987
    %5140 = vmatprep.subr.bf16.mxu0 %v4984
    %5141 = vmatpush1.bf16.msra.mxu0 %v4983
    %5142 = vmatprep.subr.bf16.mxu0 %v4980
    %5143 = vmatpush1.bf16.msra.mxu0 %v4979
    %5144 = vmatprep.subr.bf16.mxu0 %v4976
    %5145 = vmatpush1.bf16.msra.mxu0 %v4975
    %5146 = vmatprep.subr.bf16.mxu0 %v4972
    %5147 = vmatpush1.bf16.msra.mxu0 %v4971
    %5148 = vmatprep.subr.bf16.mxu0 %v4968
    %5149 = vmatpush1.bf16.msra.mxu0 %v4967
    %5150 = vmatprep.subr.bf16.mxu0 %v5028
    %5151 = vmatpush2.bf16.msra.mxu0 %v5027
    %5152 = vmatprep.subr.bf16.mxu0 %v5024
    %5153 = vmatpush2.bf16.msra.mxu0 %v5023
    %5154 = vmatprep.subr.bf16.mxu0 %v5020
    %5155 = vmatpush2.bf16.msra.mxu0 %v5019
    %5156 = vmatprep.subr.bf16.mxu0 %v5016
    %5157 = vmatpush2.bf16.msra.mxu0 %v5015
    %5158 = vmatprep.subr.bf16.mxu0 %v5012
    %5159 = vmatpush2.bf16.msra.mxu0 %v5011
    %5160 = vmatprep.subr.bf16.mxu0 %v5008
    %5161 = vmatpush2.bf16.msra.mxu0 %v5007
    %5162 = vmatprep.subr.bf16.mxu0 %v5004
    %5163 = vmatpush2.bf16.msra.mxu0 %v5003
    %5164 = vmatprep.subr.bf16.mxu0 %v5000
    %5165 = vmatpush2.bf16.msra.mxu0 %v4999
    %5166 = vmatprep.mubr.bf16.mxu0 %v4707
    %5167 = vmatmul.mubr.bf16.gmra.mxu0 %v4706
    %v5168 = vpop.f32.mrf.mxu0
    %v5169 = vadd.f32 0.0, %v5168
    %v5170 = vpop.f32.mrf.mxu0
    %v5171 = vadd.f32 0.0, %v5170
    %v5172 = vpop.f32.mrf.mxu0
    %v5173 = vpop.f32.mrf.mxu0
    %5174 = vdwg.mxu0
    %v5175 = vadd.f32 %v4612, %v5128
    %v5176 = vadd.f32 %v4614, %v5130
    %v5177 = vadd.f32 %v4653, %v5169
    %v5178 = vadd.f32 %v4655, %v5171
    %s5179 = scalar_lea.vmem [#allocation15], 24
    %v5180 = vld [vmem:[%s5179] sm:$0xff]
    %v5181 = vpack.c.bf16 %v5180, %v5180
    %v5183 = vsel %vm3623, %v5181, 0
    %5185 = vmatprep.subr.bf16.mxu0 0
    %5186 = vmatpush1.bf16.msra.mxu0 0
    %5187 = vmatprep.subr.bf16.mxu0 0
    %5188 = vmatpush1.bf16.msra.mxu0 0
    %5189 = vmatprep.subr.bf16.mxu0 0
    %5190 = vmatpush1.bf16.msra.mxu0 0
    %5191 = vmatprep.subr.bf16.mxu0 0
    %5192 = vmatpush1.bf16.msra.mxu0 0
    %5193 = vmatprep.subr.bf16.mxu0 0
    %5194 = vmatpush1.bf16.msra.mxu0 0
    %5195 = vmatprep.subr.bf16.mxu0 0
    %5196 = vmatpush1.bf16.msra.mxu0 0
    %5197 = vmatprep.subr.bf16.mxu0 0
    %5198 = vmatpush1.bf16.msra.mxu0 0
    %5199 = vmatprep.subr.bf16.mxu0 %v3632
    %5200 = vmatpush1.bf16.msra.mxu0 %v3629
    %5201 = vmatprep.subr.bf16.mxu0 0
    %5202 = vmatpush2.bf16.msra.mxu0 0
    %5203 = vmatprep.subr.bf16.mxu0 0
    %5204 = vmatpush2.bf16.msra.mxu0 0
    %5205 = vmatprep.subr.bf16.mxu0 0
    %5206 = vmatpush2.bf16.msra.mxu0 0
    %5207 = vmatprep.subr.bf16.mxu0 0
    %5208 = vmatpush2.bf16.msra.mxu0 0
    %5209 = vmatprep.subr.bf16.mxu0 0
    %5210 = vmatpush2.bf16.msra.mxu0 0
    %5211 = vmatprep.subr.bf16.mxu0 0
    %5212 = vmatpush2.bf16.msra.mxu0 0
    %5213 = vmatprep.subr.bf16.mxu0 0
    %5214 = vmatpush2.bf16.msra.mxu0 0
    %5215 = vmatprep.subr.bf16.mxu0 0
    %5216 = vmatpush2.bf16.msra.mxu0 0
    %5217 = vmatprep.mubr.bf16.mxu0 0
    %5218 = vmatmul.mubr.bf16.gmra.mxu0 %v5183
    %v5219 = vpop.f32.mrf.mxu0
    %v5220 = vadd.f32 0.0, %v5219
    %v5221 = vpop.f32.mrf.mxu0
    %v5222 = vadd.f32 0.0, %v5221
    %v5223 = vpop.f32.mrf.mxu0
    %v5224 = vpop.f32.mrf.mxu0
    %5225 = vdwg.mxu0
    %v5226 = vpack.c.bf16 %v5220, %v5220
    %v5227 = vpack.c.bf16 %v5222, %v5222
    %s5228 = scalar_lea.vmem [#allocation16], 1536
    %v5229 = vld [vmem:[%s5228] sm:$0xff]
    %v5230 = vld [vmem:[%s5228 + $0x8] sm:$0xff]
    %v5231 = vld [vmem:[%s5228 + $0x10] sm:$0xff]
    %v5232 = vld [vmem:[%s5228 + $0x18] sm:$0xff]
    %v5233 = vld [vmem:[%s5228 + $0x20] sm:$0xff]
    %v5234 = vld [vmem:[%s5228 + $0x28] sm:$0xff]
    %v5235 = vld [vmem:[%s5228 + $0x30] sm:$0xff]
    %v5236 = vld [vmem:[%s5228 + $0x38] sm:$0xff]
    %v5237 = vld [vmem:[%s5228 + $0x40] sm:$0xff]
    %v5238 = vld [vmem:[%s5228 + $0x48] sm:$0xff]
    %v5239 = vld [vmem:[%s5228 + $0x50] sm:$0xff]
    %v5240 = vld [vmem:[%s5228 + $0x58] sm:$0xff]
    %v5241 = vld [vmem:[%s5228 + $0x60] sm:$0xff]
    %v5242 = vld [vmem:[%s5228 + $0x68] sm:$0xff]
    %v5243 = vld [vmem:[%s5228 + $0x70] sm:$0xff]
    %v5244 = vld [vmem:[%s5228 + $0x78] sm:$0xff]
    %v5245 = vld [vmem:[%s5228 + $0x80] sm:$0xff]
    %v5246 = vld [vmem:[%s5228 + $0x88] sm:$0xff]
    %v5247 = vld [vmem:[%s5228 + $0x90] sm:$0xff]
    %v5248 = vld [vmem:[%s5228 + $0x98] sm:$0xff]
    %v5249 = vld [vmem:[%s5228 + $0xa0] sm:$0xff]
    %v5250 = vld [vmem:[%s5228 + $0xa8] sm:$0xff]
    %v5251 = vld [vmem:[%s5228 + $0xb0] sm:$0xff]
    %v5252 = vld [vmem:[%s5228 + $0xb8] sm:$0xff]
    %v5253 = vld [vmem:[%s5228 + $0xc0] sm:$0xff]
    %v5254 = vld [vmem:[%s5228 + $0xc8] sm:$0xff]
    %v5255 = vld [vmem:[%s5228 + $0xd0] sm:$0xff]
    %v5256 = vld [vmem:[%s5228 + $0xd8] sm:$0xff]
    %v5257 = vld [vmem:[%s5228 + $0xe0] sm:$0xff]
    %v5258 = vld [vmem:[%s5228 + $0xe8] sm:$0xff]
    %v5259 = vld [vmem:[%s5228 + $0xf0] sm:$0xff]
    %v5260 = vld [vmem:[%s5228 + $0xf8] sm:$0xff]
    %v5261 = vld [vmem:[%s5228 + $0x100] sm:$0xff]
    %v5262 = vld [vmem:[%s5228 + $0x108] sm:$0xff]
    %v5263 = vld [vmem:[%s5228 + $0x110] sm:$0xff]
    %v5264 = vld [vmem:[%s5228 + $0x118] sm:$0xff]
    %v5265 = vld [vmem:[%s5228 + $0x120] sm:$0xff]
    %v5266 = vld [vmem:[%s5228 + $0x128] sm:$0xff]
    %v5267 = vld [vmem:[%s5228 + $0x130] sm:$0xff]
    %v5268 = vld [vmem:[%s5228 + $0x138] sm:$0xff]
    %v5269 = vld [vmem:[%s5228 + $0x140] sm:$0xff]
    %v5270 = vld [vmem:[%s5228 + $0x148] sm:$0xff]
    %v5271 = vld [vmem:[%s5228 + $0x150] sm:$0xff]
    %v5272 = vld [vmem:[%s5228 + $0x158] sm:$0xff]
    %v5273 = vld [vmem:[%s5228 + $0x160] sm:$0xff]
    %v5274 = vld [vmem:[%s5228 + $0x168] sm:$0xff]
    %v5275 = vld [vmem:[%s5228 + $0x170] sm:$0xff]
    %v5276 = vld [vmem:[%s5228 + $0x178] sm:$0xff]
    %v5277 = vld [vmem:[%s5228 + $0x180] sm:$0xff]
    %v5278 = vld [vmem:[%s5228 + $0x188] sm:$0xff]
    %v5279 = vld [vmem:[%s5228 + $0x190] sm:$0xff]
    %v5280 = vld [vmem:[%s5228 + $0x198] sm:$0xff]
    %v5281 = vld [vmem:[%s5228 + $0x1a0] sm:$0xff]
    %v5282 = vld [vmem:[%s5228 + $0x1a8] sm:$0xff]
    %v5283 = vld [vmem:[%s5228 + $0x1b0] sm:$0xff]
    %v5284 = vld [vmem:[%s5228 + $0x1b8] sm:$0xff]
    %v5285 = vld [vmem:[%s5228 + $0x1c0] sm:$0xff]
    %v5286 = vld [vmem:[%s5228 + $0x1c8] sm:$0xff]
    %v5287 = vld [vmem:[%s5228 + $0x1d0] sm:$0xff]
    %v5288 = vld [vmem:[%s5228 + $0x1d8] sm:$0xff]
    %v5289 = vld [vmem:[%s5228 + $0x1e0] sm:$0xff]
    %v5290 = vld [vmem:[%s5228 + $0x1e8] sm:$0xff]
    %v5291 = vld [vmem:[%s5228 + $0x1f0] sm:$0xff]
    %v5292 = vld [vmem:[%s5228 + $0x1f8] sm:$0xff]
    %v5357 = vunpack.c.l.b16 %v5229
    %v5358 = vunpack.c.h.b16 %v5229
    %v5359 = vunpack.c.l.b16 %v5230
    %v5360 = vunpack.c.h.b16 %v5230
    %v5361 = vunpack.c.l.b16 %v5231
    %v5362 = vunpack.c.h.b16 %v5231
    %v5363 = vunpack.c.l.b16 %v5232
    %v5364 = vunpack.c.h.b16 %v5232
    %v5365 = vunpack.c.l.b16 %v5233
    %v5366 = vunpack.c.h.b16 %v5233
    %v5367 = vunpack.c.l.b16 %v5234
    %v5368 = vunpack.c.h.b16 %v5234
    %v5369 = vunpack.c.l.b16 %v5235
    %v5370 = vunpack.c.h.b16 %v5235
    %v5371 = vunpack.c.l.b16 %v5236
    %v5372 = vunpack.c.h.b16 %v5236
    %v5373 = vunpack.c.l.b16 %v5237
    %v5374 = vunpack.c.h.b16 %v5237
    %v5375 = vunpack.c.l.b16 %v5238
    %v5376 = vunpack.c.h.b16 %v5238
    %v5377 = vunpack.c.l.b16 %v5239
    %v5378 = vunpack.c.h.b16 %v5239
    %v5379 = vunpack.c.l.b16 %v5240
    %v5380 = vunpack.c.h.b16 %v5240
    %v5381 = vunpack.c.l.b16 %v5241
    %v5382 = vunpack.c.h.b16 %v5241
    %v5383 = vunpack.c.l.b16 %v5242
    %v5384 = vunpack.c.h.b16 %v5242
    %v5385 = vunpack.c.l.b16 %v5243
    %v5386 = vunpack.c.h.b16 %v5243
    %v5387 = vunpack.c.l.b16 %v5244
    %v5388 = vunpack.c.h.b16 %v5244
    %v5389 = vunpack.c.l.b16 %v5245
    %v5390 = vunpack.c.h.b16 %v5245
    %v5391 = vunpack.c.l.b16 %v5246
    %v5392 = vunpack.c.h.b16 %v5246
    %v5393 = vunpack.c.l.b16 %v5247
    %v5394 = vunpack.c.h.b16 %v5247
    %v5395 = vunpack.c.l.b16 %v5248
    %v5396 = vunpack.c.h.b16 %v5248
    %v5397 = vunpack.c.l.b16 %v5249
    %v5398 = vunpack.c.h.b16 %v5249
    %v5399 = vunpack.c.l.b16 %v5250
    %v5400 = vunpack.c.h.b16 %v5250
    %v5401 = vunpack.c.l.b16 %v5251
    %v5402 = vunpack.c.h.b16 %v5251
    %v5403 = vunpack.c.l.b16 %v5252
    %v5404 = vunpack.c.h.b16 %v5252
    %v5405 = vunpack.c.l.b16 %v5253
    %v5406 = vunpack.c.h.b16 %v5253
    %v5407 = vunpack.c.l.b16 %v5254
    %v5408 = vunpack.c.h.b16 %v5254
    %v5409 = vunpack.c.l.b16 %v5255
    %v5410 = vunpack.c.h.b16 %v5255
    %v5411 = vunpack.c.l.b16 %v5256
    %v5412 = vunpack.c.h.b16 %v5256
    %v5413 = vunpack.c.l.b16 %v5257
    %v5414 = vunpack.c.h.b16 %v5257
    %v5415 = vunpack.c.l.b16 %v5258
    %v5416 = vunpack.c.h.b16 %v5258
    %v5417 = vunpack.c.l.b16 %v5259
    %v5418 = vunpack.c.h.b16 %v5259
    %v5419 = vunpack.c.l.b16 %v5260
    %v5420 = vunpack.c.h.b16 %v5260
    %v5421 = vunpack.c.l.b16 %v5261
    %v5422 = vunpack.c.h.b16 %v5261
    %v5423 = vunpack.c.l.b16 %v5262
    %v5424 = vunpack.c.h.b16 %v5262
    %v5425 = vunpack.c.l.b16 %v5263
    %v5426 = vunpack.c.h.b16 %v5263
    %v5427 = vunpack.c.l.b16 %v5264
    %v5428 = vunpack.c.h.b16 %v5264
    %v5429 = vunpack.c.l.b16 %v5265
    %v5430 = vunpack.c.h.b16 %v5265
    %v5431 = vunpack.c.l.b16 %v5266
    %v5432 = vunpack.c.h.b16 %v5266
    %v5433 = vunpack.c.l.b16 %v5267
    %v5434 = vunpack.c.h.b16 %v5267
    %v5435 = vunpack.c.l.b16 %v5268
    %v5436 = vunpack.c.h.b16 %v5268
    %v5437 = vunpack.c.l.b16 %v5269
    %v5438 = vunpack.c.h.b16 %v5269
    %v5439 = vunpack.c.l.b16 %v5270
    %v5440 = vunpack.c.h.b16 %v5270
    %v5441 = vunpack.c.l.b16 %v5271
    %v5442 = vunpack.c.h.b16 %v5271
    %v5443 = vunpack.c.l.b16 %v5272
    %v5444 = vunpack.c.h.b16 %v5272
    %v5445 = vunpack.c.l.b16 %v5273
    %v5446 = vunpack.c.h.b16 %v5273
    %v5447 = vunpack.c.l.b16 %v5274
    %v5448 = vunpack.c.h.b16 %v5274
    %v5449 = vunpack.c.l.b16 %v5275
    %v5450 = vunpack.c.h.b16 %v5275
    %v5451 = vunpack.c.l.b16 %v5276
    %v5452 = vunpack.c.h.b16 %v5276
    %v5453 = vunpack.c.l.b16 %v5277
    %v5454 = vunpack.c.h.b16 %v5277
    %v5455 = vunpack.c.l.b16 %v5278
    %v5456 = vunpack.c.h.b16 %v5278
    %v5457 = vunpack.c.l.b16 %v5279
    %v5458 = vunpack.c.h.b16 %v5279
    %v5459 = vunpack.c.l.b16 %v5280
    %v5460 = vunpack.c.h.b16 %v5280
    %v5461 = vunpack.c.l.b16 %v5281
    %v5462 = vunpack.c.h.b16 %v5281
    %v5463 = vunpack.c.l.b16 %v5282
    %v5464 = vunpack.c.h.b16 %v5282
    %v5465 = vunpack.c.l.b16 %v5283
    %v5466 = vunpack.c.h.b16 %v5283
    %v5467 = vunpack.c.l.b16 %v5284
    %v5468 = vunpack.c.h.b16 %v5284
    %v5469 = vunpack.c.l.b16 %v5285
    %v5470 = vunpack.c.h.b16 %v5285
    %v5471 = vunpack.c.l.b16 %v5286
    %v5472 = vunpack.c.h.b16 %v5286
    %v5473 = vunpack.c.l.b16 %v5287
    %v5474 = vunpack.c.h.b16 %v5287
    %v5475 = vunpack.c.l.b16 %v5288
    %v5476 = vunpack.c.h.b16 %v5288
    %v5477 = vunpack.c.l.b16 %v5289
    %v5478 = vunpack.c.h.b16 %v5289
    %v5479 = vunpack.c.l.b16 %v5290
    %v5480 = vunpack.c.h.b16 %v5290
    %v5481 = vunpack.c.l.b16 %v5291
    %v5482 = vunpack.c.h.b16 %v5291
    %v5483 = vunpack.c.l.b16 %v5292
    %v5484 = vunpack.c.h.b16 %v5292
    %v5485 = vpack.c.b16 %v5361, %v5357
    %v5486 = vpack.c.b16 %v5362, %v5358
    %v5487 = vpack.c.b16 %v5363, %v5359
    %v5488 = vpack.c.b16 %v5364, %v5360
    %v5489 = vpack.c.b16 %v5369, %v5365
    %v5490 = vpack.c.b16 %v5370, %v5366
    %v5491 = vpack.c.b16 %v5371, %v5367
    %v5492 = vpack.c.b16 %v5372, %v5368
    %v5493 = vpack.c.b16 %v5377, %v5373
    %v5494 = vpack.c.b16 %v5378, %v5374
    %v5495 = vpack.c.b16 %v5379, %v5375
    %v5496 = vpack.c.b16 %v5380, %v5376
    %v5497 = vpack.c.b16 %v5385, %v5381
    %v5498 = vpack.c.b16 %v5386, %v5382
    %v5499 = vpack.c.b16 %v5387, %v5383
    %v5500 = vpack.c.b16 %v5388, %v5384
    %v5501 = vpack.c.b16 %v5393, %v5389
    %v5502 = vpack.c.b16 %v5394, %v5390
    %v5503 = vpack.c.b16 %v5395, %v5391
    %v5504 = vpack.c.b16 %v5396, %v5392
    %v5505 = vpack.c.b16 %v5401, %v5397
    %v5506 = vpack.c.b16 %v5402, %v5398
    %v5507 = vpack.c.b16 %v5403, %v5399
    %v5508 = vpack.c.b16 %v5404, %v5400
    %v5509 = vpack.c.b16 %v5409, %v5405
    %v5510 = vpack.c.b16 %v5410, %v5406
    %v5511 = vpack.c.b16 %v5411, %v5407
    %v5512 = vpack.c.b16 %v5412, %v5408
    %v5513 = vpack.c.b16 %v5417, %v5413
    %v5514 = vpack.c.b16 %v5418, %v5414
    %v5515 = vpack.c.b16 %v5419, %v5415
    %v5516 = vpack.c.b16 %v5420, %v5416
    %v5517 = vpack.c.b16 %v5425, %v5421
    %v5518 = vpack.c.b16 %v5426, %v5422
    %v5519 = vpack.c.b16 %v5427, %v5423
    %v5520 = vpack.c.b16 %v5428, %v5424
    %v5521 = vpack.c.b16 %v5433, %v5429
    %v5522 = vpack.c.b16 %v5434, %v5430
    %v5523 = vpack.c.b16 %v5435, %v5431
    %v5524 = vpack.c.b16 %v5436, %v5432
    %v5525 = vpack.c.b16 %v5441, %v5437
    %v5526 = vpack.c.b16 %v5442, %v5438
    %v5527 = vpack.c.b16 %v5443, %v5439
    %v5528 = vpack.c.b16 %v5444, %v5440
    %v5529 = vpack.c.b16 %v5449, %v5445
    %v5530 = vpack.c.b16 %v5450, %v5446
    %v5531 = vpack.c.b16 %v5451, %v5447
    %v5532 = vpack.c.b16 %v5452, %v5448
    %v5533 = vpack.c.b16 %v5457, %v5453
    %v5534 = vpack.c.b16 %v5458, %v5454
    %v5535 = vpack.c.b16 %v5459, %v5455
    %v5536 = vpack.c.b16 %v5460, %v5456
    %v5537 = vpack.c.b16 %v5465, %v5461
    %v5538 = vpack.c.b16 %v5466, %v5462
    %v5539 = vpack.c.b16 %v5467, %v5463
    %v5540 = vpack.c.b16 %v5468, %v5464
    %v5541 = vpack.c.b16 %v5473, %v5469
    %v5542 = vpack.c.b16 %v5474, %v5470
    %v5543 = vpack.c.b16 %v5475, %v5471
    %v5544 = vpack.c.b16 %v5476, %v5472
    %v5545 = vpack.c.b16 %v5481, %v5477
    %v5546 = vpack.c.b16 %v5482, %v5478
    %v5547 = vpack.c.b16 %v5483, %v5479
    %v5548 = vpack.c.b16 %v5484, %v5480
    %5613 = vmatprep.subr.bf16.mxu0 %v5514
    %5614 = vmatpush1.bf16.msra.mxu0 %v5513
    %5615 = vmatprep.subr.bf16.mxu0 %v5510
    %5616 = vmatpush1.bf16.msra.mxu0 %v5509
    %5617 = vmatprep.subr.bf16.mxu0 %v5506
    %5618 = vmatpush1.bf16.msra.mxu0 %v5505
    %5619 = vmatprep.subr.bf16.mxu0 %v5502
    %5620 = vmatpush1.bf16.msra.mxu0 %v5501
    %5621 = vmatprep.subr.bf16.mxu0 %v5498
    %5622 = vmatpush1.bf16.msra.mxu0 %v5497
    %5623 = vmatprep.subr.bf16.mxu0 %v5494
    %5624 = vmatpush1.bf16.msra.mxu0 %v5493
    %5625 = vmatprep.subr.bf16.mxu0 %v5490
    %5626 = vmatpush1.bf16.msra.mxu0 %v5489
    %5627 = vmatprep.subr.bf16.mxu0 %v5486
    %5628 = vmatpush1.bf16.msra.mxu0 %v5485
    %5629 = vmatprep.subr.bf16.mxu0 %v5546
    %5630 = vmatpush2.bf16.msra.mxu0 %v5545
    %5631 = vmatprep.subr.bf16.mxu0 %v5542
    %5632 = vmatpush2.bf16.msra.mxu0 %v5541
    %5633 = vmatprep.subr.bf16.mxu0 %v5538
    %5634 = vmatpush2.bf16.msra.mxu0 %v5537
    %5635 = vmatprep.subr.bf16.mxu0 %v5534
    %5636 = vmatpush2.bf16.msra.mxu0 %v5533
    %5637 = vmatprep.subr.bf16.mxu0 %v5530
    %5638 = vmatpush2.bf16.msra.mxu0 %v5529
    %5639 = vmatprep.subr.bf16.mxu0 %v5526
    %5640 = vmatpush2.bf16.msra.mxu0 %v5525
    %5641 = vmatprep.subr.bf16.mxu0 %v5522
    %5642 = vmatpush2.bf16.msra.mxu0 %v5521
    %5643 = vmatprep.subr.bf16.mxu0 %v5518
    %5644 = vmatpush2.bf16.msra.mxu0 %v5517
    %5645 = vmatprep.mubr.bf16.mxu0 %v5227
    %5646 = vmatmul.mubr.bf16.gmra.mxu0 %v5226
    %v5647 = vpop.f32.mrf.mxu0
    %v5648 = vadd.f32 0.0, %v5647
    %v5649 = vpop.f32.mrf.mxu0
    %v5650 = vadd.f32 0.0, %v5649
    %v5651 = vpop.f32.mrf.mxu0
    %v5652 = vpop.f32.mrf.mxu0
    %5653 = vdwg.mxu0
    %5654 = vmatprep.subr.bf16.mxu0 %v5516
    %5655 = vmatpush1.bf16.msra.mxu0 %v5515
    %5656 = vmatprep.subr.bf16.mxu0 %v5512
    %5657 = vmatpush1.bf16.msra.mxu0 %v5511
    %5658 = vmatprep.subr.bf16.mxu0 %v5508
    %5659 = vmatpush1.bf16.msra.mxu0 %v5507
    %5660 = vmatprep.subr.bf16.mxu0 %v5504
    %5661 = vmatpush1.bf16.msra.mxu0 %v5503
    %5662 = vmatprep.subr.bf16.mxu0 %v5500
    %5663 = vmatpush1.bf16.msra.mxu0 %v5499
    %5664 = vmatprep.subr.bf16.mxu0 %v5496
    %5665 = vmatpush1.bf16.msra.mxu0 %v5495
    %5666 = vmatprep.subr.bf16.mxu0 %v5492
    %5667 = vmatpush1.bf16.msra.mxu0 %v5491
    %5668 = vmatprep.subr.bf16.mxu0 %v5488
    %5669 = vmatpush1.bf16.msra.mxu0 %v5487
    %5670 = vmatprep.subr.bf16.mxu0 %v5548
    %5671 = vmatpush2.bf16.msra.mxu0 %v5547
    %5672 = vmatprep.subr.bf16.mxu0 %v5544
    %5673 = vmatpush2.bf16.msra.mxu0 %v5543
    %5674 = vmatprep.subr.bf16.mxu0 %v5540
    %5675 = vmatpush2.bf16.msra.mxu0 %v5539
    %5676 = vmatprep.subr.bf16.mxu0 %v5536
    %5677 = vmatpush2.bf16.msra.mxu0 %v5535
    %5678 = vmatprep.subr.bf16.mxu0 %v5532
    %5679 = vmatpush2.bf16.msra.mxu0 %v5531
    %5680 = vmatprep.subr.bf16.mxu0 %v5528
    %5681 = vmatpush2.bf16.msra.mxu0 %v5527
    %5682 = vmatprep.subr.bf16.mxu0 %v5524
    %5683 = vmatpush2.bf16.msra.mxu0 %v5523
    %5684 = vmatprep.subr.bf16.mxu0 %v5520
    %5685 = vmatpush2.bf16.msra.mxu0 %v5519
    %5686 = vmatprep.mubr.bf16.mxu0 %v5227
    %5687 = vmatmul.mubr.bf16.gmra.mxu0 %v5226
    %v5688 = vpop.f32.mrf.mxu0
    %v5689 = vadd.f32 0.0, %v5688
    %v5690 = vpop.f32.mrf.mxu0
    %v5691 = vadd.f32 0.0, %v5690
    %v5692 = vpop.f32.mrf.mxu0
    %v5693 = vpop.f32.mrf.mxu0
    %5694 = vdwg.mxu0
    %v5695 = vadd.f32 %v5175, %v5648
    %v5696 = vadd.f32 %v5176, %v5650
    %v5697 = vadd.f32 %v5177, %v5689
    %v5698 = vadd.f32 %v5178, %v5691
    %v5699 = vld [vmem:[%s25] sm:$0xf]
    %v5701 = vlaneseq
    %v5702 = vshrl.u32 %v5701, 7
    %v5703 = vsub.s32 0, %v5702
    %v5704 = vrot.slane %v5699, %v5703
    %v5705 = vlaneseq
    %v5706 = vshrl.u32 %v5705, 7
    %v5707 = vsub.s32 1, %v5706
    %v5708 = vrot.slane %v5699, %v5707
    %v5709 = vlaneseq
    %v5710 = vshrl.u32 %v5709, 7
    %v5711 = vsub.s32 2, %v5710
    %v5712 = vrot.slane %v5699, %v5711
    %v5713 = vlaneseq
    %v5714 = vshrl.u32 %v5713, 7
    %v5715 = vsub.s32 3, %v5714
    %v5716 = vrot.slane %v5699, %v5715
    %v5721 = vadd.f32 %v5695, %v5704
    %v5722 = vadd.f32 %v5696, %v5708
    %v5723 = vadd.f32 %v5697, %v5712
    %v5724 = vadd.f32 %v5698, %v5716
    %v5725 = vmax.f32 %v5721, 0.0
    %v5726 = vmax.f32 %v5722, 0.0
    %v5727 = vmax.f32 %v5723, 0.0
    %v5728 = vmax.f32 %v5724, 0.0
    %5729 = vst [vmem:[%s55] sm:$0xff] %v5725
    %5730 = vst [vmem:[%s55 + $0x8] sm:$0xff] %v5726
    %5731 = vst [vmem:[%s55 + $0x10] sm:$0xff] %v5727
    %5732 = vst [vmem:[%s55 + $0x18] sm:$0xff] %v5728
    %v5733 = vpack.c.bf16 %v5725, %v5725
    %v5734 = vpack.c.bf16 %v5726, %v5726
    %v5735 = vpack.c.bf16 %v5727, %v5727
    %v5736 = vpack.c.bf16 %v5728, %v5728
    %v5737 = vld [vmem:[#allocation18] sm:$0xff]
    %v5738 = vld [vmem:[#allocation18 + $0x8] sm:$0xf]
    %v5739 = vld [vmem:[#allocation18 + $0xc] sm:$0xff]
    %v5740 = vld [vmem:[#allocation18 + $0x14] sm:$0xf]
    %v5741 = vld [vmem:[#allocation18 + $0x18] sm:$0xff]
    %v5742 = vld [vmem:[#allocation18 + $0x20] sm:$0xf]
    %v5743 = vld [vmem:[#allocation18 + $0x24] sm:$0xff]
    %v5744 = vld [vmem:[#allocation18 + $0x2c] sm:$0xf]
    %v5745 = vld [vmem:[#allocation18 + $0x30] sm:$0xff]
    %v5746 = vld [vmem:[#allocation18 + $0x38] sm:$0xf]
    %v5747 = vld [vmem:[#allocation18 + $0x3c] sm:$0xff]
    %v5748 = vld [vmem:[#allocation18 + $0x44] sm:$0xf]
    %v5749 = vld [vmem:[#allocation18 + $0x48] sm:$0xff]
    %v5750 = vld [vmem:[#allocation18 + $0x50] sm:$0xf]
    %v5751 = vld [vmem:[#allocation18 + $0x54] sm:$0xff]
    %v5752 = vld [vmem:[#allocation18 + $0x5c] sm:$0xf]
    %v5753 = vld [vmem:[#allocation18 + $0x60] sm:$0xff]
    %v5754 = vld [vmem:[#allocation18 + $0x68] sm:$0xf]
    %v5755 = vld [vmem:[#allocation18 + $0x6c] sm:$0xff]
    %v5756 = vld [vmem:[#allocation18 + $0x74] sm:$0xf]
    %v5757 = vld [vmem:[#allocation18 + $0x78] sm:$0xff]
    %v5758 = vld [vmem:[#allocation18 + $0x80] sm:$0xf]
    %v5759 = vld [vmem:[#allocation18 + $0x84] sm:$0xff]
    %v5760 = vld [vmem:[#allocation18 + $0x8c] sm:$0xf]
    %v5761 = vld [vmem:[#allocation18 + $0x90] sm:$0xff]
    %v5762 = vld [vmem:[#allocation18 + $0x98] sm:$0xf]
    %v5763 = vld [vmem:[#allocation18 + $0x9c] sm:$0xff]
    %v5764 = vld [vmem:[#allocation18 + $0xa4] sm:$0xf]
    %v5765 = vld [vmem:[#allocation18 + $0xa8] sm:$0xff]
    %v5766 = vld [vmem:[#allocation18 + $0xb0] sm:$0xf]
    %v5767 = vld [vmem:[#allocation18 + $0xb4] sm:$0xff]
    %v5768 = vld [vmem:[#allocation18 + $0xbc] sm:$0xf]
    %v5769 = vld [vmem:[#allocation18 + $0xc0] sm:$0xff]
    %v5770 = vld [vmem:[#allocation18 + $0xc8] sm:$0xf]
    %v5771 = vld [vmem:[#allocation18 + $0xcc] sm:$0xff]
    %v5772 = vld [vmem:[#allocation18 + $0xd4] sm:$0xf]
    %v5773 = vld [vmem:[#allocation18 + $0xd8] sm:$0xff]
    %v5774 = vld [vmem:[#allocation18 + $0xe0] sm:$0xf]
    %v5775 = vld [vmem:[#allocation18 + $0xe4] sm:$0xff]
    %v5776 = vld [vmem:[#allocation18 + $0xec] sm:$0xf]
    %v5777 = vld [vmem:[#allocation18 + $0xf0] sm:$0xff]
    %v5778 = vld [vmem:[#allocation18 + $0xf8] sm:$0xf]
    %v5779 = vld [vmem:[#allocation18 + $0xfc] sm:$0xff]
    %v5780 = vld [vmem:[#allocation18 + $0x104] sm:$0xf]
    %v5781 = vld [vmem:[#allocation18 + $0x108] sm:$0xff]
    %v5782 = vld [vmem:[#allocation18 + $0x110] sm:$0xf]
    %v5783 = vld [vmem:[#allocation18 + $0x114] sm:$0xff]
    %v5784 = vld [vmem:[#allocation18 + $0x11c] sm:$0xf]
    %v5785 = vld [vmem:[#allocation18 + $0x120] sm:$0xff]
    %v5786 = vld [vmem:[#allocation18 + $0x128] sm:$0xf]
    %v5787 = vld [vmem:[#allocation18 + $0x12c] sm:$0xff]
    %v5788 = vld [vmem:[#allocation18 + $0x134] sm:$0xf]
    %v5789 = vld [vmem:[#allocation18 + $0x138] sm:$0xff]
    %v5790 = vld [vmem:[#allocation18 + $0x140] sm:$0xf]
    %v5791 = vld [vmem:[#allocation18 + $0x144] sm:$0xff]
    %v5792 = vld [vmem:[#allocation18 + $0x14c] sm:$0xf]
    %v5793 = vld [vmem:[#allocation18 + $0x150] sm:$0xff]
    %v5794 = vld [vmem:[#allocation18 + $0x158] sm:$0xf]
    %v5795 = vld [vmem:[#allocation18 + $0x15c] sm:$0xff]
    %v5796 = vld [vmem:[#allocation18 + $0x164] sm:$0xf]
    %v5797 = vld [vmem:[#allocation18 + $0x168] sm:$0xff]
    %v5798 = vld [vmem:[#allocation18 + $0x170] sm:$0xf]
    %v5799 = vld [vmem:[#allocation18 + $0x174] sm:$0xff]
    %v5800 = vld [vmem:[#allocation18 + $0x17c] sm:$0xf]
    %v5801 = vld [vmem:[#allocation18 + $0x180] sm:$0xff]
    %v5802 = vld [vmem:[#allocation18 + $0x188] sm:$0xf]
    %v5803 = vld [vmem:[#allocation18 + $0x18c] sm:$0xff]
    %v5804 = vld [vmem:[#allocation18 + $0x194] sm:$0xf]
    %v5805 = vld [vmem:[#allocation18 + $0x198] sm:$0xff]
    %v5806 = vld [vmem:[#allocation18 + $0x1a0] sm:$0xf]
    %v5807 = vld [vmem:[#allocation18 + $0x1a4] sm:$0xff]
    %v5808 = vld [vmem:[#allocation18 + $0x1ac] sm:$0xf]
    %v5809 = vld [vmem:[#allocation18 + $0x1b0] sm:$0xff]
    %v5810 = vld [vmem:[#allocation18 + $0x1b8] sm:$0xf]
    %v5811 = vld [vmem:[#allocation18 + $0x1bc] sm:$0xff]
    %v5812 = vld [vmem:[#allocation18 + $0x1c4] sm:$0xf]
    %v5813 = vld [vmem:[#allocation18 + $0x1c8] sm:$0xff]
    %v5814 = vld [vmem:[#allocation18 + $0x1d0] sm:$0xf]
    %v5815 = vld [vmem:[#allocation18 + $0x1d4] sm:$0xff]
    %v5816 = vld [vmem:[#allocation18 + $0x1dc] sm:$0xf]
    %v5817 = vld [vmem:[#allocation18 + $0x1e0] sm:$0xff]
    %v5818 = vld [vmem:[#allocation18 + $0x1e8] sm:$0xf]
    %v5819 = vld [vmem:[#allocation18 + $0x1ec] sm:$0xff]
    %v5820 = vld [vmem:[#allocation18 + $0x1f4] sm:$0xf]
    %v5821 = vld [vmem:[#allocation18 + $0x1f8] sm:$0xff]
    %v5822 = vld [vmem:[#allocation18 + $0x200] sm:$0xf]
    %v5823 = vld [vmem:[#allocation18 + $0x204] sm:$0xff]
    %v5824 = vld [vmem:[#allocation18 + $0x20c] sm:$0xf]
    %v5825 = vld [vmem:[#allocation18 + $0x210] sm:$0xff]
    %v5826 = vld [vmem:[#allocation18 + $0x218] sm:$0xf]
    %v5827 = vld [vmem:[#allocation18 + $0x21c] sm:$0xff]
    %v5828 = vld [vmem:[#allocation18 + $0x224] sm:$0xf]
    %v5829 = vld [vmem:[#allocation18 + $0x228] sm:$0xff]
    %v5830 = vld [vmem:[#allocation18 + $0x230] sm:$0xf]
    %v5831 = vld [vmem:[#allocation18 + $0x234] sm:$0xff]
    %v5832 = vld [vmem:[#allocation18 + $0x23c] sm:$0xf]
    %v5833 = vld [vmem:[#allocation18 + $0x240] sm:$0xff]
    %v5834 = vld [vmem:[#allocation18 + $0x248] sm:$0xf]
    %v5835 = vld [vmem:[#allocation18 + $0x24c] sm:$0xff]
    %v5836 = vld [vmem:[#allocation18 + $0x254] sm:$0xf]
    %v5837 = vld [vmem:[#allocation18 + $0x258] sm:$0xff]
    %v5838 = vld [vmem:[#allocation18 + $0x260] sm:$0xf]
    %v5839 = vld [vmem:[#allocation18 + $0x264] sm:$0xff]
    %v5840 = vld [vmem:[#allocation18 + $0x26c] sm:$0xf]
    %v5841 = vld [vmem:[#allocation18 + $0x270] sm:$0xff]
    %v5842 = vld [vmem:[#allocation18 + $0x278] sm:$0xf]
    %v5843 = vld [vmem:[#allocation18 + $0x27c] sm:$0xff]
    %v5844 = vld [vmem:[#allocation18 + $0x284] sm:$0xf]
    %v5845 = vld [vmem:[#allocation18 + $0x288] sm:$0xff]
    %v5846 = vld [vmem:[#allocation18 + $0x290] sm:$0xf]
    %v5847 = vld [vmem:[#allocation18 + $0x294] sm:$0xff]
    %v5848 = vld [vmem:[#allocation18 + $0x29c] sm:$0xf]
    %v5849 = vld [vmem:[#allocation18 + $0x2a0] sm:$0xff]
    %v5850 = vld [vmem:[#allocation18 + $0x2a8] sm:$0xf]
    %v5851 = vld [vmem:[#allocation18 + $0x2ac] sm:$0xff]
    %v5852 = vld [vmem:[#allocation18 + $0x2b4] sm:$0xf]
    %v5853 = vld [vmem:[#allocation18 + $0x2b8] sm:$0xff]
    %v5854 = vld [vmem:[#allocation18 + $0x2c0] sm:$0xf]
    %v5855 = vld [vmem:[#allocation18 + $0x2c4] sm:$0xff]
    %v5856 = vld [vmem:[#allocation18 + $0x2cc] sm:$0xf]
    %v5857 = vld [vmem:[#allocation18 + $0x2d0] sm:$0xff]
    %v5858 = vld [vmem:[#allocation18 + $0x2d8] sm:$0xf]
    %v5859 = vld [vmem:[#allocation18 + $0x2dc] sm:$0xff]
    %v5860 = vld [vmem:[#allocation18 + $0x2e4] sm:$0xf]
    %v5861 = vld [vmem:[#allocation18 + $0x2e8] sm:$0xff]
    %v5862 = vld [vmem:[#allocation18 + $0x2f0] sm:$0xf]
    %v5863 = vld [vmem:[#allocation18 + $0x2f4] sm:$0xff]
    %v5864 = vld [vmem:[#allocation18 + $0x2fc] sm:$0xf]
    %v5865 = vld [vmem:[#allocation19] sm:$0x7]
    %v5867 = vlaneseq
    %v5868 = vshrl.u32 %v5867, 7
    %v5869 = vsub.s32 0, %v5868
    %v5870 = vrot.slane %v5865, %v5869
    %v5871 = vlaneseq
    %v5872 = vshrl.u32 %v5871, 7
    %v5873 = vsub.s32 1, %v5872
    %v5874 = vrot.slane %v5865, %v5873
    %v5875 = vlaneseq
    %v5876 = vshrl.u32 %v5875, 7
    %v5877 = vsub.s32 2, %v5876
    %v5878 = vrot.slane %v5865, %v5877
    %v6010 = vunpack.c.l.b16 %v5737
    %v6011 = vunpack.c.h.b16 %v5737
    %v6012 = vunpack.c.l.b16 %v5738
    %v6013 = vunpack.c.l.b16 %v5739
    %v6014 = vunpack.c.h.b16 %v5739
    %v6015 = vunpack.c.l.b16 %v5740
    %v6016 = vunpack.c.l.b16 %v5741
    %v6017 = vunpack.c.h.b16 %v5741
    %v6018 = vunpack.c.l.b16 %v5742
    %v6019 = vunpack.c.l.b16 %v5743
    %v6020 = vunpack.c.h.b16 %v5743
    %v6021 = vunpack.c.l.b16 %v5744
    %v6022 = vunpack.c.l.b16 %v5745
    %v6023 = vunpack.c.h.b16 %v5745
    %v6024 = vunpack.c.l.b16 %v5746
    %v6025 = vunpack.c.l.b16 %v5747
    %v6026 = vunpack.c.h.b16 %v5747
    %v6027 = vunpack.c.l.b16 %v5748
    %v6028 = vunpack.c.l.b16 %v5749
    %v6029 = vunpack.c.h.b16 %v5749
    %v6030 = vunpack.c.l.b16 %v5750
    %v6031 = vunpack.c.l.b16 %v5751
    %v6032 = vunpack.c.h.b16 %v5751
    %v6033 = vunpack.c.l.b16 %v5752
    %v6034 = vunpack.c.l.b16 %v5753
    %v6035 = vunpack.c.h.b16 %v5753
    %v6036 = vunpack.c.l.b16 %v5754
    %v6037 = vunpack.c.l.b16 %v5755
    %v6038 = vunpack.c.h.b16 %v5755
    %v6039 = vunpack.c.l.b16 %v5756
    %v6040 = vunpack.c.l.b16 %v5757
    %v6041 = vunpack.c.h.b16 %v5757
    %v6042 = vunpack.c.l.b16 %v5758
    %v6043 = vunpack.c.l.b16 %v5759
    %v6044 = vunpack.c.h.b16 %v5759
    %v6045 = vunpack.c.l.b16 %v5760
    %v6046 = vunpack.c.l.b16 %v5761
    %v6047 = vunpack.c.h.b16 %v5761
    %v6048 = vunpack.c.l.b16 %v5762
    %v6049 = vunpack.c.l.b16 %v5763
    %v6050 = vunpack.c.h.b16 %v5763
    %v6051 = vunpack.c.l.b16 %v5764
    %v6052 = vunpack.c.l.b16 %v5765
    %v6053 = vunpack.c.h.b16 %v5765
    %v6054 = vunpack.c.l.b16 %v5766
    %v6055 = vunpack.c.l.b16 %v5767
    %v6056 = vunpack.c.h.b16 %v5767
    %v6057 = vunpack.c.l.b16 %v5768
    %v6058 = vunpack.c.l.b16 %v5769
    %v6059 = vunpack.c.h.b16 %v5769
    %v6060 = vunpack.c.l.b16 %v5770
    %v6061 = vunpack.c.l.b16 %v5771
    %v6062 = vunpack.c.h.b16 %v5771
    %v6063 = vunpack.c.l.b16 %v5772
    %v6064 = vunpack.c.l.b16 %v5773
    %v6065 = vunpack.c.h.b16 %v5773
    %v6066 = vunpack.c.l.b16 %v5774
    %v6067 = vunpack.c.l.b16 %v5775
    %v6068 = vunpack.c.h.b16 %v5775
    %v6069 = vunpack.c.l.b16 %v5776
    %v6070 = vunpack.c.l.b16 %v5777
    %v6071 = vunpack.c.h.b16 %v5777
    %v6072 = vunpack.c.l.b16 %v5778
    %v6073 = vunpack.c.l.b16 %v5779
    %v6074 = vunpack.c.h.b16 %v5779
    %v6075 = vunpack.c.l.b16 %v5780
    %v6076 = vunpack.c.l.b16 %v5781
    %v6077 = vunpack.c.h.b16 %v5781
    %v6078 = vunpack.c.l.b16 %v5782
    %v6079 = vunpack.c.l.b16 %v5783
    %v6080 = vunpack.c.h.b16 %v5783
    %v6081 = vunpack.c.l.b16 %v5784
    %v6082 = vunpack.c.l.b16 %v5785
    %v6083 = vunpack.c.h.b16 %v5785
    %v6084 = vunpack.c.l.b16 %v5786
    %v6085 = vunpack.c.l.b16 %v5787
    %v6086 = vunpack.c.h.b16 %v5787
    %v6087 = vunpack.c.l.b16 %v5788
    %v6088 = vunpack.c.l.b16 %v5789
    %v6089 = vunpack.c.h.b16 %v5789
    %v6090 = vunpack.c.l.b16 %v5790
    %v6091 = vunpack.c.l.b16 %v5791
    %v6092 = vunpack.c.h.b16 %v5791
    %v6093 = vunpack.c.l.b16 %v5792
    %v6094 = vunpack.c.l.b16 %v5793
    %v6095 = vunpack.c.h.b16 %v5793
    %v6096 = vunpack.c.l.b16 %v5794
    %v6097 = vunpack.c.l.b16 %v5795
    %v6098 = vunpack.c.h.b16 %v5795
    %v6099 = vunpack.c.l.b16 %v5796
    %v6100 = vunpack.c.l.b16 %v5797
    %v6101 = vunpack.c.h.b16 %v5797
    %v6102 = vunpack.c.l.b16 %v5798
    %v6103 = vunpack.c.l.b16 %v5799
    %v6104 = vunpack.c.h.b16 %v5799
    %v6105 = vunpack.c.l.b16 %v5800
    %v6106 = vunpack.c.l.b16 %v5801
    %v6107 = vunpack.c.h.b16 %v5801
    %v6108 = vunpack.c.l.b16 %v5802
    %v6109 = vunpack.c.l.b16 %v5803
    %v6110 = vunpack.c.h.b16 %v5803
    %v6111 = vunpack.c.l.b16 %v5804
    %v6112 = vunpack.c.l.b16 %v5805
    %v6113 = vunpack.c.h.b16 %v5805
    %v6114 = vunpack.c.l.b16 %v5806
    %v6115 = vunpack.c.l.b16 %v5807
    %v6116 = vunpack.c.h.b16 %v5807
    %v6117 = vunpack.c.l.b16 %v5808
    %v6118 = vunpack.c.l.b16 %v5809
    %v6119 = vunpack.c.h.b16 %v5809
    %v6120 = vunpack.c.l.b16 %v5810
    %v6121 = vunpack.c.l.b16 %v5811
    %v6122 = vunpack.c.h.b16 %v5811
    %v6123 = vunpack.c.l.b16 %v5812
    %v6124 = vunpack.c.l.b16 %v5813
    %v6125 = vunpack.c.h.b16 %v5813
    %v6126 = vunpack.c.l.b16 %v5814
    %v6127 = vunpack.c.l.b16 %v5815
    %v6128 = vunpack.c.h.b16 %v5815
    %v6129 = vunpack.c.l.b16 %v5816
    %v6130 = vunpack.c.l.b16 %v5817
    %v6131 = vunpack.c.h.b16 %v5817
    %v6132 = vunpack.c.l.b16 %v5818
    %v6133 = vunpack.c.l.b16 %v5819
    %v6134 = vunpack.c.h.b16 %v5819
    %v6135 = vunpack.c.l.b16 %v5820
    %v6136 = vunpack.c.l.b16 %v5821
    %v6137 = vunpack.c.h.b16 %v5821
    %v6138 = vunpack.c.l.b16 %v5822
    %v6139 = vunpack.c.l.b16 %v5823
    %v6140 = vunpack.c.h.b16 %v5823
    %v6141 = vunpack.c.l.b16 %v5824
    %v6142 = vunpack.c.l.b16 %v5825
    %v6143 = vunpack.c.h.b16 %v5825
    %v6144 = vunpack.c.l.b16 %v5826
    %v6145 = vunpack.c.l.b16 %v5827
    %v6146 = vunpack.c.h.b16 %v5827
    %v6147 = vunpack.c.l.b16 %v5828
    %v6148 = vunpack.c.l.b16 %v5829
    %v6149 = vunpack.c.h.b16 %v5829
    %v6150 = vunpack.c.l.b16 %v5830
    %v6151 = vunpack.c.l.b16 %v5831
    %v6152 = vunpack.c.h.b16 %v5831
    %v6153 = vunpack.c.l.b16 %v5832
    %v6154 = vunpack.c.l.b16 %v5833
    %v6155 = vunpack.c.h.b16 %v5833
    %v6156 = vunpack.c.l.b16 %v5834
    %v6157 = vunpack.c.l.b16 %v5835
    %v6158 = vunpack.c.h.b16 %v5835
    %v6159 = vunpack.c.l.b16 %v5836
    %v6160 = vunpack.c.l.b16 %v5837
    %v6161 = vunpack.c.h.b16 %v5837
    %v6162 = vunpack.c.l.b16 %v5838
    %v6163 = vunpack.c.l.b16 %v5839
    %v6164 = vunpack.c.h.b16 %v5839
    %v6165 = vunpack.c.l.b16 %v5840
    %v6166 = vunpack.c.l.b16 %v5841
    %v6167 = vunpack.c.h.b16 %v5841
    %v6168 = vunpack.c.l.b16 %v5842
    %v6169 = vunpack.c.l.b16 %v5843
    %v6170 = vunpack.c.h.b16 %v5843
    %v6171 = vunpack.c.l.b16 %v5844
    %v6172 = vunpack.c.l.b16 %v5845
    %v6173 = vunpack.c.h.b16 %v5845
    %v6174 = vunpack.c.l.b16 %v5846
    %v6175 = vunpack.c.l.b16 %v5847
    %v6176 = vunpack.c.h.b16 %v5847
    %v6177 = vunpack.c.l.b16 %v5848
    %v6178 = vunpack.c.l.b16 %v5849
    %v6179 = vunpack.c.h.b16 %v5849
    %v6180 = vunpack.c.l.b16 %v5850
    %v6181 = vunpack.c.l.b16 %v5851
    %v6182 = vunpack.c.h.b16 %v5851
    %v6183 = vunpack.c.l.b16 %v5852
    %v6184 = vunpack.c.l.b16 %v5853
    %v6185 = vunpack.c.h.b16 %v5853
    %v6186 = vunpack.c.l.b16 %v5854
    %v6187 = vunpack.c.l.b16 %v5855
    %v6188 = vunpack.c.h.b16 %v5855
    %v6189 = vunpack.c.l.b16 %v5856
    %v6190 = vunpack.c.l.b16 %v5857
    %v6191 = vunpack.c.h.b16 %v5857
    %v6192 = vunpack.c.l.b16 %v5858
    %v6193 = vunpack.c.l.b16 %v5859
    %v6194 = vunpack.c.h.b16 %v5859
    %v6195 = vunpack.c.l.b16 %v5860
    %v6196 = vunpack.c.l.b16 %v5861
    %v6197 = vunpack.c.h.b16 %v5861
    %v6198 = vunpack.c.l.b16 %v5862
    %v6199 = vunpack.c.l.b16 %v5863
    %v6200 = vunpack.c.h.b16 %v5863
    %v6201 = vunpack.c.l.b16 %v5864
    %v6202 = vpack.c.b16 %v6013, %v6010
    %v6203 = vpack.c.b16 %v6014, %v6011
    %v6204 = vpack.c.b16 %v6015, %v6012
    %v6205 = vpack.c.b16 %v6019, %v6016
    %v6206 = vpack.c.b16 %v6020, %v6017
    %v6207 = vpack.c.b16 %v6021, %v6018
    %v6208 = vpack.c.b16 %v6025, %v6022
    %v6209 = vpack.c.b16 %v6026, %v6023
    %v6210 = vpack.c.b16 %v6027, %v6024
    %v6211 = vpack.c.b16 %v6031, %v6028
    %v6212 = vpack.c.b16 %v6032, %v6029
    %v6213 = vpack.c.b16 %v6033, %v6030
    %v6214 = vpack.c.b16 %v6037, %v6034
    %v6215 = vpack.c.b16 %v6038, %v6035
    %v6216 = vpack.c.b16 %v6039, %v6036
    %v6217 = vpack.c.b16 %v6043, %v6040
    %v6218 = vpack.c.b16 %v6044, %v6041
    %v6219 = vpack.c.b16 %v6045, %v6042
    %v6220 = vpack.c.b16 %v6049, %v6046
    %v6221 = vpack.c.b16 %v6050, %v6047
    %v6222 = vpack.c.b16 %v6051, %v6048
    %v6223 = vpack.c.b16 %v6055, %v6052
    %v6224 = vpack.c.b16 %v6056, %v6053
    %v6225 = vpack.c.b16 %v6057, %v6054
    %v6226 = vpack.c.b16 %v6061, %v6058
    %v6227 = vpack.c.b16 %v6062, %v6059
    %v6228 = vpack.c.b16 %v6063, %v6060
    %v6229 = vpack.c.b16 %v6067, %v6064
    %v6230 = vpack.c.b16 %v6068, %v6065
    %v6231 = vpack.c.b16 %v6069, %v6066
    %v6232 = vpack.c.b16 %v6073, %v6070
    %v6233 = vpack.c.b16 %v6074, %v6071
    %v6234 = vpack.c.b16 %v6075, %v6072
    %v6235 = vpack.c.b16 %v6079, %v6076
    %v6236 = vpack.c.b16 %v6080, %v6077
    %v6237 = vpack.c.b16 %v6081, %v6078
    %v6238 = vpack.c.b16 %v6085, %v6082
    %v6239 = vpack.c.b16 %v6086, %v6083
    %v6240 = vpack.c.b16 %v6087, %v6084
    %v6241 = vpack.c.b16 %v6091, %v6088
    %v6242 = vpack.c.b16 %v6092, %v6089
    %v6243 = vpack.c.b16 %v6093, %v6090
    %v6244 = vpack.c.b16 %v6097, %v6094
    %v6245 = vpack.c.b16 %v6098, %v6095
    %v6246 = vpack.c.b16 %v6099, %v6096
    %v6247 = vpack.c.b16 %v6103, %v6100
    %v6248 = vpack.c.b16 %v6104, %v6101
    %v6249 = vpack.c.b16 %v6105, %v6102
    %v6250 = vpack.c.b16 %v6109, %v6106
    %v6251 = vpack.c.b16 %v6110, %v6107
    %v6252 = vpack.c.b16 %v6111, %v6108
    %v6253 = vpack.c.b16 %v6115, %v6112
    %v6254 = vpack.c.b16 %v6116, %v6113
    %v6255 = vpack.c.b16 %v6117, %v6114
    %v6256 = vpack.c.b16 %v6121, %v6118
    %v6257 = vpack.c.b16 %v6122, %v6119
    %v6258 = vpack.c.b16 %v6123, %v6120
    %v6259 = vpack.c.b16 %v6127, %v6124
    %v6260 = vpack.c.b16 %v6128, %v6125
    %v6261 = vpack.c.b16 %v6129, %v6126
    %v6262 = vpack.c.b16 %v6133, %v6130
    %v6263 = vpack.c.b16 %v6134, %v6131
    %v6264 = vpack.c.b16 %v6135, %v6132
    %v6265 = vpack.c.b16 %v6139, %v6136
    %v6266 = vpack.c.b16 %v6140, %v6137
    %v6267 = vpack.c.b16 %v6141, %v6138
    %v6268 = vpack.c.b16 %v6145, %v6142
    %v6269 = vpack.c.b16 %v6146, %v6143
    %v6270 = vpack.c.b16 %v6147, %v6144
    %v6271 = vpack.c.b16 %v6151, %v6148
    %v6272 = vpack.c.b16 %v6152, %v6149
    %v6273 = vpack.c.b16 %v6153, %v6150
    %v6274 = vpack.c.b16 %v6157, %v6154
    %v6275 = vpack.c.b16 %v6158, %v6155
    %v6276 = vpack.c.b16 %v6159, %v6156
    %v6277 = vpack.c.b16 %v6163, %v6160
    %v6278 = vpack.c.b16 %v6164, %v6161
    %v6279 = vpack.c.b16 %v6165, %v6162
    %v6280 = vpack.c.b16 %v6169, %v6166
    %v6281 = vpack.c.b16 %v6170, %v6167
    %v6282 = vpack.c.b16 %v6171, %v6168
    %v6283 = vpack.c.b16 %v6175, %v6172
    %v6284 = vpack.c.b16 %v6176, %v6173
    %v6285 = vpack.c.b16 %v6177, %v6174
    %v6286 = vpack.c.b16 %v6181, %v6178
    %v6287 = vpack.c.b16 %v6182, %v6179
    %v6288 = vpack.c.b16 %v6183, %v6180
    %v6289 = vpack.c.b16 %v6187, %v6184
    %v6290 = vpack.c.b16 %v6188, %v6185
    %v6291 = vpack.c.b16 %v6189, %v6186
    %v6292 = vpack.c.b16 %v6193, %v6190
    %v6293 = vpack.c.b16 %v6194, %v6191
    %v6294 = vpack.c.b16 %v6195, %v6192
    %v6295 = vpack.c.b16 %v6199, %v6196
    %v6296 = vpack.c.b16 %v6200, %v6197
    %v6297 = vpack.c.b16 %v6201, %v6198
    %6394 = vmatprep.subr.bf16.mxu0 %v6224
    %6395 = vmatpush1.bf16.msra.mxu0 %v6223
    %6396 = vmatprep.subr.bf16.mxu0 %v6221
    %6397 = vmatpush1.bf16.msra.mxu0 %v6220
    %6398 = vmatprep.subr.bf16.mxu0 %v6218
    %6399 = vmatpush1.bf16.msra.mxu0 %v6217
    %6400 = vmatprep.subr.bf16.mxu0 %v6215
    %6401 = vmatpush1.bf16.msra.mxu0 %v6214
    %6402 = vmatprep.subr.bf16.mxu0 %v6212
    %6403 = vmatpush1.bf16.msra.mxu0 %v6211
    %6404 = vmatprep.subr.bf16.mxu0 %v6209
    %6405 = vmatpush1.bf16.msra.mxu0 %v6208
    %6406 = vmatprep.subr.bf16.mxu0 %v6206
    %6407 = vmatpush1.bf16.msra.mxu0 %v6205
    %6408 = vmatprep.subr.bf16.mxu0 %v6203
    %6409 = vmatpush1.bf16.msra.mxu0 %v6202
    %6410 = vmatprep.subr.bf16.mxu0 %v6248
    %6411 = vmatpush2.bf16.msra.mxu0 %v6247
    %6412 = vmatprep.subr.bf16.mxu0 %v6245
    %6413 = vmatpush2.bf16.msra.mxu0 %v6244
    %6414 = vmatprep.subr.bf16.mxu0 %v6242
    %6415 = vmatpush2.bf16.msra.mxu0 %v6241
    %6416 = vmatprep.subr.bf16.mxu0 %v6239
    %6417 = vmatpush2.bf16.msra.mxu0 %v6238
    %6418 = vmatprep.subr.bf16.mxu0 %v6236
    %6419 = vmatpush2.bf16.msra.mxu0 %v6235
    %6420 = vmatprep.subr.bf16.mxu0 %v6233
    %6421 = vmatpush2.bf16.msra.mxu0 %v6232
    %6422 = vmatprep.subr.bf16.mxu0 %v6230
    %6423 = vmatpush2.bf16.msra.mxu0 %v6229
    %6424 = vmatprep.subr.bf16.mxu0 %v6227
    %6425 = vmatpush2.bf16.msra.mxu0 %v6226
    %6426 = vmatprep.mubr.bf16.mxu0 %v5734
    %6427 = vmatmul.mubr.bf16.gmra.mxu0 %v5733
    %v6428 = vpop.f32.mrf.mxu0
    %v6429 = vadd.f32 %v5870, %v6428
    %v6430 = vpop.f32.mrf.mxu0
    %v6431 = vadd.f32 %v5874, %v6430
    %v6432 = vpop.f32.mrf.mxu0
    %v6433 = vpop.f32.mrf.mxu0
    %6434 = vdwg.mxu0
    %6435 = vmatprep.subr.bf16.mxu0 %v6272
    %6436 = vmatpush1.bf16.msra.mxu0 %v6271
    %6437 = vmatprep.subr.bf16.mxu0 %v6269
    %6438 = vmatpush1.bf16.msra.mxu0 %v6268
    %6439 = vmatprep.subr.bf16.mxu0 %v6266
    %6440 = vmatpush1.bf16.msra.mxu0 %v6265
    %6441 = vmatprep.subr.bf16.mxu0 %v6263
    %6442 = vmatpush1.bf16.msra.mxu0 %v6262
    %6443 = vmatprep.subr.bf16.mxu0 %v6260
    %6444 = vmatpush1.bf16.msra.mxu0 %v6259
    %6445 = vmatprep.subr.bf16.mxu0 %v6257
    %6446 = vmatpush1.bf16.msra.mxu0 %v6256
    %6447 = vmatprep.subr.bf16.mxu0 %v6254
    %6448 = vmatpush1.bf16.msra.mxu0 %v6253
    %6449 = vmatprep.subr.bf16.mxu0 %v6251
    %6450 = vmatpush1.bf16.msra.mxu0 %v6250
    %6451 = vmatprep.subr.bf16.mxu0 %v6296
    %6452 = vmatpush2.bf16.msra.mxu0 %v6295
    %6453 = vmatprep.subr.bf16.mxu0 %v6293
    %6454 = vmatpush2.bf16.msra.mxu0 %v6292
    %6455 = vmatprep.subr.bf16.mxu0 %v6290
    %6456 = vmatpush2.bf16.msra.mxu0 %v6289
    %6457 = vmatprep.subr.bf16.mxu0 %v6287
    %6458 = vmatpush2.bf16.msra.mxu0 %v6286
    %6459 = vmatprep.subr.bf16.mxu0 %v6284
    %6460 = vmatpush2.bf16.msra.mxu0 %v6283
    %6461 = vmatprep.subr.bf16.mxu0 %v6281
    %6462 = vmatpush2.bf16.msra.mxu0 %v6280
    %6463 = vmatprep.subr.bf16.mxu0 %v6278
    %6464 = vmatpush2.bf16.msra.mxu0 %v6277
    %6465 = vmatprep.subr.bf16.mxu0 %v6275
    %6466 = vmatpush2.bf16.msra.mxu0 %v6274
    %6467 = vmatprep.mubr.bf16.mxu0 %v5736
    %6468 = vmatmul.mubr.bf16.gmra.mxu0 %v5735
    %v6469 = vpop.f32.mrf.mxu0
    %v6470 = vadd.f32 %v6429, %v6469
    %v6471 = vpop.f32.mrf.mxu0
    %v6472 = vadd.f32 %v6431, %v6471
    %v6473 = vpop.f32.mrf.mxu0
    %v6474 = vpop.f32.mrf.mxu0
    %6475 = vdwg.mxu0
    %6476 = vmatprep.subr.bf16.mxu0 0
    %6477 = vmatpush1.bf16.msra.mxu0 %v6225
    %6478 = vmatprep.subr.bf16.mxu0 0
    %6479 = vmatpush1.bf16.msra.mxu0 %v6222
    %6480 = vmatprep.subr.bf16.mxu0 0
    %6481 = vmatpush1.bf16.msra.mxu0 %v6219
    %6482 = vmatprep.subr.bf16.mxu0 0
    %6483 = vmatpush1.bf16.msra.mxu0 %v6216
    %6484 = vmatprep.subr.bf16.mxu0 0
    %6485 = vmatpush1.bf16.msra.mxu0 %v6213
    %6486 = vmatprep.subr.bf16.mxu0 0
    %6487 = vmatpush1.bf16.msra.mxu0 %v6210
    %6488 = vmatprep.subr.bf16.mxu0 0
    %6489 = vmatpush1.bf16.msra.mxu0 %v6207
    %6490 = vmatprep.subr.bf16.mxu0 0
    %6491 = vmatpush1.bf16.msra.mxu0 %v6204
    %6492 = vmatprep.subr.bf16.mxu0 0
    %6493 = vmatpush2.bf16.msra.mxu0 %v6249
    %6494 = vmatprep.subr.bf16.mxu0 0
    %6495 = vmatpush2.bf16.msra.mxu0 %v6246
    %6496 = vmatprep.subr.bf16.mxu0 0
    %6497 = vmatpush2.bf16.msra.mxu0 %v6243
    %6498 = vmatprep.subr.bf16.mxu0 0
    %6499 = vmatpush2.bf16.msra.mxu0 %v6240
    %6500 = vmatprep.subr.bf16.mxu0 0
    %6501 = vmatpush2.bf16.msra.mxu0 %v6237
    %6502 = vmatprep.subr.bf16.mxu0 0
    %6503 = vmatpush2.bf16.msra.mxu0 %v6234
    %6504 = vmatprep.subr.bf16.mxu0 0
    %6505 = vmatpush2.bf16.msra.mxu0 %v6231
    %6506 = vmatprep.subr.bf16.mxu0 0
    %6507 = vmatpush2.bf16.msra.mxu0 %v6228
    %6508 = vmatprep.mubr.bf16.mxu0 %v5734
    %6509 = vmatmul.mubr.bf16.gmra.mxu0 %v5733
    %v6510 = vpop.f32.mrf.mxu0
    %v6511 = vadd.f32 %v5878, %v6510
    %v6512 = vpop.f32.mrf.mxu0
    %v6513 = vpop.f32.mrf.mxu0
    %v6514 = vpop.f32.mrf.mxu0
    %6515 = vdwg.mxu0
    %6516 = vmatprep.subr.bf16.mxu0 0
    %6517 = vmatpush1.bf16.msra.mxu0 %v6273
    %6518 = vmatprep.subr.bf16.mxu0 0
    %6519 = vmatpush1.bf16.msra.mxu0 %v6270
    %6520 = vmatprep.subr.bf16.mxu0 0
    %6521 = vmatpush1.bf16.msra.mxu0 %v6267
    %6522 = vmatprep.subr.bf16.mxu0 0
    %6523 = vmatpush1.bf16.msra.mxu0 %v6264
    %6524 = vmatprep.subr.bf16.mxu0 0
    %6525 = vmatpush1.bf16.msra.mxu0 %v6261
    %6526 = vmatprep.subr.bf16.mxu0 0
    %6527 = vmatpush1.bf16.msra.mxu0 %v6258
    %6528 = vmatprep.subr.bf16.mxu0 0
    %6529 = vmatpush1.bf16.msra.mxu0 %v6255
    %6530 = vmatprep.subr.bf16.mxu0 0
    %6531 = vmatpush1.bf16.msra.mxu0 %v6252
    %6532 = vmatprep.subr.bf16.mxu0 0
    %6533 = vmatpush2.bf16.msra.mxu0 %v6297
    %6534 = vmatprep.subr.bf16.mxu0 0
    %6535 = vmatpush2.bf16.msra.mxu0 %v6294
    %6536 = vmatprep.subr.bf16.mxu0 0
    %6537 = vmatpush2.bf16.msra.mxu0 %v6291
    %6538 = vmatprep.subr.bf16.mxu0 0
    %6539 = vmatpush2.bf16.msra.mxu0 %v6288
    %6540 = vmatprep.subr.bf16.mxu0 0
    %6541 = vmatpush2.bf16.msra.mxu0 %v6285
    %6542 = vmatprep.subr.bf16.mxu0 0
    %6543 = vmatpush2.bf16.msra.mxu0 %v6282
    %6544 = vmatprep.subr.bf16.mxu0 0
    %6545 = vmatpush2.bf16.msra.mxu0 %v6279
    %6546 = vmatprep.subr.bf16.mxu0 0
    %6547 = vmatpush2.bf16.msra.mxu0 %v6276
    %6548 = vmatprep.mubr.bf16.mxu0 %v5736
    %6549 = vmatmul.mubr.bf16.gmra.mxu0 %v5735
    %v6550 = vpop.f32.mrf.mxu0
    %v6551 = vadd.f32 %v6511, %v6550
    %v6552 = vpop.f32.mrf.mxu0
    %v6553 = vpop.f32.mrf.mxu0
    %v6554 = vpop.f32.mrf.mxu0
    %6555 = vdwg.mxu0
    %v6556 = vmax.f32 %v6470, 0.0
    %v6557 = vmax.f32 %v6472, 0.0
    %v6558 = vmax.f32 %v6551, 0.0
    %6559 = vst [vmem:[%s57] sm:$0xff] %v6556
    %6560 = vst [vmem:[%s57 + $0x8] sm:$0xff] %v6557
    %6561 = vst [vmem:[%s57 + $0x10] sm:$0xff] %v6558
    %v6562 = vpack.c.bf16 %v6556, %v6556
    %v6563 = vpack.c.bf16 %v6557, %v6557
    %v6564 = vpack.c.bf16 %v6558, %v6558
    %v6565 = vld [vmem:[#allocation21] sm:$0xff]
    %v6566 = vpack.c.bf16 %v6565, %v6565
    %v6568 = vsel %vm3623, %v6566, 0
    %v6571 = vsel %vm3627, %v6562, 0
    %v6574 = vsel %vm3627, %v6563, 0
    %v6577 = vsel %vm3627, %v6564, 0
    %6579 = vmatprep.subr.bf16.mxu0 0
    %6580 = vmatpush1.bf16.msra.mxu0 0
    %6581 = vmatprep.subr.bf16.mxu0 0
    %6582 = vmatpush1.bf16.msra.mxu0 0
    %6583 = vmatprep.subr.bf16.mxu0 0
    %6584 = vmatpush1.bf16.msra.mxu0 0
    %6585 = vmatprep.subr.bf16.mxu0 0
    %6586 = vmatpush1.bf16.msra.mxu0 0
    %6587 = vmatprep.subr.bf16.mxu0 0
    %6588 = vmatpush1.bf16.msra.mxu0 0
    %6589 = vmatprep.subr.bf16.mxu0 0
    %6590 = vmatpush1.bf16.msra.mxu0 0
    %6591 = vmatprep.subr.bf16.mxu0 0
    %6592 = vmatpush1.bf16.msra.mxu0 0
    %6593 = vmatprep.subr.bf16.mxu0 %v6574
    %6594 = vmatpush1.bf16.msra.mxu0 %v6571
    %6595 = vmatprep.subr.bf16.mxu0 0
    %6596 = vmatpush2.bf16.msra.mxu0 0
    %6597 = vmatprep.subr.bf16.mxu0 0
    %6598 = vmatpush2.bf16.msra.mxu0 0
    %6599 = vmatprep.subr.bf16.mxu0 0
    %6600 = vmatpush2.bf16.msra.mxu0 0
    %6601 = vmatprep.subr.bf16.mxu0 0
    %6602 = vmatpush2.bf16.msra.mxu0 0
    %6603 = vmatprep.subr.bf16.mxu0 0
    %6604 = vmatpush2.bf16.msra.mxu0 0
    %6605 = vmatprep.subr.bf16.mxu0 0
    %6606 = vmatpush2.bf16.msra.mxu0 0
    %6607 = vmatprep.subr.bf16.mxu0 0
    %6608 = vmatpush2.bf16.msra.mxu0 0
    %6609 = vmatprep.subr.bf16.mxu0 0
    %6610 = vmatpush2.bf16.msra.mxu0 0
    %6611 = vmatprep.mubr.bf16.mxu0 0
    %6612 = vmatmul.mubr.bf16.gmra.mxu0 %v6568
    %v6613 = vpop.f32.mrf.mxu0
    %v6614 = vadd.f32 0.0, %v6613
    %v6615 = vpop.f32.mrf.mxu0
    %v6616 = vadd.f32 0.0, %v6615
    %v6617 = vpop.f32.mrf.mxu0
    %v6618 = vpop.f32.mrf.mxu0
    %6619 = vdwg.mxu0
    %6620 = vmatprep.subr.bf16.mxu0 0
    %6621 = vmatpush1.bf16.msra.mxu0 0
    %6622 = vmatprep.subr.bf16.mxu0 0
    %6623 = vmatpush1.bf16.msra.mxu0 0
    %6624 = vmatprep.subr.bf16.mxu0 0
    %6625 = vmatpush1.bf16.msra.mxu0 0
    %6626 = vmatprep.subr.bf16.mxu0 0
    %6627 = vmatpush1.bf16.msra.mxu0 0
    %6628 = vmatprep.subr.bf16.mxu0 0
    %6629 = vmatpush1.bf16.msra.mxu0 0
    %6630 = vmatprep.subr.bf16.mxu0 0
    %6631 = vmatpush1.bf16.msra.mxu0 0
    %6632 = vmatprep.subr.bf16.mxu0 0
    %6633 = vmatpush1.bf16.msra.mxu0 0
    %6634 = vmatprep.subr.bf16.mxu0 0
    %6635 = vmatpush1.bf16.msra.mxu0 %v6577
    %6636 = vmatprep.subr.bf16.mxu0 0
    %6637 = vmatpush2.bf16.msra.mxu0 0
    %6638 = vmatprep.subr.bf16.mxu0 0
    %6639 = vmatpush2.bf16.msra.mxu0 0
    %6640 = vmatprep.subr.bf16.mxu0 0
    %6641 = vmatpush2.bf16.msra.mxu0 0
    %6642 = vmatprep.subr.bf16.mxu0 0
    %6643 = vmatpush2.bf16.msra.mxu0 0
    %6644 = vmatprep.subr.bf16.mxu0 0
    %6645 = vmatpush2.bf16.msra.mxu0 0
    %6646 = vmatprep.subr.bf16.mxu0 0
    %6647 = vmatpush2.bf16.msra.mxu0 0
    %6648 = vmatprep.subr.bf16.mxu0 0
    %6649 = vmatpush2.bf16.msra.mxu0 0
    %6650 = vmatprep.subr.bf16.mxu0 0
    %6651 = vmatpush2.bf16.msra.mxu0 0
    %6652 = vmatprep.mubr.bf16.mxu0 0
    %6653 = vmatmul.mubr.bf16.gmra.mxu0 %v6568
    %v6654 = vpop.f32.mrf.mxu0
    %v6655 = vadd.f32 0.0, %v6654
    %v6656 = vpop.f32.mrf.mxu0
    %v6657 = vpop.f32.mrf.mxu0
    %v6658 = vpop.f32.mrf.mxu0
    %6659 = vdwg.mxu0
    %v6660 = vpack.c.bf16 %v6614, %v6614
    %v6661 = vpack.c.bf16 %v6616, %v6616
    %v6662 = vpack.c.bf16 %v6655, %v6655
    %v6663 = vld [vmem:[#allocation22] sm:$0xf]
    %v6664 = vld [vmem:[#allocation22 + $0x4] sm:$0xf]
    %v6665 = vld [vmem:[#allocation22 + $0x8] sm:$0xf]
    %v6666 = vld [vmem:[#allocation22 + $0xc] sm:$0xf]
    %v6667 = vld [vmem:[#allocation22 + $0x10] sm:$0xf]
    %v6668 = vld [vmem:[#allocation22 + $0x14] sm:$0xf]
    %v6669 = vld [vmem:[#allocation22 + $0x18] sm:$0xf]
    %v6670 = vld [vmem:[#allocation22 + $0x1c] sm:$0xf]
    %v6671 = vld [vmem:[#allocation22 + $0x20] sm:$0xf]
    %v6672 = vld [vmem:[#allocation22 + $0x24] sm:$0xf]
    %v6673 = vld [vmem:[#allocation22 + $0x28] sm:$0xf]
    %v6674 = vld [vmem:[#allocation22 + $0x2c] sm:$0xf]
    %v6675 = vld [vmem:[#allocation22 + $0x30] sm:$0xf]
    %v6676 = vld [vmem:[#allocation22 + $0x34] sm:$0xf]
    %v6677 = vld [vmem:[#allocation22 + $0x38] sm:$0xf]
    %v6678 = vld [vmem:[#allocation22 + $0x3c] sm:$0xf]
    %v6679 = vld [vmem:[#allocation22 + $0x40] sm:$0xf]
    %v6680 = vld [vmem:[#allocation22 + $0x44] sm:$0xf]
    %v6681 = vld [vmem:[#allocation22 + $0x48] sm:$0xf]
    %v6682 = vld [vmem:[#allocation22 + $0x4c] sm:$0xf]
    %v6683 = vld [vmem:[#allocation22 + $0x50] sm:$0xf]
    %v6684 = vld [vmem:[#allocation22 + $0x54] sm:$0xf]
    %v6685 = vld [vmem:[#allocation22 + $0x58] sm:$0xf]
    %v6686 = vld [vmem:[#allocation22 + $0x5c] sm:$0xf]
    %v6687 = vld [vmem:[#allocation22 + $0x60] sm:$0xf]
    %v6688 = vld [vmem:[#allocation22 + $0x64] sm:$0xf]
    %v6689 = vld [vmem:[#allocation22 + $0x68] sm:$0xf]
    %v6690 = vld [vmem:[#allocation22 + $0x6c] sm:$0xf]
    %v6691 = vld [vmem:[#allocation22 + $0x70] sm:$0xf]
    %v6692 = vld [vmem:[#allocation22 + $0x74] sm:$0xf]
    %v6693 = vld [vmem:[#allocation22 + $0x78] sm:$0xf]
    %v6694 = vld [vmem:[#allocation22 + $0x7c] sm:$0xf]
    %v6695 = vld [vmem:[#allocation22 + $0x80] sm:$0xf]
    %v6696 = vld [vmem:[#allocation22 + $0x84] sm:$0xf]
    %v6697 = vld [vmem:[#allocation22 + $0x88] sm:$0xf]
    %v6698 = vld [vmem:[#allocation22 + $0x8c] sm:$0xf]
    %v6699 = vld [vmem:[#allocation22 + $0x90] sm:$0xf]
    %v6700 = vld [vmem:[#allocation22 + $0x94] sm:$0xf]
    %v6701 = vld [vmem:[#allocation22 + $0x98] sm:$0xf]
    %v6702 = vld [vmem:[#allocation22 + $0x9c] sm:$0xf]
    %v6703 = vld [vmem:[#allocation22 + $0xa0] sm:$0xf]
    %v6704 = vld [vmem:[#allocation22 + $0xa4] sm:$0xf]
    %v6705 = vld [vmem:[#allocation22 + $0xa8] sm:$0xf]
    %v6706 = vld [vmem:[#allocation22 + $0xac] sm:$0xf]
    %v6707 = vld [vmem:[#allocation22 + $0xb0] sm:$0xf]
    %v6708 = vld [vmem:[#allocation22 + $0xb4] sm:$0xf]
    %v6709 = vld [vmem:[#allocation22 + $0xb8] sm:$0xf]
    %v6710 = vld [vmem:[#allocation22 + $0xbc] sm:$0xf]
    %s6711 = scalar_lea.vmem [#allocation21], 8
    %v6712 = vld [vmem:[%s6711] sm:$0xff]
    %v6713 = vpack.c.bf16 %v6712, %v6712
    %v6715 = vsel %vm3623, %v6713, 0
    %6717 = vmatprep.subr.bf16.mxu0 0
    %6718 = vmatpush1.bf16.msra.mxu0 0
    %6719 = vmatprep.subr.bf16.mxu0 0
    %6720 = vmatpush1.bf16.msra.mxu0 0
    %6721 = vmatprep.subr.bf16.mxu0 0
    %6722 = vmatpush1.bf16.msra.mxu0 0
    %6723 = vmatprep.subr.bf16.mxu0 0
    %6724 = vmatpush1.bf16.msra.mxu0 0
    %6725 = vmatprep.subr.bf16.mxu0 0
    %6726 = vmatpush1.bf16.msra.mxu0 0
    %6727 = vmatprep.subr.bf16.mxu0 0
    %6728 = vmatpush1.bf16.msra.mxu0 0
    %6729 = vmatprep.subr.bf16.mxu0 0
    %6730 = vmatpush1.bf16.msra.mxu0 0
    %6731 = vmatprep.subr.bf16.mxu0 %v6574
    %6732 = vmatpush1.bf16.msra.mxu0 %v6571
    %6733 = vmatprep.subr.bf16.mxu0 0
    %6734 = vmatpush2.bf16.msra.mxu0 0
    %6735 = vmatprep.subr.bf16.mxu0 0
    %6736 = vmatpush2.bf16.msra.mxu0 0
    %6737 = vmatprep.subr.bf16.mxu0 0
    %6738 = vmatpush2.bf16.msra.mxu0 0
    %6739 = vmatprep.subr.bf16.mxu0 0
    %6740 = vmatpush2.bf16.msra.mxu0 0
    %6741 = vmatprep.subr.bf16.mxu0 0
    %6742 = vmatpush2.bf16.msra.mxu0 0
    %6743 = vmatprep.subr.bf16.mxu0 0
    %6744 = vmatpush2.bf16.msra.mxu0 0
    %6745 = vmatprep.subr.bf16.mxu0 0
    %6746 = vmatpush2.bf16.msra.mxu0 0
    %6747 = vmatprep.subr.bf16.mxu0 0
    %6748 = vmatpush2.bf16.msra.mxu0 0
    %6749 = vmatprep.mubr.bf16.mxu0 0
    %6750 = vmatmul.mubr.bf16.gmra.mxu0 %v6715
    %v6751 = vpop.f32.mrf.mxu0
    %v6752 = vadd.f32 0.0, %v6751
    %v6753 = vpop.f32.mrf.mxu0
    %v6754 = vadd.f32 0.0, %v6753
    %v6755 = vpop.f32.mrf.mxu0
    %v6756 = vpop.f32.mrf.mxu0
    %6757 = vdwg.mxu0
    %6758 = vmatprep.subr.bf16.mxu0 0
    %6759 = vmatpush1.bf16.msra.mxu0 0
    %6760 = vmatprep.subr.bf16.mxu0 0
    %6761 = vmatpush1.bf16.msra.mxu0 0
    %6762 = vmatprep.subr.bf16.mxu0 0
    %6763 = vmatpush1.bf16.msra.mxu0 0
    %6764 = vmatprep.subr.bf16.mxu0 0
    %6765 = vmatpush1.bf16.msra.mxu0 0
    %6766 = vmatprep.subr.bf16.mxu0 0
    %6767 = vmatpush1.bf16.msra.mxu0 0
    %6768 = vmatprep.subr.bf16.mxu0 0
    %6769 = vmatpush1.bf16.msra.mxu0 0
    %6770 = vmatprep.subr.bf16.mxu0 0
    %6771 = vmatpush1.bf16.msra.mxu0 0
    %6772 = vmatprep.subr.bf16.mxu0 0
    %6773 = vmatpush1.bf16.msra.mxu0 %v6577
    %6774 = vmatprep.subr.bf16.mxu0 0
    %6775 = vmatpush2.bf16.msra.mxu0 0
    %6776 = vmatprep.subr.bf16.mxu0 0
    %6777 = vmatpush2.bf16.msra.mxu0 0
    %6778 = vmatprep.subr.bf16.mxu0 0
    %6779 = vmatpush2.bf16.msra.mxu0 0
    %6780 = vmatprep.subr.bf16.mxu0 0
    %6781 = vmatpush2.bf16.msra.mxu0 0
    %6782 = vmatprep.subr.bf16.mxu0 0
    %6783 = vmatpush2.bf16.msra.mxu0 0
    %6784 = vmatprep.subr.bf16.mxu0 0
    %6785 = vmatpush2.bf16.msra.mxu0 0
    %6786 = vmatprep.subr.bf16.mxu0 0
    %6787 = vmatpush2.bf16.msra.mxu0 0
    %6788 = vmatprep.subr.bf16.mxu0 0
    %6789 = vmatpush2.bf16.msra.mxu0 0
    %6790 = vmatprep.mubr.bf16.mxu0 0
    %6791 = vmatmul.mubr.bf16.gmra.mxu0 %v6715
    %v6792 = vpop.f32.mrf.mxu0
    %v6793 = vadd.f32 0.0, %v6792
    %v6794 = vpop.f32.mrf.mxu0
    %v6795 = vpop.f32.mrf.mxu0
    %v6796 = vpop.f32.mrf.mxu0
    %6797 = vdwg.mxu0
    %v6798 = vpack.c.bf16 %v6752, %v6752
    %v6799 = vpack.c.bf16 %v6754, %v6754
    %v6800 = vpack.c.bf16 %v6793, %v6793
    %s6801 = scalar_lea.vmem [#allocation22], 192
    %v6802 = vld [vmem:[%s6801] sm:$0xf]
    %v6803 = vld [vmem:[%s6801 + $0x4] sm:$0xf]
    %v6804 = vld [vmem:[%s6801 + $0x8] sm:$0xf]
    %v6805 = vld [vmem:[%s6801 + $0xc] sm:$0xf]
    %v6806 = vld [vmem:[%s6801 + $0x10] sm:$0xf]
    %v6807 = vld [vmem:[%s6801 + $0x14] sm:$0xf]
    %v6808 = vld [vmem:[%s6801 + $0x18] sm:$0xf]
    %v6809 = vld [vmem:[%s6801 + $0x1c] sm:$0xf]
    %v6810 = vld [vmem:[%s6801 + $0x20] sm:$0xf]
    %v6811 = vld [vmem:[%s6801 + $0x24] sm:$0xf]
    %v6812 = vld [vmem:[%s6801 + $0x28] sm:$0xf]
    %v6813 = vld [vmem:[%s6801 + $0x2c] sm:$0xf]
    %v6814 = vld [vmem:[%s6801 + $0x30] sm:$0xf]
    %v6815 = vld [vmem:[%s6801 + $0x34] sm:$0xf]
    %v6816 = vld [vmem:[%s6801 + $0x38] sm:$0xf]
    %v6817 = vld [vmem:[%s6801 + $0x3c] sm:$0xf]
    %v6818 = vld [vmem:[%s6801 + $0x40] sm:$0xf]
    %v6819 = vld [vmem:[%s6801 + $0x44] sm:$0xf]
    %v6820 = vld [vmem:[%s6801 + $0x48] sm:$0xf]
    %v6821 = vld [vmem:[%s6801 + $0x4c] sm:$0xf]
    %v6822 = vld [vmem:[%s6801 + $0x50] sm:$0xf]
    %v6823 = vld [vmem:[%s6801 + $0x54] sm:$0xf]
    %v6824 = vld [vmem:[%s6801 + $0x58] sm:$0xf]
    %v6825 = vld [vmem:[%s6801 + $0x5c] sm:$0xf]
    %v6826 = vld [vmem:[%s6801 + $0x60] sm:$0xf]
    %v6827 = vld [vmem:[%s6801 + $0x64] sm:$0xf]
    %v6828 = vld [vmem:[%s6801 + $0x68] sm:$0xf]
    %v6829 = vld [vmem:[%s6801 + $0x6c] sm:$0xf]
    %v6830 = vld [vmem:[%s6801 + $0x70] sm:$0xf]
    %v6831 = vld [vmem:[%s6801 + $0x74] sm:$0xf]
    %v6832 = vld [vmem:[%s6801 + $0x78] sm:$0xf]
    %v6833 = vld [vmem:[%s6801 + $0x7c] sm:$0xf]
    %v6834 = vld [vmem:[%s6801 + $0x80] sm:$0xf]
    %v6835 = vld [vmem:[%s6801 + $0x84] sm:$0xf]
    %v6836 = vld [vmem:[%s6801 + $0x88] sm:$0xf]
    %v6837 = vld [vmem:[%s6801 + $0x8c] sm:$0xf]
    %v6838 = vld [vmem:[%s6801 + $0x90] sm:$0xf]
    %v6839 = vld [vmem:[%s6801 + $0x94] sm:$0xf]
    %v6840 = vld [vmem:[%s6801 + $0x98] sm:$0xf]
    %v6841 = vld [vmem:[%s6801 + $0x9c] sm:$0xf]
    %v6842 = vld [vmem:[%s6801 + $0xa0] sm:$0xf]
    %v6843 = vld [vmem:[%s6801 + $0xa4] sm:$0xf]
    %v6844 = vld [vmem:[%s6801 + $0xa8] sm:$0xf]
    %v6845 = vld [vmem:[%s6801 + $0xac] sm:$0xf]
    %v6846 = vld [vmem:[%s6801 + $0xb0] sm:$0xf]
    %v6847 = vld [vmem:[%s6801 + $0xb4] sm:$0xf]
    %v6848 = vld [vmem:[%s6801 + $0xb8] sm:$0xf]
    %v6849 = vld [vmem:[%s6801 + $0xbc] sm:$0xf]
    %v6898 = vunpack.c.l.b16 %v6802
    %v6899 = vunpack.c.l.b16 %v6803
    %v6900 = vunpack.c.l.b16 %v6804
    %v6901 = vunpack.c.l.b16 %v6805
    %v6902 = vunpack.c.l.b16 %v6806
    %v6903 = vunpack.c.l.b16 %v6807
    %v6904 = vunpack.c.l.b16 %v6808
    %v6905 = vunpack.c.l.b16 %v6809
    %v6906 = vunpack.c.l.b16 %v6810
    %v6907 = vunpack.c.l.b16 %v6811
    %v6908 = vunpack.c.l.b16 %v6812
    %v6909 = vunpack.c.l.b16 %v6813
    %v6910 = vunpack.c.l.b16 %v6814
    %v6911 = vunpack.c.l.b16 %v6815
    %v6912 = vunpack.c.l.b16 %v6816
    %v6913 = vunpack.c.l.b16 %v6817
    %v6914 = vunpack.c.l.b16 %v6818
    %v6915 = vunpack.c.l.b16 %v6819
    %v6916 = vunpack.c.l.b16 %v6820
    %v6917 = vunpack.c.l.b16 %v6821
    %v6918 = vunpack.c.l.b16 %v6822
    %v6919 = vunpack.c.l.b16 %v6823
    %v6920 = vunpack.c.l.b16 %v6824
    %v6921 = vunpack.c.l.b16 %v6825
    %v6922 = vunpack.c.l.b16 %v6826
    %v6923 = vunpack.c.l.b16 %v6827
    %v6924 = vunpack.c.l.b16 %v6828
    %v6925 = vunpack.c.l.b16 %v6829
    %v6926 = vunpack.c.l.b16 %v6830
    %v6927 = vunpack.c.l.b16 %v6831
    %v6928 = vunpack.c.l.b16 %v6832
    %v6929 = vunpack.c.l.b16 %v6833
    %v6930 = vunpack.c.l.b16 %v6834
    %v6931 = vunpack.c.l.b16 %v6835
    %v6932 = vunpack.c.l.b16 %v6836
    %v6933 = vunpack.c.l.b16 %v6837
    %v6934 = vunpack.c.l.b16 %v6838
    %v6935 = vunpack.c.l.b16 %v6839
    %v6936 = vunpack.c.l.b16 %v6840
    %v6937 = vunpack.c.l.b16 %v6841
    %v6938 = vunpack.c.l.b16 %v6842
    %v6939 = vunpack.c.l.b16 %v6843
    %v6940 = vunpack.c.l.b16 %v6844
    %v6941 = vunpack.c.l.b16 %v6845
    %v6942 = vunpack.c.l.b16 %v6846
    %v6943 = vunpack.c.l.b16 %v6847
    %v6944 = vunpack.c.l.b16 %v6848
    %v6945 = vunpack.c.l.b16 %v6849
    %v6946 = vpack.c.b16 %v6899, %v6898
    %v6947 = vpack.c.b16 %v6901, %v6900
    %v6948 = vpack.c.b16 %v6903, %v6902
    %v6949 = vpack.c.b16 %v6905, %v6904
    %v6950 = vpack.c.b16 %v6907, %v6906
    %v6951 = vpack.c.b16 %v6909, %v6908
    %v6952 = vpack.c.b16 %v6911, %v6910
    %v6953 = vpack.c.b16 %v6913, %v6912
    %v6954 = vpack.c.b16 %v6915, %v6914
    %v6955 = vpack.c.b16 %v6917, %v6916
    %v6956 = vpack.c.b16 %v6919, %v6918
    %v6957 = vpack.c.b16 %v6921, %v6920
    %v6958 = vpack.c.b16 %v6923, %v6922
    %v6959 = vpack.c.b16 %v6925, %v6924
    %v6960 = vpack.c.b16 %v6927, %v6926
    %v6961 = vpack.c.b16 %v6929, %v6928
    %v6962 = vpack.c.b16 %v6931, %v6930
    %v6963 = vpack.c.b16 %v6933, %v6932
    %v6964 = vpack.c.b16 %v6935, %v6934
    %v6965 = vpack.c.b16 %v6937, %v6936
    %v6966 = vpack.c.b16 %v6939, %v6938
    %v6967 = vpack.c.b16 %v6941, %v6940
    %v6968 = vpack.c.b16 %v6943, %v6942
    %v6969 = vpack.c.b16 %v6945, %v6944
    %6994 = vmatprep.subr.bf16.mxu0 0
    %6995 = vmatpush1.bf16.msra.mxu0 %v6953
    %6996 = vmatprep.subr.bf16.mxu0 0
    %6997 = vmatpush1.bf16.msra.mxu0 %v6952
    %6998 = vmatprep.subr.bf16.mxu0 0
    %6999 = vmatpush1.bf16.msra.mxu0 %v6951
    %7000 = vmatprep.subr.bf16.mxu0 0
    %7001 = vmatpush1.bf16.msra.mxu0 %v6950
    %7002 = vmatprep.subr.bf16.mxu0 0
    %7003 = vmatpush1.bf16.msra.mxu0 %v6949
    %7004 = vmatprep.subr.bf16.mxu0 0
    %7005 = vmatpush1.bf16.msra.mxu0 %v6948
    %7006 = vmatprep.subr.bf16.mxu0 0
    %7007 = vmatpush1.bf16.msra.mxu0 %v6947
    %7008 = vmatprep.subr.bf16.mxu0 0
    %7009 = vmatpush1.bf16.msra.mxu0 %v6946
    %7010 = vmatprep.subr.bf16.mxu0 0
    %7011 = vmatpush2.bf16.msra.mxu0 %v6961
    %7012 = vmatprep.subr.bf16.mxu0 0
    %7013 = vmatpush2.bf16.msra.mxu0 %v6960
    %7014 = vmatprep.subr.bf16.mxu0 0
    %7015 = vmatpush2.bf16.msra.mxu0 %v6959
    %7016 = vmatprep.subr.bf16.mxu0 0
    %7017 = vmatpush2.bf16.msra.mxu0 %v6958
    %7018 = vmatprep.subr.bf16.mxu0 0
    %7019 = vmatpush2.bf16.msra.mxu0 %v6957
    %7020 = vmatprep.subr.bf16.mxu0 0
    %7021 = vmatpush2.bf16.msra.mxu0 %v6956
    %7022 = vmatprep.subr.bf16.mxu0 0
    %7023 = vmatpush2.bf16.msra.mxu0 %v6955
    %7024 = vmatprep.subr.bf16.mxu0 0
    %7025 = vmatpush2.bf16.msra.mxu0 %v6954
    %7026 = vmatprep.mubr.bf16.mxu0 %v6799
    %7027 = vmatmul.mubr.bf16.gmra.mxu0 %v6798
    %v7028 = vpop.f32.mrf.mxu0
    %v7029 = vadd.f32 0.0, %v7028
    %v7030 = vpop.f32.mrf.mxu0
    %v7031 = vpop.f32.mrf.mxu0
    %v7032 = vpop.f32.mrf.mxu0
    %7033 = vdwg.mxu0
    %7034 = vmatprep.subr.bf16.mxu0 0
    %7035 = vmatpush1.bf16.msra.mxu0 %v6969
    %7036 = vmatprep.subr.bf16.mxu0 0
    %7037 = vmatpush1.bf16.msra.mxu0 %v6968
    %7038 = vmatprep.subr.bf16.mxu0 0
    %7039 = vmatpush1.bf16.msra.mxu0 %v6967
    %7040 = vmatprep.subr.bf16.mxu0 0
    %7041 = vmatpush1.bf16.msra.mxu0 %v6966
    %7042 = vmatprep.subr.bf16.mxu0 0
    %7043 = vmatpush1.bf16.msra.mxu0 %v6965
    %7044 = vmatprep.subr.bf16.mxu0 0
    %7045 = vmatpush1.bf16.msra.mxu0 %v6964
    %7046 = vmatprep.subr.bf16.mxu0 0
    %7047 = vmatpush1.bf16.msra.mxu0 %v6963
    %7048 = vmatprep.subr.bf16.mxu0 0
    %7049 = vmatpush1.bf16.msra.mxu0 %v6962
    %7050 = vmatprep.subr.bf16.mxu0 0
    %7051 = vmatpush2.bf16.msra.mxu0 0
    %7052 = vmatprep.subr.bf16.mxu0 0
    %7053 = vmatpush2.bf16.msra.mxu0 0
    %7054 = vmatprep.subr.bf16.mxu0 0
    %7055 = vmatpush2.bf16.msra.mxu0 0
    %7056 = vmatprep.subr.bf16.mxu0 0
    %7057 = vmatpush2.bf16.msra.mxu0 0
    %7058 = vmatprep.subr.bf16.mxu0 0
    %7059 = vmatpush2.bf16.msra.mxu0 0
    %7060 = vmatprep.subr.bf16.mxu0 0
    %7061 = vmatpush2.bf16.msra.mxu0 0
    %7062 = vmatprep.subr.bf16.mxu0 0
    %7063 = vmatpush2.bf16.msra.mxu0 0
    %7064 = vmatprep.subr.bf16.mxu0 0
    %7065 = vmatpush2.bf16.msra.mxu0 0
    %7066 = vmatprep.mubr.bf16.mxu0 0
    %7067 = vmatmul.mubr.bf16.gmra.mxu0 %v6800
    %v7068 = vpop.f32.mrf.mxu0
    %v7069 = vadd.f32 %v7029, %v7068
    %v7070 = vpop.f32.mrf.mxu0
    %v7071 = vpop.f32.mrf.mxu0
    %v7072 = vpop.f32.mrf.mxu0
    %7073 = vdwg.mxu0
    %v7122 = vunpack.c.l.b16 %v6663
    %v7123 = vunpack.c.l.b16 %v6664
    %v7124 = vunpack.c.l.b16 %v6665
    %v7125 = vunpack.c.l.b16 %v6666
    %v7126 = vunpack.c.l.b16 %v6667
    %v7127 = vunpack.c.l.b16 %v6668
    %v7128 = vunpack.c.l.b16 %v6669
    %v7129 = vunpack.c.l.b16 %v6670
    %v7130 = vunpack.c.l.b16 %v6671
    %v7131 = vunpack.c.l.b16 %v6672
    %v7132 = vunpack.c.l.b16 %v6673
    %v7133 = vunpack.c.l.b16 %v6674
    %v7134 = vunpack.c.l.b16 %v6675
    %v7135 = vunpack.c.l.b16 %v6676
    %v7136 = vunpack.c.l.b16 %v6677
    %v7137 = vunpack.c.l.b16 %v6678
    %v7138 = vunpack.c.l.b16 %v6679
    %v7139 = vunpack.c.l.b16 %v6680
    %v7140 = vunpack.c.l.b16 %v6681
    %v7141 = vunpack.c.l.b16 %v6682
    %v7142 = vunpack.c.l.b16 %v6683
    %v7143 = vunpack.c.l.b16 %v6684
    %v7144 = vunpack.c.l.b16 %v6685
    %v7145 = vunpack.c.l.b16 %v6686
    %v7146 = vunpack.c.l.b16 %v6687
    %v7147 = vunpack.c.l.b16 %v6688
    %v7148 = vunpack.c.l.b16 %v6689
    %v7149 = vunpack.c.l.b16 %v6690
    %v7150 = vunpack.c.l.b16 %v6691
    %v7151 = vunpack.c.l.b16 %v6692
    %v7152 = vunpack.c.l.b16 %v6693
    %v7153 = vunpack.c.l.b16 %v6694
    %v7154 = vunpack.c.l.b16 %v6695
    %v7155 = vunpack.c.l.b16 %v6696
    %v7156 = vunpack.c.l.b16 %v6697
    %v7157 = vunpack.c.l.b16 %v6698
    %v7158 = vunpack.c.l.b16 %v6699
    %v7159 = vunpack.c.l.b16 %v6700
    %v7160 = vunpack.c.l.b16 %v6701
    %v7161 = vunpack.c.l.b16 %v6702
    %v7162 = vunpack.c.l.b16 %v6703
    %v7163 = vunpack.c.l.b16 %v6704
    %v7164 = vunpack.c.l.b16 %v6705
    %v7165 = vunpack.c.l.b16 %v6706
    %v7166 = vunpack.c.l.b16 %v6707
    %v7167 = vunpack.c.l.b16 %v6708
    %v7168 = vunpack.c.l.b16 %v6709
    %v7169 = vunpack.c.l.b16 %v6710
    %v7170 = vpack.c.b16 %v7123, %v7122
    %v7171 = vpack.c.b16 %v7125, %v7124
    %v7172 = vpack.c.b16 %v7127, %v7126
    %v7173 = vpack.c.b16 %v7129, %v7128
    %v7174 = vpack.c.b16 %v7131, %v7130
    %v7175 = vpack.c.b16 %v7133, %v7132
    %v7176 = vpack.c.b16 %v7135, %v7134
    %v7177 = vpack.c.b16 %v7137, %v7136
    %v7178 = vpack.c.b16 %v7139, %v7138
    %v7179 = vpack.c.b16 %v7141, %v7140
    %v7180 = vpack.c.b16 %v7143, %v7142
    %v7181 = vpack.c.b16 %v7145, %v7144
    %v7182 = vpack.c.b16 %v7147, %v7146
    %v7183 = vpack.c.b16 %v7149, %v7148
    %v7184 = vpack.c.b16 %v7151, %v7150
    %v7185 = vpack.c.b16 %v7153, %v7152
    %v7186 = vpack.c.b16 %v7155, %v7154
    %v7187 = vpack.c.b16 %v7157, %v7156
    %v7188 = vpack.c.b16 %v7159, %v7158
    %v7189 = vpack.c.b16 %v7161, %v7160
    %v7190 = vpack.c.b16 %v7163, %v7162
    %v7191 = vpack.c.b16 %v7165, %v7164
    %v7192 = vpack.c.b16 %v7167, %v7166
    %v7193 = vpack.c.b16 %v7169, %v7168
    %7218 = vmatprep.subr.bf16.mxu0 0
    %7219 = vmatpush1.bf16.msra.mxu0 %v7177
    %7220 = vmatprep.subr.bf16.mxu0 0
    %7221 = vmatpush1.bf16.msra.mxu0 %v7176
    %7222 = vmatprep.subr.bf16.mxu0 0
    %7223 = vmatpush1.bf16.msra.mxu0 %v7175
    %7224 = vmatprep.subr.bf16.mxu0 0
    %7225 = vmatpush1.bf16.msra.mxu0 %v7174
    %7226 = vmatprep.subr.bf16.mxu0 0
    %7227 = vmatpush1.bf16.msra.mxu0 %v7173
    %7228 = vmatprep.subr.bf16.mxu0 0
    %7229 = vmatpush1.bf16.msra.mxu0 %v7172
    %7230 = vmatprep.subr.bf16.mxu0 0
    %7231 = vmatpush1.bf16.msra.mxu0 %v7171
    %7232 = vmatprep.subr.bf16.mxu0 0
    %7233 = vmatpush1.bf16.msra.mxu0 %v7170
    %7234 = vmatprep.subr.bf16.mxu0 0
    %7235 = vmatpush2.bf16.msra.mxu0 %v7185
    %7236 = vmatprep.subr.bf16.mxu0 0
    %7237 = vmatpush2.bf16.msra.mxu0 %v7184
    %7238 = vmatprep.subr.bf16.mxu0 0
    %7239 = vmatpush2.bf16.msra.mxu0 %v7183
    %7240 = vmatprep.subr.bf16.mxu0 0
    %7241 = vmatpush2.bf16.msra.mxu0 %v7182
    %7242 = vmatprep.subr.bf16.mxu0 0
    %7243 = vmatpush2.bf16.msra.mxu0 %v7181
    %7244 = vmatprep.subr.bf16.mxu0 0
    %7245 = vmatpush2.bf16.msra.mxu0 %v7180
    %7246 = vmatprep.subr.bf16.mxu0 0
    %7247 = vmatpush2.bf16.msra.mxu0 %v7179
    %7248 = vmatprep.subr.bf16.mxu0 0
    %7249 = vmatpush2.bf16.msra.mxu0 %v7178
    %7250 = vmatprep.mubr.bf16.mxu0 %v6661
    %7251 = vmatmul.mubr.bf16.gmra.mxu0 %v6660
    %v7252 = vpop.f32.mrf.mxu0
    %v7253 = vadd.f32 %v7069, %v7252
    %v7254 = vpop.f32.mrf.mxu0
    %v7255 = vpop.f32.mrf.mxu0
    %v7256 = vpop.f32.mrf.mxu0
    %7257 = vdwg.mxu0
    %7258 = vmatprep.subr.bf16.mxu0 0
    %7259 = vmatpush1.bf16.msra.mxu0 %v7193
    %7260 = vmatprep.subr.bf16.mxu0 0
    %7261 = vmatpush1.bf16.msra.mxu0 %v7192
    %7262 = vmatprep.subr.bf16.mxu0 0
    %7263 = vmatpush1.bf16.msra.mxu0 %v7191
    %7264 = vmatprep.subr.bf16.mxu0 0
    %7265 = vmatpush1.bf16.msra.mxu0 %v7190
    %7266 = vmatprep.subr.bf16.mxu0 0
    %7267 = vmatpush1.bf16.msra.mxu0 %v7189
    %7268 = vmatprep.subr.bf16.mxu0 0
    %7269 = vmatpush1.bf16.msra.mxu0 %v7188
    %7270 = vmatprep.subr.bf16.mxu0 0
    %7271 = vmatpush1.bf16.msra.mxu0 %v7187
    %7272 = vmatprep.subr.bf16.mxu0 0
    %7273 = vmatpush1.bf16.msra.mxu0 %v7186
    %7274 = vmatprep.subr.bf16.mxu0 0
    %7275 = vmatpush2.bf16.msra.mxu0 0
    %7276 = vmatprep.subr.bf16.mxu0 0
    %7277 = vmatpush2.bf16.msra.mxu0 0
    %7278 = vmatprep.subr.bf16.mxu0 0
    %7279 = vmatpush2.bf16.msra.mxu0 0
    %7280 = vmatprep.subr.bf16.mxu0 0
    %7281 = vmatpush2.bf16.msra.mxu0 0
    %7282 = vmatprep.subr.bf16.mxu0 0
    %7283 = vmatpush2.bf16.msra.mxu0 0
    %7284 = vmatprep.subr.bf16.mxu0 0
    %7285 = vmatpush2.bf16.msra.mxu0 0
    %7286 = vmatprep.subr.bf16.mxu0 0
    %7287 = vmatpush2.bf16.msra.mxu0 0
    %7288 = vmatprep.subr.bf16.mxu0 0
    %7289 = vmatpush2.bf16.msra.mxu0 0
    %7290 = vmatprep.mubr.bf16.mxu0 0
    %7291 = vmatmul.mubr.bf16.gmra.mxu0 %v6662
    %v7292 = vpop.f32.mrf.mxu0
    %v7293 = vadd.f32 %v7253, %v7292
    %v7294 = vpop.f32.mrf.mxu0
    %v7295 = vpop.f32.mrf.mxu0
    %v7296 = vpop.f32.mrf.mxu0
    %7297 = vdwg.mxu0
    %s7298 = scalar_lea.vmem [#allocation21], 16
    %v7299 = vld [vmem:[%s7298] sm:$0xff]
    %v7300 = vpack.c.bf16 %v7299, %v7299
    %v7302 = vsel %vm3623, %v7300, 0
    %7304 = vmatprep.subr.bf16.mxu0 0
    %7305 = vmatpush1.bf16.msra.mxu0 0
    %7306 = vmatprep.subr.bf16.mxu0 0
    %7307 = vmatpush1.bf16.msra.mxu0 0
    %7308 = vmatprep.subr.bf16.mxu0 0
    %7309 = vmatpush1.bf16.msra.mxu0 0
    %7310 = vmatprep.subr.bf16.mxu0 0
    %7311 = vmatpush1.bf16.msra.mxu0 0
    %7312 = vmatprep.subr.bf16.mxu0 0
    %7313 = vmatpush1.bf16.msra.mxu0 0
    %7314 = vmatprep.subr.bf16.mxu0 0
    %7315 = vmatpush1.bf16.msra.mxu0 0
    %7316 = vmatprep.subr.bf16.mxu0 0
    %7317 = vmatpush1.bf16.msra.mxu0 0
    %7318 = vmatprep.subr.bf16.mxu0 %v6574
    %7319 = vmatpush1.bf16.msra.mxu0 %v6571
    %7320 = vmatprep.subr.bf16.mxu0 0
    %7321 = vmatpush2.bf16.msra.mxu0 0
    %7322 = vmatprep.subr.bf16.mxu0 0
    %7323 = vmatpush2.bf16.msra.mxu0 0
    %7324 = vmatprep.subr.bf16.mxu0 0
    %7325 = vmatpush2.bf16.msra.mxu0 0
    %7326 = vmatprep.subr.bf16.mxu0 0
    %7327 = vmatpush2.bf16.msra.mxu0 0
    %7328 = vmatprep.subr.bf16.mxu0 0
    %7329 = vmatpush2.bf16.msra.mxu0 0
    %7330 = vmatprep.subr.bf16.mxu0 0
    %7331 = vmatpush2.bf16.msra.mxu0 0
    %7332 = vmatprep.subr.bf16.mxu0 0
    %7333 = vmatpush2.bf16.msra.mxu0 0
    %7334 = vmatprep.subr.bf16.mxu0 0
    %7335 = vmatpush2.bf16.msra.mxu0 0
    %7336 = vmatprep.mubr.bf16.mxu0 0
    %7337 = vmatmul.mubr.bf16.gmra.mxu0 %v7302
    %v7338 = vpop.f32.mrf.mxu0
    %v7339 = vadd.f32 0.0, %v7338
    %v7340 = vpop.f32.mrf.mxu0
    %v7341 = vadd.f32 0.0, %v7340
    %v7342 = vpop.f32.mrf.mxu0
    %v7343 = vpop.f32.mrf.mxu0
    %7344 = vdwg.mxu0
    %7345 = vmatprep.subr.bf16.mxu0 0
    %7346 = vmatpush1.bf16.msra.mxu0 0
    %7347 = vmatprep.subr.bf16.mxu0 0
    %7348 = vmatpush1.bf16.msra.mxu0 0
    %7349 = vmatprep.subr.bf16.mxu0 0
    %7350 = vmatpush1.bf16.msra.mxu0 0
    %7351 = vmatprep.subr.bf16.mxu0 0
    %7352 = vmatpush1.bf16.msra.mxu0 0
    %7353 = vmatprep.subr.bf16.mxu0 0
    %7354 = vmatpush1.bf16.msra.mxu0 0
    %7355 = vmatprep.subr.bf16.mxu0 0
    %7356 = vmatpush1.bf16.msra.mxu0 0
    %7357 = vmatprep.subr.bf16.mxu0 0
    %7358 = vmatpush1.bf16.msra.mxu0 0
    %7359 = vmatprep.subr.bf16.mxu0 0
    %7360 = vmatpush1.bf16.msra.mxu0 %v6577
    %7361 = vmatprep.subr.bf16.mxu0 0
    %7362 = vmatpush2.bf16.msra.mxu0 0
    %7363 = vmatprep.subr.bf16.mxu0 0
    %7364 = vmatpush2.bf16.msra.mxu0 0
    %7365 = vmatprep.subr.bf16.mxu0 0
    %7366 = vmatpush2.bf16.msra.mxu0 0
    %7367 = vmatprep.subr.bf16.mxu0 0
    %7368 = vmatpush2.bf16.msra.mxu0 0
    %7369 = vmatprep.subr.bf16.mxu0 0
    %7370 = vmatpush2.bf16.msra.mxu0 0
    %7371 = vmatprep.subr.bf16.mxu0 0
    %7372 = vmatpush2.bf16.msra.mxu0 0
    %7373 = vmatprep.subr.bf16.mxu0 0
    %7374 = vmatpush2.bf16.msra.mxu0 0
    %7375 = vmatprep.subr.bf16.mxu0 0
    %7376 = vmatpush2.bf16.msra.mxu0 0
    %7377 = vmatprep.mubr.bf16.mxu0 0
    %7378 = vmatmul.mubr.bf16.gmra.mxu0 %v7302
    %v7379 = vpop.f32.mrf.mxu0
    %v7380 = vadd.f32 0.0, %v7379
    %v7381 = vpop.f32.mrf.mxu0
    %v7382 = vpop.f32.mrf.mxu0
    %v7383 = vpop.f32.mrf.mxu0
    %7384 = vdwg.mxu0
    %v7385 = vpack.c.bf16 %v7339, %v7339
    %v7386 = vpack.c.bf16 %v7341, %v7341
    %v7387 = vpack.c.bf16 %v7380, %v7380
    %s7388 = scalar_lea.vmem [#allocation22], 384
    %v7389 = vld [vmem:[%s7388] sm:$0xf]
    %v7390 = vld [vmem:[%s7388 + $0x4] sm:$0xf]
    %v7391 = vld [vmem:[%s7388 + $0x8] sm:$0xf]
    %v7392 = vld [vmem:[%s7388 + $0xc] sm:$0xf]
    %v7393 = vld [vmem:[%s7388 + $0x10] sm:$0xf]
    %v7394 = vld [vmem:[%s7388 + $0x14] sm:$0xf]
    %v7395 = vld [vmem:[%s7388 + $0x18] sm:$0xf]
    %v7396 = vld [vmem:[%s7388 + $0x1c] sm:$0xf]
    %v7397 = vld [vmem:[%s7388 + $0x20] sm:$0xf]
    %v7398 = vld [vmem:[%s7388 + $0x24] sm:$0xf]
    %v7399 = vld [vmem:[%s7388 + $0x28] sm:$0xf]
    %v7400 = vld [vmem:[%s7388 + $0x2c] sm:$0xf]
    %v7401 = vld [vmem:[%s7388 + $0x30] sm:$0xf]
    %v7402 = vld [vmem:[%s7388 + $0x34] sm:$0xf]
    %v7403 = vld [vmem:[%s7388 + $0x38] sm:$0xf]
    %v7404 = vld [vmem:[%s7388 + $0x3c] sm:$0xf]
    %v7405 = vld [vmem:[%s7388 + $0x40] sm:$0xf]
    %v7406 = vld [vmem:[%s7388 + $0x44] sm:$0xf]
    %v7407 = vld [vmem:[%s7388 + $0x48] sm:$0xf]
    %v7408 = vld [vmem:[%s7388 + $0x4c] sm:$0xf]
    %v7409 = vld [vmem:[%s7388 + $0x50] sm:$0xf]
    %v7410 = vld [vmem:[%s7388 + $0x54] sm:$0xf]
    %v7411 = vld [vmem:[%s7388 + $0x58] sm:$0xf]
    %v7412 = vld [vmem:[%s7388 + $0x5c] sm:$0xf]
    %v7413 = vld [vmem:[%s7388 + $0x60] sm:$0xf]
    %v7414 = vld [vmem:[%s7388 + $0x64] sm:$0xf]
    %v7415 = vld [vmem:[%s7388 + $0x68] sm:$0xf]
    %v7416 = vld [vmem:[%s7388 + $0x6c] sm:$0xf]
    %v7417 = vld [vmem:[%s7388 + $0x70] sm:$0xf]
    %v7418 = vld [vmem:[%s7388 + $0x74] sm:$0xf]
    %v7419 = vld [vmem:[%s7388 + $0x78] sm:$0xf]
    %v7420 = vld [vmem:[%s7388 + $0x7c] sm:$0xf]
    %v7421 = vld [vmem:[%s7388 + $0x80] sm:$0xf]
    %v7422 = vld [vmem:[%s7388 + $0x84] sm:$0xf]
    %v7423 = vld [vmem:[%s7388 + $0x88] sm:$0xf]
    %v7424 = vld [vmem:[%s7388 + $0x8c] sm:$0xf]
    %v7425 = vld [vmem:[%s7388 + $0x90] sm:$0xf]
    %v7426 = vld [vmem:[%s7388 + $0x94] sm:$0xf]
    %v7427 = vld [vmem:[%s7388 + $0x98] sm:$0xf]
    %v7428 = vld [vmem:[%s7388 + $0x9c] sm:$0xf]
    %v7429 = vld [vmem:[%s7388 + $0xa0] sm:$0xf]
    %v7430 = vld [vmem:[%s7388 + $0xa4] sm:$0xf]
    %v7431 = vld [vmem:[%s7388 + $0xa8] sm:$0xf]
    %v7432 = vld [vmem:[%s7388 + $0xac] sm:$0xf]
    %v7433 = vld [vmem:[%s7388 + $0xb0] sm:$0xf]
    %v7434 = vld [vmem:[%s7388 + $0xb4] sm:$0xf]
    %v7435 = vld [vmem:[%s7388 + $0xb8] sm:$0xf]
    %v7436 = vld [vmem:[%s7388 + $0xbc] sm:$0xf]
    %v7485 = vunpack.c.l.b16 %v7389
    %v7486 = vunpack.c.l.b16 %v7390
    %v7487 = vunpack.c.l.b16 %v7391
    %v7488 = vunpack.c.l.b16 %v7392
    %v7489 = vunpack.c.l.b16 %v7393
    %v7490 = vunpack.c.l.b16 %v7394
    %v7491 = vunpack.c.l.b16 %v7395
    %v7492 = vunpack.c.l.b16 %v7396
    %v7493 = vunpack.c.l.b16 %v7397
    %v7494 = vunpack.c.l.b16 %v7398
    %v7495 = vunpack.c.l.b16 %v7399
    %v7496 = vunpack.c.l.b16 %v7400
    %v7497 = vunpack.c.l.b16 %v7401
    %v7498 = vunpack.c.l.b16 %v7402
    %v7499 = vunpack.c.l.b16 %v7403
    %v7500 = vunpack.c.l.b16 %v7404
    %v7501 = vunpack.c.l.b16 %v7405
    %v7502 = vunpack.c.l.b16 %v7406
    %v7503 = vunpack.c.l.b16 %v7407
    %v7504 = vunpack.c.l.b16 %v7408
    %v7505 = vunpack.c.l.b16 %v7409
    %v7506 = vunpack.c.l.b16 %v7410
    %v7507 = vunpack.c.l.b16 %v7411
    %v7508 = vunpack.c.l.b16 %v7412
    %v7509 = vunpack.c.l.b16 %v7413
    %v7510 = vunpack.c.l.b16 %v7414
    %v7511 = vunpack.c.l.b16 %v7415
    %v7512 = vunpack.c.l.b16 %v7416
    %v7513 = vunpack.c.l.b16 %v7417
    %v7514 = vunpack.c.l.b16 %v7418
    %v7515 = vunpack.c.l.b16 %v7419
    %v7516 = vunpack.c.l.b16 %v7420
    %v7517 = vunpack.c.l.b16 %v7421
    %v7518 = vunpack.c.l.b16 %v7422
    %v7519 = vunpack.c.l.b16 %v7423
    %v7520 = vunpack.c.l.b16 %v7424
    %v7521 = vunpack.c.l.b16 %v7425
    %v7522 = vunpack.c.l.b16 %v7426
    %v7523 = vunpack.c.l.b16 %v7427
    %v7524 = vunpack.c.l.b16 %v7428
    %v7525 = vunpack.c.l.b16 %v7429
    %v7526 = vunpack.c.l.b16 %v7430
    %v7527 = vunpack.c.l.b16 %v7431
    %v7528 = vunpack.c.l.b16 %v7432
    %v7529 = vunpack.c.l.b16 %v7433
    %v7530 = vunpack.c.l.b16 %v7434
    %v7531 = vunpack.c.l.b16 %v7435
    %v7532 = vunpack.c.l.b16 %v7436
    %v7533 = vpack.c.b16 %v7486, %v7485
    %v7534 = vpack.c.b16 %v7488, %v7487
    %v7535 = vpack.c.b16 %v7490, %v7489
    %v7536 = vpack.c.b16 %v7492, %v7491
    %v7537 = vpack.c.b16 %v7494, %v7493
    %v7538 = vpack.c.b16 %v7496, %v7495
    %v7539 = vpack.c.b16 %v7498, %v7497
    %v7540 = vpack.c.b16 %v7500, %v7499
    %v7541 = vpack.c.b16 %v7502, %v7501
    %v7542 = vpack.c.b16 %v7504, %v7503
    %v7543 = vpack.c.b16 %v7506, %v7505
    %v7544 = vpack.c.b16 %v7508, %v7507
    %v7545 = vpack.c.b16 %v7510, %v7509
    %v7546 = vpack.c.b16 %v7512, %v7511
    %v7547 = vpack.c.b16 %v7514, %v7513
    %v7548 = vpack.c.b16 %v7516, %v7515
    %v7549 = vpack.c.b16 %v7518, %v7517
    %v7550 = vpack.c.b16 %v7520, %v7519
    %v7551 = vpack.c.b16 %v7522, %v7521
    %v7552 = vpack.c.b16 %v7524, %v7523
    %v7553 = vpack.c.b16 %v7526, %v7525
    %v7554 = vpack.c.b16 %v7528, %v7527
    %v7555 = vpack.c.b16 %v7530, %v7529
    %v7556 = vpack.c.b16 %v7532, %v7531
    %7581 = vmatprep.subr.bf16.mxu0 0
    %7582 = vmatpush1.bf16.msra.mxu0 %v7540
    %7583 = vmatprep.subr.bf16.mxu0 0
    %7584 = vmatpush1.bf16.msra.mxu0 %v7539
    %7585 = vmatprep.subr.bf16.mxu0 0
    %7586 = vmatpush1.bf16.msra.mxu0 %v7538
    %7587 = vmatprep.subr.bf16.mxu0 0
    %7588 = vmatpush1.bf16.msra.mxu0 %v7537
    %7589 = vmatprep.subr.bf16.mxu0 0
    %7590 = vmatpush1.bf16.msra.mxu0 %v7536
    %7591 = vmatprep.subr.bf16.mxu0 0
    %7592 = vmatpush1.bf16.msra.mxu0 %v7535
    %7593 = vmatprep.subr.bf16.mxu0 0
    %7594 = vmatpush1.bf16.msra.mxu0 %v7534
    %7595 = vmatprep.subr.bf16.mxu0 0
    %7596 = vmatpush1.bf16.msra.mxu0 %v7533
    %7597 = vmatprep.subr.bf16.mxu0 0
    %7598 = vmatpush2.bf16.msra.mxu0 %v7548
    %7599 = vmatprep.subr.bf16.mxu0 0
    %7600 = vmatpush2.bf16.msra.mxu0 %v7547
    %7601 = vmatprep.subr.bf16.mxu0 0
    %7602 = vmatpush2.bf16.msra.mxu0 %v7546
    %7603 = vmatprep.subr.bf16.mxu0 0
    %7604 = vmatpush2.bf16.msra.mxu0 %v7545
    %7605 = vmatprep.subr.bf16.mxu0 0
    %7606 = vmatpush2.bf16.msra.mxu0 %v7544
    %7607 = vmatprep.subr.bf16.mxu0 0
    %7608 = vmatpush2.bf16.msra.mxu0 %v7543
    %7609 = vmatprep.subr.bf16.mxu0 0
    %7610 = vmatpush2.bf16.msra.mxu0 %v7542
    %7611 = vmatprep.subr.bf16.mxu0 0
    %7612 = vmatpush2.bf16.msra.mxu0 %v7541
    %7613 = vmatprep.mubr.bf16.mxu0 %v7386
    %7614 = vmatmul.mubr.bf16.gmra.mxu0 %v7385
    %v7615 = vpop.f32.mrf.mxu0
    %v7616 = vadd.f32 0.0, %v7615
    %v7617 = vpop.f32.mrf.mxu0
    %v7618 = vpop.f32.mrf.mxu0
    %v7619 = vpop.f32.mrf.mxu0
    %7620 = vdwg.mxu0
    %7621 = vmatprep.subr.bf16.mxu0 0
    %7622 = vmatpush1.bf16.msra.mxu0 %v7556
    %7623 = vmatprep.subr.bf16.mxu0 0
    %7624 = vmatpush1.bf16.msra.mxu0 %v7555
    %7625 = vmatprep.subr.bf16.mxu0 0
    %7626 = vmatpush1.bf16.msra.mxu0 %v7554
    %7627 = vmatprep.subr.bf16.mxu0 0
    %7628 = vmatpush1.bf16.msra.mxu0 %v7553
    %7629 = vmatprep.subr.bf16.mxu0 0
    %7630 = vmatpush1.bf16.msra.mxu0 %v7552
    %7631 = vmatprep.subr.bf16.mxu0 0
    %7632 = vmatpush1.bf16.msra.mxu0 %v7551
    %7633 = vmatprep.subr.bf16.mxu0 0
    %7634 = vmatpush1.bf16.msra.mxu0 %v7550
    %7635 = vmatprep.subr.bf16.mxu0 0
    %7636 = vmatpush1.bf16.msra.mxu0 %v7549
    %7637 = vmatprep.subr.bf16.mxu0 0
    %7638 = vmatpush2.bf16.msra.mxu0 0
    %7639 = vmatprep.subr.bf16.mxu0 0
    %7640 = vmatpush2.bf16.msra.mxu0 0
    %7641 = vmatprep.subr.bf16.mxu0 0
    %7642 = vmatpush2.bf16.msra.mxu0 0
    %7643 = vmatprep.subr.bf16.mxu0 0
    %7644 = vmatpush2.bf16.msra.mxu0 0
    %7645 = vmatprep.subr.bf16.mxu0 0
    %7646 = vmatpush2.bf16.msra.mxu0 0
    %7647 = vmatprep.subr.bf16.mxu0 0
    %7648 = vmatpush2.bf16.msra.mxu0 0
    %7649 = vmatprep.subr.bf16.mxu0 0
    %7650 = vmatpush2.bf16.msra.mxu0 0
    %7651 = vmatprep.subr.bf16.mxu0 0
    %7652 = vmatpush2.bf16.msra.mxu0 0
    %7653 = vmatprep.mubr.bf16.mxu0 0
    %7654 = vmatmul.mubr.bf16.gmra.mxu0 %v7387
    %v7655 = vpop.f32.mrf.mxu0
    %v7656 = vadd.f32 %v7616, %v7655
    %v7657 = vpop.f32.mrf.mxu0
    %v7658 = vpop.f32.mrf.mxu0
    %v7659 = vpop.f32.mrf.mxu0
    %7660 = vdwg.mxu0
    %v7661 = vadd.f32 %v7293, %v7656
    %s7662 = scalar_lea.vmem [#allocation21], 24
    %v7663 = vld [vmem:[%s7662] sm:$0xff]
    %v7664 = vpack.c.bf16 %v7663, %v7663
    %v7666 = vsel %vm3623, %v7664, 0
    %7668 = vmatprep.subr.bf16.mxu0 0
    %7669 = vmatpush1.bf16.msra.mxu0 0
    %7670 = vmatprep.subr.bf16.mxu0 0
    %7671 = vmatpush1.bf16.msra.mxu0 0
    %7672 = vmatprep.subr.bf16.mxu0 0
    %7673 = vmatpush1.bf16.msra.mxu0 0
    %7674 = vmatprep.subr.bf16.mxu0 0
    %7675 = vmatpush1.bf16.msra.mxu0 0
    %7676 = vmatprep.subr.bf16.mxu0 0
    %7677 = vmatpush1.bf16.msra.mxu0 0
    %7678 = vmatprep.subr.bf16.mxu0 0
    %7679 = vmatpush1.bf16.msra.mxu0 0
    %7680 = vmatprep.subr.bf16.mxu0 0
    %7681 = vmatpush1.bf16.msra.mxu0 0
    %7682 = vmatprep.subr.bf16.mxu0 %v6574
    %7683 = vmatpush1.bf16.msra.mxu0 %v6571
    %7684 = vmatprep.subr.bf16.mxu0 0
    %7685 = vmatpush2.bf16.msra.mxu0 0
    %7686 = vmatprep.subr.bf16.mxu0 0
    %7687 = vmatpush2.bf16.msra.mxu0 0
    %7688 = vmatprep.subr.bf16.mxu0 0
    %7689 = vmatpush2.bf16.msra.mxu0 0
    %7690 = vmatprep.subr.bf16.mxu0 0
    %7691 = vmatpush2.bf16.msra.mxu0 0
    %7692 = vmatprep.subr.bf16.mxu0 0
    %7693 = vmatpush2.bf16.msra.mxu0 0
    %7694 = vmatprep.subr.bf16.mxu0 0
    %7695 = vmatpush2.bf16.msra.mxu0 0
    %7696 = vmatprep.subr.bf16.mxu0 0
    %7697 = vmatpush2.bf16.msra.mxu0 0
    %7698 = vmatprep.subr.bf16.mxu0 0
    %7699 = vmatpush2.bf16.msra.mxu0 0
    %7700 = vmatprep.mubr.bf16.mxu0 0
    %7701 = vmatmul.mubr.bf16.gmra.mxu0 %v7666
    %v7702 = vpop.f32.mrf.mxu0
    %v7703 = vadd.f32 0.0, %v7702
    %v7704 = vpop.f32.mrf.mxu0
    %v7705 = vadd.f32 0.0, %v7704
    %v7706 = vpop.f32.mrf.mxu0
    %v7707 = vpop.f32.mrf.mxu0
    %7708 = vdwg.mxu0
    %7709 = vmatprep.subr.bf16.mxu0 0
    %7710 = vmatpush1.bf16.msra.mxu0 0
    %7711 = vmatprep.subr.bf16.mxu0 0
    %7712 = vmatpush1.bf16.msra.mxu0 0
    %7713 = vmatprep.subr.bf16.mxu0 0
    %7714 = vmatpush1.bf16.msra.mxu0 0
    %7715 = vmatprep.subr.bf16.mxu0 0
    %7716 = vmatpush1.bf16.msra.mxu0 0
    %7717 = vmatprep.subr.bf16.mxu0 0
    %7718 = vmatpush1.bf16.msra.mxu0 0
    %7719 = vmatprep.subr.bf16.mxu0 0
    %7720 = vmatpush1.bf16.msra.mxu0 0
    %7721 = vmatprep.subr.bf16.mxu0 0
    %7722 = vmatpush1.bf16.msra.mxu0 0
    %7723 = vmatprep.subr.bf16.mxu0 0
    %7724 = vmatpush1.bf16.msra.mxu0 %v6577
    %7725 = vmatprep.subr.bf16.mxu0 0
    %7726 = vmatpush2.bf16.msra.mxu0 0
    %7727 = vmatprep.subr.bf16.mxu0 0
    %7728 = vmatpush2.bf16.msra.mxu0 0
    %7729 = vmatprep.subr.bf16.mxu0 0
    %7730 = vmatpush2.bf16.msra.mxu0 0
    %7731 = vmatprep.subr.bf16.mxu0 0
    %7732 = vmatpush2.bf16.msra.mxu0 0
    %7733 = vmatprep.subr.bf16.mxu0 0
    %7734 = vmatpush2.bf16.msra.mxu0 0
    %7735 = vmatprep.subr.bf16.mxu0 0
    %7736 = vmatpush2.bf16.msra.mxu0 0
    %7737 = vmatprep.subr.bf16.mxu0 0
    %7738 = vmatpush2.bf16.msra.mxu0 0
    %7739 = vmatprep.subr.bf16.mxu0 0
    %7740 = vmatpush2.bf16.msra.mxu0 0
    %7741 = vmatprep.mubr.bf16.mxu0 0
    %7742 = vmatmul.mubr.bf16.gmra.mxu0 %v7666
    %v7743 = vpop.f32.mrf.mxu0
    %v7744 = vadd.f32 0.0, %v7743
    %v7745 = vpop.f32.mrf.mxu0
    %v7746 = vpop.f32.mrf.mxu0
    %v7747 = vpop.f32.mrf.mxu0
    %7748 = vdwg.mxu0
    %v7749 = vpack.c.bf16 %v7703, %v7703
    %v7750 = vpack.c.bf16 %v7705, %v7705
    %v7751 = vpack.c.bf16 %v7744, %v7744
    %s7752 = scalar_lea.vmem [#allocation22], 576
    %v7753 = vld [vmem:[%s7752] sm:$0xf]
    %v7754 = vld [vmem:[%s7752 + $0x4] sm:$0xf]
    %v7755 = vld [vmem:[%s7752 + $0x8] sm:$0xf]
    %v7756 = vld [vmem:[%s7752 + $0xc] sm:$0xf]
    %v7757 = vld [vmem:[%s7752 + $0x10] sm:$0xf]
    %v7758 = vld [vmem:[%s7752 + $0x14] sm:$0xf]
    %v7759 = vld [vmem:[%s7752 + $0x18] sm:$0xf]
    %v7760 = vld [vmem:[%s7752 + $0x1c] sm:$0xf]
    %v7761 = vld [vmem:[%s7752 + $0x20] sm:$0xf]
    %v7762 = vld [vmem:[%s7752 + $0x24] sm:$0xf]
    %v7763 = vld [vmem:[%s7752 + $0x28] sm:$0xf]
    %v7764 = vld [vmem:[%s7752 + $0x2c] sm:$0xf]
    %v7765 = vld [vmem:[%s7752 + $0x30] sm:$0xf]
    %v7766 = vld [vmem:[%s7752 + $0x34] sm:$0xf]
    %v7767 = vld [vmem:[%s7752 + $0x38] sm:$0xf]
    %v7768 = vld [vmem:[%s7752 + $0x3c] sm:$0xf]
    %v7769 = vld [vmem:[%s7752 + $0x40] sm:$0xf]
    %v7770 = vld [vmem:[%s7752 + $0x44] sm:$0xf]
    %v7771 = vld [vmem:[%s7752 + $0x48] sm:$0xf]
    %v7772 = vld [vmem:[%s7752 + $0x4c] sm:$0xf]
    %v7773 = vld [vmem:[%s7752 + $0x50] sm:$0xf]
    %v7774 = vld [vmem:[%s7752 + $0x54] sm:$0xf]
    %v7775 = vld [vmem:[%s7752 + $0x58] sm:$0xf]
    %v7776 = vld [vmem:[%s7752 + $0x5c] sm:$0xf]
    %v7777 = vld [vmem:[%s7752 + $0x60] sm:$0xf]
    %v7778 = vld [vmem:[%s7752 + $0x64] sm:$0xf]
    %v7779 = vld [vmem:[%s7752 + $0x68] sm:$0xf]
    %v7780 = vld [vmem:[%s7752 + $0x6c] sm:$0xf]
    %v7781 = vld [vmem:[%s7752 + $0x70] sm:$0xf]
    %v7782 = vld [vmem:[%s7752 + $0x74] sm:$0xf]
    %v7783 = vld [vmem:[%s7752 + $0x78] sm:$0xf]
    %v7784 = vld [vmem:[%s7752 + $0x7c] sm:$0xf]
    %v7785 = vld [vmem:[%s7752 + $0x80] sm:$0xf]
    %v7786 = vld [vmem:[%s7752 + $0x84] sm:$0xf]
    %v7787 = vld [vmem:[%s7752 + $0x88] sm:$0xf]
    %v7788 = vld [vmem:[%s7752 + $0x8c] sm:$0xf]
    %v7789 = vld [vmem:[%s7752 + $0x90] sm:$0xf]
    %v7790 = vld [vmem:[%s7752 + $0x94] sm:$0xf]
    %v7791 = vld [vmem:[%s7752 + $0x98] sm:$0xf]
    %v7792 = vld [vmem:[%s7752 + $0x9c] sm:$0xf]
    %v7793 = vld [vmem:[%s7752 + $0xa0] sm:$0xf]
    %v7794 = vld [vmem:[%s7752 + $0xa4] sm:$0xf]
    %v7795 = vld [vmem:[%s7752 + $0xa8] sm:$0xf]
    %v7796 = vld [vmem:[%s7752 + $0xac] sm:$0xf]
    %v7797 = vld [vmem:[%s7752 + $0xb0] sm:$0xf]
    %v7798 = vld [vmem:[%s7752 + $0xb4] sm:$0xf]
    %v7799 = vld [vmem:[%s7752 + $0xb8] sm:$0xf]
    %v7800 = vld [vmem:[%s7752 + $0xbc] sm:$0xf]
    %v7849 = vunpack.c.l.b16 %v7753
    %v7850 = vunpack.c.l.b16 %v7754
    %v7851 = vunpack.c.l.b16 %v7755
    %v7852 = vunpack.c.l.b16 %v7756
    %v7853 = vunpack.c.l.b16 %v7757
    %v7854 = vunpack.c.l.b16 %v7758
    %v7855 = vunpack.c.l.b16 %v7759
    %v7856 = vunpack.c.l.b16 %v7760
    %v7857 = vunpack.c.l.b16 %v7761
    %v7858 = vunpack.c.l.b16 %v7762
    %v7859 = vunpack.c.l.b16 %v7763
    %v7860 = vunpack.c.l.b16 %v7764
    %v7861 = vunpack.c.l.b16 %v7765
    %v7862 = vunpack.c.l.b16 %v7766
    %v7863 = vunpack.c.l.b16 %v7767
    %v7864 = vunpack.c.l.b16 %v7768
    %v7865 = vunpack.c.l.b16 %v7769
    %v7866 = vunpack.c.l.b16 %v7770
    %v7867 = vunpack.c.l.b16 %v7771
    %v7868 = vunpack.c.l.b16 %v7772
    %v7869 = vunpack.c.l.b16 %v7773
    %v7870 = vunpack.c.l.b16 %v7774
    %v7871 = vunpack.c.l.b16 %v7775
    %v7872 = vunpack.c.l.b16 %v7776
    %v7873 = vunpack.c.l.b16 %v7777
    %v7874 = vunpack.c.l.b16 %v7778
    %v7875 = vunpack.c.l.b16 %v7779
    %v7876 = vunpack.c.l.b16 %v7780
    %v7877 = vunpack.c.l.b16 %v7781
    %v7878 = vunpack.c.l.b16 %v7782
    %v7879 = vunpack.c.l.b16 %v7783
    %v7880 = vunpack.c.l.b16 %v7784
    %v7881 = vunpack.c.l.b16 %v7785
    %v7882 = vunpack.c.l.b16 %v7786
    %v7883 = vunpack.c.l.b16 %v7787
    %v7884 = vunpack.c.l.b16 %v7788
    %v7885 = vunpack.c.l.b16 %v7789
    %v7886 = vunpack.c.l.b16 %v7790
    %v7887 = vunpack.c.l.b16 %v7791
    %v7888 = vunpack.c.l.b16 %v7792
    %v7889 = vunpack.c.l.b16 %v7793
    %v7890 = vunpack.c.l.b16 %v7794
    %v7891 = vunpack.c.l.b16 %v7795
    %v7892 = vunpack.c.l.b16 %v7796
    %v7893 = vunpack.c.l.b16 %v7797
    %v7894 = vunpack.c.l.b16 %v7798
    %v7895 = vunpack.c.l.b16 %v7799
    %v7896 = vunpack.c.l.b16 %v7800
    %v7897 = vpack.c.b16 %v7850, %v7849
    %v7898 = vpack.c.b16 %v7852, %v7851
    %v7899 = vpack.c.b16 %v7854, %v7853
    %v7900 = vpack.c.b16 %v7856, %v7855
    %v7901 = vpack.c.b16 %v7858, %v7857
    %v7902 = vpack.c.b16 %v7860, %v7859
    %v7903 = vpack.c.b16 %v7862, %v7861
    %v7904 = vpack.c.b16 %v7864, %v7863
    %v7905 = vpack.c.b16 %v7866, %v7865
    %v7906 = vpack.c.b16 %v7868, %v7867
    %v7907 = vpack.c.b16 %v7870, %v7869
    %v7908 = vpack.c.b16 %v7872, %v7871
    %v7909 = vpack.c.b16 %v7874, %v7873
    %v7910 = vpack.c.b16 %v7876, %v7875
    %v7911 = vpack.c.b16 %v7878, %v7877
    %v7912 = vpack.c.b16 %v7880, %v7879
    %v7913 = vpack.c.b16 %v7882, %v7881
    %v7914 = vpack.c.b16 %v7884, %v7883
    %v7915 = vpack.c.b16 %v7886, %v7885
    %v7916 = vpack.c.b16 %v7888, %v7887
    %v7917 = vpack.c.b16 %v7890, %v7889
    %v7918 = vpack.c.b16 %v7892, %v7891
    %v7919 = vpack.c.b16 %v7894, %v7893
    %v7920 = vpack.c.b16 %v7896, %v7895
    %7945 = vmatprep.subr.bf16.mxu0 0
    %7946 = vmatpush1.bf16.msra.mxu0 %v7904
    %7947 = vmatprep.subr.bf16.mxu0 0
    %7948 = vmatpush1.bf16.msra.mxu0 %v7903
    %7949 = vmatprep.subr.bf16.mxu0 0
    %7950 = vmatpush1.bf16.msra.mxu0 %v7902
    %7951 = vmatprep.subr.bf16.mxu0 0
    %7952 = vmatpush1.bf16.msra.mxu0 %v7901
    %7953 = vmatprep.subr.bf16.mxu0 0
    %7954 = vmatpush1.bf16.msra.mxu0 %v7900
    %7955 = vmatprep.subr.bf16.mxu0 0
    %7956 = vmatpush1.bf16.msra.mxu0 %v7899
    %7957 = vmatprep.subr.bf16.mxu0 0
    %7958 = vmatpush1.bf16.msra.mxu0 %v7898
    %7959 = vmatprep.subr.bf16.mxu0 0
    %7960 = vmatpush1.bf16.msra.mxu0 %v7897
    %7961 = vmatprep.subr.bf16.mxu0 0
    %7962 = vmatpush2.bf16.msra.mxu0 %v7912
    %7963 = vmatprep.subr.bf16.mxu0 0
    %7964 = vmatpush2.bf16.msra.mxu0 %v7911
    %7965 = vmatprep.subr.bf16.mxu0 0
    %7966 = vmatpush2.bf16.msra.mxu0 %v7910
    %7967 = vmatprep.subr.bf16.mxu0 0
    %7968 = vmatpush2.bf16.msra.mxu0 %v7909
    %7969 = vmatprep.subr.bf16.mxu0 0
    %7970 = vmatpush2.bf16.msra.mxu0 %v7908
    %7971 = vmatprep.subr.bf16.mxu0 0
    %7972 = vmatpush2.bf16.msra.mxu0 %v7907
    %7973 = vmatprep.subr.bf16.mxu0 0
    %7974 = vmatpush2.bf16.msra.mxu0 %v7906
    %7975 = vmatprep.subr.bf16.mxu0 0
    %7976 = vmatpush2.bf16.msra.mxu0 %v7905
    %7977 = vmatprep.mubr.bf16.mxu0 %v7750
    %7978 = vmatmul.mubr.bf16.gmra.mxu0 %v7749
    %v7979 = vpop.f32.mrf.mxu0
    %v7980 = vadd.f32 0.0, %v7979
    %v7981 = vpop.f32.mrf.mxu0
    %v7982 = vpop.f32.mrf.mxu0
    %v7983 = vpop.f32.mrf.mxu0
    %7984 = vdwg.mxu0
    %7985 = vmatprep.subr.bf16.mxu0 0
    %7986 = vmatpush1.bf16.msra.mxu0 %v7920
    %7987 = vmatprep.subr.bf16.mxu0 0
    %7988 = vmatpush1.bf16.msra.mxu0 %v7919
    %7989 = vmatprep.subr.bf16.mxu0 0
    %7990 = vmatpush1.bf16.msra.mxu0 %v7918
    %7991 = vmatprep.subr.bf16.mxu0 0
    %7992 = vmatpush1.bf16.msra.mxu0 %v7917
    %7993 = vmatprep.subr.bf16.mxu0 0
    %7994 = vmatpush1.bf16.msra.mxu0 %v7916
    %7995 = vmatprep.subr.bf16.mxu0 0
    %7996 = vmatpush1.bf16.msra.mxu0 %v7915
    %7997 = vmatprep.subr.bf16.mxu0 0
    %7998 = vmatpush1.bf16.msra.mxu0 %v7914
    %7999 = vmatprep.subr.bf16.mxu0 0
    %8000 = vmatpush1.bf16.msra.mxu0 %v7913
    %8001 = vmatprep.subr.bf16.mxu0 0
    %8002 = vmatpush2.bf16.msra.mxu0 0
    %8003 = vmatprep.subr.bf16.mxu0 0
    %8004 = vmatpush2.bf16.msra.mxu0 0
    %8005 = vmatprep.subr.bf16.mxu0 0
    %8006 = vmatpush2.bf16.msra.mxu0 0
    %8007 = vmatprep.subr.bf16.mxu0 0
    %8008 = vmatpush2.bf16.msra.mxu0 0
    %8009 = vmatprep.subr.bf16.mxu0 0
    %8010 = vmatpush2.bf16.msra.mxu0 0
    %8011 = vmatprep.subr.bf16.mxu0 0
    %8012 = vmatpush2.bf16.msra.mxu0 0
    %8013 = vmatprep.subr.bf16.mxu0 0
    %8014 = vmatpush2.bf16.msra.mxu0 0
    %8015 = vmatprep.subr.bf16.mxu0 0
    %8016 = vmatpush2.bf16.msra.mxu0 0
    %8017 = vmatprep.mubr.bf16.mxu0 0
    %8018 = vmatmul.mubr.bf16.gmra.mxu0 %v7751
    %v8019 = vpop.f32.mrf.mxu0
    %v8020 = vadd.f32 %v7980, %v8019
    %v8021 = vpop.f32.mrf.mxu0
    %v8022 = vpop.f32.mrf.mxu0
    %v8023 = vpop.f32.mrf.mxu0
    %8024 = vdwg.mxu0
    %v8025 = vadd.f32 %v7661, %v8020
    %v8026 = vpack.c.bf16 %v8025, %v8025
    %v8027 = vld [vmem:[%s35] sm:$0xff]
    %v8028 = vld [vmem:[%s35 + $0x8] sm:$0xff]
    %v8029 = vpack.c.bf16 %v8028, %v8027
    %v8031 = vsel %vm3623, %v8029, 0
    %v8034 = vsel %vm3627, %v8026, 0
    %8036 = vmatprep.subr.bf16.mxu0 0
    %8037 = vmatpush1.bf16.msra.mxu0 0
    %8038 = vmatprep.subr.bf16.mxu0 0
    %8039 = vmatpush1.bf16.msra.mxu0 0
    %8040 = vmatprep.subr.bf16.mxu0 0
    %8041 = vmatpush1.bf16.msra.mxu0 0
    %8042 = vmatprep.subr.bf16.mxu0 0
    %8043 = vmatpush1.bf16.msra.mxu0 0
    %8044 = vmatprep.subr.bf16.mxu0 0
    %8045 = vmatpush1.bf16.msra.mxu0 0
    %8046 = vmatprep.subr.bf16.mxu0 0
    %8047 = vmatpush1.bf16.msra.mxu0 0
    %8048 = vmatprep.subr.bf16.mxu0 0
    %8049 = vmatpush1.bf16.msra.mxu0 0
    %8050 = vmatprep.subr.bf16.mxu0 0
    %8051 = vmatpush1.bf16.msra.mxu0 %v8034
    %8052 = vmatprep.subr.bf16.mxu0 0
    %8053 = vmatpush2.bf16.msra.mxu0 0
    %8054 = vmatprep.subr.bf16.mxu0 0
    %8055 = vmatpush2.bf16.msra.mxu0 0
    %8056 = vmatprep.subr.bf16.mxu0 0
    %8057 = vmatpush2.bf16.msra.mxu0 0
    %8058 = vmatprep.subr.bf16.mxu0 0
    %8059 = vmatpush2.bf16.msra.mxu0 0
    %8060 = vmatprep.subr.bf16.mxu0 0
    %8061 = vmatpush2.bf16.msra.mxu0 0
    %8062 = vmatprep.subr.bf16.mxu0 0
    %8063 = vmatpush2.bf16.msra.mxu0 0
    %8064 = vmatprep.subr.bf16.mxu0 0
    %8065 = vmatpush2.bf16.msra.mxu0 0
    %8066 = vmatprep.subr.bf16.mxu0 0
    %8067 = vmatpush2.bf16.msra.mxu0 0
    %8068 = vmatprep.mubr.bf16.mxu0 0
    %8069 = vmatmul.mubr.bf16.gmra.mxu0 %v8031
    %v8070 = vpop.f32.mrf.mxu0
    %v8071 = vadd.f32 0.0, %v8070
    %v8072 = vpop.f32.mrf.mxu0
    %v8073 = vpop.f32.mrf.mxu0
    %v8074 = vadd.f32 0.0, %v8073
    %v8075 = vpop.f32.mrf.mxu0
    %8076 = vdwg.mxu0
    %v8077 = vpack.c.bf16 %v8074, %v8071
    %v8078 = vld [vmem:[%s37] sm:$0xf]
    %v8079 = vld [vmem:[%s37 + $0x4] sm:$0xf]
    %v8080 = vld [vmem:[%s37 + $0x8] sm:$0xf]
    %v8081 = vld [vmem:[%s37 + $0xc] sm:$0xf]
    %v8082 = vld [vmem:[%s37 + $0x10] sm:$0xf]
    %v8083 = vld [vmem:[%s37 + $0x14] sm:$0xf]
    %v8084 = vld [vmem:[%s37 + $0x18] sm:$0xf]
    %v8085 = vld [vmem:[%s37 + $0x1c] sm:$0xf]
    %v8086 = vld [vmem:[%s37 + $0x20] sm:$0xf]
    %v8087 = vld [vmem:[%s37 + $0x24] sm:$0xf]
    %v8088 = vld [vmem:[%s37 + $0x28] sm:$0xf]
    %v8089 = vld [vmem:[%s37 + $0x2c] sm:$0xf]
    %v8090 = vld [vmem:[%s37 + $0x30] sm:$0xf]
    %v8091 = vld [vmem:[%s37 + $0x34] sm:$0xf]
    %v8092 = vld [vmem:[%s37 + $0x38] sm:$0xf]
    %v8093 = vld [vmem:[%s37 + $0x3c] sm:$0xf]
    %s8094 = scalar_lea.vmem %s35, 16
    %v8095 = vld [vmem:[%s8094] sm:$0xff]
    %v8096 = vld [vmem:[%s8094 + $0x8] sm:$0xff]
    %v8097 = vpack.c.bf16 %v8096, %v8095
    %v8099 = vsel %vm3623, %v8097, 0
    %8101 = vmatprep.subr.bf16.mxu0 0
    %8102 = vmatpush1.bf16.msra.mxu0 0
    %8103 = vmatprep.subr.bf16.mxu0 0
    %8104 = vmatpush1.bf16.msra.mxu0 0
    %8105 = vmatprep.subr.bf16.mxu0 0
    %8106 = vmatpush1.bf16.msra.mxu0 0
    %8107 = vmatprep.subr.bf16.mxu0 0
    %8108 = vmatpush1.bf16.msra.mxu0 0
    %8109 = vmatprep.subr.bf16.mxu0 0
    %8110 = vmatpush1.bf16.msra.mxu0 0
    %8111 = vmatprep.subr.bf16.mxu0 0
    %8112 = vmatpush1.bf16.msra.mxu0 0
    %8113 = vmatprep.subr.bf16.mxu0 0
    %8114 = vmatpush1.bf16.msra.mxu0 0
    %8115 = vmatprep.subr.bf16.mxu0 0
    %8116 = vmatpush1.bf16.msra.mxu0 %v8034
    %8117 = vmatprep.subr.bf16.mxu0 0
    %8118 = vmatpush2.bf16.msra.mxu0 0
    %8119 = vmatprep.subr.bf16.mxu0 0
    %8120 = vmatpush2.bf16.msra.mxu0 0
    %8121 = vmatprep.subr.bf16.mxu0 0
    %8122 = vmatpush2.bf16.msra.mxu0 0
    %8123 = vmatprep.subr.bf16.mxu0 0
    %8124 = vmatpush2.bf16.msra.mxu0 0
    %8125 = vmatprep.subr.bf16.mxu0 0
    %8126 = vmatpush2.bf16.msra.mxu0 0
    %8127 = vmatprep.subr.bf16.mxu0 0
    %8128 = vmatpush2.bf16.msra.mxu0 0
    %8129 = vmatprep.subr.bf16.mxu0 0
    %8130 = vmatpush2.bf16.msra.mxu0 0
    %8131 = vmatprep.subr.bf16.mxu0 0
    %8132 = vmatpush2.bf16.msra.mxu0 0
    %8133 = vmatprep.mubr.bf16.mxu0 0
    %8134 = vmatmul.mubr.bf16.gmra.mxu0 %v8099
    %v8135 = vpop.f32.mrf.mxu0
    %v8136 = vadd.f32 0.0, %v8135
    %v8137 = vpop.f32.mrf.mxu0
    %v8138 = vpop.f32.mrf.mxu0
    %v8139 = vadd.f32 0.0, %v8138
    %v8140 = vpop.f32.mrf.mxu0
    %8141 = vdwg.mxu0
    %v8142 = vpack.c.bf16 %v8139, %v8136
    %s8143 = scalar_lea.vmem %s37, 64
    %v8144 = vld [vmem:[%s8143] sm:$0xf]
    %v8145 = vld [vmem:[%s8143 + $0x4] sm:$0xf]
    %v8146 = vld [vmem:[%s8143 + $0x8] sm:$0xf]
    %v8147 = vld [vmem:[%s8143 + $0xc] sm:$0xf]
    %v8148 = vld [vmem:[%s8143 + $0x10] sm:$0xf]
    %v8149 = vld [vmem:[%s8143 + $0x14] sm:$0xf]
    %v8150 = vld [vmem:[%s8143 + $0x18] sm:$0xf]
    %v8151 = vld [vmem:[%s8143 + $0x1c] sm:$0xf]
    %v8152 = vld [vmem:[%s8143 + $0x20] sm:$0xf]
    %v8153 = vld [vmem:[%s8143 + $0x24] sm:$0xf]
    %v8154 = vld [vmem:[%s8143 + $0x28] sm:$0xf]
    %v8155 = vld [vmem:[%s8143 + $0x2c] sm:$0xf]
    %v8156 = vld [vmem:[%s8143 + $0x30] sm:$0xf]
    %v8157 = vld [vmem:[%s8143 + $0x34] sm:$0xf]
    %v8158 = vld [vmem:[%s8143 + $0x38] sm:$0xf]
    %v8159 = vld [vmem:[%s8143 + $0x3c] sm:$0xf]
    %v8176 = vunpack.c.l.b16 %v8144
    %v8177 = vunpack.c.l.b16 %v8145
    %v8178 = vunpack.c.l.b16 %v8146
    %v8179 = vunpack.c.l.b16 %v8147
    %v8180 = vunpack.c.l.b16 %v8148
    %v8181 = vunpack.c.l.b16 %v8149
    %v8182 = vunpack.c.l.b16 %v8150
    %v8183 = vunpack.c.l.b16 %v8151
    %v8184 = vunpack.c.l.b16 %v8152
    %v8185 = vunpack.c.l.b16 %v8153
    %v8186 = vunpack.c.l.b16 %v8154
    %v8187 = vunpack.c.l.b16 %v8155
    %v8188 = vunpack.c.l.b16 %v8156
    %v8189 = vunpack.c.l.b16 %v8157
    %v8190 = vunpack.c.l.b16 %v8158
    %v8191 = vunpack.c.l.b16 %v8159
    %v8192 = vpack.c.b16 %v8177, %v8176
    %v8193 = vpack.c.b16 %v8179, %v8178
    %v8194 = vpack.c.b16 %v8181, %v8180
    %v8195 = vpack.c.b16 %v8183, %v8182
    %v8196 = vpack.c.b16 %v8185, %v8184
    %v8197 = vpack.c.b16 %v8187, %v8186
    %v8198 = vpack.c.b16 %v8189, %v8188
    %v8199 = vpack.c.b16 %v8191, %v8190
    %8208 = vmatprep.subr.bf16.mxu0 0
    %8209 = vmatpush1.bf16.msra.mxu0 %v8199
    %8210 = vmatprep.subr.bf16.mxu0 0
    %8211 = vmatpush1.bf16.msra.mxu0 %v8198
    %8212 = vmatprep.subr.bf16.mxu0 0
    %8213 = vmatpush1.bf16.msra.mxu0 %v8197
    %8214 = vmatprep.subr.bf16.mxu0 0
    %8215 = vmatpush1.bf16.msra.mxu0 %v8196
    %8216 = vmatprep.subr.bf16.mxu0 0
    %8217 = vmatpush1.bf16.msra.mxu0 %v8195
    %8218 = vmatprep.subr.bf16.mxu0 0
    %8219 = vmatpush1.bf16.msra.mxu0 %v8194
    %8220 = vmatprep.subr.bf16.mxu0 0
    %8221 = vmatpush1.bf16.msra.mxu0 %v8193
    %8222 = vmatprep.subr.bf16.mxu0 0
    %8223 = vmatpush1.bf16.msra.mxu0 %v8192
    %8224 = vmatprep.subr.bf16.mxu0 0
    %8225 = vmatpush2.bf16.msra.mxu0 0
    %8226 = vmatprep.subr.bf16.mxu0 0
    %8227 = vmatpush2.bf16.msra.mxu0 0
    %8228 = vmatprep.subr.bf16.mxu0 0
    %8229 = vmatpush2.bf16.msra.mxu0 0
    %8230 = vmatprep.subr.bf16.mxu0 0
    %8231 = vmatpush2.bf16.msra.mxu0 0
    %8232 = vmatprep.subr.bf16.mxu0 0
    %8233 = vmatpush2.bf16.msra.mxu0 0
    %8234 = vmatprep.subr.bf16.mxu0 0
    %8235 = vmatpush2.bf16.msra.mxu0 0
    %8236 = vmatprep.subr.bf16.mxu0 0
    %8237 = vmatpush2.bf16.msra.mxu0 0
    %8238 = vmatprep.subr.bf16.mxu0 0
    %8239 = vmatpush2.bf16.msra.mxu0 0
    %8240 = vmatprep.mubr.bf16.mxu0 0
    %8241 = vmatmul.mubr.bf16.gmra.mxu0 %v8142
    %v8242 = vpop.f32.mrf.mxu0
    %v8243 = vadd.f32 0.0, %v8242
    %v8244 = vpop.f32.mrf.mxu0
    %v8245 = vpop.f32.mrf.mxu0
    %v8246 = vadd.f32 0.0, %v8245
    %v8247 = vpop.f32.mrf.mxu0
    %8248 = vdwg.mxu0
    %v8265 = vunpack.c.l.b16 %v8078
    %v8266 = vunpack.c.l.b16 %v8079
    %v8267 = vunpack.c.l.b16 %v8080
    %v8268 = vunpack.c.l.b16 %v8081
    %v8269 = vunpack.c.l.b16 %v8082
    %v8270 = vunpack.c.l.b16 %v8083
    %v8271 = vunpack.c.l.b16 %v8084
    %v8272 = vunpack.c.l.b16 %v8085
    %v8273 = vunpack.c.l.b16 %v8086
    %v8274 = vunpack.c.l.b16 %v8087
    %v8275 = vunpack.c.l.b16 %v8088
    %v8276 = vunpack.c.l.b16 %v8089
    %v8277 = vunpack.c.l.b16 %v8090
    %v8278 = vunpack.c.l.b16 %v8091
    %v8279 = vunpack.c.l.b16 %v8092
    %v8280 = vunpack.c.l.b16 %v8093
    %v8281 = vpack.c.b16 %v8266, %v8265
    %v8282 = vpack.c.b16 %v8268, %v8267
    %v8283 = vpack.c.b16 %v8270, %v8269
    %v8284 = vpack.c.b16 %v8272, %v8271
    %v8285 = vpack.c.b16 %v8274, %v8273
    %v8286 = vpack.c.b16 %v8276, %v8275
    %v8287 = vpack.c.b16 %v8278, %v8277
    %v8288 = vpack.c.b16 %v8280, %v8279
    %8297 = vmatprep.subr.bf16.mxu0 0
    %8298 = vmatpush1.bf16.msra.mxu0 %v8288
    %8299 = vmatprep.subr.bf16.mxu0 0
    %8300 = vmatpush1.bf16.msra.mxu0 %v8287
    %8301 = vmatprep.subr.bf16.mxu0 0
    %8302 = vmatpush1.bf16.msra.mxu0 %v8286
    %8303 = vmatprep.subr.bf16.mxu0 0
    %8304 = vmatpush1.bf16.msra.mxu0 %v8285
    %8305 = vmatprep.subr.bf16.mxu0 0
    %8306 = vmatpush1.bf16.msra.mxu0 %v8284
    %8307 = vmatprep.subr.bf16.mxu0 0
    %8308 = vmatpush1.bf16.msra.mxu0 %v8283
    %8309 = vmatprep.subr.bf16.mxu0 0
    %8310 = vmatpush1.bf16.msra.mxu0 %v8282
    %8311 = vmatprep.subr.bf16.mxu0 0
    %8312 = vmatpush1.bf16.msra.mxu0 %v8281
    %8313 = vmatprep.subr.bf16.mxu0 0
    %8314 = vmatpush2.bf16.msra.mxu0 0
    %8315 = vmatprep.subr.bf16.mxu0 0
    %8316 = vmatpush2.bf16.msra.mxu0 0
    %8317 = vmatprep.subr.bf16.mxu0 0
    %8318 = vmatpush2.bf16.msra.mxu0 0
    %8319 = vmatprep.subr.bf16.mxu0 0
    %8320 = vmatpush2.bf16.msra.mxu0 0
    %8321 = vmatprep.subr.bf16.mxu0 0
    %8322 = vmatpush2.bf16.msra.mxu0 0
    %8323 = vmatprep.subr.bf16.mxu0 0
    %8324 = vmatpush2.bf16.msra.mxu0 0
    %8325 = vmatprep.subr.bf16.mxu0 0
    %8326 = vmatpush2.bf16.msra.mxu0 0
    %8327 = vmatprep.subr.bf16.mxu0 0
    %8328 = vmatpush2.bf16.msra.mxu0 0
    %8329 = vmatprep.mubr.bf16.mxu0 0
    %8330 = vmatmul.mubr.bf16.gmra.mxu0 %v8077
    %v8331 = vpop.f32.mrf.mxu0
    %v8332 = vadd.f32 %v8243, %v8331
    %v8333 = vpop.f32.mrf.mxu0
    %v8334 = vpop.f32.mrf.mxu0
    %v8335 = vadd.f32 %v8246, %v8334
    %v8336 = vpop.f32.mrf.mxu0
    %8337 = vdwg.mxu0
    %s8338 = scalar_lea.vmem %s35, 32
    %v8339 = vld [vmem:[%s8338] sm:$0xff]
    %v8340 = vld [vmem:[%s8338 + $0x8] sm:$0xff]
    %v8341 = vpack.c.bf16 %v8340, %v8339
    %v8343 = vsel %vm3623, %v8341, 0
    %8345 = vmatprep.subr.bf16.mxu0 0
    %8346 = vmatpush1.bf16.msra.mxu0 0
    %8347 = vmatprep.subr.bf16.mxu0 0
    %8348 = vmatpush1.bf16.msra.mxu0 0
    %8349 = vmatprep.subr.bf16.mxu0 0
    %8350 = vmatpush1.bf16.msra.mxu0 0
    %8351 = vmatprep.subr.bf16.mxu0 0
    %8352 = vmatpush1.bf16.msra.mxu0 0
    %8353 = vmatprep.subr.bf16.mxu0 0
    %8354 = vmatpush1.bf16.msra.mxu0 0
    %8355 = vmatprep.subr.bf16.mxu0 0
    %8356 = vmatpush1.bf16.msra.mxu0 0
    %8357 = vmatprep.subr.bf16.mxu0 0
    %8358 = vmatpush1.bf16.msra.mxu0 0
    %8359 = vmatprep.subr.bf16.mxu0 0
    %8360 = vmatpush1.bf16.msra.mxu0 %v8034
    %8361 = vmatprep.subr.bf16.mxu0 0
    %8362 = vmatpush2.bf16.msra.mxu0 0
    %8363 = vmatprep.subr.bf16.mxu0 0
    %8364 = vmatpush2.bf16.msra.mxu0 0
    %8365 = vmatprep.subr.bf16.mxu0 0
    %8366 = vmatpush2.bf16.msra.mxu0 0
    %8367 = vmatprep.subr.bf16.mxu0 0
    %8368 = vmatpush2.bf16.msra.mxu0 0
    %8369 = vmatprep.subr.bf16.mxu0 0
    %8370 = vmatpush2.bf16.msra.mxu0 0
    %8371 = vmatprep.subr.bf16.mxu0 0
    %8372 = vmatpush2.bf16.msra.mxu0 0
    %8373 = vmatprep.subr.bf16.mxu0 0
    %8374 = vmatpush2.bf16.msra.mxu0 0
    %8375 = vmatprep.subr.bf16.mxu0 0
    %8376 = vmatpush2.bf16.msra.mxu0 0
    %8377 = vmatprep.mubr.bf16.mxu0 0
    %8378 = vmatmul.mubr.bf16.gmra.mxu0 %v8343
    %v8379 = vpop.f32.mrf.mxu0
    %v8380 = vadd.f32 0.0, %v8379
    %v8381 = vpop.f32.mrf.mxu0
    %v8382 = vpop.f32.mrf.mxu0
    %v8383 = vadd.f32 0.0, %v8382
    %v8384 = vpop.f32.mrf.mxu0
    %8385 = vdwg.mxu0
    %v8386 = vpack.c.bf16 %v8383, %v8380
    %s8387 = scalar_lea.vmem %s37, 128
    %v8388 = vld [vmem:[%s8387] sm:$0xf]
    %v8389 = vld [vmem:[%s8387 + $0x4] sm:$0xf]
    %v8390 = vld [vmem:[%s8387 + $0x8] sm:$0xf]
    %v8391 = vld [vmem:[%s8387 + $0xc] sm:$0xf]
    %v8392 = vld [vmem:[%s8387 + $0x10] sm:$0xf]
    %v8393 = vld [vmem:[%s8387 + $0x14] sm:$0xf]
    %v8394 = vld [vmem:[%s8387 + $0x18] sm:$0xf]
    %v8395 = vld [vmem:[%s8387 + $0x1c] sm:$0xf]
    %v8396 = vld [vmem:[%s8387 + $0x20] sm:$0xf]
    %v8397 = vld [vmem:[%s8387 + $0x24] sm:$0xf]
    %v8398 = vld [vmem:[%s8387 + $0x28] sm:$0xf]
    %v8399 = vld [vmem:[%s8387 + $0x2c] sm:$0xf]
    %v8400 = vld [vmem:[%s8387 + $0x30] sm:$0xf]
    %v8401 = vld [vmem:[%s8387 + $0x34] sm:$0xf]
    %v8402 = vld [vmem:[%s8387 + $0x38] sm:$0xf]
    %v8403 = vld [vmem:[%s8387 + $0x3c] sm:$0xf]
    %v8420 = vunpack.c.l.b16 %v8388
    %v8421 = vunpack.c.l.b16 %v8389
    %v8422 = vunpack.c.l.b16 %v8390
    %v8423 = vunpack.c.l.b16 %v8391
    %v8424 = vunpack.c.l.b16 %v8392
    %v8425 = vunpack.c.l.b16 %v8393
    %v8426 = vunpack.c.l.b16 %v8394
    %v8427 = vunpack.c.l.b16 %v8395
    %v8428 = vunpack.c.l.b16 %v8396
    %v8429 = vunpack.c.l.b16 %v8397
    %v8430 = vunpack.c.l.b16 %v8398
    %v8431 = vunpack.c.l.b16 %v8399
    %v8432 = vunpack.c.l.b16 %v8400
    %v8433 = vunpack.c.l.b16 %v8401
    %v8434 = vunpack.c.l.b16 %v8402
    %v8435 = vunpack.c.l.b16 %v8403
    %v8436 = vpack.c.b16 %v8421, %v8420
    %v8437 = vpack.c.b16 %v8423, %v8422
    %v8438 = vpack.c.b16 %v8425, %v8424
    %v8439 = vpack.c.b16 %v8427, %v8426
    %v8440 = vpack.c.b16 %v8429, %v8428
    %v8441 = vpack.c.b16 %v8431, %v8430
    %v8442 = vpack.c.b16 %v8433, %v8432
    %v8443 = vpack.c.b16 %v8435, %v8434
    %8452 = vmatprep.subr.bf16.mxu0 0
    %8453 = vmatpush1.bf16.msra.mxu0 %v8443
    %8454 = vmatprep.subr.bf16.mxu0 0
    %8455 = vmatpush1.bf16.msra.mxu0 %v8442
    %8456 = vmatprep.subr.bf16.mxu0 0
    %8457 = vmatpush1.bf16.msra.mxu0 %v8441
    %8458 = vmatprep.subr.bf16.mxu0 0
    %8459 = vmatpush1.bf16.msra.mxu0 %v8440
    %8460 = vmatprep.subr.bf16.mxu0 0
    %8461 = vmatpush1.bf16.msra.mxu0 %v8439
    %8462 = vmatprep.subr.bf16.mxu0 0
    %8463 = vmatpush1.bf16.msra.mxu0 %v8438
    %8464 = vmatprep.subr.bf16.mxu0 0
    %8465 = vmatpush1.bf16.msra.mxu0 %v8437
    %8466 = vmatprep.subr.bf16.mxu0 0
    %8467 = vmatpush1.bf16.msra.mxu0 %v8436
    %8468 = vmatprep.subr.bf16.mxu0 0
    %8469 = vmatpush2.bf16.msra.mxu0 0
    %8470 = vmatprep.subr.bf16.mxu0 0
    %8471 = vmatpush2.bf16.msra.mxu0 0
    %8472 = vmatprep.subr.bf16.mxu0 0
    %8473 = vmatpush2.bf16.msra.mxu0 0
    %8474 = vmatprep.subr.bf16.mxu0 0
    %8475 = vmatpush2.bf16.msra.mxu0 0
    %8476 = vmatprep.subr.bf16.mxu0 0
    %8477 = vmatpush2.bf16.msra.mxu0 0
    %8478 = vmatprep.subr.bf16.mxu0 0
    %8479 = vmatpush2.bf16.msra.mxu0 0
    %8480 = vmatprep.subr.bf16.mxu0 0
    %8481 = vmatpush2.bf16.msra.mxu0 0
    %8482 = vmatprep.subr.bf16.mxu0 0
    %8483 = vmatpush2.bf16.msra.mxu0 0
    %8484 = vmatprep.mubr.bf16.mxu0 0
    %8485 = vmatmul.mubr.bf16.gmra.mxu0 %v8386
    %v8486 = vpop.f32.mrf.mxu0
    %v8487 = vadd.f32 0.0, %v8486
    %v8488 = vpop.f32.mrf.mxu0
    %v8489 = vpop.f32.mrf.mxu0
    %v8490 = vadd.f32 0.0, %v8489
    %v8491 = vpop.f32.mrf.mxu0
    %8492 = vdwg.mxu0
    %v8493 = vadd.f32 %v8332, %v8487
    %v8494 = vadd.f32 %v8335, %v8490
    %s8495 = scalar_lea.vmem %s35, 48
    %v8496 = vld [vmem:[%s8495] sm:$0xff]
    %v8497 = vld [vmem:[%s8495 + $0x8] sm:$0xff]
    %v8498 = vpack.c.bf16 %v8497, %v8496
    %v8500 = vsel %vm3623, %v8498, 0
    %8502 = vmatprep.subr.bf16.mxu0 0
    %8503 = vmatpush1.bf16.msra.mxu0 0
    %8504 = vmatprep.subr.bf16.mxu0 0
    %8505 = vmatpush1.bf16.msra.mxu0 0
    %8506 = vmatprep.subr.bf16.mxu0 0
    %8507 = vmatpush1.bf16.msra.mxu0 0
    %8508 = vmatprep.subr.bf16.mxu0 0
    %8509 = vmatpush1.bf16.msra.mxu0 0
    %8510 = vmatprep.subr.bf16.mxu0 0
    %8511 = vmatpush1.bf16.msra.mxu0 0
    %8512 = vmatprep.subr.bf16.mxu0 0
    %8513 = vmatpush1.bf16.msra.mxu0 0
    %8514 = vmatprep.subr.bf16.mxu0 0
    %8515 = vmatpush1.bf16.msra.mxu0 0
    %8516 = vmatprep.subr.bf16.mxu0 0
    %8517 = vmatpush1.bf16.msra.mxu0 %v8034
    %8518 = vmatprep.subr.bf16.mxu0 0
    %8519 = vmatpush2.bf16.msra.mxu0 0
    %8520 = vmatprep.subr.bf16.mxu0 0
    %8521 = vmatpush2.bf16.msra.mxu0 0
    %8522 = vmatprep.subr.bf16.mxu0 0
    %8523 = vmatpush2.bf16.msra.mxu0 0
    %8524 = vmatprep.subr.bf16.mxu0 0
    %8525 = vmatpush2.bf16.msra.mxu0 0
    %8526 = vmatprep.subr.bf16.mxu0 0
    %8527 = vmatpush2.bf16.msra.mxu0 0
    %8528 = vmatprep.subr.bf16.mxu0 0
    %8529 = vmatpush2.bf16.msra.mxu0 0
    %8530 = vmatprep.subr.bf16.mxu0 0
    %8531 = vmatpush2.bf16.msra.mxu0 0
    %8532 = vmatprep.subr.bf16.mxu0 0
    %8533 = vmatpush2.bf16.msra.mxu0 0
    %8534 = vmatprep.mubr.bf16.mxu0 0
    %8535 = vmatmul.mubr.bf16.gmra.mxu0 %v8500
    %v8536 = vpop.f32.mrf.mxu0
    %v8537 = vadd.f32 0.0, %v8536
    %v8538 = vpop.f32.mrf.mxu0
    %v8539 = vpop.f32.mrf.mxu0
    %v8540 = vadd.f32 0.0, %v8539
    %v8541 = vpop.f32.mrf.mxu0
    %8542 = vdwg.mxu0
    %v8543 = vpack.c.bf16 %v8540, %v8537
    %s8544 = scalar_lea.vmem %s37, 192
    %v8545 = vld [vmem:[%s8544] sm:$0xf]
    %v8546 = vld [vmem:[%s8544 + $0x4] sm:$0xf]
    %v8547 = vld [vmem:[%s8544 + $0x8] sm:$0xf]
    %v8548 = vld [vmem:[%s8544 + $0xc] sm:$0xf]
    %v8549 = vld [vmem:[%s8544 + $0x10] sm:$0xf]
    %v8550 = vld [vmem:[%s8544 + $0x14] sm:$0xf]
    %v8551 = vld [vmem:[%s8544 + $0x18] sm:$0xf]
    %v8552 = vld [vmem:[%s8544 + $0x1c] sm:$0xf]
    %v8553 = vld [vmem:[%s8544 + $0x20] sm:$0xf]
    %v8554 = vld [vmem:[%s8544 + $0x24] sm:$0xf]
    %v8555 = vld [vmem:[%s8544 + $0x28] sm:$0xf]
    %v8556 = vld [vmem:[%s8544 + $0x2c] sm:$0xf]
    %v8557 = vld [vmem:[%s8544 + $0x30] sm:$0xf]
    %v8558 = vld [vmem:[%s8544 + $0x34] sm:$0xf]
    %v8559 = vld [vmem:[%s8544 + $0x38] sm:$0xf]
    %v8560 = vld [vmem:[%s8544 + $0x3c] sm:$0xf]
    %v8577 = vunpack.c.l.b16 %v8545
    %v8578 = vunpack.c.l.b16 %v8546
    %v8579 = vunpack.c.l.b16 %v8547
    %v8580 = vunpack.c.l.b16 %v8548
    %v8581 = vunpack.c.l.b16 %v8549
    %v8582 = vunpack.c.l.b16 %v8550
    %v8583 = vunpack.c.l.b16 %v8551
    %v8584 = vunpack.c.l.b16 %v8552
    %v8585 = vunpack.c.l.b16 %v8553
    %v8586 = vunpack.c.l.b16 %v8554
    %v8587 = vunpack.c.l.b16 %v8555
    %v8588 = vunpack.c.l.b16 %v8556
    %v8589 = vunpack.c.l.b16 %v8557
    %v8590 = vunpack.c.l.b16 %v8558
    %v8591 = vunpack.c.l.b16 %v8559
    %v8592 = vunpack.c.l.b16 %v8560
    %v8593 = vpack.c.b16 %v8578, %v8577
    %v8594 = vpack.c.b16 %v8580, %v8579
    %v8595 = vpack.c.b16 %v8582, %v8581
    %v8596 = vpack.c.b16 %v8584, %v8583
    %v8597 = vpack.c.b16 %v8586, %v8585
    %v8598 = vpack.c.b16 %v8588, %v8587
    %v8599 = vpack.c.b16 %v8590, %v8589
    %v8600 = vpack.c.b16 %v8592, %v8591
    %8609 = vmatprep.subr.bf16.mxu0 0
    %8610 = vmatpush1.bf16.msra.mxu0 %v8600
    %8611 = vmatprep.subr.bf16.mxu0 0
    %8612 = vmatpush1.bf16.msra.mxu0 %v8599
    %8613 = vmatprep.subr.bf16.mxu0 0
    %8614 = vmatpush1.bf16.msra.mxu0 %v8598
    %8615 = vmatprep.subr.bf16.mxu0 0
    %8616 = vmatpush1.bf16.msra.mxu0 %v8597
    %8617 = vmatprep.subr.bf16.mxu0 0
    %8618 = vmatpush1.bf16.msra.mxu0 %v8596
    %8619 = vmatprep.subr.bf16.mxu0 0
    %8620 = vmatpush1.bf16.msra.mxu0 %v8595
    %8621 = vmatprep.subr.bf16.mxu0 0
    %8622 = vmatpush1.bf16.msra.mxu0 %v8594
    %8623 = vmatprep.subr.bf16.mxu0 0
    %8624 = vmatpush1.bf16.msra.mxu0 %v8593
    %8625 = vmatprep.subr.bf16.mxu0 0
    %8626 = vmatpush2.bf16.msra.mxu0 0
    %8627 = vmatprep.subr.bf16.mxu0 0
    %8628 = vmatpush2.bf16.msra.mxu0 0
    %8629 = vmatprep.subr.bf16.mxu0 0
    %8630 = vmatpush2.bf16.msra.mxu0 0
    %8631 = vmatprep.subr.bf16.mxu0 0
    %8632 = vmatpush2.bf16.msra.mxu0 0
    %8633 = vmatprep.subr.bf16.mxu0 0
    %8634 = vmatpush2.bf16.msra.mxu0 0
    %8635 = vmatprep.subr.bf16.mxu0 0
    %8636 = vmatpush2.bf16.msra.mxu0 0
    %8637 = vmatprep.subr.bf16.mxu0 0
    %8638 = vmatpush2.bf16.msra.mxu0 0
    %8639 = vmatprep.subr.bf16.mxu0 0
    %8640 = vmatpush2.bf16.msra.mxu0 0
    %8641 = vmatprep.mubr.bf16.mxu0 0
    %8642 = vmatmul.mubr.bf16.gmra.mxu0 %v8543
    %v8643 = vpop.f32.mrf.mxu0
    %v8644 = vadd.f32 0.0, %v8643
    %v8645 = vpop.f32.mrf.mxu0
    %v8646 = vpop.f32.mrf.mxu0
    %v8647 = vadd.f32 0.0, %v8646
    %v8648 = vpop.f32.mrf.mxu0
    %8649 = vdwg.mxu0
    %v8650 = vadd.f32 %v8493, %v8644
    %v8651 = vadd.f32 %v8494, %v8647
    %v8652 = vld [vmem:[%s39] sm:$0x1]
    %v8654 = vlaneseq
    %v8655 = vshrl.u32 %v8654, 7
    %v8656 = vsub.s32 0, %v8655
    %v8657 = vrot.slane %v8652, %v8656
    %v8659 = vadd.f32 %v8650, %v8657
    %v8660 = vadd.f32 %v8651, %v8657
    %v8661 = vmax.f32 %v8659, 0.0
    %v8662 = vmax.f32 %v8660, 0.0
    %v8663 = vpack.c.bf16 %v8662, %v8661
    %v8664 = vld [vmem:[%s41] sm:$0xff]
    %v8665 = vld [vmem:[%s41 + $0x8] sm:$0xff]
    %v8666 = vld [vmem:[%s41 + $0x10] sm:$0xff]
    %v8667 = vld [vmem:[%s41 + $0x18] sm:$0xff]
    %v8668 = vpack.c.bf16 %v8665, %v8664
    %v8669 = vpack.c.bf16 %v8667, %v8666
    %v8671 = vsel %vm2468, %v8668, 0
    %v8674 = vsel %vm2468, %v8669, 0
    %8676 = vmatprep.subr.bf16.mxu0 0
    %8677 = vmatpush1.bf16.msra.mxu0 0
    %8678 = vmatprep.subr.bf16.mxu0 0
    %8679 = vmatpush1.bf16.msra.mxu0 0
    %8680 = vmatprep.subr.bf16.mxu0 0
    %8681 = vmatpush1.bf16.msra.mxu0 0
    %8682 = vmatprep.subr.bf16.mxu0 0
    %8683 = vmatpush1.bf16.msra.mxu0 0
    %8684 = vmatprep.subr.bf16.mxu0 0
    %8685 = vmatpush1.bf16.msra.mxu0 0
    %8686 = vmatprep.subr.bf16.mxu0 0
    %8687 = vmatpush1.bf16.msra.mxu0 0
    %8688 = vmatprep.subr.bf16.mxu0 0
    %8689 = vmatpush1.bf16.msra.mxu0 0
    %8690 = vmatprep.subr.bf16.mxu0 0
    %8691 = vmatpush1.bf16.msra.mxu0 %v8663
    %8692 = vmatprep.subr.bf16.mxu0 0
    %8693 = vmatpush2.bf16.msra.mxu0 0
    %8694 = vmatprep.subr.bf16.mxu0 0
    %8695 = vmatpush2.bf16.msra.mxu0 0
    %8696 = vmatprep.subr.bf16.mxu0 0
    %8697 = vmatpush2.bf16.msra.mxu0 0
    %8698 = vmatprep.subr.bf16.mxu0 0
    %8699 = vmatpush2.bf16.msra.mxu0 0
    %8700 = vmatprep.subr.bf16.mxu0 0
    %8701 = vmatpush2.bf16.msra.mxu0 0
    %8702 = vmatprep.subr.bf16.mxu0 0
    %8703 = vmatpush2.bf16.msra.mxu0 0
    %8704 = vmatprep.subr.bf16.mxu0 0
    %8705 = vmatpush2.bf16.msra.mxu0 0
    %8706 = vmatprep.subr.bf16.mxu0 0
    %8707 = vmatpush2.bf16.msra.mxu0 0
    %8708 = vmatprep.mubr.bf16.mxu0 0
    %8709 = vmatmul.mubr.bf16.gmra.mxu0 %v8671
    %v8710 = vpop.f32.mrf.mxu0
    %v8711 = vadd.f32 0.0, %v8710
    %v8712 = vpop.f32.mrf.mxu0
    %v8713 = vpop.f32.mrf.mxu0
    %v8714 = vadd.f32 0.0, %v8713
    %v8715 = vpop.f32.mrf.mxu0
    %8716 = vmatprep.mubr.bf16.mxu0 0
    %8717 = vmatmul.mubr.bf16.gmra.mxu0 %v8674
    %v8718 = vpop.f32.mrf.mxu0
    %v8719 = vadd.f32 0.0, %v8718
    %v8720 = vpop.f32.mrf.mxu0
    %v8721 = vpop.f32.mrf.mxu0
    %v8722 = vadd.f32 0.0, %v8721
    %v8723 = vpop.f32.mrf.mxu0
    %8724 = vdwg.mxu0
    %v8725 = vpack.c.bf16 %v8714, %v8711
    %v8726 = vpack.c.bf16 %v8722, %v8719
    %v8727 = vld [vmem:[#allocation24] sm:$0xf]
    %v8728 = vld [vmem:[#allocation24 + $0x4] sm:$0xf]
    %v8729 = vld [vmem:[#allocation24 + $0x8] sm:$0xf]
    %v8730 = vld [vmem:[#allocation24 + $0xc] sm:$0xf]
    %v8731 = vld [vmem:[#allocation24 + $0x10] sm:$0xf]
    %v8732 = vld [vmem:[#allocation24 + $0x14] sm:$0xf]
    %v8733 = vld [vmem:[#allocation24 + $0x18] sm:$0xf]
    %v8734 = vld [vmem:[#allocation24 + $0x1c] sm:$0xf]
    %v8735 = vld [vmem:[#allocation24 + $0x20] sm:$0xf]
    %v8736 = vld [vmem:[#allocation24 + $0x24] sm:$0xf]
    %v8737 = vld [vmem:[#allocation24 + $0x28] sm:$0xf]
    %v8738 = vld [vmem:[#allocation24 + $0x2c] sm:$0xf]
    %v8739 = vld [vmem:[#allocation24 + $0x30] sm:$0xf]
    %v8740 = vld [vmem:[#allocation24 + $0x34] sm:$0xf]
    %v8741 = vld [vmem:[#allocation24 + $0x38] sm:$0xf]
    %v8742 = vld [vmem:[#allocation24 + $0x3c] sm:$0xf]
    %s8743 = scalar_lea.vmem %s41, 32
    %v8744 = vld [vmem:[%s8743] sm:$0xff]
    %v8745 = vld [vmem:[%s8743 + $0x8] sm:$0xff]
    %v8746 = vld [vmem:[%s8743 + $0x10] sm:$0xff]
    %v8747 = vld [vmem:[%s8743 + $0x18] sm:$0xff]
    %v8748 = vpack.c.bf16 %v8745, %v8744
    %v8749 = vpack.c.bf16 %v8747, %v8746
    %v8751 = vsel %vm2468, %v8748, 0
    %v8754 = vsel %vm2468, %v8749, 0
    %8756 = vmatprep.subr.bf16.mxu0 0
    %8757 = vmatpush1.bf16.msra.mxu0 0
    %8758 = vmatprep.subr.bf16.mxu0 0
    %8759 = vmatpush1.bf16.msra.mxu0 0
    %8760 = vmatprep.subr.bf16.mxu0 0
    %8761 = vmatpush1.bf16.msra.mxu0 0
    %8762 = vmatprep.subr.bf16.mxu0 0
    %8763 = vmatpush1.bf16.msra.mxu0 0
    %8764 = vmatprep.subr.bf16.mxu0 0
    %8765 = vmatpush1.bf16.msra.mxu0 0
    %8766 = vmatprep.subr.bf16.mxu0 0
    %8767 = vmatpush1.bf16.msra.mxu0 0
    %8768 = vmatprep.subr.bf16.mxu0 0
    %8769 = vmatpush1.bf16.msra.mxu0 0
    %8770 = vmatprep.subr.bf16.mxu0 0
    %8771 = vmatpush1.bf16.msra.mxu0 %v8663
    %8772 = vmatprep.subr.bf16.mxu0 0
    %8773 = vmatpush2.bf16.msra.mxu0 0
    %8774 = vmatprep.subr.bf16.mxu0 0
    %8775 = vmatpush2.bf16.msra.mxu0 0
    %8776 = vmatprep.subr.bf16.mxu0 0
    %8777 = vmatpush2.bf16.msra.mxu0 0
    %8778 = vmatprep.subr.bf16.mxu0 0
    %8779 = vmatpush2.bf16.msra.mxu0 0
    %8780 = vmatprep.subr.bf16.mxu0 0
    %8781 = vmatpush2.bf16.msra.mxu0 0
    %8782 = vmatprep.subr.bf16.mxu0 0
    %8783 = vmatpush2.bf16.msra.mxu0 0
    %8784 = vmatprep.subr.bf16.mxu0 0
    %8785 = vmatpush2.bf16.msra.mxu0 0
    %8786 = vmatprep.subr.bf16.mxu0 0
    %8787 = vmatpush2.bf16.msra.mxu0 0
    %8788 = vmatprep.mubr.bf16.mxu0 0
    %8789 = vmatmul.mubr.bf16.gmra.mxu0 %v8751
    %v8790 = vpop.f32.mrf.mxu0
    %v8791 = vadd.f32 0.0, %v8790
    %v8792 = vpop.f32.mrf.mxu0
    %v8793 = vpop.f32.mrf.mxu0
    %v8794 = vadd.f32 0.0, %v8793
    %v8795 = vpop.f32.mrf.mxu0
    %8796 = vmatprep.mubr.bf16.mxu0 0
    %8797 = vmatmul.mubr.bf16.gmra.mxu0 %v8754
    %v8798 = vpop.f32.mrf.mxu0
    %v8799 = vadd.f32 0.0, %v8798
    %v8800 = vpop.f32.mrf.mxu0
    %v8801 = vpop.f32.mrf.mxu0
    %v8802 = vadd.f32 0.0, %v8801
    %v8803 = vpop.f32.mrf.mxu0
    %8804 = vdwg.mxu0
    %v8805 = vpack.c.bf16 %v8794, %v8791
    %v8806 = vpack.c.bf16 %v8802, %v8799
    %s8807 = scalar_lea.vmem [#allocation24], 64
    %v8808 = vld [vmem:[%s8807] sm:$0xf]
    %v8809 = vld [vmem:[%s8807 + $0x4] sm:$0xf]
    %v8810 = vld [vmem:[%s8807 + $0x8] sm:$0xf]
    %v8811 = vld [vmem:[%s8807 + $0xc] sm:$0xf]
    %v8812 = vld [vmem:[%s8807 + $0x10] sm:$0xf]
    %v8813 = vld [vmem:[%s8807 + $0x14] sm:$0xf]
    %v8814 = vld [vmem:[%s8807 + $0x18] sm:$0xf]
    %v8815 = vld [vmem:[%s8807 + $0x1c] sm:$0xf]
    %v8816 = vld [vmem:[%s8807 + $0x20] sm:$0xf]
    %v8817 = vld [vmem:[%s8807 + $0x24] sm:$0xf]
    %v8818 = vld [vmem:[%s8807 + $0x28] sm:$0xf]
    %v8819 = vld [vmem:[%s8807 + $0x2c] sm:$0xf]
    %v8820 = vld [vmem:[%s8807 + $0x30] sm:$0xf]
    %v8821 = vld [vmem:[%s8807 + $0x34] sm:$0xf]
    %v8822 = vld [vmem:[%s8807 + $0x38] sm:$0xf]
    %v8823 = vld [vmem:[%s8807 + $0x3c] sm:$0xf]
    %v8840 = vunpack.c.l.b16 %v8808
    %v8841 = vunpack.c.l.b16 %v8809
    %v8842 = vunpack.c.l.b16 %v8810
    %v8843 = vunpack.c.l.b16 %v8811
    %v8844 = vunpack.c.l.b16 %v8812
    %v8845 = vunpack.c.l.b16 %v8813
    %v8846 = vunpack.c.l.b16 %v8814
    %v8847 = vunpack.c.l.b16 %v8815
    %v8848 = vunpack.c.l.b16 %v8816
    %v8849 = vunpack.c.l.b16 %v8817
    %v8850 = vunpack.c.l.b16 %v8818
    %v8851 = vunpack.c.l.b16 %v8819
    %v8852 = vunpack.c.l.b16 %v8820
    %v8853 = vunpack.c.l.b16 %v8821
    %v8854 = vunpack.c.l.b16 %v8822
    %v8855 = vunpack.c.l.b16 %v8823
    %v8856 = vpack.c.b16 %v8841, %v8840
    %v8857 = vpack.c.b16 %v8843, %v8842
    %v8858 = vpack.c.b16 %v8845, %v8844
    %v8859 = vpack.c.b16 %v8847, %v8846
    %v8860 = vpack.c.b16 %v8849, %v8848
    %v8861 = vpack.c.b16 %v8851, %v8850
    %v8862 = vpack.c.b16 %v8853, %v8852
    %v8863 = vpack.c.b16 %v8855, %v8854
    %8872 = vmatprep.subr.bf16.mxu0 0
    %8873 = vmatpush1.bf16.msra.mxu0 %v8863
    %8874 = vmatprep.subr.bf16.mxu0 0
    %8875 = vmatpush1.bf16.msra.mxu0 %v8862
    %8876 = vmatprep.subr.bf16.mxu0 0
    %8877 = vmatpush1.bf16.msra.mxu0 %v8861
    %8878 = vmatprep.subr.bf16.mxu0 0
    %8879 = vmatpush1.bf16.msra.mxu0 %v8860
    %8880 = vmatprep.subr.bf16.mxu0 0
    %8881 = vmatpush1.bf16.msra.mxu0 %v8859
    %8882 = vmatprep.subr.bf16.mxu0 0
    %8883 = vmatpush1.bf16.msra.mxu0 %v8858
    %8884 = vmatprep.subr.bf16.mxu0 0
    %8885 = vmatpush1.bf16.msra.mxu0 %v8857
    %8886 = vmatprep.subr.bf16.mxu0 0
    %8887 = vmatpush1.bf16.msra.mxu0 %v8856
    %8888 = vmatprep.subr.bf16.mxu0 0
    %8889 = vmatpush2.bf16.msra.mxu0 0
    %8890 = vmatprep.subr.bf16.mxu0 0
    %8891 = vmatpush2.bf16.msra.mxu0 0
    %8892 = vmatprep.subr.bf16.mxu0 0
    %8893 = vmatpush2.bf16.msra.mxu0 0
    %8894 = vmatprep.subr.bf16.mxu0 0
    %8895 = vmatpush2.bf16.msra.mxu0 0
    %8896 = vmatprep.subr.bf16.mxu0 0
    %8897 = vmatpush2.bf16.msra.mxu0 0
    %8898 = vmatprep.subr.bf16.mxu0 0
    %8899 = vmatpush2.bf16.msra.mxu0 0
    %8900 = vmatprep.subr.bf16.mxu0 0
    %8901 = vmatpush2.bf16.msra.mxu0 0
    %8902 = vmatprep.subr.bf16.mxu0 0
    %8903 = vmatpush2.bf16.msra.mxu0 0
    %8904 = vmatprep.mubr.bf16.mxu0 0
    %8905 = vmatmul.mubr.bf16.gmra.mxu0 %v8805
    %v8906 = vpop.f32.mrf.mxu0
    %v8907 = vadd.f32 0.0, %v8906
    %v8908 = vpop.f32.mrf.mxu0
    %v8909 = vpop.f32.mrf.mxu0
    %v8910 = vadd.f32 0.0, %v8909
    %v8911 = vpop.f32.mrf.mxu0
    %8912 = vmatprep.mubr.bf16.mxu0 0
    %8913 = vmatmul.mubr.bf16.gmra.mxu0 %v8806
    %v8914 = vpop.f32.mrf.mxu0
    %v8915 = vadd.f32 0.0, %v8914
    %v8916 = vpop.f32.mrf.mxu0
    %v8917 = vpop.f32.mrf.mxu0
    %v8918 = vadd.f32 0.0, %v8917
    %v8919 = vpop.f32.mrf.mxu0
    %8920 = vdwg.mxu0
    %v8937 = vunpack.c.l.b16 %v8727
    %v8938 = vunpack.c.l.b16 %v8728
    %v8939 = vunpack.c.l.b16 %v8729
    %v8940 = vunpack.c.l.b16 %v8730
    %v8941 = vunpack.c.l.b16 %v8731
    %v8942 = vunpack.c.l.b16 %v8732
    %v8943 = vunpack.c.l.b16 %v8733
    %v8944 = vunpack.c.l.b16 %v8734
    %v8945 = vunpack.c.l.b16 %v8735
    %v8946 = vunpack.c.l.b16 %v8736
    %v8947 = vunpack.c.l.b16 %v8737
    %v8948 = vunpack.c.l.b16 %v8738
    %v8949 = vunpack.c.l.b16 %v8739
    %v8950 = vunpack.c.l.b16 %v8740
    %v8951 = vunpack.c.l.b16 %v8741
    %v8952 = vunpack.c.l.b16 %v8742
    %v8953 = vpack.c.b16 %v8938, %v8937
    %v8954 = vpack.c.b16 %v8940, %v8939
    %v8955 = vpack.c.b16 %v8942, %v8941
    %v8956 = vpack.c.b16 %v8944, %v8943
    %v8957 = vpack.c.b16 %v8946, %v8945
    %v8958 = vpack.c.b16 %v8948, %v8947
    %v8959 = vpack.c.b16 %v8950, %v8949
    %v8960 = vpack.c.b16 %v8952, %v8951
    %8969 = vmatprep.subr.bf16.mxu0 0
    %8970 = vmatpush1.bf16.msra.mxu0 %v8960
    %8971 = vmatprep.subr.bf16.mxu0 0
    %8972 = vmatpush1.bf16.msra.mxu0 %v8959
    %8973 = vmatprep.subr.bf16.mxu0 0
    %8974 = vmatpush1.bf16.msra.mxu0 %v8958
    %8975 = vmatprep.subr.bf16.mxu0 0
    %8976 = vmatpush1.bf16.msra.mxu0 %v8957
    %8977 = vmatprep.subr.bf16.mxu0 0
    %8978 = vmatpush1.bf16.msra.mxu0 %v8956
    %8979 = vmatprep.subr.bf16.mxu0 0
    %8980 = vmatpush1.bf16.msra.mxu0 %v8955
    %8981 = vmatprep.subr.bf16.mxu0 0
    %8982 = vmatpush1.bf16.msra.mxu0 %v8954
    %8983 = vmatprep.subr.bf16.mxu0 0
    %8984 = vmatpush1.bf16.msra.mxu0 %v8953
    %8985 = vmatprep.subr.bf16.mxu0 0
    %8986 = vmatpush2.bf16.msra.mxu0 0
    %8987 = vmatprep.subr.bf16.mxu0 0
    %8988 = vmatpush2.bf16.msra.mxu0 0
    %8989 = vmatprep.subr.bf16.mxu0 0
    %8990 = vmatpush2.bf16.msra.mxu0 0
    %8991 = vmatprep.subr.bf16.mxu0 0
    %8992 = vmatpush2.bf16.msra.mxu0 0
    %8993 = vmatprep.subr.bf16.mxu0 0
    %8994 = vmatpush2.bf16.msra.mxu0 0
    %8995 = vmatprep.subr.bf16.mxu0 0
    %8996 = vmatpush2.bf16.msra.mxu0 0
    %8997 = vmatprep.subr.bf16.mxu0 0
    %8998 = vmatpush2.bf16.msra.mxu0 0
    %8999 = vmatprep.subr.bf16.mxu0 0
    %9000 = vmatpush2.bf16.msra.mxu0 0
    %9001 = vmatprep.mubr.bf16.mxu0 0
    %9002 = vmatmul.mubr.bf16.gmra.mxu0 %v8725
    %v9003 = vpop.f32.mrf.mxu0
    %v9004 = vadd.f32 %v8907, %v9003
    %v9005 = vpop.f32.mrf.mxu0
    %v9006 = vpop.f32.mrf.mxu0
    %v9007 = vadd.f32 %v8910, %v9006
    %v9008 = vpop.f32.mrf.mxu0
    %9009 = vmatprep.mubr.bf16.mxu0 0
    %9010 = vmatmul.mubr.bf16.gmra.mxu0 %v8726
    %v9011 = vpop.f32.mrf.mxu0
    %v9012 = vadd.f32 %v8915, %v9011
    %v9013 = vpop.f32.mrf.mxu0
    %v9014 = vpop.f32.mrf.mxu0
    %v9015 = vadd.f32 %v8918, %v9014
    %v9016 = vpop.f32.mrf.mxu0
    %9017 = vdwg.mxu0
    %s9018 = scalar_lea.vmem %s41, 64
    %v9019 = vld [vmem:[%s9018] sm:$0xff]
    %v9020 = vld [vmem:[%s9018 + $0x8] sm:$0xff]
    %v9021 = vld [vmem:[%s9018 + $0x10] sm:$0xff]
    %v9022 = vld [vmem:[%s9018 + $0x18] sm:$0xff]
    %v9023 = vpack.c.bf16 %v9020, %v9019
    %v9024 = vpack.c.bf16 %v9022, %v9021
    %v9026 = vsel %vm2468, %v9023, 0
    %v9029 = vsel %vm2468, %v9024, 0
    %9031 = vmatprep.subr.bf16.mxu0 0
    %9032 = vmatpush1.bf16.msra.mxu0 0
    %9033 = vmatprep.subr.bf16.mxu0 0
    %9034 = vmatpush1.bf16.msra.mxu0 0
    %9035 = vmatprep.subr.bf16.mxu0 0
    %9036 = vmatpush1.bf16.msra.mxu0 0
    %9037 = vmatprep.subr.bf16.mxu0 0
    %9038 = vmatpush1.bf16.msra.mxu0 0
    %9039 = vmatprep.subr.bf16.mxu0 0
    %9040 = vmatpush1.bf16.msra.mxu0 0
    %9041 = vmatprep.subr.bf16.mxu0 0
    %9042 = vmatpush1.bf16.msra.mxu0 0
    %9043 = vmatprep.subr.bf16.mxu0 0
    %9044 = vmatpush1.bf16.msra.mxu0 0
    %9045 = vmatprep.subr.bf16.mxu0 0
    %9046 = vmatpush1.bf16.msra.mxu0 %v8663
    %9047 = vmatprep.subr.bf16.mxu0 0
    %9048 = vmatpush2.bf16.msra.mxu0 0
    %9049 = vmatprep.subr.bf16.mxu0 0
    %9050 = vmatpush2.bf16.msra.mxu0 0
    %9051 = vmatprep.subr.bf16.mxu0 0
    %9052 = vmatpush2.bf16.msra.mxu0 0
    %9053 = vmatprep.subr.bf16.mxu0 0
    %9054 = vmatpush2.bf16.msra.mxu0 0
    %9055 = vmatprep.subr.bf16.mxu0 0
    %9056 = vmatpush2.bf16.msra.mxu0 0
    %9057 = vmatprep.subr.bf16.mxu0 0
    %9058 = vmatpush2.bf16.msra.mxu0 0
    %9059 = vmatprep.subr.bf16.mxu0 0
    %9060 = vmatpush2.bf16.msra.mxu0 0
    %9061 = vmatprep.subr.bf16.mxu0 0
    %9062 = vmatpush2.bf16.msra.mxu0 0
    %9063 = vmatprep.mubr.bf16.mxu0 0
    %9064 = vmatmul.mubr.bf16.gmra.mxu0 %v9026
    %v9065 = vpop.f32.mrf.mxu0
    %v9066 = vadd.f32 0.0, %v9065
    %v9067 = vpop.f32.mrf.mxu0
    %v9068 = vpop.f32.mrf.mxu0
    %v9069 = vadd.f32 0.0, %v9068
    %v9070 = vpop.f32.mrf.mxu0
    %9071 = vmatprep.mubr.bf16.mxu0 0
    %9072 = vmatmul.mubr.bf16.gmra.mxu0 %v9029
    %v9073 = vpop.f32.mrf.mxu0
    %v9074 = vadd.f32 0.0, %v9073
    %v9075 = vpop.f32.mrf.mxu0
    %v9076 = vpop.f32.mrf.mxu0
    %v9077 = vadd.f32 0.0, %v9076
    %v9078 = vpop.f32.mrf.mxu0
    %9079 = vdwg.mxu0
    %v9080 = vpack.c.bf16 %v9069, %v9066
    %v9081 = vpack.c.bf16 %v9077, %v9074
    %s9082 = scalar_lea.vmem [#allocation24], 128
    %v9083 = vld [vmem:[%s9082] sm:$0xf]
    %v9084 = vld [vmem:[%s9082 + $0x4] sm:$0xf]
    %v9085 = vld [vmem:[%s9082 + $0x8] sm:$0xf]
    %v9086 = vld [vmem:[%s9082 + $0xc] sm:$0xf]
    %v9087 = vld [vmem:[%s9082 + $0x10] sm:$0xf]
    %v9088 = vld [vmem:[%s9082 + $0x14] sm:$0xf]
    %v9089 = vld [vmem:[%s9082 + $0x18] sm:$0xf]
    %v9090 = vld [vmem:[%s9082 + $0x1c] sm:$0xf]
    %v9091 = vld [vmem:[%s9082 + $0x20] sm:$0xf]
    %v9092 = vld [vmem:[%s9082 + $0x24] sm:$0xf]
    %v9093 = vld [vmem:[%s9082 + $0x28] sm:$0xf]
    %v9094 = vld [vmem:[%s9082 + $0x2c] sm:$0xf]
    %v9095 = vld [vmem:[%s9082 + $0x30] sm:$0xf]
    %v9096 = vld [vmem:[%s9082 + $0x34] sm:$0xf]
    %v9097 = vld [vmem:[%s9082 + $0x38] sm:$0xf]
    %v9098 = vld [vmem:[%s9082 + $0x3c] sm:$0xf]
    %v9115 = vunpack.c.l.b16 %v9083
    %v9116 = vunpack.c.l.b16 %v9084
    %v9117 = vunpack.c.l.b16 %v9085
    %v9118 = vunpack.c.l.b16 %v9086
    %v9119 = vunpack.c.l.b16 %v9087
    %v9120 = vunpack.c.l.b16 %v9088
    %v9121 = vunpack.c.l.b16 %v9089
    %v9122 = vunpack.c.l.b16 %v9090
    %v9123 = vunpack.c.l.b16 %v9091
    %v9124 = vunpack.c.l.b16 %v9092
    %v9125 = vunpack.c.l.b16 %v9093
    %v9126 = vunpack.c.l.b16 %v9094
    %v9127 = vunpack.c.l.b16 %v9095
    %v9128 = vunpack.c.l.b16 %v9096
    %v9129 = vunpack.c.l.b16 %v9097
    %v9130 = vunpack.c.l.b16 %v9098
    %v9131 = vpack.c.b16 %v9116, %v9115
    %v9132 = vpack.c.b16 %v9118, %v9117
    %v9133 = vpack.c.b16 %v9120, %v9119
    %v9134 = vpack.c.b16 %v9122, %v9121
    %v9135 = vpack.c.b16 %v9124, %v9123
    %v9136 = vpack.c.b16 %v9126, %v9125
    %v9137 = vpack.c.b16 %v9128, %v9127
    %v9138 = vpack.c.b16 %v9130, %v9129
    %9147 = vmatprep.subr.bf16.mxu0 0
    %9148 = vmatpush1.bf16.msra.mxu0 %v9138
    %9149 = vmatprep.subr.bf16.mxu0 0
    %9150 = vmatpush1.bf16.msra.mxu0 %v9137
    %9151 = vmatprep.subr.bf16.mxu0 0
    %9152 = vmatpush1.bf16.msra.mxu0 %v9136
    %9153 = vmatprep.subr.bf16.mxu0 0
    %9154 = vmatpush1.bf16.msra.mxu0 %v9135
    %9155 = vmatprep.subr.bf16.mxu0 0
    %9156 = vmatpush1.bf16.msra.mxu0 %v9134
    %9157 = vmatprep.subr.bf16.mxu0 0
    %9158 = vmatpush1.bf16.msra.mxu0 %v9133
    %9159 = vmatprep.subr.bf16.mxu0 0
    %9160 = vmatpush1.bf16.msra.mxu0 %v9132
    %9161 = vmatprep.subr.bf16.mxu0 0
    %9162 = vmatpush1.bf16.msra.mxu0 %v9131
    %9163 = vmatprep.subr.bf16.mxu0 0
    %9164 = vmatpush2.bf16.msra.mxu0 0
    %9165 = vmatprep.subr.bf16.mxu0 0
    %9166 = vmatpush2.bf16.msra.mxu0 0
    %9167 = vmatprep.subr.bf16.mxu0 0
    %9168 = vmatpush2.bf16.msra.mxu0 0
    %9169 = vmatprep.subr.bf16.mxu0 0
    %9170 = vmatpush2.bf16.msra.mxu0 0
    %9171 = vmatprep.subr.bf16.mxu0 0
    %9172 = vmatpush2.bf16.msra.mxu0 0
    %9173 = vmatprep.subr.bf16.mxu0 0
    %9174 = vmatpush2.bf16.msra.mxu0 0
    %9175 = vmatprep.subr.bf16.mxu0 0
    %9176 = vmatpush2.bf16.msra.mxu0 0
    %9177 = vmatprep.subr.bf16.mxu0 0
    %9178 = vmatpush2.bf16.msra.mxu0 0
    %9179 = vmatprep.mubr.bf16.mxu0 0
    %9180 = vmatmul.mubr.bf16.gmra.mxu0 %v9080
    %v9181 = vpop.f32.mrf.mxu0
    %v9182 = vadd.f32 0.0, %v9181
    %v9183 = vpop.f32.mrf.mxu0
    %v9184 = vpop.f32.mrf.mxu0
    %v9185 = vadd.f32 0.0, %v9184
    %v9186 = vpop.f32.mrf.mxu0
    %9187 = vmatprep.mubr.bf16.mxu0 0
    %9188 = vmatmul.mubr.bf16.gmra.mxu0 %v9081
    %v9189 = vpop.f32.mrf.mxu0
    %v9190 = vadd.f32 0.0, %v9189
    %v9191 = vpop.f32.mrf.mxu0
    %v9192 = vpop.f32.mrf.mxu0
    %v9193 = vadd.f32 0.0, %v9192
    %v9194 = vpop.f32.mrf.mxu0
    %9195 = vdwg.mxu0
    %v9196 = vadd.f32 %v9004, %v9182
    %v9197 = vadd.f32 %v9007, %v9185
    %v9198 = vadd.f32 %v9012, %v9190
    %v9199 = vadd.f32 %v9015, %v9193
    %s9200 = scalar_lea.vmem %s41, 96
    %v9201 = vld [vmem:[%s9200] sm:$0xff]
    %v9202 = vld [vmem:[%s9200 + $0x8] sm:$0xff]
    %v9203 = vld [vmem:[%s9200 + $0x10] sm:$0xff]
    %v9204 = vld [vmem:[%s9200 + $0x18] sm:$0xff]
    %v9205 = vpack.c.bf16 %v9202, %v9201
    %v9206 = vpack.c.bf16 %v9204, %v9203
    %v9208 = vsel %vm2468, %v9205, 0
    %v9211 = vsel %vm2468, %v9206, 0
    %9213 = vmatprep.subr.bf16.mxu0 0
    %9214 = vmatpush1.bf16.msra.mxu0 0
    %9215 = vmatprep.subr.bf16.mxu0 0
    %9216 = vmatpush1.bf16.msra.mxu0 0
    %9217 = vmatprep.subr.bf16.mxu0 0
    %9218 = vmatpush1.bf16.msra.mxu0 0
    %9219 = vmatprep.subr.bf16.mxu0 0
    %9220 = vmatpush1.bf16.msra.mxu0 0
    %9221 = vmatprep.subr.bf16.mxu0 0
    %9222 = vmatpush1.bf16.msra.mxu0 0
    %9223 = vmatprep.subr.bf16.mxu0 0
    %9224 = vmatpush1.bf16.msra.mxu0 0
    %9225 = vmatprep.subr.bf16.mxu0 0
    %9226 = vmatpush1.bf16.msra.mxu0 0
    %9227 = vmatprep.subr.bf16.mxu0 0
    %9228 = vmatpush1.bf16.msra.mxu0 %v8663
    %9229 = vmatprep.subr.bf16.mxu0 0
    %9230 = vmatpush2.bf16.msra.mxu0 0
    %9231 = vmatprep.subr.bf16.mxu0 0
    %9232 = vmatpush2.bf16.msra.mxu0 0
    %9233 = vmatprep.subr.bf16.mxu0 0
    %9234 = vmatpush2.bf16.msra.mxu0 0
    %9235 = vmatprep.subr.bf16.mxu0 0
    %9236 = vmatpush2.bf16.msra.mxu0 0
    %9237 = vmatprep.subr.bf16.mxu0 0
    %9238 = vmatpush2.bf16.msra.mxu0 0
    %9239 = vmatprep.subr.bf16.mxu0 0
    %9240 = vmatpush2.bf16.msra.mxu0 0
    %9241 = vmatprep.subr.bf16.mxu0 0
    %9242 = vmatpush2.bf16.msra.mxu0 0
    %9243 = vmatprep.subr.bf16.mxu0 0
    %9244 = vmatpush2.bf16.msra.mxu0 0
    %9245 = vmatprep.mubr.bf16.mxu0 0
    %9246 = vmatmul.mubr.bf16.gmra.mxu0 %v9208
    %v9247 = vpop.f32.mrf.mxu0
    %v9248 = vadd.f32 0.0, %v9247
    %v9249 = vpop.f32.mrf.mxu0
    %v9250 = vpop.f32.mrf.mxu0
    %v9251 = vadd.f32 0.0, %v9250
    %v9252 = vpop.f32.mrf.mxu0
    %9253 = vmatprep.mubr.bf16.mxu0 0
    %9254 = vmatmul.mubr.bf16.gmra.mxu0 %v9211
    %v9255 = vpop.f32.mrf.mxu0
    %v9256 = vadd.f32 0.0, %v9255
    %v9257 = vpop.f32.mrf.mxu0
    %v9258 = vpop.f32.mrf.mxu0
    %v9259 = vadd.f32 0.0, %v9258
    %v9260 = vpop.f32.mrf.mxu0
    %9261 = vdwg.mxu0
    %v9262 = vpack.c.bf16 %v9251, %v9248
    %v9263 = vpack.c.bf16 %v9259, %v9256
    %s9264 = scalar_lea.vmem [#allocation24], 192
    %v9265 = vld [vmem:[%s9264] sm:$0xf]
    %v9266 = vld [vmem:[%s9264 + $0x4] sm:$0xf]
    %v9267 = vld [vmem:[%s9264 + $0x8] sm:$0xf]
    %v9268 = vld [vmem:[%s9264 + $0xc] sm:$0xf]
    %v9269 = vld [vmem:[%s9264 + $0x10] sm:$0xf]
    %v9270 = vld [vmem:[%s9264 + $0x14] sm:$0xf]
    %v9271 = vld [vmem:[%s9264 + $0x18] sm:$0xf]
    %v9272 = vld [vmem:[%s9264 + $0x1c] sm:$0xf]
    %v9273 = vld [vmem:[%s9264 + $0x20] sm:$0xf]
    %v9274 = vld [vmem:[%s9264 + $0x24] sm:$0xf]
    %v9275 = vld [vmem:[%s9264 + $0x28] sm:$0xf]
    %v9276 = vld [vmem:[%s9264 + $0x2c] sm:$0xf]
    %v9277 = vld [vmem:[%s9264 + $0x30] sm:$0xf]
    %v9278 = vld [vmem:[%s9264 + $0x34] sm:$0xf]
    %v9279 = vld [vmem:[%s9264 + $0x38] sm:$0xf]
    %v9280 = vld [vmem:[%s9264 + $0x3c] sm:$0xf]
    %v9297 = vunpack.c.l.b16 %v9265
    %v9298 = vunpack.c.l.b16 %v9266
    %v9299 = vunpack.c.l.b16 %v9267
    %v9300 = vunpack.c.l.b16 %v9268
    %v9301 = vunpack.c.l.b16 %v9269
    %v9302 = vunpack.c.l.b16 %v9270
    %v9303 = vunpack.c.l.b16 %v9271
    %v9304 = vunpack.c.l.b16 %v9272
    %v9305 = vunpack.c.l.b16 %v9273
    %v9306 = vunpack.c.l.b16 %v9274
    %v9307 = vunpack.c.l.b16 %v9275
    %v9308 = vunpack.c.l.b16 %v9276
    %v9309 = vunpack.c.l.b16 %v9277
    %v9310 = vunpack.c.l.b16 %v9278
    %v9311 = vunpack.c.l.b16 %v9279
    %v9312 = vunpack.c.l.b16 %v9280
    %v9313 = vpack.c.b16 %v9298, %v9297
    %v9314 = vpack.c.b16 %v9300, %v9299
    %v9315 = vpack.c.b16 %v9302, %v9301
    %v9316 = vpack.c.b16 %v9304, %v9303
    %v9317 = vpack.c.b16 %v9306, %v9305
    %v9318 = vpack.c.b16 %v9308, %v9307
    %v9319 = vpack.c.b16 %v9310, %v9309
    %v9320 = vpack.c.b16 %v9312, %v9311
    %9329 = vmatprep.subr.bf16.mxu0 0
    %9330 = vmatpush1.bf16.msra.mxu0 %v9320
    %9331 = vmatprep.subr.bf16.mxu0 0
    %9332 = vmatpush1.bf16.msra.mxu0 %v9319
    %9333 = vmatprep.subr.bf16.mxu0 0
    %9334 = vmatpush1.bf16.msra.mxu0 %v9318
    %9335 = vmatprep.subr.bf16.mxu0 0
    %9336 = vmatpush1.bf16.msra.mxu0 %v9317
    %9337 = vmatprep.subr.bf16.mxu0 0
    %9338 = vmatpush1.bf16.msra.mxu0 %v9316
    %9339 = vmatprep.subr.bf16.mxu0 0
    %9340 = vmatpush1.bf16.msra.mxu0 %v9315
    %9341 = vmatprep.subr.bf16.mxu0 0
    %9342 = vmatpush1.bf16.msra.mxu0 %v9314
    %9343 = vmatprep.subr.bf16.mxu0 0
    %9344 = vmatpush1.bf16.msra.mxu0 %v9313
    %9345 = vmatprep.subr.bf16.mxu0 0
    %9346 = vmatpush2.bf16.msra.mxu0 0
    %9347 = vmatprep.subr.bf16.mxu0 0
    %9348 = vmatpush2.bf16.msra.mxu0 0
    %9349 = vmatprep.subr.bf16.mxu0 0
    %9350 = vmatpush2.bf16.msra.mxu0 0
    %9351 = vmatprep.subr.bf16.mxu0 0
    %9352 = vmatpush2.bf16.msra.mxu0 0
    %9353 = vmatprep.subr.bf16.mxu0 0
    %9354 = vmatpush2.bf16.msra.mxu0 0
    %9355 = vmatprep.subr.bf16.mxu0 0
    %9356 = vmatpush2.bf16.msra.mxu0 0
    %9357 = vmatprep.subr.bf16.mxu0 0
    %9358 = vmatpush2.bf16.msra.mxu0 0
    %9359 = vmatprep.subr.bf16.mxu0 0
    %9360 = vmatpush2.bf16.msra.mxu0 0
    %9361 = vmatprep.mubr.bf16.mxu0 0
    %9362 = vmatmul.mubr.bf16.gmra.mxu0 %v9262
    %v9363 = vpop.f32.mrf.mxu0
    %v9364 = vadd.f32 0.0, %v9363
    %v9365 = vpop.f32.mrf.mxu0
    %v9366 = vpop.f32.mrf.mxu0
    %v9367 = vadd.f32 0.0, %v9366
    %v9368 = vpop.f32.mrf.mxu0
    %9369 = vmatprep.mubr.bf16.mxu0 0
    %9370 = vmatmul.mubr.bf16.gmra.mxu0 %v9263
    %v9371 = vpop.f32.mrf.mxu0
    %v9372 = vadd.f32 0.0, %v9371
    %v9373 = vpop.f32.mrf.mxu0
    %v9374 = vpop.f32.mrf.mxu0
    %v9375 = vadd.f32 0.0, %v9374
    %v9376 = vpop.f32.mrf.mxu0
    %9377 = vdwg.mxu0
    %v9378 = vadd.f32 %v9196, %v9364
    %v9379 = vadd.f32 %v9197, %v9367
    %v9380 = vadd.f32 %v9198, %v9372
    %v9381 = vadd.f32 %v9199, %v9375
    %v9382 = vld [vmem:[#allocation25] sm:$0x1]
    %v9384 = vlaneseq
    %v9385 = vshrl.u32 %v9384, 7
    %v9386 = vsub.s32 0, %v9385
    %v9387 = vrot.slane %v9382, %v9386
    %v9389 = vadd.f32 %v9378, %v9387
    %v9390 = vadd.f32 %v9379, %v9387
    %v9391 = vadd.f32 %v9380, %v9387
    %v9392 = vadd.f32 %v9381, %v9387
    %v9393 = vmax.f32 %v9389, 0.0
    %v9394 = vmax.f32 %v9390, 0.0
    %v9395 = vmax.f32 %v9391, 0.0
    %v9396 = vmax.f32 %v9392, 0.0
    %v9397 = vpack.c.bf16 %v9394, %v9393
    %v9398 = vpack.c.bf16 %v9396, %v9395
    %v9399 = vld [vmem:[%s47] sm:$0xff]
    %v9400 = vld [vmem:[%s47 + $0x8] sm:$0xff]
    %v9401 = vld [vmem:[%s47 + $0x10] sm:$0xff]
    %v9402 = vld [vmem:[%s47 + $0x18] sm:$0xff]
    %v9403 = vld [vmem:[%s47 + $0x20] sm:$0xff]
    %v9404 = vld [vmem:[%s47 + $0x28] sm:$0xff]
    %v9405 = vld [vmem:[%s47 + $0x30] sm:$0xff]
    %v9406 = vld [vmem:[%s47 + $0x38] sm:$0xff]
    %v9407 = vpack.c.bf16 %v9400, %v9399
    %v9408 = vpack.c.bf16 %v9402, %v9401
    %v9409 = vpack.c.bf16 %v9404, %v9403
    %v9410 = vpack.c.bf16 %v9406, %v9405
    %v9412 = vsel %vm1288, %v9407, 0
    %v9415 = vsel %vm1288, %v9408, 0
    %v9418 = vsel %vm1288, %v9409, 0
    %v9421 = vsel %vm1288, %v9410, 0
    %9423 = vmatprep.subr.bf16.mxu0 0
    %9424 = vmatpush1.bf16.msra.mxu0 0
    %9425 = vmatprep.subr.bf16.mxu0 0
    %9426 = vmatpush1.bf16.msra.mxu0 0
    %9427 = vmatprep.subr.bf16.mxu0 0
    %9428 = vmatpush1.bf16.msra.mxu0 0
    %9429 = vmatprep.subr.bf16.mxu0 0
    %9430 = vmatpush1.bf16.msra.mxu0 0
    %9431 = vmatprep.subr.bf16.mxu0 0
    %9432 = vmatpush1.bf16.msra.mxu0 0
    %9433 = vmatprep.subr.bf16.mxu0 0
    %9434 = vmatpush1.bf16.msra.mxu0 0
    %9435 = vmatprep.subr.bf16.mxu0 0
    %9436 = vmatpush1.bf16.msra.mxu0 %v9398
    %9437 = vmatprep.subr.bf16.mxu0 0
    %9438 = vmatpush1.bf16.msra.mxu0 %v9397
    %9439 = vmatprep.subr.bf16.mxu0 0
    %9440 = vmatpush2.bf16.msra.mxu0 0
    %9441 = vmatprep.subr.bf16.mxu0 0
    %9442 = vmatpush2.bf16.msra.mxu0 0
    %9443 = vmatprep.subr.bf16.mxu0 0
    %9444 = vmatpush2.bf16.msra.mxu0 0
    %9445 = vmatprep.subr.bf16.mxu0 0
    %9446 = vmatpush2.bf16.msra.mxu0 0
    %9447 = vmatprep.subr.bf16.mxu0 0
    %9448 = vmatpush2.bf16.msra.mxu0 0
    %9449 = vmatprep.subr.bf16.mxu0 0
    %9450 = vmatpush2.bf16.msra.mxu0 0
    %9451 = vmatprep.subr.bf16.mxu0 0
    %9452 = vmatpush2.bf16.msra.mxu0 0
    %9453 = vmatprep.subr.bf16.mxu0 0
    %9454 = vmatpush2.bf16.msra.mxu0 0
    %9455 = vmatprep.mubr.bf16.mxu0 0
    %9456 = vmatmul.mubr.bf16.gmra.mxu0 %v9412
    %v9457 = vpop.f32.mrf.mxu0
    %v9458 = vadd.f32 0.0, %v9457
    %v9459 = vpop.f32.mrf.mxu0
    %v9460 = vpop.f32.mrf.mxu0
    %v9461 = vadd.f32 0.0, %v9460
    %v9462 = vpop.f32.mrf.mxu0
    %9463 = vmatprep.mubr.bf16.mxu0 0
    %9464 = vmatmul.mubr.bf16.gmra.mxu0 %v9415
    %v9465 = vpop.f32.mrf.mxu0
    %v9466 = vadd.f32 0.0, %v9465
    %v9467 = vpop.f32.mrf.mxu0
    %v9468 = vpop.f32.mrf.mxu0
    %v9469 = vadd.f32 0.0, %v9468
    %v9470 = vpop.f32.mrf.mxu0
    %9471 = vmatprep.mubr.bf16.mxu0 0
    %9472 = vmatmul.mubr.bf16.gmra.mxu0 %v9418
    %v9473 = vpop.f32.mrf.mxu0
    %v9474 = vadd.f32 0.0, %v9473
    %v9475 = vpop.f32.mrf.mxu0
    %v9476 = vpop.f32.mrf.mxu0
    %v9477 = vadd.f32 0.0, %v9476
    %v9478 = vpop.f32.mrf.mxu0
    %9479 = vmatprep.mubr.bf16.mxu0 0
    %9480 = vmatmul.mubr.bf16.gmra.mxu0 %v9421
    %v9481 = vpop.f32.mrf.mxu0
    %v9482 = vadd.f32 0.0, %v9481
    %v9483 = vpop.f32.mrf.mxu0
    %v9484 = vpop.f32.mrf.mxu0
    %v9485 = vadd.f32 0.0, %v9484
    %v9486 = vpop.f32.mrf.mxu0
    %9487 = vdwg.mxu0
    %v9488 = vpack.c.bf16 %v9461, %v9458
    %v9489 = vpack.c.bf16 %v9469, %v9466
    %v9490 = vpack.c.bf16 %v9477, %v9474
    %v9491 = vpack.c.bf16 %v9485, %v9482
    %v9492 = vld [vmem:[#allocation27] sm:$0xf]
    %v9493 = vld [vmem:[#allocation27 + $0x4] sm:$0xf]
    %v9494 = vld [vmem:[#allocation27 + $0x8] sm:$0xf]
    %v9495 = vld [vmem:[#allocation27 + $0xc] sm:$0xf]
    %v9496 = vld [vmem:[#allocation27 + $0x10] sm:$0xf]
    %v9497 = vld [vmem:[#allocation27 + $0x14] sm:$0xf]
    %v9498 = vld [vmem:[#allocation27 + $0x18] sm:$0xf]
    %v9499 = vld [vmem:[#allocation27 + $0x1c] sm:$0xf]
    %v9500 = vld [vmem:[#allocation27 + $0x20] sm:$0xf]
    %v9501 = vld [vmem:[#allocation27 + $0x24] sm:$0xf]
    %v9502 = vld [vmem:[#allocation27 + $0x28] sm:$0xf]
    %v9503 = vld [vmem:[#allocation27 + $0x2c] sm:$0xf]
    %v9504 = vld [vmem:[#allocation27 + $0x30] sm:$0xf]
    %v9505 = vld [vmem:[#allocation27 + $0x34] sm:$0xf]
    %v9506 = vld [vmem:[#allocation27 + $0x38] sm:$0xf]
    %v9507 = vld [vmem:[#allocation27 + $0x3c] sm:$0xf]
    %s9508 = scalar_lea.vmem %s47, 64
    %v9509 = vld [vmem:[%s9508] sm:$0xff]
    %v9510 = vld [vmem:[%s9508 + $0x8] sm:$0xff]
    %v9511 = vld [vmem:[%s9508 + $0x10] sm:$0xff]
    %v9512 = vld [vmem:[%s9508 + $0x18] sm:$0xff]
    %v9513 = vld [vmem:[%s9508 + $0x20] sm:$0xff]
    %v9514 = vld [vmem:[%s9508 + $0x28] sm:$0xff]
    %v9515 = vld [vmem:[%s9508 + $0x30] sm:$0xff]
    %v9516 = vld [vmem:[%s9508 + $0x38] sm:$0xff]
    %v9517 = vpack.c.bf16 %v9510, %v9509
    %v9518 = vpack.c.bf16 %v9512, %v9511
    %v9519 = vpack.c.bf16 %v9514, %v9513
    %v9520 = vpack.c.bf16 %v9516, %v9515
    %v9522 = vsel %vm1288, %v9517, 0
    %v9525 = vsel %vm1288, %v9518, 0
    %v9528 = vsel %vm1288, %v9519, 0
    %v9531 = vsel %vm1288, %v9520, 0
    %9533 = vmatprep.subr.bf16.mxu0 0
    %9534 = vmatpush1.bf16.msra.mxu0 0
    %9535 = vmatprep.subr.bf16.mxu0 0
    %9536 = vmatpush1.bf16.msra.mxu0 0
    %9537 = vmatprep.subr.bf16.mxu0 0
    %9538 = vmatpush1.bf16.msra.mxu0 0
    %9539 = vmatprep.subr.bf16.mxu0 0
    %9540 = vmatpush1.bf16.msra.mxu0 0
    %9541 = vmatprep.subr.bf16.mxu0 0
    %9542 = vmatpush1.bf16.msra.mxu0 0
    %9543 = vmatprep.subr.bf16.mxu0 0
    %9544 = vmatpush1.bf16.msra.mxu0 0
    %9545 = vmatprep.subr.bf16.mxu0 0
    %9546 = vmatpush1.bf16.msra.mxu0 %v9398
    %9547 = vmatprep.subr.bf16.mxu0 0
    %9548 = vmatpush1.bf16.msra.mxu0 %v9397
    %9549 = vmatprep.subr.bf16.mxu0 0
    %9550 = vmatpush2.bf16.msra.mxu0 0
    %9551 = vmatprep.subr.bf16.mxu0 0
    %9552 = vmatpush2.bf16.msra.mxu0 0
    %9553 = vmatprep.subr.bf16.mxu0 0
    %9554 = vmatpush2.bf16.msra.mxu0 0
    %9555 = vmatprep.subr.bf16.mxu0 0
    %9556 = vmatpush2.bf16.msra.mxu0 0
    %9557 = vmatprep.subr.bf16.mxu0 0
    %9558 = vmatpush2.bf16.msra.mxu0 0
    %9559 = vmatprep.subr.bf16.mxu0 0
    %9560 = vmatpush2.bf16.msra.mxu0 0
    %9561 = vmatprep.subr.bf16.mxu0 0
    %9562 = vmatpush2.bf16.msra.mxu0 0
    %9563 = vmatprep.subr.bf16.mxu0 0
    %9564 = vmatpush2.bf16.msra.mxu0 0
    %9565 = vmatprep.mubr.bf16.mxu0 0
    %9566 = vmatmul.mubr.bf16.gmra.mxu0 %v9522
    %v9567 = vpop.f32.mrf.mxu0
    %v9568 = vadd.f32 0.0, %v9567
    %v9569 = vpop.f32.mrf.mxu0
    %v9570 = vpop.f32.mrf.mxu0
    %v9571 = vadd.f32 0.0, %v9570
    %v9572 = vpop.f32.mrf.mxu0
    %9573 = vmatprep.mubr.bf16.mxu0 0
    %9574 = vmatmul.mubr.bf16.gmra.mxu0 %v9525
    %v9575 = vpop.f32.mrf.mxu0
    %v9576 = vadd.f32 0.0, %v9575
    %v9577 = vpop.f32.mrf.mxu0
    %v9578 = vpop.f32.mrf.mxu0
    %v9579 = vadd.f32 0.0, %v9578
    %v9580 = vpop.f32.mrf.mxu0
    %9581 = vmatprep.mubr.bf16.mxu0 0
    %9582 = vmatmul.mubr.bf16.gmra.mxu0 %v9528
    %v9583 = vpop.f32.mrf.mxu0
    %v9584 = vadd.f32 0.0, %v9583
    %v9585 = vpop.f32.mrf.mxu0
    %v9586 = vpop.f32.mrf.mxu0
    %v9587 = vadd.f32 0.0, %v9586
    %v9588 = vpop.f32.mrf.mxu0
    %9589 = vmatprep.mubr.bf16.mxu0 0
    %9590 = vmatmul.mubr.bf16.gmra.mxu0 %v9531
    %v9591 = vpop.f32.mrf.mxu0
    %v9592 = vadd.f32 0.0, %v9591
    %v9593 = vpop.f32.mrf.mxu0
    %v9594 = vpop.f32.mrf.mxu0
    %v9595 = vadd.f32 0.0, %v9594
    %v9596 = vpop.f32.mrf.mxu0
    %9597 = vdwg.mxu0
    %v9598 = vpack.c.bf16 %v9571, %v9568
    %v9599 = vpack.c.bf16 %v9579, %v9576
    %v9600 = vpack.c.bf16 %v9587, %v9584
    %v9601 = vpack.c.bf16 %v9595, %v9592
    %s9602 = scalar_lea.vmem [#allocation27], 64
    %v9603 = vld [vmem:[%s9602] sm:$0xf]
    %v9604 = vld [vmem:[%s9602 + $0x4] sm:$0xf]
    %v9605 = vld [vmem:[%s9602 + $0x8] sm:$0xf]
    %v9606 = vld [vmem:[%s9602 + $0xc] sm:$0xf]
    %v9607 = vld [vmem:[%s9602 + $0x10] sm:$0xf]
    %v9608 = vld [vmem:[%s9602 + $0x14] sm:$0xf]
    %v9609 = vld [vmem:[%s9602 + $0x18] sm:$0xf]
    %v9610 = vld [vmem:[%s9602 + $0x1c] sm:$0xf]
    %v9611 = vld [vmem:[%s9602 + $0x20] sm:$0xf]
    %v9612 = vld [vmem:[%s9602 + $0x24] sm:$0xf]
    %v9613 = vld [vmem:[%s9602 + $0x28] sm:$0xf]
    %v9614 = vld [vmem:[%s9602 + $0x2c] sm:$0xf]
    %v9615 = vld [vmem:[%s9602 + $0x30] sm:$0xf]
    %v9616 = vld [vmem:[%s9602 + $0x34] sm:$0xf]
    %v9617 = vld [vmem:[%s9602 + $0x38] sm:$0xf]
    %v9618 = vld [vmem:[%s9602 + $0x3c] sm:$0xf]
    %v9635 = vunpack.c.l.b16 %v9603
    %v9636 = vunpack.c.l.b16 %v9604
    %v9637 = vunpack.c.l.b16 %v9605
    %v9638 = vunpack.c.l.b16 %v9606
    %v9639 = vunpack.c.l.b16 %v9607
    %v9640 = vunpack.c.l.b16 %v9608
    %v9641 = vunpack.c.l.b16 %v9609
    %v9642 = vunpack.c.l.b16 %v9610
    %v9643 = vunpack.c.l.b16 %v9611
    %v9644 = vunpack.c.l.b16 %v9612
    %v9645 = vunpack.c.l.b16 %v9613
    %v9646 = vunpack.c.l.b16 %v9614
    %v9647 = vunpack.c.l.b16 %v9615
    %v9648 = vunpack.c.l.b16 %v9616
    %v9649 = vunpack.c.l.b16 %v9617
    %v9650 = vunpack.c.l.b16 %v9618
    %v9651 = vpack.c.b16 %v9636, %v9635
    %v9652 = vpack.c.b16 %v9638, %v9637
    %v9653 = vpack.c.b16 %v9640, %v9639
    %v9654 = vpack.c.b16 %v9642, %v9641
    %v9655 = vpack.c.b16 %v9644, %v9643
    %v9656 = vpack.c.b16 %v9646, %v9645
    %v9657 = vpack.c.b16 %v9648, %v9647
    %v9658 = vpack.c.b16 %v9650, %v9649
    %9667 = vmatprep.subr.bf16.mxu0 0
    %9668 = vmatpush1.bf16.msra.mxu0 %v9658
    %9669 = vmatprep.subr.bf16.mxu0 0
    %9670 = vmatpush1.bf16.msra.mxu0 %v9657
    %9671 = vmatprep.subr.bf16.mxu0 0
    %9672 = vmatpush1.bf16.msra.mxu0 %v9656
    %9673 = vmatprep.subr.bf16.mxu0 0
    %9674 = vmatpush1.bf16.msra.mxu0 %v9655
    %9675 = vmatprep.subr.bf16.mxu0 0
    %9676 = vmatpush1.bf16.msra.mxu0 %v9654
    %9677 = vmatprep.subr.bf16.mxu0 0
    %9678 = vmatpush1.bf16.msra.mxu0 %v9653
    %9679 = vmatprep.subr.bf16.mxu0 0
    %9680 = vmatpush1.bf16.msra.mxu0 %v9652
    %9681 = vmatprep.subr.bf16.mxu0 0
    %9682 = vmatpush1.bf16.msra.mxu0 %v9651
    %9683 = vmatprep.subr.bf16.mxu0 0
    %9684 = vmatpush2.bf16.msra.mxu0 0
    %9685 = vmatprep.subr.bf16.mxu0 0
    %9686 = vmatpush2.bf16.msra.mxu0 0
    %9687 = vmatprep.subr.bf16.mxu0 0
    %9688 = vmatpush2.bf16.msra.mxu0 0
    %9689 = vmatprep.subr.bf16.mxu0 0
    %9690 = vmatpush2.bf16.msra.mxu0 0
    %9691 = vmatprep.subr.bf16.mxu0 0
    %9692 = vmatpush2.bf16.msra.mxu0 0
    %9693 = vmatprep.subr.bf16.mxu0 0
    %9694 = vmatpush2.bf16.msra.mxu0 0
    %9695 = vmatprep.subr.bf16.mxu0 0
    %9696 = vmatpush2.bf16.msra.mxu0 0
    %9697 = vmatprep.subr.bf16.mxu0 0
    %9698 = vmatpush2.bf16.msra.mxu0 0
    %9699 = vmatprep.mubr.bf16.mxu0 0
    %9700 = vmatmul.mubr.bf16.gmra.mxu0 %v9598
    %v9701 = vpop.f32.mrf.mxu0
    %v9702 = vadd.f32 0.0, %v9701
    %v9703 = vpop.f32.mrf.mxu0
    %v9704 = vpop.f32.mrf.mxu0
    %v9705 = vadd.f32 0.0, %v9704
    %v9706 = vpop.f32.mrf.mxu0
    %9707 = vmatprep.mubr.bf16.mxu0 0
    %9708 = vmatmul.mubr.bf16.gmra.mxu0 %v9599
    %v9709 = vpop.f32.mrf.mxu0
    %v9710 = vadd.f32 0.0, %v9709
    %v9711 = vpop.f32.mrf.mxu0
    %v9712 = vpop.f32.mrf.mxu0
    %v9713 = vadd.f32 0.0, %v9712
    %v9714 = vpop.f32.mrf.mxu0
    %9715 = vmatprep.mubr.bf16.mxu0 0
    %9716 = vmatmul.mubr.bf16.gmra.mxu0 %v9600
    %v9717 = vpop.f32.mrf.mxu0
    %v9718 = vadd.f32 0.0, %v9717
    %v9719 = vpop.f32.mrf.mxu0
    %v9720 = vpop.f32.mrf.mxu0
    %v9721 = vadd.f32 0.0, %v9720
    %v9722 = vpop.f32.mrf.mxu0
    %9723 = vmatprep.mubr.bf16.mxu0 0
    %9724 = vmatmul.mubr.bf16.gmra.mxu0 %v9601
    %v9725 = vpop.f32.mrf.mxu0
    %v9726 = vadd.f32 0.0, %v9725
    %v9727 = vpop.f32.mrf.mxu0
    %v9728 = vpop.f32.mrf.mxu0
    %v9729 = vadd.f32 0.0, %v9728
    %v9730 = vpop.f32.mrf.mxu0
    %9731 = vdwg.mxu0
    %v9748 = vunpack.c.l.b16 %v9492
    %v9749 = vunpack.c.l.b16 %v9493
    %v9750 = vunpack.c.l.b16 %v9494
    %v9751 = vunpack.c.l.b16 %v9495
    %v9752 = vunpack.c.l.b16 %v9496
    %v9753 = vunpack.c.l.b16 %v9497
    %v9754 = vunpack.c.l.b16 %v9498
    %v9755 = vunpack.c.l.b16 %v9499
    %v9756 = vunpack.c.l.b16 %v9500
    %v9757 = vunpack.c.l.b16 %v9501
    %v9758 = vunpack.c.l.b16 %v9502
    %v9759 = vunpack.c.l.b16 %v9503
    %v9760 = vunpack.c.l.b16 %v9504
    %v9761 = vunpack.c.l.b16 %v9505
    %v9762 = vunpack.c.l.b16 %v9506
    %v9763 = vunpack.c.l.b16 %v9507
    %v9764 = vpack.c.b16 %v9749, %v9748
    %v9765 = vpack.c.b16 %v9751, %v9750
    %v9766 = vpack.c.b16 %v9753, %v9752
    %v9767 = vpack.c.b16 %v9755, %v9754
    %v9768 = vpack.c.b16 %v9757, %v9756
    %v9769 = vpack.c.b16 %v9759, %v9758
    %v9770 = vpack.c.b16 %v9761, %v9760
    %v9771 = vpack.c.b16 %v9763, %v9762
    %9780 = vmatprep.subr.bf16.mxu0 0
    %9781 = vmatpush1.bf16.msra.mxu0 %v9771
    %9782 = vmatprep.subr.bf16.mxu0 0
    %9783 = vmatpush1.bf16.msra.mxu0 %v9770
    %9784 = vmatprep.subr.bf16.mxu0 0
    %9785 = vmatpush1.bf16.msra.mxu0 %v9769
    %9786 = vmatprep.subr.bf16.mxu0 0
    %9787 = vmatpush1.bf16.msra.mxu0 %v9768
    %9788 = vmatprep.subr.bf16.mxu0 0
    %9789 = vmatpush1.bf16.msra.mxu0 %v9767
    %9790 = vmatprep.subr.bf16.mxu0 0
    %9791 = vmatpush1.bf16.msra.mxu0 %v9766
    %9792 = vmatprep.subr.bf16.mxu0 0
    %9793 = vmatpush1.bf16.msra.mxu0 %v9765
    %9794 = vmatprep.subr.bf16.mxu0 0
    %9795 = vmatpush1.bf16.msra.mxu0 %v9764
    %9796 = vmatprep.subr.bf16.mxu0 0
    %9797 = vmatpush2.bf16.msra.mxu0 0
    %9798 = vmatprep.subr.bf16.mxu0 0
    %9799 = vmatpush2.bf16.msra.mxu0 0
    %9800 = vmatprep.subr.bf16.mxu0 0
    %9801 = vmatpush2.bf16.msra.mxu0 0
    %9802 = vmatprep.subr.bf16.mxu0 0
    %9803 = vmatpush2.bf16.msra.mxu0 0
    %9804 = vmatprep.subr.bf16.mxu0 0
    %9805 = vmatpush2.bf16.msra.mxu0 0
    %9806 = vmatprep.subr.bf16.mxu0 0
    %9807 = vmatpush2.bf16.msra.mxu0 0
    %9808 = vmatprep.subr.bf16.mxu0 0
    %9809 = vmatpush2.bf16.msra.mxu0 0
    %9810 = vmatprep.subr.bf16.mxu0 0
    %9811 = vmatpush2.bf16.msra.mxu0 0
    %9812 = vmatprep.mubr.bf16.mxu0 0
    %9813 = vmatmul.mubr.bf16.gmra.mxu0 %v9488
    %v9814 = vpop.f32.mrf.mxu0
    %v9815 = vadd.f32 %v9702, %v9814
    %v9816 = vpop.f32.mrf.mxu0
    %v9817 = vpop.f32.mrf.mxu0
    %v9818 = vadd.f32 %v9705, %v9817
    %v9819 = vpop.f32.mrf.mxu0
    %9820 = vmatprep.mubr.bf16.mxu0 0
    %9821 = vmatmul.mubr.bf16.gmra.mxu0 %v9489
    %v9822 = vpop.f32.mrf.mxu0
    %v9823 = vadd.f32 %v9710, %v9822
    %v9824 = vpop.f32.mrf.mxu0
    %v9825 = vpop.f32.mrf.mxu0
    %v9826 = vadd.f32 %v9713, %v9825
    %v9827 = vpop.f32.mrf.mxu0
    %9828 = vmatprep.mubr.bf16.mxu0 0
    %9829 = vmatmul.mubr.bf16.gmra.mxu0 %v9490
    %v9830 = vpop.f32.mrf.mxu0
    %v9831 = vadd.f32 %v9718, %v9830
    %v9832 = vpop.f32.mrf.mxu0
    %v9833 = vpop.f32.mrf.mxu0
    %v9834 = vadd.f32 %v9721, %v9833
    %v9835 = vpop.f32.mrf.mxu0
    %9836 = vmatprep.mubr.bf16.mxu0 0
    %9837 = vmatmul.mubr.bf16.gmra.mxu0 %v9491
    %v9838 = vpop.f32.mrf.mxu0
    %v9839 = vadd.f32 %v9726, %v9838
    %v9840 = vpop.f32.mrf.mxu0
    %v9841 = vpop.f32.mrf.mxu0
    %v9842 = vadd.f32 %v9729, %v9841
    %v9843 = vpop.f32.mrf.mxu0
    %9844 = vdwg.mxu0
    %s9845 = scalar_lea.vmem %s47, 128
    %v9846 = vld [vmem:[%s9845] sm:$0xff]
    %v9847 = vld [vmem:[%s9845 + $0x8] sm:$0xff]
    %v9848 = vld [vmem:[%s9845 + $0x10] sm:$0xff]
    %v9849 = vld [vmem:[%s9845 + $0x18] sm:$0xff]
    %v9850 = vld [vmem:[%s9845 + $0x20] sm:$0xff]
    %v9851 = vld [vmem:[%s9845 + $0x28] sm:$0xff]
    %v9852 = vld [vmem:[%s9845 + $0x30] sm:$0xff]
    %v9853 = vld [vmem:[%s9845 + $0x38] sm:$0xff]
    %v9854 = vpack.c.bf16 %v9847, %v9846
    %v9855 = vpack.c.bf16 %v9849, %v9848
    %v9856 = vpack.c.bf16 %v9851, %v9850
    %v9857 = vpack.c.bf16 %v9853, %v9852
    %v9859 = vsel %vm1288, %v9854, 0
    %v9862 = vsel %vm1288, %v9855, 0
    %v9865 = vsel %vm1288, %v9856, 0
    %v9868 = vsel %vm1288, %v9857, 0
    %9870 = vmatprep.subr.bf16.mxu0 0
    %9871 = vmatpush1.bf16.msra.mxu0 0
    %9872 = vmatprep.subr.bf16.mxu0 0
    %9873 = vmatpush1.bf16.msra.mxu0 0
    %9874 = vmatprep.subr.bf16.mxu0 0
    %9875 = vmatpush1.bf16.msra.mxu0 0
    %9876 = vmatprep.subr.bf16.mxu0 0
    %9877 = vmatpush1.bf16.msra.mxu0 0
    %9878 = vmatprep.subr.bf16.mxu0 0
    %9879 = vmatpush1.bf16.msra.mxu0 0
    %9880 = vmatprep.subr.bf16.mxu0 0
    %9881 = vmatpush1.bf16.msra.mxu0 0
    %9882 = vmatprep.subr.bf16.mxu0 0
    %9883 = vmatpush1.bf16.msra.mxu0 %v9398
    %9884 = vmatprep.subr.bf16.mxu0 0
    %9885 = vmatpush1.bf16.msra.mxu0 %v9397
    %9886 = vmatprep.subr.bf16.mxu0 0
    %9887 = vmatpush2.bf16.msra.mxu0 0
    %9888 = vmatprep.subr.bf16.mxu0 0
    %9889 = vmatpush2.bf16.msra.mxu0 0
    %9890 = vmatprep.subr.bf16.mxu0 0
    %9891 = vmatpush2.bf16.msra.mxu0 0
    %9892 = vmatprep.subr.bf16.mxu0 0
    %9893 = vmatpush2.bf16.msra.mxu0 0
    %9894 = vmatprep.subr.bf16.mxu0 0
    %9895 = vmatpush2.bf16.msra.mxu0 0
    %9896 = vmatprep.subr.bf16.mxu0 0
    %9897 = vmatpush2.bf16.msra.mxu0 0
    %9898 = vmatprep.subr.bf16.mxu0 0
    %9899 = vmatpush2.bf16.msra.mxu0 0
    %9900 = vmatprep.subr.bf16.mxu0 0
    %9901 = vmatpush2.bf16.msra.mxu0 0
    %9902 = vmatprep.mubr.bf16.mxu0 0
    %9903 = vmatmul.mubr.bf16.gmra.mxu0 %v9859
    %v9904 = vpop.f32.mrf.mxu0
    %v9905 = vadd.f32 0.0, %v9904
    %v9906 = vpop.f32.mrf.mxu0
    %v9907 = vpop.f32.mrf.mxu0
    %v9908 = vadd.f32 0.0, %v9907
    %v9909 = vpop.f32.mrf.mxu0
    %9910 = vmatprep.mubr.bf16.mxu0 0
    %9911 = vmatmul.mubr.bf16.gmra.mxu0 %v9862
    %v9912 = vpop.f32.mrf.mxu0
    %v9913 = vadd.f32 0.0, %v9912
    %v9914 = vpop.f32.mrf.mxu0
    %v9915 = vpop.f32.mrf.mxu0
    %v9916 = vadd.f32 0.0, %v9915
    %v9917 = vpop.f32.mrf.mxu0
    %9918 = vmatprep.mubr.bf16.mxu0 0
    %9919 = vmatmul.mubr.bf16.gmra.mxu0 %v9865
    %v9920 = vpop.f32.mrf.mxu0
    %v9921 = vadd.f32 0.0, %v9920
    %v9922 = vpop.f32.mrf.mxu0
    %v9923 = vpop.f32.mrf.mxu0
    %v9924 = vadd.f32 0.0, %v9923
    %v9925 = vpop.f32.mrf.mxu0
    %9926 = vmatprep.mubr.bf16.mxu0 0
    %9927 = vmatmul.mubr.bf16.gmra.mxu0 %v9868
    %v9928 = vpop.f32.mrf.mxu0
    %v9929 = vadd.f32 0.0, %v9928
    %v9930 = vpop.f32.mrf.mxu0
    %v9931 = vpop.f32.mrf.mxu0
    %v9932 = vadd.f32 0.0, %v9931
    %v9933 = vpop.f32.mrf.mxu0
    %9934 = vdwg.mxu0
    %v9935 = vpack.c.bf16 %v9908, %v9905
    %v9936 = vpack.c.bf16 %v9916, %v9913
    %v9937 = vpack.c.bf16 %v9924, %v9921
    %v9938 = vpack.c.bf16 %v9932, %v9929
    %s9939 = scalar_lea.vmem [#allocation27], 128
    %v9940 = vld [vmem:[%s9939] sm:$0xf]
    %v9941 = vld [vmem:[%s9939 + $0x4] sm:$0xf]
    %v9942 = vld [vmem:[%s9939 + $0x8] sm:$0xf]
    %v9943 = vld [vmem:[%s9939 + $0xc] sm:$0xf]
    %v9944 = vld [vmem:[%s9939 + $0x10] sm:$0xf]
    %v9945 = vld [vmem:[%s9939 + $0x14] sm:$0xf]
    %v9946 = vld [vmem:[%s9939 + $0x18] sm:$0xf]
    %v9947 = vld [vmem:[%s9939 + $0x1c] sm:$0xf]
    %v9948 = vld [vmem:[%s9939 + $0x20] sm:$0xf]
    %v9949 = vld [vmem:[%s9939 + $0x24] sm:$0xf]
    %v9950 = vld [vmem:[%s9939 + $0x28] sm:$0xf]
    %v9951 = vld [vmem:[%s9939 + $0x2c] sm:$0xf]
    %v9952 = vld [vmem:[%s9939 + $0x30] sm:$0xf]
    %v9953 = vld [vmem:[%s9939 + $0x34] sm:$0xf]
    %v9954 = vld [vmem:[%s9939 + $0x38] sm:$0xf]
    %v9955 = vld [vmem:[%s9939 + $0x3c] sm:$0xf]
    %v9972 = vunpack.c.l.b16 %v9940
    %v9973 = vunpack.c.l.b16 %v9941
    %v9974 = vunpack.c.l.b16 %v9942
    %v9975 = vunpack.c.l.b16 %v9943
    %v9976 = vunpack.c.l.b16 %v9944
    %v9977 = vunpack.c.l.b16 %v9945
    %v9978 = vunpack.c.l.b16 %v9946
    %v9979 = vunpack.c.l.b16 %v9947
    %v9980 = vunpack.c.l.b16 %v9948
    %v9981 = vunpack.c.l.b16 %v9949
    %v9982 = vunpack.c.l.b16 %v9950
    %v9983 = vunpack.c.l.b16 %v9951
    %v9984 = vunpack.c.l.b16 %v9952
    %v9985 = vunpack.c.l.b16 %v9953
    %v9986 = vunpack.c.l.b16 %v9954
    %v9987 = vunpack.c.l.b16 %v9955
    %v9988 = vpack.c.b16 %v9973, %v9972
    %v9989 = vpack.c.b16 %v9975, %v9974
    %v9990 = vpack.c.b16 %v9977, %v9976
    %v9991 = vpack.c.b16 %v9979, %v9978
    %v9992 = vpack.c.b16 %v9981, %v9980
    %v9993 = vpack.c.b16 %v9983, %v9982
    %v9994 = vpack.c.b16 %v9985, %v9984
    %v9995 = vpack.c.b16 %v9987, %v9986
    %10004 = vmatprep.subr.bf16.mxu0 0
    %10005 = vmatpush1.bf16.msra.mxu0 %v9995
    %10006 = vmatprep.subr.bf16.mxu0 0
    %10007 = vmatpush1.bf16.msra.mxu0 %v9994
    %10008 = vmatprep.subr.bf16.mxu0 0
    %10009 = vmatpush1.bf16.msra.mxu0 %v9993
    %10010 = vmatprep.subr.bf16.mxu0 0
    %10011 = vmatpush1.bf16.msra.mxu0 %v9992
    %10012 = vmatprep.subr.bf16.mxu0 0
    %10013 = vmatpush1.bf16.msra.mxu0 %v9991
    %10014 = vmatprep.subr.bf16.mxu0 0
    %10015 = vmatpush1.bf16.msra.mxu0 %v9990
    %10016 = vmatprep.subr.bf16.mxu0 0
    %10017 = vmatpush1.bf16.msra.mxu0 %v9989
    %10018 = vmatprep.subr.bf16.mxu0 0
    %10019 = vmatpush1.bf16.msra.mxu0 %v9988
    %10020 = vmatprep.subr.bf16.mxu0 0
    %10021 = vmatpush2.bf16.msra.mxu0 0
    %10022 = vmatprep.subr.bf16.mxu0 0
    %10023 = vmatpush2.bf16.msra.mxu0 0
    %10024 = vmatprep.subr.bf16.mxu0 0
    %10025 = vmatpush2.bf16.msra.mxu0 0
    %10026 = vmatprep.subr.bf16.mxu0 0
    %10027 = vmatpush2.bf16.msra.mxu0 0
    %10028 = vmatprep.subr.bf16.mxu0 0
    %10029 = vmatpush2.bf16.msra.mxu0 0
    %10030 = vmatprep.subr.bf16.mxu0 0
    %10031 = vmatpush2.bf16.msra.mxu0 0
    %10032 = vmatprep.subr.bf16.mxu0 0
    %10033 = vmatpush2.bf16.msra.mxu0 0
    %10034 = vmatprep.subr.bf16.mxu0 0
    %10035 = vmatpush2.bf16.msra.mxu0 0
    %10036 = vmatprep.mubr.bf16.mxu0 0
    %10037 = vmatmul.mubr.bf16.gmra.mxu0 %v9935
    %v10038 = vpop.f32.mrf.mxu0
    %v10039 = vadd.f32 0.0, %v10038
    %v10040 = vpop.f32.mrf.mxu0
    %v10041 = vpop.f32.mrf.mxu0
    %v10042 = vadd.f32 0.0, %v10041
    %v10043 = vpop.f32.mrf.mxu0
    %10044 = vmatprep.mubr.bf16.mxu0 0
    %10045 = vmatmul.mubr.bf16.gmra.mxu0 %v9936
    %v10046 = vpop.f32.mrf.mxu0
    %v10047 = vadd.f32 0.0, %v10046
    %v10048 = vpop.f32.mrf.mxu0
    %v10049 = vpop.f32.mrf.mxu0
    %v10050 = vadd.f32 0.0, %v10049
    %v10051 = vpop.f32.mrf.mxu0
    %10052 = vmatprep.mubr.bf16.mxu0 0
    %10053 = vmatmul.mubr.bf16.gmra.mxu0 %v9937
    %v10054 = vpop.f32.mrf.mxu0
    %v10055 = vadd.f32 0.0, %v10054
    %v10056 = vpop.f32.mrf.mxu0
    %v10057 = vpop.f32.mrf.mxu0
    %v10058 = vadd.f32 0.0, %v10057
    %v10059 = vpop.f32.mrf.mxu0
    %10060 = vmatprep.mubr.bf16.mxu0 0
    %10061 = vmatmul.mubr.bf16.gmra.mxu0 %v9938
    %v10062 = vpop.f32.mrf.mxu0
    %v10063 = vadd.f32 0.0, %v10062
    %v10064 = vpop.f32.mrf.mxu0
    %v10065 = vpop.f32.mrf.mxu0
    %v10066 = vadd.f32 0.0, %v10065
    %v10067 = vpop.f32.mrf.mxu0
    %10068 = vdwg.mxu0
    %v10069 = vadd.f32 %v9815, %v10039
    %v10070 = vadd.f32 %v9818, %v10042
    %v10071 = vadd.f32 %v9823, %v10047
    %v10072 = vadd.f32 %v9826, %v10050
    %v10073 = vadd.f32 %v9831, %v10055
    %v10074 = vadd.f32 %v9834, %v10058
    %v10075 = vadd.f32 %v9839, %v10063
    %v10076 = vadd.f32 %v9842, %v10066
    %s10077 = scalar_lea.vmem %s47, 192
    %v10078 = vld [vmem:[%s10077] sm:$0xff]
    %v10079 = vld [vmem:[%s10077 + $0x8] sm:$0xff]
    %v10080 = vld [vmem:[%s10077 + $0x10] sm:$0xff]
    %v10081 = vld [vmem:[%s10077 + $0x18] sm:$0xff]
    %v10082 = vld [vmem:[%s10077 + $0x20] sm:$0xff]
    %v10083 = vld [vmem:[%s10077 + $0x28] sm:$0xff]
    %v10084 = vld [vmem:[%s10077 + $0x30] sm:$0xff]
    %v10085 = vld [vmem:[%s10077 + $0x38] sm:$0xff]
    %v10086 = vpack.c.bf16 %v10079, %v10078
    %v10087 = vpack.c.bf16 %v10081, %v10080
    %v10088 = vpack.c.bf16 %v10083, %v10082
    %v10089 = vpack.c.bf16 %v10085, %v10084
    %v10091 = vsel %vm1288, %v10086, 0
    %v10094 = vsel %vm1288, %v10087, 0
    %v10097 = vsel %vm1288, %v10088, 0
    %v10100 = vsel %vm1288, %v10089, 0
    %10102 = vmatprep.subr.bf16.mxu0 0
    %10103 = vmatpush1.bf16.msra.mxu0 0
    %10104 = vmatprep.subr.bf16.mxu0 0
    %10105 = vmatpush1.bf16.msra.mxu0 0
    %10106 = vmatprep.subr.bf16.mxu0 0
    %10107 = vmatpush1.bf16.msra.mxu0 0
    %10108 = vmatprep.subr.bf16.mxu0 0
    %10109 = vmatpush1.bf16.msra.mxu0 0
    %10110 = vmatprep.subr.bf16.mxu0 0
    %10111 = vmatpush1.bf16.msra.mxu0 0
    %10112 = vmatprep.subr.bf16.mxu0 0
    %10113 = vmatpush1.bf16.msra.mxu0 0
    %10114 = vmatprep.subr.bf16.mxu0 0
    %10115 = vmatpush1.bf16.msra.mxu0 %v9398
    %10116 = vmatprep.subr.bf16.mxu0 0
    %10117 = vmatpush1.bf16.msra.mxu0 %v9397
    %10118 = vmatprep.subr.bf16.mxu0 0
    %10119 = vmatpush2.bf16.msra.mxu0 0
    %10120 = vmatprep.subr.bf16.mxu0 0
    %10121 = vmatpush2.bf16.msra.mxu0 0
    %10122 = vmatprep.subr.bf16.mxu0 0
    %10123 = vmatpush2.bf16.msra.mxu0 0
    %10124 = vmatprep.subr.bf16.mxu0 0
    %10125 = vmatpush2.bf16.msra.mxu0 0
    %10126 = vmatprep.subr.bf16.mxu0 0
    %10127 = vmatpush2.bf16.msra.mxu0 0
    %10128 = vmatprep.subr.bf16.mxu0 0
    %10129 = vmatpush2.bf16.msra.mxu0 0
    %10130 = vmatprep.subr.bf16.mxu0 0
    %10131 = vmatpush2.bf16.msra.mxu0 0
    %10132 = vmatprep.subr.bf16.mxu0 0
    %10133 = vmatpush2.bf16.msra.mxu0 0
    %10134 = vmatprep.mubr.bf16.mxu0 0
    %10135 = vmatmul.mubr.bf16.gmra.mxu0 %v10091
    %v10136 = vpop.f32.mrf.mxu0
    %v10137 = vadd.f32 0.0, %v10136
    %v10138 = vpop.f32.mrf.mxu0
    %v10139 = vpop.f32.mrf.mxu0
    %v10140 = vadd.f32 0.0, %v10139
    %v10141 = vpop.f32.mrf.mxu0
    %10142 = vmatprep.mubr.bf16.mxu0 0
    %10143 = vmatmul.mubr.bf16.gmra.mxu0 %v10094
    %v10144 = vpop.f32.mrf.mxu0
    %v10145 = vadd.f32 0.0, %v10144
    %v10146 = vpop.f32.mrf.mxu0
    %v10147 = vpop.f32.mrf.mxu0
    %v10148 = vadd.f32 0.0, %v10147
    %v10149 = vpop.f32.mrf.mxu0
    %10150 = vmatprep.mubr.bf16.mxu0 0
    %10151 = vmatmul.mubr.bf16.gmra.mxu0 %v10097
    %v10152 = vpop.f32.mrf.mxu0
    %v10153 = vadd.f32 0.0, %v10152
    %v10154 = vpop.f32.mrf.mxu0
    %v10155 = vpop.f32.mrf.mxu0
    %v10156 = vadd.f32 0.0, %v10155
    %v10157 = vpop.f32.mrf.mxu0
    %10158 = vmatprep.mubr.bf16.mxu0 0
    %10159 = vmatmul.mubr.bf16.gmra.mxu0 %v10100
    %v10160 = vpop.f32.mrf.mxu0
    %v10161 = vadd.f32 0.0, %v10160
    %v10162 = vpop.f32.mrf.mxu0
    %v10163 = vpop.f32.mrf.mxu0
    %v10164 = vadd.f32 0.0, %v10163
    %v10165 = vpop.f32.mrf.mxu0
    %10166 = vdwg.mxu0
    %v10167 = vpack.c.bf16 %v10140, %v10137
    %v10168 = vpack.c.bf16 %v10148, %v10145
    %v10169 = vpack.c.bf16 %v10156, %v10153
    %v10170 = vpack.c.bf16 %v10164, %v10161
    %s10171 = scalar_lea.vmem [#allocation27], 192
    %v10172 = vld [vmem:[%s10171] sm:$0xf]
    %v10173 = vld [vmem:[%s10171 + $0x4] sm:$0xf]
    %v10174 = vld [vmem:[%s10171 + $0x8] sm:$0xf]
    %v10175 = vld [vmem:[%s10171 + $0xc] sm:$0xf]
    %v10176 = vld [vmem:[%s10171 + $0x10] sm:$0xf]
    %v10177 = vld [vmem:[%s10171 + $0x14] sm:$0xf]
    %v10178 = vld [vmem:[%s10171 + $0x18] sm:$0xf]
    %v10179 = vld [vmem:[%s10171 + $0x1c] sm:$0xf]
    %v10180 = vld [vmem:[%s10171 + $0x20] sm:$0xf]
    %v10181 = vld [vmem:[%s10171 + $0x24] sm:$0xf]
    %v10182 = vld [vmem:[%s10171 + $0x28] sm:$0xf]
    %v10183 = vld [vmem:[%s10171 + $0x2c] sm:$0xf]
    %v10184 = vld [vmem:[%s10171 + $0x30] sm:$0xf]
    %v10185 = vld [vmem:[%s10171 + $0x34] sm:$0xf]
    %v10186 = vld [vmem:[%s10171 + $0x38] sm:$0xf]
    %v10187 = vld [vmem:[%s10171 + $0x3c] sm:$0xf]
    %v10204 = vunpack.c.l.b16 %v10172
    %v10205 = vunpack.c.l.b16 %v10173
    %v10206 = vunpack.c.l.b16 %v10174
    %v10207 = vunpack.c.l.b16 %v10175
    %v10208 = vunpack.c.l.b16 %v10176
    %v10209 = vunpack.c.l.b16 %v10177
    %v10210 = vunpack.c.l.b16 %v10178
    %v10211 = vunpack.c.l.b16 %v10179
    %v10212 = vunpack.c.l.b16 %v10180
    %v10213 = vunpack.c.l.b16 %v10181
    %v10214 = vunpack.c.l.b16 %v10182
    %v10215 = vunpack.c.l.b16 %v10183
    %v10216 = vunpack.c.l.b16 %v10184
    %v10217 = vunpack.c.l.b16 %v10185
    %v10218 = vunpack.c.l.b16 %v10186
    %v10219 = vunpack.c.l.b16 %v10187
    %v10220 = vpack.c.b16 %v10205, %v10204
    %v10221 = vpack.c.b16 %v10207, %v10206
    %v10222 = vpack.c.b16 %v10209, %v10208
    %v10223 = vpack.c.b16 %v10211, %v10210
    %v10224 = vpack.c.b16 %v10213, %v10212
    %v10225 = vpack.c.b16 %v10215, %v10214
    %v10226 = vpack.c.b16 %v10217, %v10216
    %v10227 = vpack.c.b16 %v10219, %v10218
    %10236 = vmatprep.subr.bf16.mxu0 0
    %10237 = vmatpush1.bf16.msra.mxu0 %v10227
    %10238 = vmatprep.subr.bf16.mxu0 0
    %10239 = vmatpush1.bf16.msra.mxu0 %v10226
    %10240 = vmatprep.subr.bf16.mxu0 0
    %10241 = vmatpush1.bf16.msra.mxu0 %v10225
    %10242 = vmatprep.subr.bf16.mxu0 0
    %10243 = vmatpush1.bf16.msra.mxu0 %v10224
    %10244 = vmatprep.subr.bf16.mxu0 0
    %10245 = vmatpush1.bf16.msra.mxu0 %v10223
    %10246 = vmatprep.subr.bf16.mxu0 0
    %10247 = vmatpush1.bf16.msra.mxu0 %v10222
    %10248 = vmatprep.subr.bf16.mxu0 0
    %10249 = vmatpush1.bf16.msra.mxu0 %v10221
    %10250 = vmatprep.subr.bf16.mxu0 0
    %10251 = vmatpush1.bf16.msra.mxu0 %v10220
    %10252 = vmatprep.subr.bf16.mxu0 0
    %10253 = vmatpush2.bf16.msra.mxu0 0
    %10254 = vmatprep.subr.bf16.mxu0 0
    %10255 = vmatpush2.bf16.msra.mxu0 0
    %10256 = vmatprep.subr.bf16.mxu0 0
    %10257 = vmatpush2.bf16.msra.mxu0 0
    %10258 = vmatprep.subr.bf16.mxu0 0
    %10259 = vmatpush2.bf16.msra.mxu0 0
    %10260 = vmatprep.subr.bf16.mxu0 0
    %10261 = vmatpush2.bf16.msra.mxu0 0
    %10262 = vmatprep.subr.bf16.mxu0 0
    %10263 = vmatpush2.bf16.msra.mxu0 0
    %10264 = vmatprep.subr.bf16.mxu0 0
    %10265 = vmatpush2.bf16.msra.mxu0 0
    %10266 = vmatprep.subr.bf16.mxu0 0
    %10267 = vmatpush2.bf16.msra.mxu0 0
    %10268 = vmatprep.mubr.bf16.mxu0 0
    %10269 = vmatmul.mubr.bf16.gmra.mxu0 %v10167
    %v10270 = vpop.f32.mrf.mxu0
    %v10271 = vadd.f32 0.0, %v10270
    %v10272 = vpop.f32.mrf.mxu0
    %v10273 = vpop.f32.mrf.mxu0
    %v10274 = vadd.f32 0.0, %v10273
    %v10275 = vpop.f32.mrf.mxu0
    %10276 = vmatprep.mubr.bf16.mxu0 0
    %10277 = vmatmul.mubr.bf16.gmra.mxu0 %v10168
    %v10278 = vpop.f32.mrf.mxu0
    %v10279 = vadd.f32 0.0, %v10278
    %v10280 = vpop.f32.mrf.mxu0
    %v10281 = vpop.f32.mrf.mxu0
    %v10282 = vadd.f32 0.0, %v10281
    %v10283 = vpop.f32.mrf.mxu0
    %10284 = vmatprep.mubr.bf16.mxu0 0
    %10285 = vmatmul.mubr.bf16.gmra.mxu0 %v10169
    %v10286 = vpop.f32.mrf.mxu0
    %v10287 = vadd.f32 0.0, %v10286
    %v10288 = vpop.f32.mrf.mxu0
    %v10289 = vpop.f32.mrf.mxu0
    %v10290 = vadd.f32 0.0, %v10289
    %v10291 = vpop.f32.mrf.mxu0
    %10292 = vmatprep.mubr.bf16.mxu0 0
    %10293 = vmatmul.mubr.bf16.gmra.mxu0 %v10170
    %v10294 = vpop.f32.mrf.mxu0
    %v10295 = vadd.f32 0.0, %v10294
    %v10296 = vpop.f32.mrf.mxu0
    %v10297 = vpop.f32.mrf.mxu0
    %v10298 = vadd.f32 0.0, %v10297
    %v10299 = vpop.f32.mrf.mxu0
    %10300 = vdwg.mxu0
    %v10301 = vadd.f32 %v10069, %v10271
    %v10302 = vadd.f32 %v10070, %v10274
    %v10303 = vadd.f32 %v10071, %v10279
    %v10304 = vadd.f32 %v10072, %v10282
    %v10305 = vadd.f32 %v10073, %v10287
    %v10306 = vadd.f32 %v10074, %v10290
    %v10307 = vadd.f32 %v10075, %v10295
    %v10308 = vadd.f32 %v10076, %v10298
    %v10309 = vld [vmem:[#allocation28] sm:$0x1]
    %v10311 = vlaneseq
    %v10312 = vshrl.u32 %v10311, 7
    %v10313 = vsub.s32 0, %v10312
    %v10314 = vrot.slane %v10309, %v10313
    %v10316 = vadd.f32 %v10301, %v10314
    %v10317 = vadd.f32 %v10302, %v10314
    %v10318 = vadd.f32 %v10303, %v10314
    %v10319 = vadd.f32 %v10304, %v10314
    %v10320 = vadd.f32 %v10305, %v10314
    %v10321 = vadd.f32 %v10306, %v10314
    %v10322 = vadd.f32 %v10307, %v10314
    %v10323 = vadd.f32 %v10308, %v10314
    %v10324 = vtanh.pop %v10316
    %v10325 = vtanh.pop %v10317
    %v10326 = vtanh.pop %v10318
    %v10327 = vtanh.pop %v10319
    %v10328 = vtanh.pop %v10320
    %v10329 = vtanh.pop %v10321
    %v10330 = vtanh.pop %v10322
    %v10331 = vtanh.pop %v10323
    %10332 = vst [vmem:[%s59] sm:$0xff] %v10324
    %10333 = vst [vmem:[%s59 + $0x8] sm:$0xff] %v10325
    %10334 = vst [vmem:[%s59 + $0x10] sm:$0xff] %v10326
    %10335 = vst [vmem:[%s59 + $0x18] sm:$0xff] %v10327
    %10336 = vst [vmem:[%s59 + $0x20] sm:$0xff] %v10328
    %10337 = vst [vmem:[%s59 + $0x28] sm:$0xff] %v10329
    %10338 = vst [vmem:[%s59 + $0x30] sm:$0xff] %v10330
    %10339 = vst [vmem:[%s59 + $0x38] sm:$0xff] %v10331
    // Predicated region
    $region178: #{_forward.1} parent=1 // pred_check
      _
    $region179: #{_forward.1} parent=1 // pred_check_branch
      %10341 = sbr.rel (0) target = $region181
    $region180: #{_forward.1} parent=1 // pred_region
      _
    $region181: #{_forward.1} parent=1 // pred_fallthru
      _
    // Predicated region
    $region182: #{_forward.1} parent=1 // pred_check
      _
    $region183: #{_forward.1} parent=1 // pred_check_branch
      %10343 = sbr.rel (0) target = $region185
    $region184: #{_forward.1} parent=1 // pred_region
      _
    $region185: #{_forward.1} parent=1 // pred_fallthru
      _
    // Predicated region
    $region186: #{_forward.1} parent=1 // pred_check
      _
    $region187: #{_forward.1} parent=1 // pred_check_branch
      %10345 = sbr.rel (0) target = $region189
    $region188: #{_forward.1} parent=1 // pred_region
      _
    $region189: #{_forward.1} parent=1 // pred_fallthru
      _
    // Predicated region
    $region190: #{_forward.1} parent=1 // pred_check
      _
    $region191: #{_forward.1} parent=1 // pred_check_branch
      %10347 = sbr.rel (0) target = $region193
    $region192: #{_forward.1} parent=1 // pred_region
      _
    $region193: #{_forward.1} parent=1 // pred_fallthru
      _
    // Predicated region
    $region194: #{_forward.1} parent=1 // pred_check
      _
    $region195: #{_forward.1} parent=1 // pred_check_branch
      %10349 = sbr.rel (0) target = $region197
    $region196: #{_forward.1} parent=1 // pred_region
      _
    $region197: #{_forward.1} parent=1 // pred_fallthru
      _
    // Predicated region
    $region198: #{_forward.1} parent=1 // pred_check
      _
    $region199: #{_forward.1} parent=1 // pred_check_branch
      %10351 = sbr.rel (0) target = $region201
    $region200: #{_forward.1} parent=1 // pred_region
      _
    $region201: #{_forward.1} parent=1 // pred_fallthru
      _
    // Predicated region
    $region202: #{_forward.1} parent=1 // pred_check
      _
    $region203: #{_forward.1} parent=1 // pred_check_branch
      %10353 = sbr.rel (0) target = $region205
    $region204: #{_forward.1} parent=1 // pred_region
      _
    $region205: #{_forward.1} parent=1 // pred_fallthru
      _
    // Predicated region
    $region206: #{_forward.1} parent=1 // pred_check
      _
    $region207: #{_forward.1} parent=1 // pred_check_branch
      %10355 = sbr.rel (0) target = $region209
    $region208: #{_forward.1} parent=1 // pred_region
      _
    $region209: #{_forward.1} parent=1 // pred_fallthru
      _
    %10356 = vsyncpa [#allocation3], 1
    %10357 = vsyncpa [#allocation5], 1
    %10358 = vsyncpa [#allocation8], 1
    %10359 = vsyncpa [#allocation11], 1
    %10360 = vsyncpa [#allocation14], 1
    %10361 = vsyncpa [#allocation17], 1
    %10362 = vsyncpa [#allocation20], 1
    %10363 = vsyncpa [#allocation23], 1
    %10364 = vsyncpa [#allocation26], 1
    %10365 = vsyncpa [#allocation29], 1

</llo_original>
